<compile_context>
chip_gen: v7x
topology: tpu7x:2x2x1
jax: 0.10.0
libtpu: 0.0.40
codegen_flags: <defaults>
</compile_context>

<pallas_src>
import jax
import jax.numpy as jnp
from jax.experimental import pallas as pl
from jax.experimental.pallas import tpu as pltpu

EPS = 1e-5
LANE = 128


def _round_up(x, m):
    return (x + m - 1) // m * m


def _vmem_budget_bytes():
    """Generation-aware VMEM budget: half of physical capacity, capped."""
    try:
        cap = int(getattr(pltpu.get_tpu_info(), "vmem_capacity_bytes", 0) or 0)
        if cap > 0:
            return int(min(cap // 2, 64 << 20))   # v5e/v6e -> 64MB, v7x -> 32MB
    except Exception:
        pass
    return 32 << 20


def _pick_block_rows(ho, wo, cin, cp, budget_bytes):
    """Largest divisor of `ho` whose per-step VMEM footprint fits the budget,
    capped so the grid keeps >= 4 independent row blocks (enough tiles for the
    two v7x TensorCores plus pipelining) whenever the image allows it."""
    hp, wp = ho + 2, wo + 2
    lane_cin = max(_round_up(cin, LANE), LANE)            # VMEM lane padding of the input
    resident = 2 * hp * _round_up(wp, 8) * lane_cin * 2   # dbl-buffered resident image (bf16)
    resident += 2 * 9 * _round_up(cin, 8) * cp * 2        # resident packed weights (bf16)
    avail = max(budget_bytes - resident, 1 << 20)
    per_row = wo * cp * (2 * 2 + 4)                       # dbl-buffered bf16 act block + f32 acc
    per_row += 2 * _round_up(wp, 8) * lane_cin * 2        # a couple of tap slabs in flight
    max_rows = max(int(avail // per_row), 1)
    target = min(max_rows, max(ho // 4, 1))
    tr = 1
    for d in range(1, ho + 1):
        if ho % d == 0 and d <= target:
            tr = d
    return tr


# --------------------------------------------------------------------------
# Kernel: in-kernel im2col (static tap slices of the resident padded image)
# + 9 per-tap MXU matmuls (f32 accumulate) + bf16 activation store
# + per-block BatchNorm partial statistics.
# --------------------------------------------------------------------------
def _conv3x3_stats_kernel(x_ref, w_ref, act_ref, sum_ref, sq_ref):
    # x_ref:   (1, Hp, Wp, Cin)  zero-padded input image (bf16), resident per batch
    # w_ref:   (9, Cin, Cp)      packed 3x3 weights (bf16), resident
    # act_ref: (1, TR, Wo, Cp)   raw conv activations for this row block (bf16)
    # sum_ref / sq_ref: (1, 1, 1, Cp)  per-block channel sum / sum-of-squares (f32)
    _, tr, wo, cp = act_ref.shape
    cin = x_ref.shape[-1]
    r0 = pl.multiple_of(pl.program_id(1) * tr, tr)

    acc = None
    for ky in range(3):
        rows = pl.ds(r0 + ky, tr)
        for kx in range(3):
            # Tap (ky, kx): rows [r0+ky, r0+ky+tr), cols [kx, kx+wo) of the padded image.
            slab = x_ref[0, rows, pl.ds(kx, wo), :]                  # (tr, wo, cin)
            part = jnp.dot(slab.reshape(tr * wo, cin),               # MXU; Mosaic pads K=cin
                           w_ref[3 * ky + kx],                       # (cin, cp)
                           preferred_element_type=jnp.float32)
            acc = part if acc is None else acc + part

    act_ref[...] = acc.reshape(1, tr, wo, cp).astype(act_ref.dtype)
    # BN partials from the exact f32 accumulator, as two separate lane-dense
    # outputs (no concatenate relayout).  Padded output channels are exactly
    # zero (zero weight columns, no bias) and are sliced away afterwards.
    sum_ref[...] = jnp.sum(acc, axis=0).reshape(1, 1, 1, cp)
    sq_ref[...] = jnp.sum(acc * acc, axis=0).reshape(1, 1, 1, cp)


# --------------------------------------------------------------------------
# One layer: (optional 2x nearest upsample) -> Conv3x3 -> BN(train) -> ReLU
# --------------------------------------------------------------------------
def conv_bn_relu(x_nhwc, w_hwio, gamma, beta, *, upsample, out_dtype=jnp.bfloat16):
    n, h, w, cin = x_nhwc.shape
    cout = w_hwio.shape[-1]
    s = 2 if upsample else 1
    ho, wo = h * s, w * s
    hp, wp = ho + 2, wo + 2
    cp = _round_up(cout, LANE)

    # XLA prep (cheap, fuses): nearest 2x replication (layer 1 only), the 1-px
    # zero-pad ring for the 3x3 conv, and the cast to bf16 matmul operands.
    xb = x_nhwc
    if s == 2:
        xb = jnp.repeat(jnp.repeat(xb, 2, axis=1), 2, axis=2)
    xb = jnp.pad(xb, ((0, 0), (1, 1), (1, 1), (0, 0))).astype(jnp.bfloat16)

    wk = jnp.pad(w_hwio.reshape(9, cin, cout),
                 ((0, 0), (0, 0), (0, cp - cout))).astype(jnp.bfloat16)

    budget = _vmem_budget_bytes()
    tr = _pick_block_rows(ho, wo, cin, cp, budget)
    nb = ho // tr

    acts, sums, sqs = pl.pallas_call(
        _conv3x3_stats_kernel,
        out_shape=(
            jax.ShapeDtypeStruct((n, ho, wo, cp), jnp.bfloat16),
            jax.ShapeDtypeStruct((n, nb, 1, cp), jnp.float32),
            jax.ShapeDtypeStruct((n, nb, 1, cp), jnp.float32),
        ),
        grid=(n, nb),
        in_specs=[
            # Whole padded image: resident across the (inner) row-block axis.
            pl.BlockSpec((1, hp, wp, cin), lambda b, r: (b, 0, 0, 0)),
            pl.BlockSpec((9, cin, cp), lambda b, r: (0, 0, 0)),
        ],
        out_specs=(
            pl.BlockSpec((1, tr, wo, cp), lambda b, r: (b, r, 0, 0)),
            pl.BlockSpec((1, 1, 1, cp), lambda b, r: (b, r, 0, 0)),
            pl.BlockSpec((1, 1, 1, cp), lambda b, r: (b, r, 0, 0)),
        ),
        compiler_params=pltpu.CompilerParams(
            dimension_semantics=("parallel", "parallel"),
            vmem_limit_bytes=int(budget),
        ),
        cost_estimate=pl.CostEstimate(
            flops=2 * n * ho * wo * 9 * cin * cp,
            transcendentals=0,
            bytes_accessed=(xb.size * 2 + wk.size * 2
                            + n * ho * wo * cp * 2 + 2 * n * nb * cp * 4),
        ),
    )(xb, wk)

    # Global training-mode BN statistics (tiny XLA reduction over per-block
    # partials), then the affine + ReLU fused by XLA on the bf16 activations.
    # NOTE: var = E[x^2] - E[x]^2 from f32 partial sums is safe here only
    # because the conv bias is dropped (activations are ~zero-mean).
    m = n * ho * wo
    mean = (jnp.sum(sums, axis=(0, 1, 2)) / m)[:cout]
    ex2 = (jnp.sum(sqs, axis=(0, 1, 2)) / m)[:cout]
    var = jnp.maximum(ex2 - mean * mean, 0.0)
    inv_std = jax.lax.rsqrt(var + EPS)

    a = acts[..., :cout].astype(jnp.float32)
    y = jnp.maximum((a - mean) * (inv_std * gamma) + beta, 0.0)
    return y.astype(out_dtype)


# --------------------------------------------------------------------------
# Full module forward (matches Upsampling.forward: NCHW in, NCHW out)
# --------------------------------------------------------------------------
def upsampling_forward(x_nchw, params):
    x = jnp.transpose(x_nchw, (0, 2, 3, 1))                        # NCHW -> NHWC
    x = conv_bn_relu(x, params["w0"], params["g0"], params["bt0"],
                     upsample=True, out_dtype=jnp.bfloat16)        # inter-layer stays bf16
    x = conv_bn_relu(x, params["w1"], params["g1"], params["bt1"],
                     upsample=False, out_dtype=jnp.float32)
    return jnp.transpose(x, (0, 3, 1, 2))                          # NHWC -> NCHW


# --------------------------------------------------------------------------
# Pure-jnp f32 reference (includes the conv bias, which the BN mean cancels)
# --------------------------------------------------------------------------
def reference_forward(x_nchw, params):
    x = jnp.transpose(x_nchw, (0, 2, 3, 1))
    x = jnp.repeat(jnp.repeat(x, 2, axis=1), 2, axis=2)            # nearest 2x
    for w, b, g, bt in ((params["w0"], params["b0"], params["g0"], params["bt0"]),
                        (params["w1"], params["b1"], params["g1"], params["bt1"])):
        n, h, ww, cin = x.shape
        cout = w.shape[-1]
        xp = jnp.pad(x, ((0, 0), (1, 1), (1, 1), (0, 0)))
        cols = [xp[:, dy:dy + h, dx:dx + ww, :] for dy in range(3) for dx in range(3)]
        a = jnp.concatenate(cols, -1).reshape(n * h * ww, 9 * cin) @ w.reshape(9 * cin, cout)
        a = a + b
        mean = a.mean(0)
        var = ((a - mean) ** 2).mean(0)                            # biased (training BN)
        a = (a - mean) * jax.lax.rsqrt(var + EPS) * g + bt
        x = jnp.maximum(a, 0.0).reshape(n, h, ww, cout)
    return jnp.transpose(x, (0, 3, 1, 2))


def init_params(key, in_channels, out_channels):
    """Deterministic synthetic init (PyTorch-like uniform fan-in scaling).
    Conv biases are kept (the module has them) but only the reference uses
    them -- they cancel exactly under training-mode BatchNorm."""
    k0, k1, k2, k3 = jax.random.split(key, 4)
    fan0 = in_channels * 9
    fan1 = out_channels * 9
    return {
        "w0": jax.random.uniform(k0, (3, 3, in_channels, out_channels),
                                 jnp.float32, -1.0, 1.0) / jnp.sqrt(fan0),
        "b0": jax.random.uniform(k1, (out_channels,),
                                 jnp.float32, -1.0, 1.0) / jnp.sqrt(fan0),
        "g0": jnp.ones((out_channels,), jnp.float32),
        "bt0": jnp.zeros((out_channels,), jnp.float32),
        "w1": jax.random.uniform(k2, (3, 3, out_channels, out_channels),
                                 jnp.float32, -1.0, 1.0) / jnp.sqrt(fan1),
        "b1": jax.random.uniform(k3, (out_channels,),
                                 jnp.float32, -1.0, 1.0) / jnp.sqrt(fan1),
        "g1": jnp.ones((out_channels,), jnp.float32),
        "bt1": jnp.zeros((out_channels,), jnp.float32),
    }


if __name__ == "__main__":
    key = jax.random.PRNGKey(0)
    kp, kx = jax.random.split(key)

    N, Cin, Cout, H, W = 2, 4, 8, 16, 16
    params = init_params(kp, Cin, Cout)
    x = jax.random.normal(kx, (N, Cin, H, W), jnp.float32)

    out = jax.block_until_ready(jax.jit(upsampling_forward)(x, params))

    assert out.shape == (N, Cout, 2 * H, 2 * W), out.shape
    assert out.dtype == jnp.float32
    assert bool(jnp.all(out >= 0.0))          # final ReLU

    # Cross-check vs pure-jnp f32 reference (loose tolerance: bf16 matmul
    # operands and bf16 intermediate activations).
    ref = jax.block_until_ready(jax.jit(reference_forward)(x, params))
    max_err = float(jnp.max(jnp.abs(out - ref)))
    assert max_err < 0.2, f"max |err| vs reference = {max_err}"

    print("KERNEL_OK")
</pallas_src>

<mosaic_0001>
module attributes {stable_mosaic.version = 11 : i64} {
  func.func @_conv3x3_stats_kernel(%arg0: i32, %arg1: i32, %arg2: memref<1x34x34x4xbf16, #tpu.memory_space<vmem>>, %arg3: memref<9x4x128xbf16, #tpu.memory_space<vmem>>, %arg4: memref<1x8x32x128xbf16, #tpu.memory_space<vmem>>, %arg5: memref<1x1x1x128xf32, #tpu.memory_space<vmem>>, %arg6: memref<1x1x1x128xf32, #tpu.memory_space<vmem>>) attributes {dimension_semantics = [#tpu.dimension_semantics<parallel>, #tpu.dimension_semantics<parallel>], iteration_bounds = array<i64: 2, 4>, scalar_prefetch = 0 : i64, scratch_operands = 0 : i64, tpu.core_type = #tpu.core_type<tc>, window_params = [{transform_indices = @transform_0, window_bounds = array<i64: 1, 34, 34, 4>}, {pipeline_mode = #tpu.pipeline_mode<synchronous>, transform_indices = @transform_1, window_bounds = array<i64: 9, 4, 128>}, {transform_indices = @transform_2, window_bounds = array<i64: 1, 8, 32, 128>}, {transform_indices = @transform_3, window_bounds = array<i64: 1, 1, 1, 128>}, {transform_indices = @transform_4, window_bounds = array<i64: 1, 1, 1, 128>}]} {
    %c8_i32 = arith.constant 8 : i32
    %0 = arith.muli %arg1, %c8_i32 : i32
    %1 = tpu.assume_multiple %0, 8 : i32
    %c0_i32 = arith.constant 0 : i32
    %2 = arith.addi %1, %c0_i32 : i32
    %c0 = arith.constant 0 : index
    %3 = arith.index_cast %2 : i32 to index
    %c0_0 = arith.constant 0 : index
    %c0_1 = arith.constant 0 : index
    %4 = vector.load %arg2[%c0, %3, %c0_0, %c0_1] : memref<1x34x34x4xbf16, #tpu.memory_space<vmem>>, vector<1x8x32x4xbf16>
    %5 = vector.shape_cast %4 : vector<1x8x32x4xbf16> to vector<8x32x4xbf16>
    %6 = vector.shape_cast %5 : vector<8x32x4xbf16> to vector<256x4xbf16>
    %c0_2 = arith.constant 0 : index
    %c0_3 = arith.constant 0 : index
    %c0_4 = arith.constant 0 : index
    %7 = vector.load %arg3[%c0_2, %c0_3, %c0_4] : memref<9x4x128xbf16, #tpu.memory_space<vmem>>, vector<1x4x128xbf16>
    %8 = vector.shape_cast %7 : vector<1x4x128xbf16> to vector<4x128xbf16>
    %cst = arith.constant dense<0.000000e+00> : vector<256x128xf32>
    %9 = tpu.matmul %6, %8, %cst {dimension_numbers = #tpu.dot_dimension_numbers<[1], [0], [0], [1], [0, 0, 1, 1], [], []>} : vector<256x4xbf16>, vector<4x128xbf16>, vector<256x128xf32> -> vector<256x128xf32>
    %c0_5 = arith.constant 0 : index
    %10 = arith.index_cast %2 : i32 to index
    %c1 = arith.constant 1 : index
    %c0_6 = arith.constant 0 : index
    %11 = vector.load %arg2[%c0_5, %10, %c1, %c0_6] : memref<1x34x34x4xbf16, #tpu.memory_space<vmem>>, vector<1x8x32x4xbf16>
    %12 = vector.shape_cast %11 : vector<1x8x32x4xbf16> to vector<8x32x4xbf16>
    %13 = vector.shape_cast %12 : vector<8x32x4xbf16> to vector<256x4xbf16>
    %c1_7 = arith.constant 1 : index
    %c0_8 = arith.constant 0 : index
    %c0_9 = arith.constant 0 : index
    %14 = vector.load %arg3[%c1_7, %c0_8, %c0_9] : memref<9x4x128xbf16, #tpu.memory_space<vmem>>, vector<1x4x128xbf16>
    %15 = vector.shape_cast %14 : vector<1x4x128xbf16> to vector<4x128xbf16>
    %cst_10 = arith.constant dense<0.000000e+00> : vector<256x128xf32>
    %16 = tpu.matmul %13, %15, %cst_10 {dimension_numbers = #tpu.dot_dimension_numbers<[1], [0], [0], [1], [0, 0, 1, 1], [], []>} : vector<256x4xbf16>, vector<4x128xbf16>, vector<256x128xf32> -> vector<256x128xf32>
    %17 = arith.addf %9, %16 : vector<256x128xf32>
    %c0_11 = arith.constant 0 : index
    %18 = arith.index_cast %2 : i32 to index
    %c2 = arith.constant 2 : index
    %c0_12 = arith.constant 0 : index
    %19 = vector.load %arg2[%c0_11, %18, %c2, %c0_12] : memref<1x34x34x4xbf16, #tpu.memory_space<vmem>>, vector<1x8x32x4xbf16>
    %20 = vector.shape_cast %19 : vector<1x8x32x4xbf16> to vector<8x32x4xbf16>
    %21 = vector.shape_cast %20 : vector<8x32x4xbf16> to vector<256x4xbf16>
    %c2_13 = arith.constant 2 : index
    %c0_14 = arith.constant 0 : index
    %c0_15 = arith.constant 0 : index
    %22 = vector.load %arg3[%c2_13, %c0_14, %c0_15] : memref<9x4x128xbf16, #tpu.memory_space<vmem>>, vector<1x4x128xbf16>
    %23 = vector.shape_cast %22 : vector<1x4x128xbf16> to vector<4x128xbf16>
    %cst_16 = arith.constant dense<0.000000e+00> : vector<256x128xf32>
    %24 = tpu.matmul %21, %23, %cst_16 {dimension_numbers = #tpu.dot_dimension_numbers<[1], [0], [0], [1], [0, 0, 1, 1], [], []>} : vector<256x4xbf16>, vector<4x128xbf16>, vector<256x128xf32> -> vector<256x128xf32>
    %25 = arith.addf %17, %24 : vector<256x128xf32>
    %c1_i32 = arith.constant 1 : i32
    %26 = arith.addi %1, %c1_i32 : i32
    %c0_17 = arith.constant 0 : index
    %27 = arith.index_cast %26 : i32 to index
    %c0_18 = arith.constant 0 : index
    %c0_19 = arith.constant 0 : index
    %28 = vector.load %arg2[%c0_17, %27, %c0_18, %c0_19] : memref<1x34x34x4xbf16, #tpu.memory_space<vmem>>, vector<1x8x32x4xbf16>
    %29 = vector.shape_cast %28 : vector<1x8x32x4xbf16> to vector<8x32x4xbf16>
    %30 = vector.shape_cast %29 : vector<8x32x4xbf16> to vector<256x4xbf16>
    %c3 = arith.constant 3 : index
    %c0_20 = arith.constant 0 : index
    %c0_21 = arith.constant 0 : index
    %31 = vector.load %arg3[%c3, %c0_20, %c0_21] : memref<9x4x128xbf16, #tpu.memory_space<vmem>>, vector<1x4x128xbf16>
    %32 = vector.shape_cast %31 : vector<1x4x128xbf16> to vector<4x128xbf16>
    %cst_22 = arith.constant dense<0.000000e+00> : vector<256x128xf32>
    %33 = tpu.matmul %30, %32, %cst_22 {dimension_numbers = #tpu.dot_dimension_numbers<[1], [0], [0], [1], [0, 0, 1, 1], [], []>} : vector<256x4xbf16>, vector<4x128xbf16>, vector<256x128xf32> -> vector<256x128xf32>
    %34 = arith.addf %25, %33 : vector<256x128xf32>
    %c0_23 = arith.constant 0 : index
    %35 = arith.index_cast %26 : i32 to index
    %c1_24 = arith.constant 1 : index
    %c0_25 = arith.constant 0 : index
    %36 = vector.load %arg2[%c0_23, %35, %c1_24, %c0_25] : memref<1x34x34x4xbf16, #tpu.memory_space<vmem>>, vector<1x8x32x4xbf16>
    %37 = vector.shape_cast %36 : vector<1x8x32x4xbf16> to vector<8x32x4xbf16>
    %38 = vector.shape_cast %37 : vector<8x32x4xbf16> to vector<256x4xbf16>
    %c4 = arith.constant 4 : index
    %c0_26 = arith.constant 0 : index
    %c0_27 = arith.constant 0 : index
    %39 = vector.load %arg3[%c4, %c0_26, %c0_27] : memref<9x4x128xbf16, #tpu.memory_space<vmem>>, vector<1x4x128xbf16>
    %40 = vector.shape_cast %39 : vector<1x4x128xbf16> to vector<4x128xbf16>
    %cst_28 = arith.constant dense<0.000000e+00> : vector<256x128xf32>
    %41 = tpu.matmul %38, %40, %cst_28 {dimension_numbers = #tpu.dot_dimension_numbers<[1], [0], [0], [1], [0, 0, 1, 1], [], []>} : vector<256x4xbf16>, vector<4x128xbf16>, vector<256x128xf32> -> vector<256x128xf32>
    %42 = arith.addf %34, %41 : vector<256x128xf32>
    %c0_29 = arith.constant 0 : index
    %43 = arith.index_cast %26 : i32 to index
    %c2_30 = arith.constant 2 : index
    %c0_31 = arith.constant 0 : index
    %44 = vector.load %arg2[%c0_29, %43, %c2_30, %c0_31] : memref<1x34x34x4xbf16, #tpu.memory_space<vmem>>, vector<1x8x32x4xbf16>
    %45 = vector.shape_cast %44 : vector<1x8x32x4xbf16> to vector<8x32x4xbf16>
    %46 = vector.shape_cast %45 : vector<8x32x4xbf16> to vector<256x4xbf16>
    %c5 = arith.constant 5 : index
    %c0_32 = arith.constant 0 : index
    %c0_33 = arith.constant 0 : index
    %47 = vector.load %arg3[%c5, %c0_32, %c0_33] : memref<9x4x128xbf16, #tpu.memory_space<vmem>>, vector<1x4x128xbf16>
    %48 = vector.shape_cast %47 : vector<1x4x128xbf16> to vector<4x128xbf16>
    %cst_34 = arith.constant dense<0.000000e+00> : vector<256x128xf32>
    %49 = tpu.matmul %46, %48, %cst_34 {dimension_numbers = #tpu.dot_dimension_numbers<[1], [0], [0], [1], [0, 0, 1, 1], [], []>} : vector<256x4xbf16>, vector<4x128xbf16>, vector<256x128xf32> -> vector<256x128xf32>
    %50 = arith.addf %42, %49 : vector<256x128xf32>
    %c2_i32 = arith.constant 2 : i32
    %51 = arith.addi %1, %c2_i32 : i32
    %c0_35 = arith.constant 0 : index
    %52 = arith.index_cast %51 : i32 to index
    %c0_36 = arith.constant 0 : index
    %c0_37 = arith.constant 0 : index
    %53 = vector.load %arg2[%c0_35, %52, %c0_36, %c0_37] : memref<1x34x34x4xbf16, #tpu.memory_space<vmem>>, vector<1x8x32x4xbf16>
    %54 = vector.shape_cast %53 : vector<1x8x32x4xbf16> to vector<8x32x4xbf16>
    %55 = vector.shape_cast %54 : vector<8x32x4xbf16> to vector<256x4xbf16>
    %c6 = arith.constant 6 : index
    %c0_38 = arith.constant 0 : index
    %c0_39 = arith.constant 0 : index
    %56 = vector.load %arg3[%c6, %c0_38, %c0_39] : memref<9x4x128xbf16, #tpu.memory_space<vmem>>, vector<1x4x128xbf16>
    %57 = vector.shape_cast %56 : vector<1x4x128xbf16> to vector<4x128xbf16>
    %cst_40 = arith.constant dense<0.000000e+00> : vector<256x128xf32>
    %58 = tpu.matmul %55, %57, %cst_40 {dimension_numbers = #tpu.dot_dimension_numbers<[1], [0], [0], [1], [0, 0, 1, 1], [], []>} : vector<256x4xbf16>, vector<4x128xbf16>, vector<256x128xf32> -> vector<256x128xf32>
    %59 = arith.addf %50, %58 : vector<256x128xf32>
    %c0_41 = arith.constant 0 : index
    %60 = arith.index_cast %51 : i32 to index
    %c1_42 = arith.constant 1 : index
    %c0_43 = arith.constant 0 : index
    %61 = vector.load %arg2[%c0_41, %60, %c1_42, %c0_43] : memref<1x34x34x4xbf16, #tpu.memory_space<vmem>>, vector<1x8x32x4xbf16>
    %62 = vector.shape_cast %61 : vector<1x8x32x4xbf16> to vector<8x32x4xbf16>
    %63 = vector.shape_cast %62 : vector<8x32x4xbf16> to vector<256x4xbf16>
    %c7 = arith.constant 7 : index
    %c0_44 = arith.constant 0 : index
    %c0_45 = arith.constant 0 : index
    %64 = vector.load %arg3[%c7, %c0_44, %c0_45] : memref<9x4x128xbf16, #tpu.memory_space<vmem>>, vector<1x4x128xbf16>
    %65 = vector.shape_cast %64 : vector<1x4x128xbf16> to vector<4x128xbf16>
    %cst_46 = arith.constant dense<0.000000e+00> : vector<256x128xf32>
    %66 = tpu.matmul %63, %65, %cst_46 {dimension_numbers = #tpu.dot_dimension_numbers<[1], [0], [0], [1], [0, 0, 1, 1], [], []>} : vector<256x4xbf16>, vector<4x128xbf16>, vector<256x128xf32> -> vector<256x128xf32>
    %67 = arith.addf %59, %66 : vector<256x128xf32>
    %c0_47 = arith.constant 0 : index
    %68 = arith.index_cast %51 : i32 to index
    %c2_48 = arith.constant 2 : index
    %c0_49 = arith.constant 0 : index
    %69 = vector.load %arg2[%c0_47, %68, %c2_48, %c0_49] : memref<1x34x34x4xbf16, #tpu.memory_space<vmem>>, vector<1x8x32x4xbf16>
    %70 = vector.shape_cast %69 : vector<1x8x32x4xbf16> to vector<8x32x4xbf16>
    %71 = vector.shape_cast %70 : vector<8x32x4xbf16> to vector<256x4xbf16>
    %c8 = arith.constant 8 : index
    %c0_50 = arith.constant 0 : index
    %c0_51 = arith.constant 0 : index
    %72 = vector.load %arg3[%c8, %c0_50, %c0_51] : memref<9x4x128xbf16, #tpu.memory_space<vmem>>, vector<1x4x128xbf16>
    %73 = vector.shape_cast %72 : vector<1x4x128xbf16> to vector<4x128xbf16>
    %cst_52 = arith.constant dense<0.000000e+00> : vector<256x128xf32>
    %74 = tpu.matmul %71, %73, %cst_52 {dimension_numbers = #tpu.dot_dimension_numbers<[1], [0], [0], [1], [0, 0, 1, 1], [], []>} : vector<256x4xbf16>, vector<4x128xbf16>, vector<256x128xf32> -> vector<256x128xf32>
    %75 = arith.addf %67, %74 : vector<256x128xf32>
    %76 = vector.shape_cast %75 : vector<256x128xf32> to vector<1x8x32x128xf32>
    %77 = arith.truncf %76 : vector<1x8x32x128xf32> to vector<1x8x32x128xbf16>
    %c0_53 = arith.constant 0 : index
    %c0_54 = arith.constant 0 : index
    %c0_55 = arith.constant 0 : index
    %c0_56 = arith.constant 0 : index
    %78 = vector.load %arg4[%c0_53, %c0_54, %c0_55, %c0_56] : memref<1x8x32x128xbf16, #tpu.memory_space<vmem>>, vector<1x8x32x128xbf16>
    tpu.vector_store %arg4[%c0_53, %c0_54, %c0_55, %c0_56], %77 {strides = array<i32>} : memref<1x8x32x128xbf16, #tpu.memory_space<vmem>>, vector<1x8x32x128xbf16>,
    %cst_57 = arith.constant dense<0.000000e+00> : vector<128xf32>
    %79 = vector.multi_reduction <add>, %75, %cst_57 [0] : vector<256x128xf32> to vector<128xf32>
    %80 = vector.shape_cast %79 : vector<128xf32> to vector<1x1x1x128xf32>
    %c0_58 = arith.constant 0 : index
    %c0_59 = arith.constant 0 : index
    %c0_60 = arith.constant 0 : index
    %c0_61 = arith.constant 0 : index
    %81 = vector.load %arg5[%c0_58, %c0_59, %c0_60, %c0_61] : memref<1x1x1x128xf32, #tpu.memory_space<vmem>>, vector<1x1x1x128xf32>
    tpu.vector_store %arg5[%c0_58, %c0_59, %c0_60, %c0_61], %80 {strides = array<i32>} : memref<1x1x1x128xf32, #tpu.memory_space<vmem>>, vector<1x1x1x128xf32>,
    %82 = arith.mulf %75, %75 : vector<256x128xf32>
    %cst_62 = arith.constant dense<0.000000e+00> : vector<128xf32>
    %83 = vector.multi_reduction <add>, %82, %cst_62 [0] : vector<256x128xf32> to vector<128xf32>
    %84 = vector.shape_cast %83 : vector<128xf32> to vector<1x1x1x128xf32>
    %c0_63 = arith.constant 0 : index
    %c0_64 = arith.constant 0 : index
    %c0_65 = arith.constant 0 : index
    %c0_66 = arith.constant 0 : index
    %85 = vector.load %arg6[%c0_63, %c0_64, %c0_65, %c0_66] : memref<1x1x1x128xf32, #tpu.memory_space<vmem>>, vector<1x1x1x128xf32>
    tpu.vector_store %arg6[%c0_63, %c0_64, %c0_65, %c0_66], %84 {strides = array<i32>} : memref<1x1x1x128xf32, #tpu.memory_space<vmem>>, vector<1x1x1x128xf32>,
    return
  }
  func.func @transform_0(%arg0: i32, %arg1: i32) -> (i32, i32, i32, i32) {
    %c0_i32 = arith.constant 0 : i32
    %c0_i32_0 = arith.constant 0 : i32
    %c0_i32_1 = arith.constant 0 : i32
    %c0_i32_2 = arith.constant 0 : i32
    return %arg0, %c0_i32, %c0_i32_0, %c0_i32_1 : i32, i32, i32, i32
  }
  func.func @transform_1(%arg0: i32, %arg1: i32) -> (i32, i32, i32) {
    %c0_i32 = arith.constant 0 : i32
    %c0_i32_0 = arith.constant 0 : i32
    %c0_i32_1 = arith.constant 0 : i32
    %c0_i32_2 = arith.constant 0 : i32
    return %c0_i32, %c0_i32_0, %c0_i32_1 : i32, i32, i32
  }
  func.func @transform_2(%arg0: i32, %arg1: i32) -> (i32, i32, i32, i32) {
    %c0_i32 = arith.constant 0 : i32
    %c0_i32_0 = arith.constant 0 : i32
    %c0_i32_1 = arith.constant 0 : i32
    return %arg0, %arg1, %c0_i32, %c0_i32_0 : i32, i32, i32, i32
  }
  func.func @transform_3(%arg0: i32, %arg1: i32) -> (i32, i32, i32, i32) {
    %c0_i32 = arith.constant 0 : i32
    %c0_i32_0 = arith.constant 0 : i32
    %c0_i32_1 = arith.constant 0 : i32
    return %arg0, %arg1, %c0_i32, %c0_i32_0 : i32, i32, i32, i32
  }
  func.func @transform_4(%arg0: i32, %arg1: i32) -> (i32, i32, i32, i32) {
    %c0_i32 = arith.constant 0 : i32
    %c0_i32_0 = arith.constant 0 : i32
    %c0_i32_1 = arith.constant 0 : i32
    return %arg0, %arg1, %c0_i32, %c0_i32_0 : i32, i32, i32, i32
  }
}

module attributes {stable_mosaic.version = 11 : i64} {
  func.func @_conv3x3_stats_kernel(%arg0: i32, %arg1: i32, %arg2: memref<1x34x34x8xbf16, #tpu.memory_space<vmem>>, %arg3: memref<9x8x128xbf16, #tpu.memory_space<vmem>>, %arg4: memref<1x8x32x128xbf16, #tpu.memory_space<vmem>>, %arg5: memref<1x1x1x128xf32, #tpu.memory_space<vmem>>, %arg6: memref<1x1x1x128xf32, #tpu.memory_space<vmem>>) attributes {dimension_semantics = [#tpu.dimension_semantics<parallel>, #tpu.dimension_semantics<parallel>], iteration_bounds = array<i64: 2, 4>, scalar_prefetch = 0 : i64, scratch_operands = 0 : i64, tpu.core_type = #tpu.core_type<tc>, window_params = [{transform_indices = @transform_0, window_bounds = array<i64: 1, 34, 34, 8>}, {pipeline_mode = #tpu.pipeline_mode<synchronous>, transform_indices = @transform_1, window_bounds = array<i64: 9, 8, 128>}, {transform_indices = @transform_2, window_bounds = array<i64: 1, 8, 32, 128>}, {transform_indices = @transform_3, window_bounds = array<i64: 1, 1, 1, 128>}, {transform_indices = @transform_4, window_bounds = array<i64: 1, 1, 1, 128>}]} {
    %c8_i32 = arith.constant 8 : i32
    %0 = arith.muli %arg1, %c8_i32 : i32
    %1 = tpu.assume_multiple %0, 8 : i32
    %c0_i32 = arith.constant 0 : i32
    %2 = arith.addi %1, %c0_i32 : i32
    %c0 = arith.constant 0 : index
    %3 = arith.index_cast %2 : i32 to index
    %c0_0 = arith.constant 0 : index
    %c0_1 = arith.constant 0 : index
    %4 = vector.load %arg2[%c0, %3, %c0_0, %c0_1] : memref<1x34x34x8xbf16, #tpu.memory_space<vmem>>, vector<1x8x32x8xbf16>
    %5 = vector.shape_cast %4 : vector<1x8x32x8xbf16> to vector<8x32x8xbf16>
    %6 = vector.shape_cast %5 : vector<8x32x8xbf16> to vector<256x8xbf16>
    %c0_2 = arith.constant 0 : index
    %c0_3 = arith.constant 0 : index
    %c0_4 = arith.constant 0 : index
    %7 = vector.load %arg3[%c0_2, %c0_3, %c0_4] : memref<9x8x128xbf16, #tpu.memory_space<vmem>>, vector<1x8x128xbf16>
    %8 = vector.shape_cast %7 : vector<1x8x128xbf16> to vector<8x128xbf16>
    %cst = arith.constant dense<0.000000e+00> : vector<256x128xf32>
    %9 = tpu.matmul %6, %8, %cst {dimension_numbers = #tpu.dot_dimension_numbers<[1], [0], [0], [1], [0, 0, 1, 1], [], []>} : vector<256x8xbf16>, vector<8x128xbf16>, vector<256x128xf32> -> vector<256x128xf32>
    %c0_5 = arith.constant 0 : index
    %10 = arith.index_cast %2 : i32 to index
    %c1 = arith.constant 1 : index
    %c0_6 = arith.constant 0 : index
    %11 = vector.load %arg2[%c0_5, %10, %c1, %c0_6] : memref<1x34x34x8xbf16, #tpu.memory_space<vmem>>, vector<1x8x32x8xbf16>
    %12 = vector.shape_cast %11 : vector<1x8x32x8xbf16> to vector<8x32x8xbf16>
    %13 = vector.shape_cast %12 : vector<8x32x8xbf16> to vector<256x8xbf16>
    %c1_7 = arith.constant 1 : index
    %c0_8 = arith.constant 0 : index
    %c0_9 = arith.constant 0 : index
    %14 = vector.load %arg3[%c1_7, %c0_8, %c0_9] : memref<9x8x128xbf16, #tpu.memory_space<vmem>>, vector<1x8x128xbf16>
    %15 = vector.shape_cast %14 : vector<1x8x128xbf16> to vector<8x128xbf16>
    %cst_10 = arith.constant dense<0.000000e+00> : vector<256x128xf32>
    %16 = tpu.matmul %13, %15, %cst_10 {dimension_numbers = #tpu.dot_dimension_numbers<[1], [0], [0], [1], [0, 0, 1, 1], [], []>} : vector<256x8xbf16>, vector<8x128xbf16>, vector<256x128xf32> -> vector<256x128xf32>
    %17 = arith.addf %9, %16 : vector<256x128xf32>
    %c0_11 = arith.constant 0 : index
    %18 = arith.index_cast %2 : i32 to index
    %c2 = arith.constant 2 : index
    %c0_12 = arith.constant 0 : index
    %19 = vector.load %arg2[%c0_11, %18, %c2, %c0_12] : memref<1x34x34x8xbf16, #tpu.memory_space<vmem>>, vector<1x8x32x8xbf16>
    %20 = vector.shape_cast %19 : vector<1x8x32x8xbf16> to vector<8x32x8xbf16>
    %21 = vector.shape_cast %20 : vector<8x32x8xbf16> to vector<256x8xbf16>
    %c2_13 = arith.constant 2 : index
    %c0_14 = arith.constant 0 : index
    %c0_15 = arith.constant 0 : index
    %22 = vector.load %arg3[%c2_13, %c0_14, %c0_15] : memref<9x8x128xbf16, #tpu.memory_space<vmem>>, vector<1x8x128xbf16>
    %23 = vector.shape_cast %22 : vector<1x8x128xbf16> to vector<8x128xbf16>
    %cst_16 = arith.constant dense<0.000000e+00> : vector<256x128xf32>
    %24 = tpu.matmul %21, %23, %cst_16 {dimension_numbers = #tpu.dot_dimension_numbers<[1], [0], [0], [1], [0, 0, 1, 1], [], []>} : vector<256x8xbf16>, vector<8x128xbf16>, vector<256x128xf32> -> vector<256x128xf32>
    %25 = arith.addf %17, %24 : vector<256x128xf32>
    %c1_i32 = arith.constant 1 : i32
    %26 = arith.addi %1, %c1_i32 : i32
    %c0_17 = arith.constant 0 : index
    %27 = arith.index_cast %26 : i32 to index
    %c0_18 = arith.constant 0 : index
    %c0_19 = arith.constant 0 : index
    %28 = vector.load %arg2[%c0_17, %27, %c0_18, %c0_19] : memref<1x34x34x8xbf16, #tpu.memory_space<vmem>>, vector<1x8x32x8xbf16>
    %29 = vector.shape_cast %28 : vector<1x8x32x8xbf16> to vector<8x32x8xbf16>
    %30 = vector.shape_cast %29 : vector<8x32x8xbf16> to vector<256x8xbf16>
    %c3 = arith.constant 3 : index
    %c0_20 = arith.constant 0 : index
    %c0_21 = arith.constant 0 : index
    %31 = vector.load %arg3[%c3, %c0_20, %c0_21] : memref<9x8x128xbf16, #tpu.memory_space<vmem>>, vector<1x8x128xbf16>
    %32 = vector.shape_cast %31 : vector<1x8x128xbf16> to vector<8x128xbf16>
    %cst_22 = arith.constant dense<0.000000e+00> : vector<256x128xf32>
    %33 = tpu.matmul %30, %32, %cst_22 {dimension_numbers = #tpu.dot_dimension_numbers<[1], [0], [0], [1], [0, 0, 1, 1], [], []>} : vector<256x8xbf16>, vector<8x128xbf16>, vector<256x128xf32> -> vector<256x128xf32>
    %34 = arith.addf %25, %33 : vector<256x128xf32>
    %c0_23 = arith.constant 0 : index
    %35 = arith.index_cast %26 : i32 to index
    %c1_24 = arith.constant 1 : index
    %c0_25 = arith.constant 0 : index
    %36 = vector.load %arg2[%c0_23, %35, %c1_24, %c0_25] : memref<1x34x34x8xbf16, #tpu.memory_space<vmem>>, vector<1x8x32x8xbf16>
    %37 = vector.shape_cast %36 : vector<1x8x32x8xbf16> to vector<8x32x8xbf16>
    %38 = vector.shape_cast %37 : vector<8x32x8xbf16> to vector<256x8xbf16>
    %c4 = arith.constant 4 : index
    %c0_26 = arith.constant 0 : index
    %c0_27 = arith.constant 0 : index
    %39 = vector.load %arg3[%c4, %c0_26, %c0_27] : memref<9x8x128xbf16, #tpu.memory_space<vmem>>, vector<1x8x128xbf16>
    %40 = vector.shape_cast %39 : vector<1x8x128xbf16> to vector<8x128xbf16>
    %cst_28 = arith.constant dense<0.000000e+00> : vector<256x128xf32>
    %41 = tpu.matmul %38, %40, %cst_28 {dimension_numbers = #tpu.dot_dimension_numbers<[1], [0], [0], [1], [0, 0, 1, 1], [], []>} : vector<256x8xbf16>, vector<8x128xbf16>, vector<256x128xf32> -> vector<256x128xf32>
    %42 = arith.addf %34, %41 : vector<256x128xf32>
    %c0_29 = arith.constant 0 : index
    %43 = arith.index_cast %26 : i32 to index
    %c2_30 = arith.constant 2 : index
    %c0_31 = arith.constant 0 : index
    %44 = vector.load %arg2[%c0_29, %43, %c2_30, %c0_31] : memref<1x34x34x8xbf16, #tpu.memory_space<vmem>>, vector<1x8x32x8xbf16>
    %45 = vector.shape_cast %44 : vector<1x8x32x8xbf16> to vector<8x32x8xbf16>
    %46 = vector.shape_cast %45 : vector<8x32x8xbf16> to vector<256x8xbf16>
    %c5 = arith.constant 5 : index
    %c0_32 = arith.constant 0 : index
    %c0_33 = arith.constant 0 : index
    %47 = vector.load %arg3[%c5, %c0_32, %c0_33] : memref<9x8x128xbf16, #tpu.memory_space<vmem>>, vector<1x8x128xbf16>
    %48 = vector.shape_cast %47 : vector<1x8x128xbf16> to vector<8x128xbf16>
    %cst_34 = arith.constant dense<0.000000e+00> : vector<256x128xf32>
    %49 = tpu.matmul %46, %48, %cst_34 {dimension_numbers = #tpu.dot_dimension_numbers<[1], [0], [0], [1], [0, 0, 1, 1], [], []>} : vector<256x8xbf16>, vector<8x128xbf16>, vector<256x128xf32> -> vector<256x128xf32>
    %50 = arith.addf %42, %49 : vector<256x128xf32>
    %c2_i32 = arith.constant 2 : i32
    %51 = arith.addi %1, %c2_i32 : i32
    %c0_35 = arith.constant 0 : index
    %52 = arith.index_cast %51 : i32 to index
    %c0_36 = arith.constant 0 : index
    %c0_37 = arith.constant 0 : index
    %53 = vector.load %arg2[%c0_35, %52, %c0_36, %c0_37] : memref<1x34x34x8xbf16, #tpu.memory_space<vmem>>, vector<1x8x32x8xbf16>
    %54 = vector.shape_cast %53 : vector<1x8x32x8xbf16> to vector<8x32x8xbf16>
    %55 = vector.shape_cast %54 : vector<8x32x8xbf16> to vector<256x8xbf16>
    %c6 = arith.constant 6 : index
    %c0_38 = arith.constant 0 : index
    %c0_39 = arith.constant 0 : index
    %56 = vector.load %arg3[%c6, %c0_38, %c0_39] : memref<9x8x128xbf16, #tpu.memory_space<vmem>>, vector<1x8x128xbf16>
    %57 = vector.shape_cast %56 : vector<1x8x128xbf16> to vector<8x128xbf16>
    %cst_40 = arith.constant dense<0.000000e+00> : vector<256x128xf32>
    %58 = tpu.matmul %55, %57, %cst_40 {dimension_numbers = #tpu.dot_dimension_numbers<[1], [0], [0], [1], [0, 0, 1, 1], [], []>} : vector<256x8xbf16>, vector<8x128xbf16>, vector<256x128xf32> -> vector<256x128xf32>
    %59 = arith.addf %50, %58 : vector<256x128xf32>
    %c0_41 = arith.constant 0 : index
    %60 = arith.index_cast %51 : i32 to index
    %c1_42 = arith.constant 1 : index
    %c0_43 = arith.constant 0 : index
    %61 = vector.load %arg2[%c0_41, %60, %c1_42, %c0_43] : memref<1x34x34x8xbf16, #tpu.memory_space<vmem>>, vector<1x8x32x8xbf16>
    %62 = vector.shape_cast %61 : vector<1x8x32x8xbf16> to vector<8x32x8xbf16>
    %63 = vector.shape_cast %62 : vector<8x32x8xbf16> to vector<256x8xbf16>
    %c7 = arith.constant 7 : index
    %c0_44 = arith.constant 0 : index
    %c0_45 = arith.constant 0 : index
    %64 = vector.load %arg3[%c7, %c0_44, %c0_45] : memref<9x8x128xbf16, #tpu.memory_space<vmem>>, vector<1x8x128xbf16>
    %65 = vector.shape_cast %64 : vector<1x8x128xbf16> to vector<8x128xbf16>
    %cst_46 = arith.constant dense<0.000000e+00> : vector<256x128xf32>
    %66 = tpu.matmul %63, %65, %cst_46 {dimension_numbers = #tpu.dot_dimension_numbers<[1], [0], [0], [1], [0, 0, 1, 1], [], []>} : vector<256x8xbf16>, vector<8x128xbf16>, vector<256x128xf32> -> vector<256x128xf32>
    %67 = arith.addf %59, %66 : vector<256x128xf32>
    %c0_47 = arith.constant 0 : index
    %68 = arith.index_cast %51 : i32 to index
    %c2_48 = arith.constant 2 : index
    %c0_49 = arith.constant 0 : index
    %69 = vector.load %arg2[%c0_47, %68, %c2_48, %c0_49] : memref<1x34x34x8xbf16, #tpu.memory_space<vmem>>, vector<1x8x32x8xbf16>
    %70 = vector.shape_cast %69 : vector<1x8x32x8xbf16> to vector<8x32x8xbf16>
    %71 = vector.shape_cast %70 : vector<8x32x8xbf16> to vector<256x8xbf16>
    %c8 = arith.constant 8 : index
    %c0_50 = arith.constant 0 : index
    %c0_51 = arith.constant 0 : index
    %72 = vector.load %arg3[%c8, %c0_50, %c0_51] : memref<9x8x128xbf16, #tpu.memory_space<vmem>>, vector<1x8x128xbf16>
    %73 = vector.shape_cast %72 : vector<1x8x128xbf16> to vector<8x128xbf16>
    %cst_52 = arith.constant dense<0.000000e+00> : vector<256x128xf32>
    %74 = tpu.matmul %71, %73, %cst_52 {dimension_numbers = #tpu.dot_dimension_numbers<[1], [0], [0], [1], [0, 0, 1, 1], [], []>} : vector<256x8xbf16>, vector<8x128xbf16>, vector<256x128xf32> -> vector<256x128xf32>
    %75 = arith.addf %67, %74 : vector<256x128xf32>
    %76 = vector.shape_cast %75 : vector<256x128xf32> to vector<1x8x32x128xf32>
    %77 = arith.truncf %76 : vector<1x8x32x128xf32> to vector<1x8x32x128xbf16>
    %c0_53 = arith.constant 0 : index
    %c0_54 = arith.constant 0 : index
    %c0_55 = arith.constant 0 : index
    %c0_56 = arith.constant 0 : index
    %78 = vector.load %arg4[%c0_53, %c0_54, %c0_55, %c0_56] : memref<1x8x32x128xbf16, #tpu.memory_space<vmem>>, vector<1x8x32x128xbf16>
    tpu.vector_store %arg4[%c0_53, %c0_54, %c0_55, %c0_56], %77 {strides = array<i32>} : memref<1x8x32x128xbf16, #tpu.memory_space<vmem>>, vector<1x8x32x128xbf16>,
    %cst_57 = arith.constant dense<0.000000e+00> : vector<128xf32>
    %79 = vector.multi_reduction <add>, %75, %cst_57 [0] : vector<256x128xf32> to vector<128xf32>
    %80 = vector.shape_cast %79 : vector<128xf32> to vector<1x1x1x128xf32>
    %c0_58 = arith.constant 0 : index
    %c0_59 = arith.constant 0 : index
    %c0_60 = arith.constant 0 : index
    %c0_61 = arith.constant 0 : index
    %81 = vector.load %arg5[%c0_58, %c0_59, %c0_60, %c0_61] : memref<1x1x1x128xf32, #tpu.memory_space<vmem>>, vector<1x1x1x128xf32>
    tpu.vector_store %arg5[%c0_58, %c0_59, %c0_60, %c0_61], %80 {strides = array<i32>} : memref<1x1x1x128xf32, #tpu.memory_space<vmem>>, vector<1x1x1x128xf32>,
    %82 = arith.mulf %75, %75 : vector<256x128xf32>
    %cst_62 = arith.constant dense<0.000000e+00> : vector<128xf32>
    %83 = vector.multi_reduction <add>, %82, %cst_62 [0] : vector<256x128xf32> to vector<128xf32>
    %84 = vector.shape_cast %83 : vector<128xf32> to vector<1x1x1x128xf32>
    %c0_63 = arith.constant 0 : index
    %c0_64 = arith.constant 0 : index
    %c0_65 = arith.constant 0 : index
    %c0_66 = arith.constant 0 : index
    %85 = vector.load %arg6[%c0_63, %c0_64, %c0_65, %c0_66] : memref<1x1x1x128xf32, #tpu.memory_space<vmem>>, vector<1x1x1x128xf32>
    tpu.vector_store %arg6[%c0_63, %c0_64, %c0_65, %c0_66], %84 {strides = array<i32>} : memref<1x1x1x128xf32, #tpu.memory_space<vmem>>, vector<1x1x1x128xf32>,
    return
  }
  func.func @transform_0(%arg0: i32, %arg1: i32) -> (i32, i32, i32, i32) {
    %c0_i32 = arith.constant 0 : i32
    %c0_i32_0 = arith.constant 0 : i32
    %c0_i32_1 = arith.constant 0 : i32
    %c0_i32_2 = arith.constant 0 : i32
    return %arg0, %c0_i32, %c0_i32_0, %c0_i32_1 : i32, i32, i32, i32
  }
  func.func @transform_1(%arg0: i32, %arg1: i32) -> (i32, i32, i32) {
    %c0_i32 = arith.constant 0 : i32
    %c0_i32_0 = arith.constant 0 : i32
    %c0_i32_1 = arith.constant 0 : i32
    %c0_i32_2 = arith.constant 0 : i32
    return %c0_i32, %c0_i32_0, %c0_i32_1 : i32, i32, i32
  }
  func.func @transform_2(%arg0: i32, %arg1: i32) -> (i32, i32, i32, i32) {
    %c0_i32 = arith.constant 0 : i32
    %c0_i32_0 = arith.constant 0 : i32
    %c0_i32_1 = arith.constant 0 : i32
    return %arg0, %arg1, %c0_i32, %c0_i32_0 : i32, i32, i32, i32
  }
  func.func @transform_3(%arg0: i32, %arg1: i32) -> (i32, i32, i32, i32) {
    %c0_i32 = arith.constant 0 : i32
    %c0_i32_0 = arith.constant 0 : i32
    %c0_i32_1 = arith.constant 0 : i32
    return %arg0, %arg1, %c0_i32, %c0_i32_0 : i32, i32, i32, i32
  }
  func.func @transform_4(%arg0: i32, %arg1: i32) -> (i32, i32, i32, i32) {
    %c0_i32 = arith.constant 0 : i32
    %c0_i32_0 = arith.constant 0 : i32
    %c0_i32_1 = arith.constant 0 : i32
    return %arg0, %arg1, %c0_i32, %c0_i32_0 : i32, i32, i32, i32
  }
}

</mosaic_0001>

<llo_original>
// kernel: upsampling_forward.2
$region0: #{upsampling_forward.2}
  #allocation0 [shape = 'u32[]', space=smem, size = 0x4, offset = 0x4, fixed_abs, tag = 'smem constant byte address 0x4 - core index']
  #allocation1 [shape = 'u32[144,128]{1,0:T(1,128)}', space=vmem, size = 0x12000, scoped, tag = 'internal scratch']
  %s0 = inlined_call_operand.vmem [shape: bf16[2,34,34,4], index: 0, kind: input, shape index: {}]
  %s1 = inlined_call_operand.vmem [shape: bf16[9,4,128], index: 1, kind: input, shape index: {}]
  %s2 = inlined_call_operand.vmem [shape: bf16[2,32,32,128], index: 2, kind: output, shape index: {0}]
  %s3 = inlined_call_operand.vmem [shape: f32[2,4,1,128], index: 3, kind: output, shape index: {1}]
  %s4 = inlined_call_operand.vmem [shape: f32[2,4,1,128], index: 4, kind: output, shape index: {2}]
  %5 = xla_tuple %s2, %s3, %s4
  %s6 = sld [smem:[#allocation0]]
  $region57: #{upsampling_forward.2} parent=0
    _
  %s8 = ssub.s32 1, %s6
  %s9 = scalar_select 0, %s8, %s6
  loop: start=0, step=1, limit=10
  $region2: #{upsampling_forward.2} parent=0 // loop_pre_header
    _
  $region3: #{upsampling_forward.2} parent=0 // loop_header
    %s11 = sphi 0, %s15
    %p12 = scmp.ge.s32.totalorder %s11, 10
    %s18 = sphi 0, %s30
    %s19 = sphi 0, %s26
    %s20 = sphi 0, %s18
    %s21 = sphi 0, %s19
    %s22 = sphi 0, %s20
    %s23 = sphi 0, %s21
    %s33 = sphi 0, %s35
    %s36 = sphi 0, %s33
    %s37 = sphi 0, %s36
    %s53 = sphi 0, %s37
    %s57 = sphi 0, %s57
    %s59 = sphi 0, %s57
    %s60 = sphi 0, %s59
    %s74 = sphi 0, %s60
    %s82 = sphi 0, %s84
    %s85 = sphi 0, %s82
    %s86 = sphi 0, %s85
    %s102 = sphi 0, %s86
    %s110 = sphi 0, %s112
    %s113 = sphi 0, %s110
    %s114 = sphi 0, %s113
    %s130 = sphi 0, %s114
    %s138 = sphi 0, %s140
    %s141 = sphi 0, %s138
    %s142 = sphi 0, %s141
    %s158 = sphi 0, %s142
  $region4: #{upsampling_forward.2} parent=0 // loop_header_branch
    %14 = sbr.rel (%p12) target = $region8
  $region5: #{upsampling_forward.2} parent=0 // loop_body
    %s16 = ssub.s32 %s11, 1
    %s17 = ssub.s32 %s11, 2
    %s24 = sadd.s32 1, %s19
    %p25 = scmp.ge.s32.totalorder %s24, 4
    %s26 = scalar_select %p25, 0, %s24
    %s27 = sadd.s32 1, %s18
    %s28 = scalar_select %p25, %s27, %s18
    %p29 = scmp.ge.s32.totalorder %s28, 2
    %s30 = scalar_select %p29, 0, %s28
    %s31 = ssub.s32 %s18, %s30
    %p32 = scmp.eq.s32.totalorder %s31, 0
    %s34 = sadd.s32 %s33, 1
    %s35 = scalar_select %p32, %s33, %s34
    %p38 = pneg %p32
    %p39 = scmp.eq.s32.totalorder %s11, 7
    %p40 = por %p38, %p39
    %p41 = scmp.ne.s32.totalorder %s33, %s36
    %p42 = scmp.eq.s32.totalorder %s11, 0
    %p43 = por %p41, %p42
    %p44 = scmp.ne.s32.totalorder %s33, %s36
    %p45 = scmp.eq.s32.totalorder %s16, 7
    %p46 = por %p44, %p45
    %p47 = scmp.ne.s32.totalorder %s36, %s37
    %p48 = scmp.eq.s32.totalorder %s16, 0
    %p49 = por %p47, %p48
    %p50 = scmp.ne.s32.totalorder %s36, %s37
    %p51 = scmp.eq.s32.totalorder %s17, 7
    %p52 = por %p50, %p51
    %p54 = scmp.ne.s32.totalorder %s37, %s53
    %p55 = scmp.eq.s32.totalorder %s17, 0
    %p56 = por %p54, %p55
    %s58 = sadd.s32 %s57, 1
    %p61 = scmp.eq.s32.totalorder %s11, 7
    %p62 = scmp.ne.s32.totalorder %s57, %s59
    %p63 = scmp.eq.s32.totalorder %s11, 0
    %p64 = por %p62, %p63
    %p65 = scmp.ne.s32.totalorder %s57, %s59
    %p66 = scmp.eq.s32.totalorder %s16, 7
    %p67 = por %p65, %p66
    %p68 = scmp.ne.s32.totalorder %s59, %s60
    %p69 = scmp.eq.s32.totalorder %s16, 0
    %p70 = por %p68, %p69
    %p71 = scmp.ne.s32.totalorder %s59, %s60
    %p72 = scmp.eq.s32.totalorder %s17, 7
    %p73 = por %p71, %p72
    %p75 = scmp.ne.s32.totalorder %s60, %s74
    %p76 = scmp.eq.s32.totalorder %s17, 0
    %p77 = por %p75, %p76
    %s78 = ssub.s32 %s18, %s30
    %s79 = ssub.s32 %s19, %s26
    %s80 = sor.u32 %s78, %s79
    %p81 = scmp.eq.s32.totalorder %s80, 0
    %s83 = sadd.s32 %s82, 1
    %s84 = scalar_select %p81, %s82, %s83
    %p87 = pneg %p81
    %p88 = scmp.eq.s32.totalorder %s11, 7
    %p89 = por %p87, %p88
    %p90 = scmp.ne.s32.totalorder %s82, %s85
    %p91 = scmp.eq.s32.totalorder %s11, 0
    %p92 = por %p90, %p91
    %p93 = scmp.ne.s32.totalorder %s82, %s85
    %p94 = scmp.eq.s32.totalorder %s16, 7
    %p95 = por %p93, %p94
    %p96 = scmp.ne.s32.totalorder %s85, %s86
    %p97 = scmp.eq.s32.totalorder %s16, 0
    %p98 = por %p96, %p97
    %p99 = scmp.ne.s32.totalorder %s85, %s86
    %p100 = scmp.eq.s32.totalorder %s17, 7
    %p101 = por %p99, %p100
    %p103 = scmp.ne.s32.totalorder %s86, %s102
    %p104 = scmp.eq.s32.totalorder %s17, 0
    %p105 = por %p103, %p104
    %s106 = ssub.s32 %s18, %s30
    %s107 = ssub.s32 %s19, %s26
    %s108 = sor.u32 %s106, %s107
    %p109 = scmp.eq.s32.totalorder %s108, 0
    %s111 = sadd.s32 %s110, 1
    %s112 = scalar_select %p109, %s110, %s111
    %p115 = pneg %p109
    %p116 = scmp.eq.s32.totalorder %s11, 7
    %p117 = por %p115, %p116
    %p118 = scmp.ne.s32.totalorder %s110, %s113
    %p119 = scmp.eq.s32.totalorder %s11, 0
    %p120 = por %p118, %p119
    %p121 = scmp.ne.s32.totalorder %s110, %s113
    %p122 = scmp.eq.s32.totalorder %s16, 7
    %p123 = por %p121, %p122
    %p124 = scmp.ne.s32.totalorder %s113, %s114
    %p125 = scmp.eq.s32.totalorder %s16, 0
    %p126 = por %p124, %p125
    %p127 = scmp.ne.s32.totalorder %s113, %s114
    %p128 = scmp.eq.s32.totalorder %s17, 7
    %p129 = por %p127, %p128
    %p131 = scmp.ne.s32.totalorder %s114, %s130
    %p132 = scmp.eq.s32.totalorder %s17, 0
    %p133 = por %p131, %p132
    %s134 = ssub.s32 %s18, %s30
    %s135 = ssub.s32 %s19, %s26
    %s136 = sor.u32 %s134, %s135
    %p137 = scmp.eq.s32.totalorder %s136, 0
    %s139 = sadd.s32 %s138, 1
    %s140 = scalar_select %p137, %s138, %s139
    %p143 = pneg %p137
    %p144 = scmp.eq.s32.totalorder %s11, 7
    %p145 = por %p143, %p144
    %p146 = scmp.ne.s32.totalorder %s138, %s141
    %p147 = scmp.eq.s32.totalorder %s11, 0
    %p148 = por %p146, %p147
    %p149 = scmp.ne.s32.totalorder %s138, %s141
    %p150 = scmp.eq.s32.totalorder %s16, 7
    %p151 = por %p149, %p150
    %p152 = scmp.ne.s32.totalorder %s141, %s142
    %p153 = scmp.eq.s32.totalorder %s16, 0
    %p154 = por %p152, %p153
    %p155 = scmp.ne.s32.totalorder %s141, %s142
    %p156 = scmp.eq.s32.totalorder %s17, 7
    %p157 = por %p155, %p156
    %p159 = scmp.ne.s32.totalorder %s142, %s158
    %p160 = scmp.eq.s32.totalorder %s17, 0
    %p161 = por %p159, %p160
    %p162 = scmp.le.s32.totalorder 1, %s11
    %p163 = scmp.lt.s32.totalorder %s11, 9
    %p164 = pnand %p162, %p163
    %p165 = pneg %p164
    // Predicated region
    $region9: #{upsampling_forward.2} parent=5 // pred_check
      _
    $region10: #{upsampling_forward.2} parent=5 // pred_check_branch
      %167 = sbr.rel (%p164) target = $region12
    $region11: #{upsampling_forward.2} parent=5 // pred_region
      %s168 = ssub.s32 %s11, 1
      // Predicated region
      $region13: #{upsampling_forward.2} parent=11 // pred_check
        %p169 = pneg %p70
      $region14: #{upsampling_forward.2} parent=11 // pred_check_branch
        %171 = sbr.rel (%p169) target = $region16
      $region15: #{upsampling_forward.2} parent=11 // pred_region
        _
      $region16: #{upsampling_forward.2} parent=11 // pred_fallthru
        _
    $region12: #{upsampling_forward.2} parent=5 // pred_fallthru
      _
    %p172 = scmp.lt.s32.totalorder %s11, 8
    // Predicated region
    $region17: #{upsampling_forward.2} parent=5 // pred_check
      %p173 = pneg %p172
    $region18: #{upsampling_forward.2} parent=5 // pred_check_branch
      %175 = sbr.rel (%p173) target = $region20
    $region19: #{upsampling_forward.2} parent=5 // pred_region
      // Predicated region
      $region21: #{upsampling_forward.2} parent=19 // pred_check
        %p176 = pneg %p43
      $region22: #{upsampling_forward.2} parent=19 // pred_check_branch
        %178 = sbr.rel (%p176) target = $region24
      $region23: #{upsampling_forward.2} parent=19 // pred_region
        %p179 = scmp.lt.s32.totalorder %s18, 1
        %s180 = scalar_select %p179, %s18, 1
        %s181 = smul.addr %s180, 170
        %s182 = smul.addr %s181, 4
        %s183 = scalar_lea.vmem %s0, %s182
      $region24: #{upsampling_forward.2} parent=19 // pred_fallthru
        _
    $region20: #{upsampling_forward.2} parent=5 // pred_fallthru
      _
    %p184 = scmp.le.s32.totalorder 1, %s11
    %p185 = scmp.lt.s32.totalorder %s11, 9
    %p186 = pnand %p184, %p185
    %p187 = pneg %p186
    // Predicated region
    $region25: #{upsampling_forward.2} parent=5 // pred_check
      _
    $region26: #{upsampling_forward.2} parent=5 // pred_check_branch
      %189 = sbr.rel (%p186) target = $region28
    $region27: #{upsampling_forward.2} parent=5 // pred_region
      %s190 = ssub.s32 %s11, 1
      %p191 = scmp.lt.s32.totalorder %s20, 1
      %s192 = scalar_select %p191, %s20, 1
      %s193 = smul.addr %s192, 170
      %s194 = smul.addr %s193, 4
      %s195 = scalar_lea.vmem %s0, %s194
      %p196 = pneg %p49
      %p197 = pneg %p46
      %p198 = pneg %p70
      %p199 = pneg %p67
      %p200 = pneg %p98
      %p201 = pneg %p95
      %s202 = smul.u32 8, %s21
      %p203 = scmp.lt.s32.totalorder %s20, 1
      %s204 = scalar_select %p203, %s20, 1
      %p205 = scmp.lt.s32.totalorder %s202, 31
      %s206 = scalar_select %p205, %s202, 31
      %s207 = smul.addr %s206, 4
      %s208 = smul.addr %s204, 128
      %s209 = sadd.s32 %s207, %s208
      %s210 = smul.addr %s209, 4
      %s211 = scalar_lea.vmem %s2, %s210
      %p212 = pneg %p126
      %p213 = pneg %p123
      %p214 = scmp.lt.s32.totalorder %s20, 1
      %s215 = scalar_select %p214, %s20, 1
      %p216 = scmp.lt.s32.totalorder %s21, 3
      %s217 = scalar_select %p216, %s21, 3
      %s218 = smul.addr %s215, 4
      %s219 = sadd.s32 %s217, %s218
      %s220 = scalar_lea.vmem %s3, %s219
      %p221 = pneg %p154
      %p222 = pneg %p151
      %p223 = scmp.lt.s32.totalorder %s20, 1
      %s224 = scalar_select %p223, %s20, 1
      %p225 = scmp.lt.s32.totalorder %s21, 3
      %s226 = scalar_select %p225, %s21, 3
      %s227 = smul.addr %s224, 4
      %s228 = sadd.s32 %s226, %s227
      %s229 = scalar_lea.vmem %s4, %s228
      %p230 = scmp.lt.s32.totalorder %s20, 1
      %s231 = scalar_select %p230, %s20, 1
      %s232 = smul.addr %s231, 170
      %s233 = smul.addr %s232, 4
      %s234 = scalar_lea.vmem %s0, %s233
      %s235 = smul.u32 8, %s21
      %p236 = scmp.lt.s32.totalorder %s20, 1
      %s237 = scalar_select %p236, %s20, 1
      %p238 = scmp.lt.s32.totalorder %s235, 31
      %s239 = scalar_select %p238, %s235, 31
      %s240 = smul.addr %s239, 4
      %s241 = smul.addr %s237, 128
      %s242 = sadd.s32 %s240, %s241
      %s243 = smul.addr %s242, 4
      %s244 = scalar_lea.vmem %s2, %s243
      %s245 = smul.u32 8, %s21
      %p246 = scmp.lt.s32.totalorder %s20, 1
      %s247 = scalar_select %p246, %s20, 1
      %p248 = scmp.lt.s32.totalorder %s21, 3
      %s249 = scalar_select %p248, %s21, 3
      %s250 = smul.addr %s247, 4
      %s251 = sadd.s32 %s249, %s250
      %s252 = scalar_lea.vmem %s3, %s251
      %p253 = scmp.lt.s32.totalorder %s20, 1
      %s254 = scalar_select %p253, %s20, 1
      %p255 = scmp.lt.s32.totalorder %s21, 3
      %s256 = scalar_select %p255, %s21, 3
      %s257 = smul.addr %s254, 4
      %s258 = sadd.s32 %s256, %s257
      %s259 = scalar_lea.vmem %s4, %s258
      %s261 = smul.u32 %s21, 8
      %s262 = smul.u32 %s261, 5
      %s263 = smul.addr %s262, 4
      %s264 = scalar_lea.vmem %s234, %s263
      %v265 = vld [vmem:[%s264] sm:$0xf]
      %v266 = vld [vmem:[%s264 + $0x4] sm:$0xf]
      %v267 = vld [vmem:[%s264 + $0x8] sm:$0xf]
      %v268 = vld [vmem:[%s264 + $0xc] sm:$0xf]
      %v269 = vld [vmem:[%s264 + $0x14] sm:$0xf]
      %v270 = vld [vmem:[%s264 + $0x18] sm:$0xf]
      %v271 = vld [vmem:[%s264 + $0x1c] sm:$0xf]
      %v272 = vld [vmem:[%s264 + $0x20] sm:$0xf]
      %v273 = vld [vmem:[%s264 + $0x28] sm:$0xf]
      %v274 = vld [vmem:[%s264 + $0x2c] sm:$0xf]
      %v275 = vld [vmem:[%s264 + $0x30] sm:$0xf]
      %v276 = vld [vmem:[%s264 + $0x34] sm:$0xf]
      %v277 = vld [vmem:[%s264 + $0x3c] sm:$0xf]
      %v278 = vld [vmem:[%s264 + $0x40] sm:$0xf]
      %v279 = vld [vmem:[%s264 + $0x44] sm:$0xf]
      %v280 = vld [vmem:[%s264 + $0x48] sm:$0xf]
      %v281 = vld [vmem:[%s264 + $0x50] sm:$0xf]
      %v282 = vld [vmem:[%s264 + $0x54] sm:$0xf]
      %v283 = vld [vmem:[%s264 + $0x58] sm:$0xf]
      %v284 = vld [vmem:[%s264 + $0x5c] sm:$0xf]
      %v285 = vld [vmem:[%s264 + $0x64] sm:$0xf]
      %v286 = vld [vmem:[%s264 + $0x68] sm:$0xf]
      %v287 = vld [vmem:[%s264 + $0x6c] sm:$0xf]
      %v288 = vld [vmem:[%s264 + $0x70] sm:$0xf]
      %v289 = vld [vmem:[%s264 + $0x78] sm:$0xf]
      %v290 = vld [vmem:[%s264 + $0x7c] sm:$0xf]
      %v291 = vld [vmem:[%s264 + $0x80] sm:$0xf]
      %v292 = vld [vmem:[%s264 + $0x84] sm:$0xf]
      %v293 = vld [vmem:[%s264 + $0x8c] sm:$0xf]
      %v294 = vld [vmem:[%s264 + $0x90] sm:$0xf]
      %v295 = vld [vmem:[%s264 + $0x94] sm:$0xf]
      %v296 = vld [vmem:[%s264 + $0x98] sm:$0xf]
      %v297 = vld [vmem:[%s1] sm:$0x3]
      %v298 = vld [vmem:[%s264 + $0x10] sm:$0x1]
      %v299 = vld [vmem:[%s264 + $0x24] sm:$0x1]
      %v300 = vld [vmem:[%s264 + $0x38] sm:$0x1]
      %v301 = vld [vmem:[%s264 + $0x4c] sm:$0x1]
      %v302 = vld [vmem:[%s264 + $0x60] sm:$0x1]
      %v303 = vld [vmem:[%s264 + $0x74] sm:$0x1]
      %v304 = vld [vmem:[%s264 + $0x88] sm:$0x1]
      %v305 = vld [vmem:[%s264 + $0x9c] sm:$0x1]
      %vm306 = vsmask.f32 3328
      %vm307 = vsmask.f32 7440
      %vm308 = vmor %vm306, %vm307
      %v310 = vshrl.u32 %v265, 16
      %v312 = vrot.slane %v310, 4
      %v313 = vshll.u32 %v265, 16
      %v315 = vrot.slane %v313, 5
      %v316 = vor.u32 %v312, %v315
      %v317 = vrot.slane %v316, 4
      %v319 = vshll.u32 %v266, 16
      %v321 = vrot.slane %v319, 5
      %v322 = vsel %vm308, %v317, %v321
      %v323 = vshrl.u32 %v266, 16
      %v325 = vrot.slane %v323, 4
      %v326 = vor.u32 %v325, %v321
      %v327 = vrot.slane %v326, 4
      %v329 = vshll.u32 %v267, 16
      %v331 = vrot.slane %v329, 5
      %v332 = vsel %vm308, %v327, %v331
      %v333 = vshrl.u32 %v267, 16
      %v335 = vrot.slane %v333, 4
      %v336 = vor.u32 %v335, %v331
      %v337 = vrot.slane %v336, 4
      %v339 = vshll.u32 %v268, 16
      %v341 = vrot.slane %v339, 5
      %v342 = vsel %vm308, %v337, %v341
      %v343 = vshrl.u32 %v268, 16
      %v345 = vrot.slane %v343, 4
      %v346 = vor.u32 %v345, %v341
      %v347 = vrot.slane %v346, 4
      %v349 = vshll.u32 %v298, 16
      %v351 = vrot.slane %v349, 5
      %v352 = vsel %vm308, %v347, %v351
      %v354 = vshrl.u32 %v269, 16
      %v356 = vrot.slane %v354, 4
      %v357 = vshll.u32 %v269, 16
      %v359 = vrot.slane %v357, 5
      %v360 = vor.u32 %v356, %v359
      %v361 = vrot.slane %v360, 4
      %v363 = vshll.u32 %v270, 16
      %v365 = vrot.slane %v363, 5
      %v366 = vsel %vm308, %v361, %v365
      %v367 = vshrl.u32 %v270, 16
      %v369 = vrot.slane %v367, 4
      %v370 = vor.u32 %v369, %v365
      %v371 = vrot.slane %v370, 4
      %v373 = vshll.u32 %v271, 16
      %v375 = vrot.slane %v373, 5
      %v376 = vsel %vm308, %v371, %v375
      %v377 = vshrl.u32 %v271, 16
      %v379 = vrot.slane %v377, 4
      %v380 = vor.u32 %v379, %v375
      %v381 = vrot.slane %v380, 4
      %v383 = vshll.u32 %v272, 16
      %v385 = vrot.slane %v383, 5
      %v386 = vsel %vm308, %v381, %v385
      %v387 = vshrl.u32 %v272, 16
      %v389 = vrot.slane %v387, 4
      %v390 = vor.u32 %v389, %v385
      %v391 = vrot.slane %v390, 4
      %v393 = vshll.u32 %v299, 16
      %v395 = vrot.slane %v393, 5
      %v396 = vsel %vm308, %v391, %v395
      %v398 = vshrl.u32 %v273, 16
      %v400 = vrot.slane %v398, 4
      %v401 = vshll.u32 %v273, 16
      %v403 = vrot.slane %v401, 5
      %v404 = vor.u32 %v400, %v403
      %v405 = vrot.slane %v404, 4
      %v407 = vshll.u32 %v274, 16
      %v409 = vrot.slane %v407, 5
      %v410 = vsel %vm308, %v405, %v409
      %v411 = vshrl.u32 %v274, 16
      %v413 = vrot.slane %v411, 4
      %v414 = vor.u32 %v413, %v409
      %v415 = vrot.slane %v414, 4
      %v417 = vshll.u32 %v275, 16
      %v419 = vrot.slane %v417, 5
      %v420 = vsel %vm308, %v415, %v419
      %v421 = vshrl.u32 %v275, 16
      %v423 = vrot.slane %v421, 4
      %v424 = vor.u32 %v423, %v419
      %v425 = vrot.slane %v424, 4
      %v427 = vshll.u32 %v276, 16
      %v429 = vrot.slane %v427, 5
      %v430 = vsel %vm308, %v425, %v429
      %v431 = vshrl.u32 %v276, 16
      %v433 = vrot.slane %v431, 4
      %v434 = vor.u32 %v433, %v429
      %v435 = vrot.slane %v434, 4
      %v437 = vshll.u32 %v300, 16
      %v439 = vrot.slane %v437, 5
      %v440 = vsel %vm308, %v435, %v439
      %v442 = vshrl.u32 %v277, 16
      %v444 = vrot.slane %v442, 4
      %v445 = vshll.u32 %v277, 16
      %v447 = vrot.slane %v445, 5
      %v448 = vor.u32 %v444, %v447
      %v449 = vrot.slane %v448, 4
      %v451 = vshll.u32 %v278, 16
      %v453 = vrot.slane %v451, 5
      %v454 = vsel %vm308, %v449, %v453
      %v455 = vshrl.u32 %v278, 16
      %v457 = vrot.slane %v455, 4
      %v458 = vor.u32 %v457, %v453
      %v459 = vrot.slane %v458, 4
      %v461 = vshll.u32 %v279, 16
      %v463 = vrot.slane %v461, 5
      %v464 = vsel %vm308, %v459, %v463
      %v465 = vshrl.u32 %v279, 16
      %v467 = vrot.slane %v465, 4
      %v468 = vor.u32 %v467, %v463
      %v469 = vrot.slane %v468, 4
      %v471 = vshll.u32 %v280, 16
      %v473 = vrot.slane %v471, 5
      %v474 = vsel %vm308, %v469, %v473
      %v475 = vshrl.u32 %v280, 16
      %v477 = vrot.slane %v475, 4
      %v478 = vor.u32 %v477, %v473
      %v479 = vrot.slane %v478, 4
      %v481 = vshll.u32 %v301, 16
      %v483 = vrot.slane %v481, 5
      %v484 = vsel %vm308, %v479, %v483
      %v486 = vshrl.u32 %v281, 16
      %v488 = vrot.slane %v486, 4
      %v489 = vshll.u32 %v281, 16
      %v491 = vrot.slane %v489, 5
      %v492 = vor.u32 %v488, %v491
      %v493 = vrot.slane %v492, 4
      %v495 = vshll.u32 %v282, 16
      %v497 = vrot.slane %v495, 5
      %v498 = vsel %vm308, %v493, %v497
      %v499 = vshrl.u32 %v282, 16
      %v501 = vrot.slane %v499, 4
      %v502 = vor.u32 %v501, %v497
      %v503 = vrot.slane %v502, 4
      %v505 = vshll.u32 %v283, 16
      %v507 = vrot.slane %v505, 5
      %v508 = vsel %vm308, %v503, %v507
      %v509 = vshrl.u32 %v283, 16
      %v511 = vrot.slane %v509, 4
      %v512 = vor.u32 %v511, %v507
      %v513 = vrot.slane %v512, 4
      %v515 = vshll.u32 %v284, 16
      %v517 = vrot.slane %v515, 5
      %v518 = vsel %vm308, %v513, %v517
      %v519 = vshrl.u32 %v284, 16
      %v521 = vrot.slane %v519, 4
      %v522 = vor.u32 %v521, %v517
      %v523 = vrot.slane %v522, 4
      %v525 = vshll.u32 %v302, 16
      %v527 = vrot.slane %v525, 5
      %v528 = vsel %vm308, %v523, %v527
      %v530 = vshrl.u32 %v285, 16
      %v532 = vrot.slane %v530, 4
      %v533 = vshll.u32 %v285, 16
      %v535 = vrot.slane %v533, 5
      %v536 = vor.u32 %v532, %v535
      %v537 = vrot.slane %v536, 4
      %v539 = vshll.u32 %v286, 16
      %v541 = vrot.slane %v539, 5
      %v542 = vsel %vm308, %v537, %v541
      %v543 = vshrl.u32 %v286, 16
      %v545 = vrot.slane %v543, 4
      %v546 = vor.u32 %v545, %v541
      %v547 = vrot.slane %v546, 4
      %v549 = vshll.u32 %v287, 16
      %v551 = vrot.slane %v549, 5
      %v552 = vsel %vm308, %v547, %v551
      %v553 = vshrl.u32 %v287, 16
      %v555 = vrot.slane %v553, 4
      %v556 = vor.u32 %v555, %v551
      %v557 = vrot.slane %v556, 4
      %v559 = vshll.u32 %v288, 16
      %v561 = vrot.slane %v559, 5
      %v562 = vsel %vm308, %v557, %v561
      %v563 = vshrl.u32 %v288, 16
      %v565 = vrot.slane %v563, 4
      %v566 = vor.u32 %v565, %v561
      %v567 = vrot.slane %v566, 4
      %v569 = vshll.u32 %v303, 16
      %v571 = vrot.slane %v569, 5
      %v572 = vsel %vm308, %v567, %v571
      %v574 = vshrl.u32 %v289, 16
      %v576 = vrot.slane %v574, 4
      %v577 = vshll.u32 %v289, 16
      %v579 = vrot.slane %v577, 5
      %v580 = vor.u32 %v576, %v579
      %v581 = vrot.slane %v580, 4
      %v583 = vshll.u32 %v290, 16
      %v585 = vrot.slane %v583, 5
      %v586 = vsel %vm308, %v581, %v585
      %v587 = vshrl.u32 %v290, 16
      %v589 = vrot.slane %v587, 4
      %v590 = vor.u32 %v589, %v585
      %v591 = vrot.slane %v590, 4
      %v593 = vshll.u32 %v291, 16
      %v595 = vrot.slane %v593, 5
      %v596 = vsel %vm308, %v591, %v595
      %v597 = vshrl.u32 %v291, 16
      %v599 = vrot.slane %v597, 4
      %v600 = vor.u32 %v599, %v595
      %v601 = vrot.slane %v600, 4
      %v603 = vshll.u32 %v292, 16
      %v605 = vrot.slane %v603, 5
      %v606 = vsel %vm308, %v601, %v605
      %v607 = vshrl.u32 %v292, 16
      %v609 = vrot.slane %v607, 4
      %v610 = vor.u32 %v609, %v605
      %v611 = vrot.slane %v610, 4
      %v613 = vshll.u32 %v304, 16
      %v615 = vrot.slane %v613, 5
      %v616 = vsel %vm308, %v611, %v615
      %v618 = vshrl.u32 %v293, 16
      %v620 = vrot.slane %v618, 4
      %v621 = vshll.u32 %v293, 16
      %v623 = vrot.slane %v621, 5
      %v624 = vor.u32 %v620, %v623
      %v625 = vrot.slane %v624, 4
      %v627 = vshll.u32 %v294, 16
      %v629 = vrot.slane %v627, 5
      %v630 = vsel %vm308, %v625, %v629
      %v631 = vshrl.u32 %v294, 16
      %v633 = vrot.slane %v631, 4
      %v634 = vor.u32 %v633, %v629
      %v635 = vrot.slane %v634, 4
      %v637 = vshll.u32 %v295, 16
      %v639 = vrot.slane %v637, 5
      %v640 = vsel %vm308, %v635, %v639
      %v641 = vshrl.u32 %v295, 16
      %v643 = vrot.slane %v641, 4
      %v644 = vor.u32 %v643, %v639
      %v645 = vrot.slane %v644, 4
      %v647 = vshll.u32 %v296, 16
      %v649 = vrot.slane %v647, 5
      %v650 = vsel %vm308, %v645, %v649
      %v651 = vshrl.u32 %v296, 16
      %v653 = vrot.slane %v651, 4
      %v654 = vor.u32 %v653, %v649
      %v655 = vrot.slane %v654, 4
      %v657 = vshll.u32 %v305, 16
      %v659 = vrot.slane %v657, 5
      %v660 = vsel %vm308, %v655, %v659
      %s661 = scalar_lea.vmem %s1, 2
      %v662 = vld [vmem:[%s661] sm:$0x3]
      %v663 = vunpack.c.l.b16 %v322
      %v664 = vunpack.c.l.b16 %v332
      %v665 = vunpack.c.l.b16 %v342
      %v666 = vunpack.c.l.b16 %v352
      %v667 = vunpack.c.l.b16 %v366
      %v668 = vunpack.c.l.b16 %v376
      %v669 = vunpack.c.l.b16 %v386
      %v670 = vunpack.c.l.b16 %v396
      %v671 = vunpack.c.l.b16 %v410
      %v672 = vunpack.c.l.b16 %v420
      %v673 = vunpack.c.l.b16 %v430
      %v674 = vunpack.c.l.b16 %v440
      %v675 = vunpack.c.l.b16 %v454
      %v676 = vunpack.c.l.b16 %v464
      %v677 = vunpack.c.l.b16 %v474
      %v678 = vunpack.c.l.b16 %v484
      %v679 = vunpack.c.l.b16 %v498
      %v680 = vunpack.c.l.b16 %v508
      %v681 = vunpack.c.l.b16 %v518
      %v682 = vunpack.c.l.b16 %v528
      %v683 = vunpack.c.l.b16 %v542
      %v684 = vunpack.c.l.b16 %v552
      %v685 = vunpack.c.l.b16 %v562
      %v686 = vunpack.c.l.b16 %v572
      %v687 = vunpack.c.l.b16 %v586
      %v688 = vunpack.c.l.b16 %v596
      %v689 = vunpack.c.l.b16 %v606
      %v690 = vunpack.c.l.b16 %v616
      %v691 = vunpack.c.l.b16 %v630
      %v692 = vunpack.c.l.b16 %v640
      %v693 = vunpack.c.l.b16 %v650
      %v694 = vunpack.c.l.b16 %v660
      %v695 = vpack.c.b16 %v664, %v663
      %v696 = vpack.c.b16 %v666, %v665
      %v697 = vpack.c.b16 %v668, %v667
      %v698 = vpack.c.b16 %v670, %v669
      %v699 = vpack.c.b16 %v672, %v671
      %v700 = vpack.c.b16 %v674, %v673
      %v701 = vpack.c.b16 %v676, %v675
      %v702 = vpack.c.b16 %v678, %v677
      %v703 = vpack.c.b16 %v680, %v679
      %v704 = vpack.c.b16 %v682, %v681
      %v705 = vpack.c.b16 %v684, %v683
      %v706 = vpack.c.b16 %v686, %v685
      %v707 = vpack.c.b16 %v688, %v687
      %v708 = vpack.c.b16 %v690, %v689
      %v709 = vpack.c.b16 %v692, %v691
      %v710 = vpack.c.b16 %v694, %v693
      %vm711 = vcmask 31744
      %v713 = vsel %vm711, %v695, 0
      %v716 = vsel %vm711, %v696, 0
      %v719 = vsel %vm711, %v697, 0
      %v722 = vsel %vm711, %v698, 0
      %v725 = vsel %vm711, %v699, 0
      %v728 = vsel %vm711, %v700, 0
      %v731 = vsel %vm711, %v701, 0
      %v734 = vsel %vm711, %v702, 0
      %v737 = vsel %vm711, %v703, 0
      %v740 = vsel %vm711, %v704, 0
      %v743 = vsel %vm711, %v705, 0
      %v746 = vsel %vm711, %v706, 0
      %v749 = vsel %vm711, %v707, 0
      %v752 = vsel %vm711, %v708, 0
      %v755 = vsel %vm711, %v709, 0
      %v758 = vsel %vm711, %v710, 0
      %vm760 = vcmask 1041408
      %v762 = vsel %vm760, %v662, 0
      %764 = vmatprep.subr.bf16.mxu0 0
      %765 = vmatpush1.bf16.msra.mxu0 %v762
      %766 = vmatprep.subr.bf16.mxu0 0
      %767 = vmatpush1.bf16.msra.mxu0 0
      %768 = vmatprep.subr.bf16.mxu0 0
      %769 = vmatpush1.bf16.msra.mxu0 0
      %770 = vmatprep.subr.bf16.mxu0 0
      %771 = vmatpush1.bf16.msra.mxu0 0
      %772 = vmatprep.subr.bf16.mxu0 0
      %773 = vmatpush1.bf16.msra.mxu0 0
      %774 = vmatprep.subr.bf16.mxu0 0
      %775 = vmatpush1.bf16.msra.mxu0 0
      %776 = vmatprep.subr.bf16.mxu0 0
      %777 = vmatpush1.bf16.msra.mxu0 0
      %778 = vmatprep.subr.bf16.mxu0 0
      %779 = vmatpush1.bf16.msra.mxu0 0
      %780 = vmatprep.subr.bf16.mxu0 0
      %781 = vmatpush1.bf16.msra.mxu0 0
      %782 = vmatprep.subr.bf16.mxu0 0
      %783 = vmatpush1.bf16.msra.mxu0 0
      %784 = vmatprep.subr.bf16.mxu0 0
      %785 = vmatpush1.bf16.msra.mxu0 0
      %786 = vmatprep.subr.bf16.mxu0 0
      %787 = vmatpush1.bf16.msra.mxu0 0
      %788 = vmatprep.subr.bf16.mxu0 0
      %789 = vmatpush1.bf16.msra.mxu0 0
      %790 = vmatprep.subr.bf16.mxu0 0
      %791 = vmatpush1.bf16.msra.mxu0 0
      %792 = vmatprep.subr.bf16.mxu0 0
      %793 = vmatpush1.bf16.msra.mxu0 0
      %794 = vmatprep.subr.bf16.mxu0 0
      %795 = vmatpush1.bf16.msra.mxu0 0
      %796 = vmatprep.mubr.bf16.mxu0 0
      %797 = vmatmul.mubr.bf16.gmra.mrb[0].mxu0 %v713
      %v798 = vpop.f32.mrb[0].mxu0
      %v799 = vadd.f32 0.0, %v798
      %v800 = vpop.f32.mrb[0].mxu0
      %v801 = vpop.f32.mrb[0].mxu0
      %v802 = vadd.f32 0.0, %v801
      %v803 = vpop.f32.mrb[0].mxu0
      %804 = vmatprep.mubr.bf16.mxu0 0
      %805 = vmatmul.mubr.bf16.gmra.mrb[0].mxu0 %v716
      %v806 = vpop.f32.mrb[0].mxu0
      %v807 = vadd.f32 0.0, %v806
      %v808 = vpop.f32.mrb[0].mxu0
      %v809 = vpop.f32.mrb[0].mxu0
      %v810 = vadd.f32 0.0, %v809
      %v811 = vpop.f32.mrb[0].mxu0
      %812 = vmatprep.mubr.bf16.mxu0 0
      %813 = vmatmul.mubr.bf16.gmra.mrb[0].mxu0 %v719
      %v814 = vpop.f32.mrb[0].mxu0
      %v815 = vadd.f32 0.0, %v814
      %v816 = vpop.f32.mrb[0].mxu0
      %v817 = vpop.f32.mrb[0].mxu0
      %v818 = vadd.f32 0.0, %v817
      %v819 = vpop.f32.mrb[0].mxu0
      %820 = vmatprep.mubr.bf16.mxu0 0
      %821 = vmatmul.mubr.bf16.gmra.mrb[0].mxu0 %v722
      %v822 = vpop.f32.mrb[0].mxu0
      %v823 = vadd.f32 0.0, %v822
      %v824 = vpop.f32.mrb[0].mxu0
      %v825 = vpop.f32.mrb[0].mxu0
      %v826 = vadd.f32 0.0, %v825
      %v827 = vpop.f32.mrb[0].mxu0
      %828 = vmatprep.mubr.bf16.mxu0 0
      %829 = vmatmul.mubr.bf16.gmra.mrb[0].mxu0 %v725
      %v830 = vpop.f32.mrb[0].mxu0
      %v831 = vadd.f32 0.0, %v830
      %v832 = vpop.f32.mrb[0].mxu0
      %v833 = vpop.f32.mrb[0].mxu0
      %v834 = vadd.f32 0.0, %v833
      %v835 = vpop.f32.mrb[0].mxu0
      %836 = vmatprep.mubr.bf16.mxu0 0
      %837 = vmatmul.mubr.bf16.gmra.mrb[0].mxu0 %v728
      %v838 = vpop.f32.mrb[0].mxu0
      %v839 = vadd.f32 0.0, %v838
      %v840 = vpop.f32.mrb[0].mxu0
      %v841 = vpop.f32.mrb[0].mxu0
      %v842 = vadd.f32 0.0, %v841
      %v843 = vpop.f32.mrb[0].mxu0
      %844 = vmatprep.mubr.bf16.mxu0 0
      %845 = vmatmul.mubr.bf16.gmra.mrb[0].mxu0 %v731
      %v846 = vpop.f32.mrb[0].mxu0
      %v847 = vadd.f32 0.0, %v846
      %v848 = vpop.f32.mrb[0].mxu0
      %v849 = vpop.f32.mrb[0].mxu0
      %v850 = vadd.f32 0.0, %v849
      %v851 = vpop.f32.mrb[0].mxu0
      %852 = vmatprep.mubr.bf16.mxu0 0
      %853 = vmatmul.mubr.bf16.gmra.mrb[0].mxu0 %v734
      %v854 = vpop.f32.mrb[0].mxu0
      %v855 = vadd.f32 0.0, %v854
      %v856 = vpop.f32.mrb[0].mxu0
      %v857 = vpop.f32.mrb[0].mxu0
      %v858 = vadd.f32 0.0, %v857
      %v859 = vpop.f32.mrb[0].mxu0
      %860 = vmatprep.mubr.bf16.mxu0 0
      %861 = vmatmul.mubr.bf16.gmra.mrb[0].mxu0 %v737
      %v862 = vpop.f32.mrb[0].mxu0
      %v863 = vadd.f32 0.0, %v862
      %v864 = vpop.f32.mrb[0].mxu0
      %v865 = vpop.f32.mrb[0].mxu0
      %v866 = vadd.f32 0.0, %v865
      %v867 = vpop.f32.mrb[0].mxu0
      %868 = vmatprep.mubr.bf16.mxu0 0
      %869 = vmatmul.mubr.bf16.gmra.mrb[0].mxu0 %v740
      %v870 = vpop.f32.mrb[0].mxu0
      %v871 = vadd.f32 0.0, %v870
      %v872 = vpop.f32.mrb[0].mxu0
      %v873 = vpop.f32.mrb[0].mxu0
      %v874 = vadd.f32 0.0, %v873
      %v875 = vpop.f32.mrb[0].mxu0
      %876 = vmatprep.mubr.bf16.mxu0 0
      %877 = vmatmul.mubr.bf16.gmra.mrb[0].mxu0 %v743
      %v878 = vpop.f32.mrb[0].mxu0
      %v879 = vadd.f32 0.0, %v878
      %v880 = vpop.f32.mrb[0].mxu0
      %v881 = vpop.f32.mrb[0].mxu0
      %v882 = vadd.f32 0.0, %v881
      %v883 = vpop.f32.mrb[0].mxu0
      %884 = vmatprep.mubr.bf16.mxu0 0
      %885 = vmatmul.mubr.bf16.gmra.mrb[0].mxu0 %v746
      %v886 = vpop.f32.mrb[0].mxu0
      %v887 = vadd.f32 0.0, %v886
      %v888 = vpop.f32.mrb[0].mxu0
      %v889 = vpop.f32.mrb[0].mxu0
      %v890 = vadd.f32 0.0, %v889
      %v891 = vpop.f32.mrb[0].mxu0
      %892 = vmatprep.mubr.bf16.mxu0 0
      %893 = vmatmul.mubr.bf16.gmra.mrb[0].mxu0 %v749
      %v894 = vpop.f32.mrb[0].mxu0
      %v895 = vadd.f32 0.0, %v894
      %v896 = vpop.f32.mrb[0].mxu0
      %v897 = vpop.f32.mrb[0].mxu0
      %v898 = vadd.f32 0.0, %v897
      %v899 = vpop.f32.mrb[0].mxu0
      %900 = vmatprep.mubr.bf16.mxu0 0
      %901 = vmatmul.mubr.bf16.gmra.mrb[0].mxu0 %v752
      %v902 = vpop.f32.mrb[0].mxu0
      %v903 = vadd.f32 0.0, %v902
      %v904 = vpop.f32.mrb[0].mxu0
      %v905 = vpop.f32.mrb[0].mxu0
      %v906 = vadd.f32 0.0, %v905
      %v907 = vpop.f32.mrb[0].mxu0
      %908 = vmatprep.mubr.bf16.mxu0 0
      %909 = vmatmul.mubr.bf16.gmra.mrb[0].mxu0 %v755
      %v910 = vpop.f32.mrb[0].mxu0
      %v911 = vadd.f32 0.0, %v910
      %v912 = vpop.f32.mrb[0].mxu0
      %v913 = vpop.f32.mrb[0].mxu0
      %v914 = vadd.f32 0.0, %v913
      %v915 = vpop.f32.mrb[0].mxu0
      %916 = vmatprep.mubr.bf16.mxu0 0
      %917 = vmatmul.mubr.bf16.gmra.mrb[0].mxu0 %v758
      %v918 = vpop.f32.mrb[0].mxu0
      %v919 = vadd.f32 0.0, %v918
      %v920 = vpop.f32.mrb[0].mxu0
      %v921 = vpop.f32.mrb[0].mxu0
      %v922 = vadd.f32 0.0, %v921
      %v923 = vpop.f32.mrb[0].mxu0
      %924 = vdwg.mxu0
      %v957 = vunpack.c.l.b16 %v265
      %v958 = vunpack.c.l.b16 %v266
      %v959 = vunpack.c.l.b16 %v267
      %v960 = vunpack.c.l.b16 %v268
      %v961 = vunpack.c.l.b16 %v269
      %v962 = vunpack.c.l.b16 %v270
      %v963 = vunpack.c.l.b16 %v271
      %v964 = vunpack.c.l.b16 %v272
      %v965 = vunpack.c.l.b16 %v273
      %v966 = vunpack.c.l.b16 %v274
      %v967 = vunpack.c.l.b16 %v275
      %v968 = vunpack.c.l.b16 %v276
      %v969 = vunpack.c.l.b16 %v277
      %v970 = vunpack.c.l.b16 %v278
      %v971 = vunpack.c.l.b16 %v279
      %v972 = vunpack.c.l.b16 %v280
      %v973 = vunpack.c.l.b16 %v281
      %v974 = vunpack.c.l.b16 %v282
      %v975 = vunpack.c.l.b16 %v283
      %v976 = vunpack.c.l.b16 %v284
      %v977 = vunpack.c.l.b16 %v285
      %v978 = vunpack.c.l.b16 %v286
      %v979 = vunpack.c.l.b16 %v287
      %v980 = vunpack.c.l.b16 %v288
      %v981 = vunpack.c.l.b16 %v289
      %v982 = vunpack.c.l.b16 %v290
      %v983 = vunpack.c.l.b16 %v291
      %v984 = vunpack.c.l.b16 %v292
      %v985 = vunpack.c.l.b16 %v293
      %v986 = vunpack.c.l.b16 %v294
      %v987 = vunpack.c.l.b16 %v295
      %v988 = vunpack.c.l.b16 %v296
      %v989 = vpack.c.b16 %v958, %v957
      %v990 = vpack.c.b16 %v960, %v959
      %v991 = vpack.c.b16 %v962, %v961
      %v992 = vpack.c.b16 %v964, %v963
      %v993 = vpack.c.b16 %v966, %v965
      %v994 = vpack.c.b16 %v968, %v967
      %v995 = vpack.c.b16 %v970, %v969
      %v996 = vpack.c.b16 %v972, %v971
      %v997 = vpack.c.b16 %v974, %v973
      %v998 = vpack.c.b16 %v976, %v975
      %v999 = vpack.c.b16 %v978, %v977
      %v1000 = vpack.c.b16 %v980, %v979
      %v1001 = vpack.c.b16 %v982, %v981
      %v1002 = vpack.c.b16 %v984, %v983
      %v1003 = vpack.c.b16 %v986, %v985
      %v1004 = vpack.c.b16 %v988, %v987
      %v1006 = vsel %vm711, %v989, 0
      %v1009 = vsel %vm711, %v990, 0
      %v1012 = vsel %vm711, %v991, 0
      %v1015 = vsel %vm711, %v992, 0
      %v1018 = vsel %vm711, %v993, 0
      %v1021 = vsel %vm711, %v994, 0
      %v1024 = vsel %vm711, %v995, 0
      %v1027 = vsel %vm711, %v996, 0
      %v1030 = vsel %vm711, %v997, 0
      %v1033 = vsel %vm711, %v998, 0
      %v1036 = vsel %vm711, %v999, 0
      %v1039 = vsel %vm711, %v1000, 0
      %v1042 = vsel %vm711, %v1001, 0
      %v1045 = vsel %vm711, %v1002, 0
      %v1048 = vsel %vm711, %v1003, 0
      %v1051 = vsel %vm711, %v1004, 0
      %v1054 = vsel %vm760, %v297, 0
      %1056 = vmatprep.subr.bf16.mxu0 0
      %1057 = vmatpush1.bf16.msra.mxu0 %v1054
      %1058 = vmatprep.subr.bf16.mxu0 0
      %1059 = vmatpush1.bf16.msra.mxu0 0
      %1060 = vmatprep.subr.bf16.mxu0 0
      %1061 = vmatpush1.bf16.msra.mxu0 0
      %1062 = vmatprep.subr.bf16.mxu0 0
      %1063 = vmatpush1.bf16.msra.mxu0 0
      %1064 = vmatprep.subr.bf16.mxu0 0
      %1065 = vmatpush1.bf16.msra.mxu0 0
      %1066 = vmatprep.subr.bf16.mxu0 0
      %1067 = vmatpush1.bf16.msra.mxu0 0
      %1068 = vmatprep.subr.bf16.mxu0 0
      %1069 = vmatpush1.bf16.msra.mxu0 0
      %1070 = vmatprep.subr.bf16.mxu0 0
      %1071 = vmatpush1.bf16.msra.mxu0 0
      %1072 = vmatprep.subr.bf16.mxu0 0
      %1073 = vmatpush1.bf16.msra.mxu0 0
      %1074 = vmatprep.subr.bf16.mxu0 0
      %1075 = vmatpush1.bf16.msra.mxu0 0
      %1076 = vmatprep.subr.bf16.mxu0 0
      %1077 = vmatpush1.bf16.msra.mxu0 0
      %1078 = vmatprep.subr.bf16.mxu0 0
      %1079 = vmatpush1.bf16.msra.mxu0 0
      %1080 = vmatprep.subr.bf16.mxu0 0
      %1081 = vmatpush1.bf16.msra.mxu0 0
      %1082 = vmatprep.subr.bf16.mxu0 0
      %1083 = vmatpush1.bf16.msra.mxu0 0
      %1084 = vmatprep.subr.bf16.mxu0 0
      %1085 = vmatpush1.bf16.msra.mxu0 0
      %1086 = vmatprep.subr.bf16.mxu0 0
      %1087 = vmatpush1.bf16.msra.mxu0 0
      %1088 = vmatprep.mubr.bf16.mxu0 0
      %1089 = vmatmul.mubr.bf16.gmra.mrb[0].mxu0 %v1006
      %v1090 = vpop.f32.mrb[0].mxu0
      %v1091 = vadd.f32 %v799, %v1090
      %v1092 = vpop.f32.mrb[0].mxu0
      %v1093 = vpop.f32.mrb[0].mxu0
      %v1094 = vadd.f32 %v802, %v1093
      %v1095 = vpop.f32.mrb[0].mxu0
      %1096 = vmatprep.mubr.bf16.mxu0 0
      %1097 = vmatmul.mubr.bf16.gmra.mrb[0].mxu0 %v1009
      %v1098 = vpop.f32.mrb[0].mxu0
      %v1099 = vadd.f32 %v807, %v1098
      %v1100 = vpop.f32.mrb[0].mxu0
      %v1101 = vpop.f32.mrb[0].mxu0
      %v1102 = vadd.f32 %v810, %v1101
      %v1103 = vpop.f32.mrb[0].mxu0
      %1104 = vmatprep.mubr.bf16.mxu0 0
      %1105 = vmatmul.mubr.bf16.gmra.mrb[0].mxu0 %v1012
      %v1106 = vpop.f32.mrb[0].mxu0
      %v1107 = vadd.f32 %v815, %v1106
      %v1108 = vpop.f32.mrb[0].mxu0
      %v1109 = vpop.f32.mrb[0].mxu0
      %v1110 = vadd.f32 %v818, %v1109
      %v1111 = vpop.f32.mrb[0].mxu0
      %1112 = vmatprep.mubr.bf16.mxu0 0
      %1113 = vmatmul.mubr.bf16.gmra.mrb[0].mxu0 %v1015
      %v1114 = vpop.f32.mrb[0].mxu0
      %v1115 = vadd.f32 %v823, %v1114
      %v1116 = vpop.f32.mrb[0].mxu0
      %v1117 = vpop.f32.mrb[0].mxu0
      %v1118 = vadd.f32 %v826, %v1117
      %v1119 = vpop.f32.mrb[0].mxu0
      %1120 = vmatprep.mubr.bf16.mxu0 0
      %1121 = vmatmul.mubr.bf16.gmra.mrb[0].mxu0 %v1018
      %v1122 = vpop.f32.mrb[0].mxu0
      %v1123 = vadd.f32 %v831, %v1122
      %v1124 = vpop.f32.mrb[0].mxu0
      %v1125 = vpop.f32.mrb[0].mxu0
      %v1126 = vadd.f32 %v834, %v1125
      %v1127 = vpop.f32.mrb[0].mxu0
      %1128 = vmatprep.mubr.bf16.mxu0 0
      %1129 = vmatmul.mubr.bf16.gmra.mrb[0].mxu0 %v1021
      %v1130 = vpop.f32.mrb[0].mxu0
      %v1131 = vadd.f32 %v839, %v1130
      %v1132 = vpop.f32.mrb[0].mxu0
      %v1133 = vpop.f32.mrb[0].mxu0
      %v1134 = vadd.f32 %v842, %v1133
      %v1135 = vpop.f32.mrb[0].mxu0
      %1136 = vmatprep.mubr.bf16.mxu0 0
      %1137 = vmatmul.mubr.bf16.gmra.mrb[0].mxu0 %v1024
      %v1138 = vpop.f32.mrb[0].mxu0
      %v1139 = vadd.f32 %v847, %v1138
      %v1140 = vpop.f32.mrb[0].mxu0
      %v1141 = vpop.f32.mrb[0].mxu0
      %v1142 = vadd.f32 %v850, %v1141
      %v1143 = vpop.f32.mrb[0].mxu0
      %1144 = vmatprep.mubr.bf16.mxu0 0
      %1145 = vmatmul.mubr.bf16.gmra.mrb[0].mxu0 %v1027
      %v1146 = vpop.f32.mrb[0].mxu0
      %v1147 = vadd.f32 %v855, %v1146
      %v1148 = vpop.f32.mrb[0].mxu0
      %v1149 = vpop.f32.mrb[0].mxu0
      %v1150 = vadd.f32 %v858, %v1149
      %v1151 = vpop.f32.mrb[0].mxu0
      %1152 = vmatprep.mubr.bf16.mxu0 0
      %1153 = vmatmul.mubr.bf16.gmra.mrb[0].mxu0 %v1030
      %v1154 = vpop.f32.mrb[0].mxu0
      %v1155 = vadd.f32 %v863, %v1154
      %v1156 = vpop.f32.mrb[0].mxu0
      %v1157 = vpop.f32.mrb[0].mxu0
      %v1158 = vadd.f32 %v866, %v1157
      %v1159 = vpop.f32.mrb[0].mxu0
      %1160 = vmatprep.mubr.bf16.mxu0 0
      %1161 = vmatmul.mubr.bf16.gmra.mrb[0].mxu0 %v1033
      %v1162 = vpop.f32.mrb[0].mxu0
      %v1163 = vadd.f32 %v871, %v1162
      %v1164 = vpop.f32.mrb[0].mxu0
      %v1165 = vpop.f32.mrb[0].mxu0
      %v1166 = vadd.f32 %v874, %v1165
      %v1167 = vpop.f32.mrb[0].mxu0
      %1168 = vmatprep.mubr.bf16.mxu0 0
      %1169 = vmatmul.mubr.bf16.gmra.mrb[0].mxu0 %v1036
      %v1170 = vpop.f32.mrb[0].mxu0
      %v1171 = vadd.f32 %v879, %v1170
      %v1172 = vpop.f32.mrb[0].mxu0
      %v1173 = vpop.f32.mrb[0].mxu0
      %v1174 = vadd.f32 %v882, %v1173
      %v1175 = vpop.f32.mrb[0].mxu0
      %1176 = vmatprep.mubr.bf16.mxu0 0
      %1177 = vmatmul.mubr.bf16.gmra.mrb[0].mxu0 %v1039
      %v1178 = vpop.f32.mrb[0].mxu0
      %v1179 = vadd.f32 %v887, %v1178
      %v1180 = vpop.f32.mrb[0].mxu0
      %v1181 = vpop.f32.mrb[0].mxu0
      %v1182 = vadd.f32 %v890, %v1181
      %v1183 = vpop.f32.mrb[0].mxu0
      %1184 = vmatprep.mubr.bf16.mxu0 0
      %1185 = vmatmul.mubr.bf16.gmra.mrb[0].mxu0 %v1042
      %v1186 = vpop.f32.mrb[0].mxu0
      %v1187 = vadd.f32 %v895, %v1186
      %v1188 = vpop.f32.mrb[0].mxu0
      %v1189 = vpop.f32.mrb[0].mxu0
      %v1190 = vadd.f32 %v898, %v1189
      %v1191 = vpop.f32.mrb[0].mxu0
      %1192 = vmatprep.mubr.bf16.mxu0 0
      %1193 = vmatmul.mubr.bf16.gmra.mrb[0].mxu0 %v1045
      %v1194 = vpop.f32.mrb[0].mxu0
      %v1195 = vadd.f32 %v903, %v1194
      %v1196 = vpop.f32.mrb[0].mxu0
      %v1197 = vpop.f32.mrb[0].mxu0
      %v1198 = vadd.f32 %v906, %v1197
      %v1199 = vpop.f32.mrb[0].mxu0
      %1200 = vmatprep.mubr.bf16.mxu0 0
      %1201 = vmatmul.mubr.bf16.gmra.mrb[0].mxu0 %v1048
      %v1202 = vpop.f32.mrb[0].mxu0
      %v1203 = vadd.f32 %v911, %v1202
      %v1204 = vpop.f32.mrb[0].mxu0
      %v1205 = vpop.f32.mrb[0].mxu0
      %v1206 = vadd.f32 %v914, %v1205
      %v1207 = vpop.f32.mrb[0].mxu0
      %1208 = vmatprep.mubr.bf16.mxu0 0
      %1209 = vmatmul.mubr.bf16.gmra.mrb[0].mxu0 %v1051
      %v1210 = vpop.f32.mrb[0].mxu0
      %v1211 = vadd.f32 %v919, %v1210
      %v1212 = vpop.f32.mrb[0].mxu0
      %v1213 = vpop.f32.mrb[0].mxu0
      %v1214 = vadd.f32 %v922, %v1213
      %v1215 = vpop.f32.mrb[0].mxu0
      %1216 = vdwg.mxu0
      %v1217 = vld [vmem:[%s264] sm:$0xe]
      %v1218 = vld [vmem:[%s264 + $0x14] sm:$0xe]
      %v1219 = vld [vmem:[%s264 + $0x28] sm:$0xe]
      %v1220 = vld [vmem:[%s264 + $0x3c] sm:$0xe]
      %v1221 = vld [vmem:[%s264 + $0x50] sm:$0xe]
      %v1222 = vld [vmem:[%s264 + $0x64] sm:$0xe]
      %v1223 = vld [vmem:[%s264 + $0x78] sm:$0xe]
      %v1224 = vld [vmem:[%s264 + $0x8c] sm:$0xe]
      %vm1241 = vcmask 1042432
      %vm1242 = vcmask 1046532
      %vm1243 = vmor %vm1241, %vm1242
      %v1244 = vrot.slane %v1217, 5
      %v1245 = vrot.slane %v1244, 4
      %v1246 = vrot.slane %v266, 5
      %v1247 = vsel %vm1243, %v1245, %v1246
      %v1248 = vrot.slane %v1246, 4
      %v1249 = vrot.slane %v267, 5
      %v1250 = vsel %vm1243, %v1248, %v1249
      %v1251 = vrot.slane %v1249, 4
      %v1252 = vrot.slane %v268, 5
      %v1253 = vsel %vm1243, %v1251, %v1252
      %v1254 = vrot.slane %v1252, 4
      %v1255 = vrot.slane %v298, 5
      %v1256 = vsel %vm1243, %v1254, %v1255
      %v1257 = vrot.slane %v1218, 5
      %v1258 = vrot.slane %v1257, 4
      %v1259 = vrot.slane %v270, 5
      %v1260 = vsel %vm1243, %v1258, %v1259
      %v1261 = vrot.slane %v1259, 4
      %v1262 = vrot.slane %v271, 5
      %v1263 = vsel %vm1243, %v1261, %v1262
      %v1264 = vrot.slane %v1262, 4
      %v1265 = vrot.slane %v272, 5
      %v1266 = vsel %vm1243, %v1264, %v1265
      %v1267 = vrot.slane %v1265, 4
      %v1268 = vrot.slane %v299, 5
      %v1269 = vsel %vm1243, %v1267, %v1268
      %v1270 = vrot.slane %v1219, 5
      %v1271 = vrot.slane %v1270, 4
      %v1272 = vrot.slane %v274, 5
      %v1273 = vsel %vm1243, %v1271, %v1272
      %v1274 = vrot.slane %v1272, 4
      %v1275 = vrot.slane %v275, 5
      %v1276 = vsel %vm1243, %v1274, %v1275
      %v1277 = vrot.slane %v1275, 4
      %v1278 = vrot.slane %v276, 5
      %v1279 = vsel %vm1243, %v1277, %v1278
      %v1280 = vrot.slane %v1278, 4
      %v1281 = vrot.slane %v300, 5
      %v1282 = vsel %vm1243, %v1280, %v1281
      %v1283 = vrot.slane %v1220, 5
      %v1284 = vrot.slane %v1283, 4
      %v1285 = vrot.slane %v278, 5
      %v1286 = vsel %vm1243, %v1284, %v1285
      %v1287 = vrot.slane %v1285, 4
      %v1288 = vrot.slane %v279, 5
      %v1289 = vsel %vm1243, %v1287, %v1288
      %v1290 = vrot.slane %v1288, 4
      %v1291 = vrot.slane %v280, 5
      %v1292 = vsel %vm1243, %v1290, %v1291
      %v1293 = vrot.slane %v1291, 4
      %v1294 = vrot.slane %v301, 5
      %v1295 = vsel %vm1243, %v1293, %v1294
      %v1296 = vrot.slane %v1221, 5
      %v1297 = vrot.slane %v1296, 4
      %v1298 = vrot.slane %v282, 5
      %v1299 = vsel %vm1243, %v1297, %v1298
      %v1300 = vrot.slane %v1298, 4
      %v1301 = vrot.slane %v283, 5
      %v1302 = vsel %vm1243, %v1300, %v1301
      %v1303 = vrot.slane %v1301, 4
      %v1304 = vrot.slane %v284, 5
      %v1305 = vsel %vm1243, %v1303, %v1304
      %v1306 = vrot.slane %v1304, 4
      %v1307 = vrot.slane %v302, 5
      %v1308 = vsel %vm1243, %v1306, %v1307
      %v1309 = vrot.slane %v1222, 5
      %v1310 = vrot.slane %v1309, 4
      %v1311 = vrot.slane %v286, 5
      %v1312 = vsel %vm1243, %v1310, %v1311
      %v1313 = vrot.slane %v1311, 4
      %v1314 = vrot.slane %v287, 5
      %v1315 = vsel %vm1243, %v1313, %v1314
      %v1316 = vrot.slane %v1314, 4
      %v1317 = vrot.slane %v288, 5
      %v1318 = vsel %vm1243, %v1316, %v1317
      %v1319 = vrot.slane %v1317, 4
      %v1320 = vrot.slane %v303, 5
      %v1321 = vsel %vm1243, %v1319, %v1320
      %v1322 = vrot.slane %v1223, 5
      %v1323 = vrot.slane %v1322, 4
      %v1324 = vrot.slane %v290, 5
      %v1325 = vsel %vm1243, %v1323, %v1324
      %v1326 = vrot.slane %v1324, 4
      %v1327 = vrot.slane %v291, 5
      %v1328 = vsel %vm1243, %v1326, %v1327
      %v1329 = vrot.slane %v1327, 4
      %v1330 = vrot.slane %v292, 5
      %v1331 = vsel %vm1243, %v1329, %v1330
      %v1332 = vrot.slane %v1330, 4
      %v1333 = vrot.slane %v304, 5
      %v1334 = vsel %vm1243, %v1332, %v1333
      %v1335 = vrot.slane %v1224, 5
      %v1336 = vrot.slane %v1335, 4
      %v1337 = vrot.slane %v294, 5
      %v1338 = vsel %vm1243, %v1336, %v1337
      %v1339 = vrot.slane %v1337, 4
      %v1340 = vrot.slane %v295, 5
      %v1341 = vsel %vm1243, %v1339, %v1340
      %v1342 = vrot.slane %v1340, 4
      %v1343 = vrot.slane %v296, 5
      %v1344 = vsel %vm1243, %v1342, %v1343
      %v1345 = vrot.slane %v1343, 4
      %v1346 = vrot.slane %v305, 5
      %v1347 = vsel %vm1243, %v1345, %v1346
      %s1348 = scalar_lea.vmem %s1, 4
      %v1349 = vld [vmem:[%s1348] sm:$0x3]
      %v1350 = vunpack.c.l.b16 %v1247
      %v1351 = vunpack.c.l.b16 %v1250
      %v1352 = vunpack.c.l.b16 %v1253
      %v1353 = vunpack.c.l.b16 %v1256
      %v1354 = vunpack.c.l.b16 %v1260
      %v1355 = vunpack.c.l.b16 %v1263
      %v1356 = vunpack.c.l.b16 %v1266
      %v1357 = vunpack.c.l.b16 %v1269
      %v1358 = vunpack.c.l.b16 %v1273
      %v1359 = vunpack.c.l.b16 %v1276
      %v1360 = vunpack.c.l.b16 %v1279
      %v1361 = vunpack.c.l.b16 %v1282
      %v1362 = vunpack.c.l.b16 %v1286
      %v1363 = vunpack.c.l.b16 %v1289
      %v1364 = vunpack.c.l.b16 %v1292
      %v1365 = vunpack.c.l.b16 %v1295
      %v1366 = vunpack.c.l.b16 %v1299
      %v1367 = vunpack.c.l.b16 %v1302
      %v1368 = vunpack.c.l.b16 %v1305
      %v1369 = vunpack.c.l.b16 %v1308
      %v1370 = vunpack.c.l.b16 %v1312
      %v1371 = vunpack.c.l.b16 %v1315
      %v1372 = vunpack.c.l.b16 %v1318
      %v1373 = vunpack.c.l.b16 %v1321
      %v1374 = vunpack.c.l.b16 %v1325
      %v1375 = vunpack.c.l.b16 %v1328
      %v1376 = vunpack.c.l.b16 %v1331
      %v1377 = vunpack.c.l.b16 %v1334
      %v1378 = vunpack.c.l.b16 %v1338
      %v1379 = vunpack.c.l.b16 %v1341
      %v1380 = vunpack.c.l.b16 %v1344
      %v1381 = vunpack.c.l.b16 %v1347
      %v1382 = vpack.c.b16 %v1351, %v1350
      %v1383 = vpack.c.b16 %v1353, %v1352
      %v1384 = vpack.c.b16 %v1355, %v1354
      %v1385 = vpack.c.b16 %v1357, %v1356
      %v1386 = vpack.c.b16 %v1359, %v1358
      %v1387 = vpack.c.b16 %v1361, %v1360
      %v1388 = vpack.c.b16 %v1363, %v1362
      %v1389 = vpack.c.b16 %v1365, %v1364
      %v1390 = vpack.c.b16 %v1367, %v1366
      %v1391 = vpack.c.b16 %v1369, %v1368
      %v1392 = vpack.c.b16 %v1371, %v1370
      %v1393 = vpack.c.b16 %v1373, %v1372
      %v1394 = vpack.c.b16 %v1375, %v1374
      %v1395 = vpack.c.b16 %v1377, %v1376
      %v1396 = vpack.c.b16 %v1379, %v1378
      %v1397 = vpack.c.b16 %v1381, %v1380
      %v1399 = vsel %vm711, %v1382, 0
      %v1402 = vsel %vm711, %v1383, 0
      %v1405 = vsel %vm711, %v1384, 0
      %v1408 = vsel %vm711, %v1385, 0
      %v1411 = vsel %vm711, %v1386, 0
      %v1414 = vsel %vm711, %v1387, 0
      %v1417 = vsel %vm711, %v1388, 0
      %v1420 = vsel %vm711, %v1389, 0
      %v1423 = vsel %vm711, %v1390, 0
      %v1426 = vsel %vm711, %v1391, 0
      %v1429 = vsel %vm711, %v1392, 0
      %v1432 = vsel %vm711, %v1393, 0
      %v1435 = vsel %vm711, %v1394, 0
      %v1438 = vsel %vm711, %v1395, 0
      %v1441 = vsel %vm711, %v1396, 0
      %v1444 = vsel %vm711, %v1397, 0
      %v1447 = vsel %vm760, %v1349, 0
      %1449 = vmatprep.subr.bf16.mxu0 0
      %1450 = vmatpush1.bf16.msra.mxu0 %v1447
      %1451 = vmatprep.subr.bf16.mxu0 0
      %1452 = vmatpush1.bf16.msra.mxu0 0
      %1453 = vmatprep.subr.bf16.mxu0 0
      %1454 = vmatpush1.bf16.msra.mxu0 0
      %1455 = vmatprep.subr.bf16.mxu0 0
      %1456 = vmatpush1.bf16.msra.mxu0 0
      %1457 = vmatprep.subr.bf16.mxu0 0
      %1458 = vmatpush1.bf16.msra.mxu0 0
      %1459 = vmatprep.subr.bf16.mxu0 0
      %1460 = vmatpush1.bf16.msra.mxu0 0
      %1461 = vmatprep.subr.bf16.mxu0 0
      %1462 = vmatpush1.bf16.msra.mxu0 0
      %1463 = vmatprep.subr.bf16.mxu0 0
      %1464 = vmatpush1.bf16.msra.mxu0 0
      %1465 = vmatprep.subr.bf16.mxu0 0
      %1466 = vmatpush1.bf16.msra.mxu0 0
      %1467 = vmatprep.subr.bf16.mxu0 0
      %1468 = vmatpush1.bf16.msra.mxu0 0
      %1469 = vmatprep.subr.bf16.mxu0 0
      %1470 = vmatpush1.bf16.msra.mxu0 0
      %1471 = vmatprep.subr.bf16.mxu0 0
      %1472 = vmatpush1.bf16.msra.mxu0 0
      %1473 = vmatprep.subr.bf16.mxu0 0
      %1474 = vmatpush1.bf16.msra.mxu0 0
      %1475 = vmatprep.subr.bf16.mxu0 0
      %1476 = vmatpush1.bf16.msra.mxu0 0
      %1477 = vmatprep.subr.bf16.mxu0 0
      %1478 = vmatpush1.bf16.msra.mxu0 0
      %1479 = vmatprep.subr.bf16.mxu0 0
      %1480 = vmatpush1.bf16.msra.mxu0 0
      %1481 = vmatprep.mubr.bf16.mxu0 0
      %1482 = vmatmul.mubr.bf16.gmra.mrb[0].mxu0 %v1399
      %v1483 = vpop.f32.mrb[0].mxu0
      %v1484 = vadd.f32 0.0, %v1483
      %v1485 = vpop.f32.mrb[0].mxu0
      %v1486 = vpop.f32.mrb[0].mxu0
      %v1487 = vadd.f32 0.0, %v1486
      %v1488 = vpop.f32.mrb[0].mxu0
      %1489 = vmatprep.mubr.bf16.mxu0 0
      %1490 = vmatmul.mubr.bf16.gmra.mrb[0].mxu0 %v1402
      %v1491 = vpop.f32.mrb[0].mxu0
      %v1492 = vadd.f32 0.0, %v1491
      %v1493 = vpop.f32.mrb[0].mxu0
      %v1494 = vpop.f32.mrb[0].mxu0
      %v1495 = vadd.f32 0.0, %v1494
      %v1496 = vpop.f32.mrb[0].mxu0
      %1497 = vmatprep.mubr.bf16.mxu0 0
      %1498 = vmatmul.mubr.bf16.gmra.mrb[0].mxu0 %v1405
      %v1499 = vpop.f32.mrb[0].mxu0
      %v1500 = vadd.f32 0.0, %v1499
      %v1501 = vpop.f32.mrb[0].mxu0
      %v1502 = vpop.f32.mrb[0].mxu0
      %v1503 = vadd.f32 0.0, %v1502
      %v1504 = vpop.f32.mrb[0].mxu0
      %1505 = vmatprep.mubr.bf16.mxu0 0
      %1506 = vmatmul.mubr.bf16.gmra.mrb[0].mxu0 %v1408
      %v1507 = vpop.f32.mrb[0].mxu0
      %v1508 = vadd.f32 0.0, %v1507
      %v1509 = vpop.f32.mrb[0].mxu0
      %v1510 = vpop.f32.mrb[0].mxu0
      %v1511 = vadd.f32 0.0, %v1510
      %v1512 = vpop.f32.mrb[0].mxu0
      %1513 = vmatprep.mubr.bf16.mxu0 0
      %1514 = vmatmul.mubr.bf16.gmra.mrb[0].mxu0 %v1411
      %v1515 = vpop.f32.mrb[0].mxu0
      %v1516 = vadd.f32 0.0, %v1515
      %v1517 = vpop.f32.mrb[0].mxu0
      %v1518 = vpop.f32.mrb[0].mxu0
      %v1519 = vadd.f32 0.0, %v1518
      %v1520 = vpop.f32.mrb[0].mxu0
      %1521 = vmatprep.mubr.bf16.mxu0 0
      %1522 = vmatmul.mubr.bf16.gmra.mrb[0].mxu0 %v1414
      %v1523 = vpop.f32.mrb[0].mxu0
      %v1524 = vadd.f32 0.0, %v1523
      %v1525 = vpop.f32.mrb[0].mxu0
      %v1526 = vpop.f32.mrb[0].mxu0
      %v1527 = vadd.f32 0.0, %v1526
      %v1528 = vpop.f32.mrb[0].mxu0
      %1529 = vmatprep.mubr.bf16.mxu0 0
      %1530 = vmatmul.mubr.bf16.gmra.mrb[0].mxu0 %v1417
      %v1531 = vpop.f32.mrb[0].mxu0
      %v1532 = vadd.f32 0.0, %v1531
      %v1533 = vpop.f32.mrb[0].mxu0
      %v1534 = vpop.f32.mrb[0].mxu0
      %v1535 = vadd.f32 0.0, %v1534
      %v1536 = vpop.f32.mrb[0].mxu0
      %1537 = vmatprep.mubr.bf16.mxu0 0
      %1538 = vmatmul.mubr.bf16.gmra.mrb[0].mxu0 %v1420
      %v1539 = vpop.f32.mrb[0].mxu0
      %v1540 = vadd.f32 0.0, %v1539
      %v1541 = vpop.f32.mrb[0].mxu0
      %v1542 = vpop.f32.mrb[0].mxu0
      %v1543 = vadd.f32 0.0, %v1542
      %v1544 = vpop.f32.mrb[0].mxu0
      %1545 = vmatprep.mubr.bf16.mxu0 0
      %1546 = vmatmul.mubr.bf16.gmra.mrb[0].mxu0 %v1423
      %v1547 = vpop.f32.mrb[0].mxu0
      %v1548 = vadd.f32 0.0, %v1547
      %v1549 = vpop.f32.mrb[0].mxu0
      %v1550 = vpop.f32.mrb[0].mxu0
      %v1551 = vadd.f32 0.0, %v1550
      %v1552 = vpop.f32.mrb[0].mxu0
      %1553 = vmatprep.mubr.bf16.mxu0 0
      %1554 = vmatmul.mubr.bf16.gmra.mrb[0].mxu0 %v1426
      %v1555 = vpop.f32.mrb[0].mxu0
      %v1556 = vadd.f32 0.0, %v1555
      %v1557 = vpop.f32.mrb[0].mxu0
      %v1558 = vpop.f32.mrb[0].mxu0
      %v1559 = vadd.f32 0.0, %v1558
      %v1560 = vpop.f32.mrb[0].mxu0
      %1561 = vmatprep.mubr.bf16.mxu0 0
      %1562 = vmatmul.mubr.bf16.gmra.mrb[0].mxu0 %v1429
      %v1563 = vpop.f32.mrb[0].mxu0
      %v1564 = vadd.f32 0.0, %v1563
      %v1565 = vpop.f32.mrb[0].mxu0
      %v1566 = vpop.f32.mrb[0].mxu0
      %v1567 = vadd.f32 0.0, %v1566
      %v1568 = vpop.f32.mrb[0].mxu0
      %1569 = vmatprep.mubr.bf16.mxu0 0
      %1570 = vmatmul.mubr.bf16.gmra.mrb[0].mxu0 %v1432
      %v1571 = vpop.f32.mrb[0].mxu0
      %v1572 = vadd.f32 0.0, %v1571
      %v1573 = vpop.f32.mrb[0].mxu0
      %v1574 = vpop.f32.mrb[0].mxu0
      %v1575 = vadd.f32 0.0, %v1574
      %v1576 = vpop.f32.mrb[0].mxu0
      %1577 = vmatprep.mubr.bf16.mxu0 0
      %1578 = vmatmul.mubr.bf16.gmra.mrb[0].mxu0 %v1435
      %v1579 = vpop.f32.mrb[0].mxu0
      %v1580 = vadd.f32 0.0, %v1579
      %v1581 = vpop.f32.mrb[0].mxu0
      %v1582 = vpop.f32.mrb[0].mxu0
      %v1583 = vadd.f32 0.0, %v1582
      %v1584 = vpop.f32.mrb[0].mxu0
      %1585 = vmatprep.mubr.bf16.mxu0 0
      %1586 = vmatmul.mubr.bf16.gmra.mrb[0].mxu0 %v1438
      %v1587 = vpop.f32.mrb[0].mxu0
      %v1588 = vadd.f32 0.0, %v1587
      %v1589 = vpop.f32.mrb[0].mxu0
      %v1590 = vpop.f32.mrb[0].mxu0
      %v1591 = vadd.f32 0.0, %v1590
      %v1592 = vpop.f32.mrb[0].mxu0
      %1593 = vmatprep.mubr.bf16.mxu0 0
      %1594 = vmatmul.mubr.bf16.gmra.mrb[0].mxu0 %v1441
      %v1595 = vpop.f32.mrb[0].mxu0
      %v1596 = vadd.f32 0.0, %v1595
      %v1597 = vpop.f32.mrb[0].mxu0
      %v1598 = vpop.f32.mrb[0].mxu0
      %v1599 = vadd.f32 0.0, %v1598
      %v1600 = vpop.f32.mrb[0].mxu0
      %1601 = vmatprep.mubr.bf16.mxu0 0
      %1602 = vmatmul.mubr.bf16.gmra.mrb[0].mxu0 %v1444
      %v1603 = vpop.f32.mrb[0].mxu0
      %v1604 = vadd.f32 0.0, %v1603
      %v1605 = vpop.f32.mrb[0].mxu0
      %v1606 = vpop.f32.mrb[0].mxu0
      %v1607 = vadd.f32 0.0, %v1606
      %v1608 = vpop.f32.mrb[0].mxu0
      %1609 = vdwg.mxu0
      %v1610 = vadd.f32 %v1091, %v1484
      %v1611 = vadd.f32 %v1094, %v1487
      %v1612 = vadd.f32 %v1099, %v1492
      %v1613 = vadd.f32 %v1102, %v1495
      %v1614 = vadd.f32 %v1107, %v1500
      %v1615 = vadd.f32 %v1110, %v1503
      %v1616 = vadd.f32 %v1115, %v1508
      %v1617 = vadd.f32 %v1118, %v1511
      %v1618 = vadd.f32 %v1123, %v1516
      %v1619 = vadd.f32 %v1126, %v1519
      %v1620 = vadd.f32 %v1131, %v1524
      %v1621 = vadd.f32 %v1134, %v1527
      %v1622 = vadd.f32 %v1139, %v1532
      %v1623 = vadd.f32 %v1142, %v1535
      %v1624 = vadd.f32 %v1147, %v1540
      %v1625 = vadd.f32 %v1150, %v1543
      %v1626 = vadd.f32 %v1155, %v1548
      %v1627 = vadd.f32 %v1158, %v1551
      %v1628 = vadd.f32 %v1163, %v1556
      %v1629 = vadd.f32 %v1166, %v1559
      %v1630 = vadd.f32 %v1171, %v1564
      %v1631 = vadd.f32 %v1174, %v1567
      %v1632 = vadd.f32 %v1179, %v1572
      %v1633 = vadd.f32 %v1182, %v1575
      %v1634 = vadd.f32 %v1187, %v1580
      %v1635 = vadd.f32 %v1190, %v1583
      %v1636 = vadd.f32 %v1195, %v1588
      %v1637 = vadd.f32 %v1198, %v1591
      %v1638 = vadd.f32 %v1203, %v1596
      %v1639 = vadd.f32 %v1206, %v1599
      %v1640 = vadd.f32 %v1211, %v1604
      %v1641 = vadd.f32 %v1214, %v1607
      %s1642 = sadd.s32 %s261, 1
      %s1643 = smul.u32 %s1642, 5
      %s1644 = smul.addr %s1643, 4
      %s1645 = scalar_lea.vmem %s234, %s1644
      %v1646 = vld [vmem:[%s1645] sm:$0xf]
      %v1647 = vld [vmem:[%s1645 + $0x4] sm:$0xf]
      %v1648 = vld [vmem:[%s1645 + $0x8] sm:$0xf]
      %v1649 = vld [vmem:[%s1645 + $0xc] sm:$0xf]
      %v1650 = vld [vmem:[%s1645 + $0x14] sm:$0xf]
      %v1651 = vld [vmem:[%s1645 + $0x18] sm:$0xf]
      %v1652 = vld [vmem:[%s1645 + $0x1c] sm:$0xf]
      %v1653 = vld [vmem:[%s1645 + $0x20] sm:$0xf]
      %v1654 = vld [vmem:[%s1645 + $0x28] sm:$0xf]
      %v1655 = vld [vmem:[%s1645 + $0x2c] sm:$0xf]
      %v1656 = vld [vmem:[%s1645 + $0x30] sm:$0xf]
      %v1657 = vld [vmem:[%s1645 + $0x34] sm:$0xf]
      %v1658 = vld [vmem:[%s1645 + $0x3c] sm:$0xf]
      %v1659 = vld [vmem:[%s1645 + $0x40] sm:$0xf]
      %v1660 = vld [vmem:[%s1645 + $0x44] sm:$0xf]
      %v1661 = vld [vmem:[%s1645 + $0x48] sm:$0xf]
      %v1662 = vld [vmem:[%s1645 + $0x50] sm:$0xf]
      %v1663 = vld [vmem:[%s1645 + $0x54] sm:$0xf]
      %v1664 = vld [vmem:[%s1645 + $0x58] sm:$0xf]
      %v1665 = vld [vmem:[%s1645 + $0x5c] sm:$0xf]
      %v1666 = vld [vmem:[%s1645 + $0x64] sm:$0xf]
      %v1667 = vld [vmem:[%s1645 + $0x68] sm:$0xf]
      %v1668 = vld [vmem:[%s1645 + $0x6c] sm:$0xf]
      %v1669 = vld [vmem:[%s1645 + $0x70] sm:$0xf]
      %v1670 = vld [vmem:[%s1645 + $0x78] sm:$0xf]
      %v1671 = vld [vmem:[%s1645 + $0x7c] sm:$0xf]
      %v1672 = vld [vmem:[%s1645 + $0x80] sm:$0xf]
      %v1673 = vld [vmem:[%s1645 + $0x84] sm:$0xf]
      %v1674 = vld [vmem:[%s1645 + $0x8c] sm:$0xf]
      %v1675 = vld [vmem:[%s1645 + $0x90] sm:$0xf]
      %v1676 = vld [vmem:[%s1645 + $0x94] sm:$0xf]
      %v1677 = vld [vmem:[%s1645 + $0x98] sm:$0xf]
      %s1678 = scalar_lea.vmem %s1, 6
      %v1679 = vld [vmem:[%s1678] sm:$0x3]
      %v1712 = vunpack.c.l.b16 %v1646
      %v1713 = vunpack.c.l.b16 %v1647
      %v1714 = vunpack.c.l.b16 %v1648
      %v1715 = vunpack.c.l.b16 %v1649
      %v1716 = vunpack.c.l.b16 %v1650
      %v1717 = vunpack.c.l.b16 %v1651
      %v1718 = vunpack.c.l.b16 %v1652
      %v1719 = vunpack.c.l.b16 %v1653
      %v1720 = vunpack.c.l.b16 %v1654
      %v1721 = vunpack.c.l.b16 %v1655
      %v1722 = vunpack.c.l.b16 %v1656
      %v1723 = vunpack.c.l.b16 %v1657
      %v1724 = vunpack.c.l.b16 %v1658
      %v1725 = vunpack.c.l.b16 %v1659
      %v1726 = vunpack.c.l.b16 %v1660
      %v1727 = vunpack.c.l.b16 %v1661
      %v1728 = vunpack.c.l.b16 %v1662
      %v1729 = vunpack.c.l.b16 %v1663
      %v1730 = vunpack.c.l.b16 %v1664
      %v1731 = vunpack.c.l.b16 %v1665
      %v1732 = vunpack.c.l.b16 %v1666
      %v1733 = vunpack.c.l.b16 %v1667
      %v1734 = vunpack.c.l.b16 %v1668
      %v1735 = vunpack.c.l.b16 %v1669
      %v1736 = vunpack.c.l.b16 %v1670
      %v1737 = vunpack.c.l.b16 %v1671
      %v1738 = vunpack.c.l.b16 %v1672
      %v1739 = vunpack.c.l.b16 %v1673
      %v1740 = vunpack.c.l.b16 %v1674
      %v1741 = vunpack.c.l.b16 %v1675
      %v1742 = vunpack.c.l.b16 %v1676
      %v1743 = vunpack.c.l.b16 %v1677
      %v1744 = vpack.c.b16 %v1713, %v1712
      %v1745 = vpack.c.b16 %v1715, %v1714
      %v1746 = vpack.c.b16 %v1717, %v1716
      %v1747 = vpack.c.b16 %v1719, %v1718
      %v1748 = vpack.c.b16 %v1721, %v1720
      %v1749 = vpack.c.b16 %v1723, %v1722
      %v1750 = vpack.c.b16 %v1725, %v1724
      %v1751 = vpack.c.b16 %v1727, %v1726
      %v1752 = vpack.c.b16 %v1729, %v1728
      %v1753 = vpack.c.b16 %v1731, %v1730
      %v1754 = vpack.c.b16 %v1733, %v1732
      %v1755 = vpack.c.b16 %v1735, %v1734
      %v1756 = vpack.c.b16 %v1737, %v1736
      %v1757 = vpack.c.b16 %v1739, %v1738
      %v1758 = vpack.c.b16 %v1741, %v1740
      %v1759 = vpack.c.b16 %v1743, %v1742
      %v1761 = vsel %vm711, %v1744, 0
      %v1764 = vsel %vm711, %v1745, 0
      %v1767 = vsel %vm711, %v1746, 0
      %v1770 = vsel %vm711, %v1747, 0
      %v1773 = vsel %vm711, %v1748, 0
      %v1776 = vsel %vm711, %v1749, 0
      %v1779 = vsel %vm711, %v1750, 0
      %v1782 = vsel %vm711, %v1751, 0
      %v1785 = vsel %vm711, %v1752, 0
      %v1788 = vsel %vm711, %v1753, 0
      %v1791 = vsel %vm711, %v1754, 0
      %v1794 = vsel %vm711, %v1755, 0
      %v1797 = vsel %vm711, %v1756, 0
      %v1800 = vsel %vm711, %v1757, 0
      %v1803 = vsel %vm711, %v1758, 0
      %v1806 = vsel %vm711, %v1759, 0
      %v1809 = vsel %vm760, %v1679, 0
      %1811 = vmatprep.subr.bf16.mxu0 0
      %1812 = vmatpush1.bf16.msra.mxu0 %v1809
      %1813 = vmatprep.subr.bf16.mxu0 0
      %1814 = vmatpush1.bf16.msra.mxu0 0
      %1815 = vmatprep.subr.bf16.mxu0 0
      %1816 = vmatpush1.bf16.msra.mxu0 0
      %1817 = vmatprep.subr.bf16.mxu0 0
      %1818 = vmatpush1.bf16.msra.mxu0 0
      %1819 = vmatprep.subr.bf16.mxu0 0
      %1820 = vmatpush1.bf16.msra.mxu0 0
      %1821 = vmatprep.subr.bf16.mxu0 0
      %1822 = vmatpush1.bf16.msra.mxu0 0
      %1823 = vmatprep.subr.bf16.mxu0 0
      %1824 = vmatpush1.bf16.msra.mxu0 0
      %1825 = vmatprep.subr.bf16.mxu0 0
      %1826 = vmatpush1.bf16.msra.mxu0 0
      %1827 = vmatprep.subr.bf16.mxu0 0
      %1828 = vmatpush1.bf16.msra.mxu0 0
      %1829 = vmatprep.subr.bf16.mxu0 0
      %1830 = vmatpush1.bf16.msra.mxu0 0
      %1831 = vmatprep.subr.bf16.mxu0 0
      %1832 = vmatpush1.bf16.msra.mxu0 0
      %1833 = vmatprep.subr.bf16.mxu0 0
      %1834 = vmatpush1.bf16.msra.mxu0 0
      %1835 = vmatprep.subr.bf16.mxu0 0
      %1836 = vmatpush1.bf16.msra.mxu0 0
      %1837 = vmatprep.subr.bf16.mxu0 0
      %1838 = vmatpush1.bf16.msra.mxu0 0
      %1839 = vmatprep.subr.bf16.mxu0 0
      %1840 = vmatpush1.bf16.msra.mxu0 0
      %1841 = vmatprep.subr.bf16.mxu0 0
      %1842 = vmatpush1.bf16.msra.mxu0 0
      %1843 = vmatprep.mubr.bf16.mxu0 0
      %1844 = vmatmul.mubr.bf16.gmra.mrb[0].mxu0 %v1761
      %v1845 = vpop.f32.mrb[0].mxu0
      %v1846 = vadd.f32 0.0, %v1845
      %v1847 = vpop.f32.mrb[0].mxu0
      %v1848 = vpop.f32.mrb[0].mxu0
      %v1849 = vadd.f32 0.0, %v1848
      %v1850 = vpop.f32.mrb[0].mxu0
      %1851 = vmatprep.mubr.bf16.mxu0 0
      %1852 = vmatmul.mubr.bf16.gmra.mrb[0].mxu0 %v1764
      %v1853 = vpop.f32.mrb[0].mxu0
      %v1854 = vadd.f32 0.0, %v1853
      %v1855 = vpop.f32.mrb[0].mxu0
      %v1856 = vpop.f32.mrb[0].mxu0
      %v1857 = vadd.f32 0.0, %v1856
      %v1858 = vpop.f32.mrb[0].mxu0
      %1859 = vmatprep.mubr.bf16.mxu0 0
      %1860 = vmatmul.mubr.bf16.gmra.mrb[0].mxu0 %v1767
      %v1861 = vpop.f32.mrb[0].mxu0
      %v1862 = vadd.f32 0.0, %v1861
      %v1863 = vpop.f32.mrb[0].mxu0
      %v1864 = vpop.f32.mrb[0].mxu0
      %v1865 = vadd.f32 0.0, %v1864
      %v1866 = vpop.f32.mrb[0].mxu0
      %1867 = vmatprep.mubr.bf16.mxu0 0
      %1868 = vmatmul.mubr.bf16.gmra.mrb[0].mxu0 %v1770
      %v1869 = vpop.f32.mrb[0].mxu0
      %v1870 = vadd.f32 0.0, %v1869
      %v1871 = vpop.f32.mrb[0].mxu0
      %v1872 = vpop.f32.mrb[0].mxu0
      %v1873 = vadd.f32 0.0, %v1872
      %v1874 = vpop.f32.mrb[0].mxu0
      %1875 = vmatprep.mubr.bf16.mxu0 0
      %1876 = vmatmul.mubr.bf16.gmra.mrb[0].mxu0 %v1773
      %v1877 = vpop.f32.mrb[0].mxu0
      %v1878 = vadd.f32 0.0, %v1877
      %v1879 = vpop.f32.mrb[0].mxu0
      %v1880 = vpop.f32.mrb[0].mxu0
      %v1881 = vadd.f32 0.0, %v1880
      %v1882 = vpop.f32.mrb[0].mxu0
      %1883 = vmatprep.mubr.bf16.mxu0 0
      %1884 = vmatmul.mubr.bf16.gmra.mrb[0].mxu0 %v1776
      %v1885 = vpop.f32.mrb[0].mxu0
      %v1886 = vadd.f32 0.0, %v1885
      %v1887 = vpop.f32.mrb[0].mxu0
      %v1888 = vpop.f32.mrb[0].mxu0
      %v1889 = vadd.f32 0.0, %v1888
      %v1890 = vpop.f32.mrb[0].mxu0
      %1891 = vmatprep.mubr.bf16.mxu0 0
      %1892 = vmatmul.mubr.bf16.gmra.mrb[0].mxu0 %v1779
      %v1893 = vpop.f32.mrb[0].mxu0
      %v1894 = vadd.f32 0.0, %v1893
      %v1895 = vpop.f32.mrb[0].mxu0
      %v1896 = vpop.f32.mrb[0].mxu0
      %v1897 = vadd.f32 0.0, %v1896
      %v1898 = vpop.f32.mrb[0].mxu0
      %1899 = vmatprep.mubr.bf16.mxu0 0
      %1900 = vmatmul.mubr.bf16.gmra.mrb[0].mxu0 %v1782
      %v1901 = vpop.f32.mrb[0].mxu0
      %v1902 = vadd.f32 0.0, %v1901
      %v1903 = vpop.f32.mrb[0].mxu0
      %v1904 = vpop.f32.mrb[0].mxu0
      %v1905 = vadd.f32 0.0, %v1904
      %v1906 = vpop.f32.mrb[0].mxu0
      %1907 = vmatprep.mubr.bf16.mxu0 0
      %1908 = vmatmul.mubr.bf16.gmra.mrb[0].mxu0 %v1785
      %v1909 = vpop.f32.mrb[0].mxu0
      %v1910 = vadd.f32 0.0, %v1909
      %v1911 = vpop.f32.mrb[0].mxu0
      %v1912 = vpop.f32.mrb[0].mxu0
      %v1913 = vadd.f32 0.0, %v1912
      %v1914 = vpop.f32.mrb[0].mxu0
      %1915 = vmatprep.mubr.bf16.mxu0 0
      %1916 = vmatmul.mubr.bf16.gmra.mrb[0].mxu0 %v1788
      %v1917 = vpop.f32.mrb[0].mxu0
      %v1918 = vadd.f32 0.0, %v1917
      %v1919 = vpop.f32.mrb[0].mxu0
      %v1920 = vpop.f32.mrb[0].mxu0
      %v1921 = vadd.f32 0.0, %v1920
      %v1922 = vpop.f32.mrb[0].mxu0
      %1923 = vmatprep.mubr.bf16.mxu0 0
      %1924 = vmatmul.mubr.bf16.gmra.mrb[0].mxu0 %v1791
      %v1925 = vpop.f32.mrb[0].mxu0
      %v1926 = vadd.f32 0.0, %v1925
      %v1927 = vpop.f32.mrb[0].mxu0
      %v1928 = vpop.f32.mrb[0].mxu0
      %v1929 = vadd.f32 0.0, %v1928
      %v1930 = vpop.f32.mrb[0].mxu0
      %1931 = vmatprep.mubr.bf16.mxu0 0
      %1932 = vmatmul.mubr.bf16.gmra.mrb[0].mxu0 %v1794
      %v1933 = vpop.f32.mrb[0].mxu0
      %v1934 = vadd.f32 0.0, %v1933
      %v1935 = vpop.f32.mrb[0].mxu0
      %v1936 = vpop.f32.mrb[0].mxu0
      %v1937 = vadd.f32 0.0, %v1936
      %v1938 = vpop.f32.mrb[0].mxu0
      %1939 = vmatprep.mubr.bf16.mxu0 0
      %1940 = vmatmul.mubr.bf16.gmra.mrb[0].mxu0 %v1797
      %v1941 = vpop.f32.mrb[0].mxu0
      %v1942 = vadd.f32 0.0, %v1941
      %v1943 = vpop.f32.mrb[0].mxu0
      %v1944 = vpop.f32.mrb[0].mxu0
      %v1945 = vadd.f32 0.0, %v1944
      %v1946 = vpop.f32.mrb[0].mxu0
      %1947 = vmatprep.mubr.bf16.mxu0 0
      %1948 = vmatmul.mubr.bf16.gmra.mrb[0].mxu0 %v1800
      %v1949 = vpop.f32.mrb[0].mxu0
      %v1950 = vadd.f32 0.0, %v1949
      %v1951 = vpop.f32.mrb[0].mxu0
      %v1952 = vpop.f32.mrb[0].mxu0
      %v1953 = vadd.f32 0.0, %v1952
      %v1954 = vpop.f32.mrb[0].mxu0
      %1955 = vmatprep.mubr.bf16.mxu0 0
      %1956 = vmatmul.mubr.bf16.gmra.mrb[0].mxu0 %v1803
      %v1957 = vpop.f32.mrb[0].mxu0
      %v1958 = vadd.f32 0.0, %v1957
      %v1959 = vpop.f32.mrb[0].mxu0
      %v1960 = vpop.f32.mrb[0].mxu0
      %v1961 = vadd.f32 0.0, %v1960
      %v1962 = vpop.f32.mrb[0].mxu0
      %1963 = vmatprep.mubr.bf16.mxu0 0
      %1964 = vmatmul.mubr.bf16.gmra.mrb[0].mxu0 %v1806
      %v1965 = vpop.f32.mrb[0].mxu0
      %v1966 = vadd.f32 0.0, %v1965
      %v1967 = vpop.f32.mrb[0].mxu0
      %v1968 = vpop.f32.mrb[0].mxu0
      %v1969 = vadd.f32 0.0, %v1968
      %v1970 = vpop.f32.mrb[0].mxu0
      %1971 = vdwg.mxu0
      %v1972 = vadd.f32 %v1610, %v1846
      %v1973 = vadd.f32 %v1611, %v1849
      %v1974 = vadd.f32 %v1612, %v1854
      %v1975 = vadd.f32 %v1613, %v1857
      %v1976 = vadd.f32 %v1614, %v1862
      %v1977 = vadd.f32 %v1615, %v1865
      %v1978 = vadd.f32 %v1616, %v1870
      %v1979 = vadd.f32 %v1617, %v1873
      %v1980 = vadd.f32 %v1618, %v1878
      %v1981 = vadd.f32 %v1619, %v1881
      %v1982 = vadd.f32 %v1620, %v1886
      %v1983 = vadd.f32 %v1621, %v1889
      %v1984 = vadd.f32 %v1622, %v1894
      %v1985 = vadd.f32 %v1623, %v1897
      %v1986 = vadd.f32 %v1624, %v1902
      %v1987 = vadd.f32 %v1625, %v1905
      %v1988 = vadd.f32 %v1626, %v1910
      %v1989 = vadd.f32 %v1627, %v1913
      %v1990 = vadd.f32 %v1628, %v1918
      %v1991 = vadd.f32 %v1629, %v1921
      %v1992 = vadd.f32 %v1630, %v1926
      %v1993 = vadd.f32 %v1631, %v1929
      %v1994 = vadd.f32 %v1632, %v1934
      %v1995 = vadd.f32 %v1633, %v1937
      %v1996 = vadd.f32 %v1634, %v1942
      %v1997 = vadd.f32 %v1635, %v1945
      %v1998 = vadd.f32 %v1636, %v1950
      %v1999 = vadd.f32 %v1637, %v1953
      %v2000 = vadd.f32 %v1638, %v1958
      %v2001 = vadd.f32 %v1639, %v1961
      %v2002 = vadd.f32 %v1640, %v1966
      %v2003 = vadd.f32 %v1641, %v1969
      %v2004 = vld [vmem:[%s1645] sm:$0xf]
      %v2005 = vld [vmem:[%s1645 + $0x4] sm:$0xf]
      %v2006 = vld [vmem:[%s1645 + $0x8] sm:$0xf]
      %v2007 = vld [vmem:[%s1645 + $0xc] sm:$0xf]
      %v2008 = vld [vmem:[%s1645 + $0x10] sm:$0x1]
      %v2009 = vld [vmem:[%s1645 + $0x14] sm:$0xf]
      %v2010 = vld [vmem:[%s1645 + $0x18] sm:$0xf]
      %v2011 = vld [vmem:[%s1645 + $0x1c] sm:$0xf]
      %v2012 = vld [vmem:[%s1645 + $0x20] sm:$0xf]
      %v2013 = vld [vmem:[%s1645 + $0x24] sm:$0x1]
      %v2014 = vld [vmem:[%s1645 + $0x28] sm:$0xf]
      %v2015 = vld [vmem:[%s1645 + $0x2c] sm:$0xf]
      %v2016 = vld [vmem:[%s1645 + $0x30] sm:$0xf]
      %v2017 = vld [vmem:[%s1645 + $0x34] sm:$0xf]
      %v2018 = vld [vmem:[%s1645 + $0x38] sm:$0x1]
      %v2019 = vld [vmem:[%s1645 + $0x3c] sm:$0xf]
      %v2020 = vld [vmem:[%s1645 + $0x40] sm:$0xf]
      %v2021 = vld [vmem:[%s1645 + $0x44] sm:$0xf]
      %v2022 = vld [vmem:[%s1645 + $0x48] sm:$0xf]
      %v2023 = vld [vmem:[%s1645 + $0x4c] sm:$0x1]
      %v2024 = vld [vmem:[%s1645 + $0x50] sm:$0xf]
      %v2025 = vld [vmem:[%s1645 + $0x54] sm:$0xf]
      %v2026 = vld [vmem:[%s1645 + $0x58] sm:$0xf]
      %v2027 = vld [vmem:[%s1645 + $0x5c] sm:$0xf]
      %v2028 = vld [vmem:[%s1645 + $0x60] sm:$0x1]
      %v2029 = vld [vmem:[%s1645 + $0x64] sm:$0xf]
      %v2030 = vld [vmem:[%s1645 + $0x68] sm:$0xf]
      %v2031 = vld [vmem:[%s1645 + $0x6c] sm:$0xf]
      %v2032 = vld [vmem:[%s1645 + $0x70] sm:$0xf]
      %v2033 = vld [vmem:[%s1645 + $0x74] sm:$0x1]
      %v2034 = vld [vmem:[%s1645 + $0x78] sm:$0xf]
      %v2035 = vld [vmem:[%s1645 + $0x7c] sm:$0xf]
      %v2036 = vld [vmem:[%s1645 + $0x80] sm:$0xf]
      %v2037 = vld [vmem:[%s1645 + $0x84] sm:$0xf]
      %v2038 = vld [vmem:[%s1645 + $0x88] sm:$0x1]
      %v2039 = vld [vmem:[%s1645 + $0x8c] sm:$0xf]
      %v2040 = vld [vmem:[%s1645 + $0x90] sm:$0xf]
      %v2041 = vld [vmem:[%s1645 + $0x94] sm:$0xf]
      %v2042 = vld [vmem:[%s1645 + $0x98] sm:$0xf]
      %v2043 = vld [vmem:[%s1645 + $0x9c] sm:$0x1]
      %v2045 = vshrl.u32 %v2004, 16
      %v2047 = vrot.slane %v2045, 4
      %v2048 = vshll.u32 %v2004, 16
      %v2050 = vrot.slane %v2048, 5
      %v2051 = vor.u32 %v2047, %v2050
      %v2052 = vrot.slane %v2051, 4
      %v2054 = vshll.u32 %v2005, 16
      %v2056 = vrot.slane %v2054, 5
      %v2057 = vsel %vm308, %v2052, %v2056
      %v2058 = vshrl.u32 %v2005, 16
      %v2060 = vrot.slane %v2058, 4
      %v2061 = vor.u32 %v2060, %v2056
      %v2062 = vrot.slane %v2061, 4
      %v2064 = vshll.u32 %v2006, 16
      %v2066 = vrot.slane %v2064, 5
      %v2067 = vsel %vm308, %v2062, %v2066
      %v2068 = vshrl.u32 %v2006, 16
      %v2070 = vrot.slane %v2068, 4
      %v2071 = vor.u32 %v2070, %v2066
      %v2072 = vrot.slane %v2071, 4
      %v2074 = vshll.u32 %v2007, 16
      %v2076 = vrot.slane %v2074, 5
      %v2077 = vsel %vm308, %v2072, %v2076
      %v2078 = vshrl.u32 %v2007, 16
      %v2080 = vrot.slane %v2078, 4
      %v2081 = vor.u32 %v2080, %v2076
      %v2082 = vrot.slane %v2081, 4
      %v2084 = vshll.u32 %v2008, 16
      %v2086 = vrot.slane %v2084, 5
      %v2087 = vsel %vm308, %v2082, %v2086
      %v2089 = vshrl.u32 %v2009, 16
      %v2091 = vrot.slane %v2089, 4
      %v2092 = vshll.u32 %v2009, 16
      %v2094 = vrot.slane %v2092, 5
      %v2095 = vor.u32 %v2091, %v2094
      %v2096 = vrot.slane %v2095, 4
      %v2098 = vshll.u32 %v2010, 16
      %v2100 = vrot.slane %v2098, 5
      %v2101 = vsel %vm308, %v2096, %v2100
      %v2102 = vshrl.u32 %v2010, 16
      %v2104 = vrot.slane %v2102, 4
      %v2105 = vor.u32 %v2104, %v2100
      %v2106 = vrot.slane %v2105, 4
      %v2108 = vshll.u32 %v2011, 16
      %v2110 = vrot.slane %v2108, 5
      %v2111 = vsel %vm308, %v2106, %v2110
      %v2112 = vshrl.u32 %v2011, 16
      %v2114 = vrot.slane %v2112, 4
      %v2115 = vor.u32 %v2114, %v2110
      %v2116 = vrot.slane %v2115, 4
      %v2118 = vshll.u32 %v2012, 16
      %v2120 = vrot.slane %v2118, 5
      %v2121 = vsel %vm308, %v2116, %v2120
      %v2122 = vshrl.u32 %v2012, 16
      %v2124 = vrot.slane %v2122, 4
      %v2125 = vor.u32 %v2124, %v2120
      %v2126 = vrot.slane %v2125, 4
      %v2128 = vshll.u32 %v2013, 16
      %v2130 = vrot.slane %v2128, 5
      %v2131 = vsel %vm308, %v2126, %v2130
      %v2133 = vshrl.u32 %v2014, 16
      %v2135 = vrot.slane %v2133, 4
      %v2136 = vshll.u32 %v2014, 16
      %v2138 = vrot.slane %v2136, 5
      %v2139 = vor.u32 %v2135, %v2138
      %v2140 = vrot.slane %v2139, 4
      %v2142 = vshll.u32 %v2015, 16
      %v2144 = vrot.slane %v2142, 5
      %v2145 = vsel %vm308, %v2140, %v2144
      %v2146 = vshrl.u32 %v2015, 16
      %v2148 = vrot.slane %v2146, 4
      %v2149 = vor.u32 %v2148, %v2144
      %v2150 = vrot.slane %v2149, 4
      %v2152 = vshll.u32 %v2016, 16
      %v2154 = vrot.slane %v2152, 5
      %v2155 = vsel %vm308, %v2150, %v2154
      %v2156 = vshrl.u32 %v2016, 16
      %v2158 = vrot.slane %v2156, 4
      %v2159 = vor.u32 %v2158, %v2154
      %v2160 = vrot.slane %v2159, 4
      %v2162 = vshll.u32 %v2017, 16
      %v2164 = vrot.slane %v2162, 5
      %v2165 = vsel %vm308, %v2160, %v2164
      %v2166 = vshrl.u32 %v2017, 16
      %v2168 = vrot.slane %v2166, 4
      %v2169 = vor.u32 %v2168, %v2164
      %v2170 = vrot.slane %v2169, 4
      %v2172 = vshll.u32 %v2018, 16
      %v2174 = vrot.slane %v2172, 5
      %v2175 = vsel %vm308, %v2170, %v2174
      %v2177 = vshrl.u32 %v2019, 16
      %v2179 = vrot.slane %v2177, 4
      %v2180 = vshll.u32 %v2019, 16
      %v2182 = vrot.slane %v2180, 5
      %v2183 = vor.u32 %v2179, %v2182
      %v2184 = vrot.slane %v2183, 4
      %v2186 = vshll.u32 %v2020, 16
      %v2188 = vrot.slane %v2186, 5
      %v2189 = vsel %vm308, %v2184, %v2188
      %v2190 = vshrl.u32 %v2020, 16
      %v2192 = vrot.slane %v2190, 4
      %v2193 = vor.u32 %v2192, %v2188
      %v2194 = vrot.slane %v2193, 4
      %v2196 = vshll.u32 %v2021, 16
      %v2198 = vrot.slane %v2196, 5
      %v2199 = vsel %vm308, %v2194, %v2198
      %v2200 = vshrl.u32 %v2021, 16
      %v2202 = vrot.slane %v2200, 4
      %v2203 = vor.u32 %v2202, %v2198
      %v2204 = vrot.slane %v2203, 4
      %v2206 = vshll.u32 %v2022, 16
      %v2208 = vrot.slane %v2206, 5
      %v2209 = vsel %vm308, %v2204, %v2208
      %v2210 = vshrl.u32 %v2022, 16
      %v2212 = vrot.slane %v2210, 4
      %v2213 = vor.u32 %v2212, %v2208
      %v2214 = vrot.slane %v2213, 4
      %v2216 = vshll.u32 %v2023, 16
      %v2218 = vrot.slane %v2216, 5
      %v2219 = vsel %vm308, %v2214, %v2218
      %v2221 = vshrl.u32 %v2024, 16
      %v2223 = vrot.slane %v2221, 4
      %v2224 = vshll.u32 %v2024, 16
      %v2226 = vrot.slane %v2224, 5
      %v2227 = vor.u32 %v2223, %v2226
      %v2228 = vrot.slane %v2227, 4
      %v2230 = vshll.u32 %v2025, 16
      %v2232 = vrot.slane %v2230, 5
      %v2233 = vsel %vm308, %v2228, %v2232
      %v2234 = vshrl.u32 %v2025, 16
      %v2236 = vrot.slane %v2234, 4
      %v2237 = vor.u32 %v2236, %v2232
      %v2238 = vrot.slane %v2237, 4
      %v2240 = vshll.u32 %v2026, 16
      %v2242 = vrot.slane %v2240, 5
      %v2243 = vsel %vm308, %v2238, %v2242
      %v2244 = vshrl.u32 %v2026, 16
      %v2246 = vrot.slane %v2244, 4
      %v2247 = vor.u32 %v2246, %v2242
      %v2248 = vrot.slane %v2247, 4
      %v2250 = vshll.u32 %v2027, 16
      %v2252 = vrot.slane %v2250, 5
      %v2253 = vsel %vm308, %v2248, %v2252
      %v2254 = vshrl.u32 %v2027, 16
      %v2256 = vrot.slane %v2254, 4
      %v2257 = vor.u32 %v2256, %v2252
      %v2258 = vrot.slane %v2257, 4
      %v2260 = vshll.u32 %v2028, 16
      %v2262 = vrot.slane %v2260, 5
      %v2263 = vsel %vm308, %v2258, %v2262
      %v2265 = vshrl.u32 %v2029, 16
      %v2267 = vrot.slane %v2265, 4
      %v2268 = vshll.u32 %v2029, 16
      %v2270 = vrot.slane %v2268, 5
      %v2271 = vor.u32 %v2267, %v2270
      %v2272 = vrot.slane %v2271, 4
      %v2274 = vshll.u32 %v2030, 16
      %v2276 = vrot.slane %v2274, 5
      %v2277 = vsel %vm308, %v2272, %v2276
      %v2278 = vshrl.u32 %v2030, 16
      %v2280 = vrot.slane %v2278, 4
      %v2281 = vor.u32 %v2280, %v2276
      %v2282 = vrot.slane %v2281, 4
      %v2284 = vshll.u32 %v2031, 16
      %v2286 = vrot.slane %v2284, 5
      %v2287 = vsel %vm308, %v2282, %v2286
      %v2288 = vshrl.u32 %v2031, 16
      %v2290 = vrot.slane %v2288, 4
      %v2291 = vor.u32 %v2290, %v2286
      %v2292 = vrot.slane %v2291, 4
      %v2294 = vshll.u32 %v2032, 16
      %v2296 = vrot.slane %v2294, 5
      %v2297 = vsel %vm308, %v2292, %v2296
      %v2298 = vshrl.u32 %v2032, 16
      %v2300 = vrot.slane %v2298, 4
      %v2301 = vor.u32 %v2300, %v2296
      %v2302 = vrot.slane %v2301, 4
      %v2304 = vshll.u32 %v2033, 16
      %v2306 = vrot.slane %v2304, 5
      %v2307 = vsel %vm308, %v2302, %v2306
      %v2309 = vshrl.u32 %v2034, 16
      %v2311 = vrot.slane %v2309, 4
      %v2312 = vshll.u32 %v2034, 16
      %v2314 = vrot.slane %v2312, 5
      %v2315 = vor.u32 %v2311, %v2314
      %v2316 = vrot.slane %v2315, 4
      %v2318 = vshll.u32 %v2035, 16
      %v2320 = vrot.slane %v2318, 5
      %v2321 = vsel %vm308, %v2316, %v2320
      %v2322 = vshrl.u32 %v2035, 16
      %v2324 = vrot.slane %v2322, 4
      %v2325 = vor.u32 %v2324, %v2320
      %v2326 = vrot.slane %v2325, 4
      %v2328 = vshll.u32 %v2036, 16
      %v2330 = vrot.slane %v2328, 5
      %v2331 = vsel %vm308, %v2326, %v2330
      %v2332 = vshrl.u32 %v2036, 16
      %v2334 = vrot.slane %v2332, 4
      %v2335 = vor.u32 %v2334, %v2330
      %v2336 = vrot.slane %v2335, 4
      %v2338 = vshll.u32 %v2037, 16
      %v2340 = vrot.slane %v2338, 5
      %v2341 = vsel %vm308, %v2336, %v2340
      %v2342 = vshrl.u32 %v2037, 16
      %v2344 = vrot.slane %v2342, 4
      %v2345 = vor.u32 %v2344, %v2340
      %v2346 = vrot.slane %v2345, 4
      %v2348 = vshll.u32 %v2038, 16
      %v2350 = vrot.slane %v2348, 5
      %v2351 = vsel %vm308, %v2346, %v2350
      %v2353 = vshrl.u32 %v2039, 16
      %v2355 = vrot.slane %v2353, 4
      %v2356 = vshll.u32 %v2039, 16
      %v2358 = vrot.slane %v2356, 5
      %v2359 = vor.u32 %v2355, %v2358
      %v2360 = vrot.slane %v2359, 4
      %v2362 = vshll.u32 %v2040, 16
      %v2364 = vrot.slane %v2362, 5
      %v2365 = vsel %vm308, %v2360, %v2364
      %v2366 = vshrl.u32 %v2040, 16
      %v2368 = vrot.slane %v2366, 4
      %v2369 = vor.u32 %v2368, %v2364
      %v2370 = vrot.slane %v2369, 4
      %v2372 = vshll.u32 %v2041, 16
      %v2374 = vrot.slane %v2372, 5
      %v2375 = vsel %vm308, %v2370, %v2374
      %v2376 = vshrl.u32 %v2041, 16
      %v2378 = vrot.slane %v2376, 4
      %v2379 = vor.u32 %v2378, %v2374
      %v2380 = vrot.slane %v2379, 4
      %v2382 = vshll.u32 %v2042, 16
      %v2384 = vrot.slane %v2382, 5
      %v2385 = vsel %vm308, %v2380, %v2384
      %v2386 = vshrl.u32 %v2042, 16
      %v2388 = vrot.slane %v2386, 4
      %v2389 = vor.u32 %v2388, %v2384
      %v2390 = vrot.slane %v2389, 4
      %v2392 = vshll.u32 %v2043, 16
      %v2394 = vrot.slane %v2392, 5
      %v2395 = vsel %vm308, %v2390, %v2394
      %s2396 = scalar_lea.vmem %s1, 8
      %v2397 = vld [vmem:[%s2396] sm:$0x3]
      %v2398 = vunpack.c.l.b16 %v2057
      %v2399 = vunpack.c.l.b16 %v2067
      %v2400 = vunpack.c.l.b16 %v2077
      %v2401 = vunpack.c.l.b16 %v2087
      %v2402 = vunpack.c.l.b16 %v2101
      %v2403 = vunpack.c.l.b16 %v2111
      %v2404 = vunpack.c.l.b16 %v2121
      %v2405 = vunpack.c.l.b16 %v2131
      %v2406 = vunpack.c.l.b16 %v2145
      %v2407 = vunpack.c.l.b16 %v2155
      %v2408 = vunpack.c.l.b16 %v2165
      %v2409 = vunpack.c.l.b16 %v2175
      %v2410 = vunpack.c.l.b16 %v2189
      %v2411 = vunpack.c.l.b16 %v2199
      %v2412 = vunpack.c.l.b16 %v2209
      %v2413 = vunpack.c.l.b16 %v2219
      %v2414 = vunpack.c.l.b16 %v2233
      %v2415 = vunpack.c.l.b16 %v2243
      %v2416 = vunpack.c.l.b16 %v2253
      %v2417 = vunpack.c.l.b16 %v2263
      %v2418 = vunpack.c.l.b16 %v2277
      %v2419 = vunpack.c.l.b16 %v2287
      %v2420 = vunpack.c.l.b16 %v2297
      %v2421 = vunpack.c.l.b16 %v2307
      %v2422 = vunpack.c.l.b16 %v2321
      %v2423 = vunpack.c.l.b16 %v2331
      %v2424 = vunpack.c.l.b16 %v2341
      %v2425 = vunpack.c.l.b16 %v2351
      %v2426 = vunpack.c.l.b16 %v2365
      %v2427 = vunpack.c.l.b16 %v2375
      %v2428 = vunpack.c.l.b16 %v2385
      %v2429 = vunpack.c.l.b16 %v2395
      %v2430 = vpack.c.b16 %v2399, %v2398
      %v2431 = vpack.c.b16 %v2401, %v2400
      %v2432 = vpack.c.b16 %v2403, %v2402
      %v2433 = vpack.c.b16 %v2405, %v2404
      %v2434 = vpack.c.b16 %v2407, %v2406
      %v2435 = vpack.c.b16 %v2409, %v2408
      %v2436 = vpack.c.b16 %v2411, %v2410
      %v2437 = vpack.c.b16 %v2413, %v2412
      %v2438 = vpack.c.b16 %v2415, %v2414
      %v2439 = vpack.c.b16 %v2417, %v2416
      %v2440 = vpack.c.b16 %v2419, %v2418
      %v2441 = vpack.c.b16 %v2421, %v2420
      %v2442 = vpack.c.b16 %v2423, %v2422
      %v2443 = vpack.c.b16 %v2425, %v2424
      %v2444 = vpack.c.b16 %v2427, %v2426
      %v2445 = vpack.c.b16 %v2429, %v2428
      %v2447 = vsel %vm711, %v2430, 0
      %v2450 = vsel %vm711, %v2431, 0
      %v2453 = vsel %vm711, %v2432, 0
      %v2456 = vsel %vm711, %v2433, 0
      %v2459 = vsel %vm711, %v2434, 0
      %v2462 = vsel %vm711, %v2435, 0
      %v2465 = vsel %vm711, %v2436, 0
      %v2468 = vsel %vm711, %v2437, 0
      %v2471 = vsel %vm711, %v2438, 0
      %v2474 = vsel %vm711, %v2439, 0
      %v2477 = vsel %vm711, %v2440, 0
      %v2480 = vsel %vm711, %v2441, 0
      %v2483 = vsel %vm711, %v2442, 0
      %v2486 = vsel %vm711, %v2443, 0
      %v2489 = vsel %vm711, %v2444, 0
      %v2492 = vsel %vm711, %v2445, 0
      %v2495 = vsel %vm760, %v2397, 0
      %2497 = vmatprep.subr.bf16.mxu0 0
      %2498 = vmatpush1.bf16.msra.mxu0 %v2495
      %2499 = vmatprep.subr.bf16.mxu0 0
      %2500 = vmatpush1.bf16.msra.mxu0 0
      %2501 = vmatprep.subr.bf16.mxu0 0
      %2502 = vmatpush1.bf16.msra.mxu0 0
      %2503 = vmatprep.subr.bf16.mxu0 0
      %2504 = vmatpush1.bf16.msra.mxu0 0
      %2505 = vmatprep.subr.bf16.mxu0 0
      %2506 = vmatpush1.bf16.msra.mxu0 0
      %2507 = vmatprep.subr.bf16.mxu0 0
      %2508 = vmatpush1.bf16.msra.mxu0 0
      %2509 = vmatprep.subr.bf16.mxu0 0
      %2510 = vmatpush1.bf16.msra.mxu0 0
      %2511 = vmatprep.subr.bf16.mxu0 0
      %2512 = vmatpush1.bf16.msra.mxu0 0
      %2513 = vmatprep.subr.bf16.mxu0 0
      %2514 = vmatpush1.bf16.msra.mxu0 0
      %2515 = vmatprep.subr.bf16.mxu0 0
      %2516 = vmatpush1.bf16.msra.mxu0 0
      %2517 = vmatprep.subr.bf16.mxu0 0
      %2518 = vmatpush1.bf16.msra.mxu0 0
      %2519 = vmatprep.subr.bf16.mxu0 0
      %2520 = vmatpush1.bf16.msra.mxu0 0
      %2521 = vmatprep.subr.bf16.mxu0 0
      %2522 = vmatpush1.bf16.msra.mxu0 0
      %2523 = vmatprep.subr.bf16.mxu0 0
      %2524 = vmatpush1.bf16.msra.mxu0 0
      %2525 = vmatprep.subr.bf16.mxu0 0
      %2526 = vmatpush1.bf16.msra.mxu0 0
      %2527 = vmatprep.subr.bf16.mxu0 0
      %2528 = vmatpush1.bf16.msra.mxu0 0
      %2529 = vmatprep.mubr.bf16.mxu0 0
      %2530 = vmatmul.mubr.bf16.gmra.mrb[0].mxu0 %v2447
      %v2531 = vpop.f32.mrb[0].mxu0
      %v2532 = vadd.f32 0.0, %v2531
      %v2533 = vpop.f32.mrb[0].mxu0
      %v2534 = vpop.f32.mrb[0].mxu0
      %v2535 = vadd.f32 0.0, %v2534
      %v2536 = vpop.f32.mrb[0].mxu0
      %2537 = vmatprep.mubr.bf16.mxu0 0
      %2538 = vmatmul.mubr.bf16.gmra.mrb[0].mxu0 %v2450
      %v2539 = vpop.f32.mrb[0].mxu0
      %v2540 = vadd.f32 0.0, %v2539
      %v2541 = vpop.f32.mrb[0].mxu0
      %v2542 = vpop.f32.mrb[0].mxu0
      %v2543 = vadd.f32 0.0, %v2542
      %v2544 = vpop.f32.mrb[0].mxu0
      %2545 = vmatprep.mubr.bf16.mxu0 0
      %2546 = vmatmul.mubr.bf16.gmra.mrb[0].mxu0 %v2453
      %v2547 = vpop.f32.mrb[0].mxu0
      %v2548 = vadd.f32 0.0, %v2547
      %v2549 = vpop.f32.mrb[0].mxu0
      %v2550 = vpop.f32.mrb[0].mxu0
      %v2551 = vadd.f32 0.0, %v2550
      %v2552 = vpop.f32.mrb[0].mxu0
      %2553 = vmatprep.mubr.bf16.mxu0 0
      %2554 = vmatmul.mubr.bf16.gmra.mrb[0].mxu0 %v2456
      %v2555 = vpop.f32.mrb[0].mxu0
      %v2556 = vadd.f32 0.0, %v2555
      %v2557 = vpop.f32.mrb[0].mxu0
      %v2558 = vpop.f32.mrb[0].mxu0
      %v2559 = vadd.f32 0.0, %v2558
      %v2560 = vpop.f32.mrb[0].mxu0
      %2561 = vmatprep.mubr.bf16.mxu0 0
      %2562 = vmatmul.mubr.bf16.gmra.mrb[0].mxu0 %v2459
      %v2563 = vpop.f32.mrb[0].mxu0
      %v2564 = vadd.f32 0.0, %v2563
      %v2565 = vpop.f32.mrb[0].mxu0
      %v2566 = vpop.f32.mrb[0].mxu0
      %v2567 = vadd.f32 0.0, %v2566
      %v2568 = vpop.f32.mrb[0].mxu0
      %2569 = vmatprep.mubr.bf16.mxu0 0
      %2570 = vmatmul.mubr.bf16.gmra.mrb[0].mxu0 %v2462
      %v2571 = vpop.f32.mrb[0].mxu0
      %v2572 = vadd.f32 0.0, %v2571
      %v2573 = vpop.f32.mrb[0].mxu0
      %v2574 = vpop.f32.mrb[0].mxu0
      %v2575 = vadd.f32 0.0, %v2574
      %v2576 = vpop.f32.mrb[0].mxu0
      %2577 = vmatprep.mubr.bf16.mxu0 0
      %2578 = vmatmul.mubr.bf16.gmra.mrb[0].mxu0 %v2465
      %v2579 = vpop.f32.mrb[0].mxu0
      %v2580 = vadd.f32 0.0, %v2579
      %v2581 = vpop.f32.mrb[0].mxu0
      %v2582 = vpop.f32.mrb[0].mxu0
      %v2583 = vadd.f32 0.0, %v2582
      %v2584 = vpop.f32.mrb[0].mxu0
      %2585 = vmatprep.mubr.bf16.mxu0 0
      %2586 = vmatmul.mubr.bf16.gmra.mrb[0].mxu0 %v2468
      %v2587 = vpop.f32.mrb[0].mxu0
      %v2588 = vadd.f32 0.0, %v2587
      %v2589 = vpop.f32.mrb[0].mxu0
      %v2590 = vpop.f32.mrb[0].mxu0
      %v2591 = vadd.f32 0.0, %v2590
      %v2592 = vpop.f32.mrb[0].mxu0
      %2593 = vmatprep.mubr.bf16.mxu0 0
      %2594 = vmatmul.mubr.bf16.gmra.mrb[0].mxu0 %v2471
      %v2595 = vpop.f32.mrb[0].mxu0
      %v2596 = vadd.f32 0.0, %v2595
      %v2597 = vpop.f32.mrb[0].mxu0
      %v2598 = vpop.f32.mrb[0].mxu0
      %v2599 = vadd.f32 0.0, %v2598
      %v2600 = vpop.f32.mrb[0].mxu0
      %2601 = vmatprep.mubr.bf16.mxu0 0
      %2602 = vmatmul.mubr.bf16.gmra.mrb[0].mxu0 %v2474
      %v2603 = vpop.f32.mrb[0].mxu0
      %v2604 = vadd.f32 0.0, %v2603
      %v2605 = vpop.f32.mrb[0].mxu0
      %v2606 = vpop.f32.mrb[0].mxu0
      %v2607 = vadd.f32 0.0, %v2606
      %v2608 = vpop.f32.mrb[0].mxu0
      %2609 = vmatprep.mubr.bf16.mxu0 0
      %2610 = vmatmul.mubr.bf16.gmra.mrb[0].mxu0 %v2477
      %v2611 = vpop.f32.mrb[0].mxu0
      %v2612 = vadd.f32 0.0, %v2611
      %v2613 = vpop.f32.mrb[0].mxu0
      %v2614 = vpop.f32.mrb[0].mxu0
      %v2615 = vadd.f32 0.0, %v2614
      %v2616 = vpop.f32.mrb[0].mxu0
      %2617 = vmatprep.mubr.bf16.mxu0 0
      %2618 = vmatmul.mubr.bf16.gmra.mrb[0].mxu0 %v2480
      %v2619 = vpop.f32.mrb[0].mxu0
      %v2620 = vadd.f32 0.0, %v2619
      %v2621 = vpop.f32.mrb[0].mxu0
      %v2622 = vpop.f32.mrb[0].mxu0
      %v2623 = vadd.f32 0.0, %v2622
      %v2624 = vpop.f32.mrb[0].mxu0
      %2625 = vmatprep.mubr.bf16.mxu0 0
      %2626 = vmatmul.mubr.bf16.gmra.mrb[0].mxu0 %v2483
      %v2627 = vpop.f32.mrb[0].mxu0
      %v2628 = vadd.f32 0.0, %v2627
      %v2629 = vpop.f32.mrb[0].mxu0
      %v2630 = vpop.f32.mrb[0].mxu0
      %v2631 = vadd.f32 0.0, %v2630
      %v2632 = vpop.f32.mrb[0].mxu0
      %2633 = vmatprep.mubr.bf16.mxu0 0
      %2634 = vmatmul.mubr.bf16.gmra.mrb[0].mxu0 %v2486
      %v2635 = vpop.f32.mrb[0].mxu0
      %v2636 = vadd.f32 0.0, %v2635
      %v2637 = vpop.f32.mrb[0].mxu0
      %v2638 = vpop.f32.mrb[0].mxu0
      %v2639 = vadd.f32 0.0, %v2638
      %v2640 = vpop.f32.mrb[0].mxu0
      %2641 = vmatprep.mubr.bf16.mxu0 0
      %2642 = vmatmul.mubr.bf16.gmra.mrb[0].mxu0 %v2489
      %v2643 = vpop.f32.mrb[0].mxu0
      %v2644 = vadd.f32 0.0, %v2643
      %v2645 = vpop.f32.mrb[0].mxu0
      %v2646 = vpop.f32.mrb[0].mxu0
      %v2647 = vadd.f32 0.0, %v2646
      %v2648 = vpop.f32.mrb[0].mxu0
      %2649 = vmatprep.mubr.bf16.mxu0 0
      %2650 = vmatmul.mubr.bf16.gmra.mrb[0].mxu0 %v2492
      %v2651 = vpop.f32.mrb[0].mxu0
      %v2652 = vadd.f32 0.0, %v2651
      %v2653 = vpop.f32.mrb[0].mxu0
      %v2654 = vpop.f32.mrb[0].mxu0
      %v2655 = vadd.f32 0.0, %v2654
      %v2656 = vpop.f32.mrb[0].mxu0
      %2657 = vdwg.mxu0
      %v2658 = vadd.f32 %v1972, %v2532
      %v2659 = vadd.f32 %v1973, %v2535
      %v2660 = vadd.f32 %v1974, %v2540
      %v2661 = vadd.f32 %v1975, %v2543
      %v2662 = vadd.f32 %v1976, %v2548
      %v2663 = vadd.f32 %v1977, %v2551
      %v2664 = vadd.f32 %v1978, %v2556
      %v2665 = vadd.f32 %v1979, %v2559
      %v2666 = vadd.f32 %v1980, %v2564
      %v2667 = vadd.f32 %v1981, %v2567
      %v2668 = vadd.f32 %v1982, %v2572
      %v2669 = vadd.f32 %v1983, %v2575
      %v2670 = vadd.f32 %v1984, %v2580
      %v2671 = vadd.f32 %v1985, %v2583
      %v2672 = vadd.f32 %v1986, %v2588
      %v2673 = vadd.f32 %v1987, %v2591
      %v2674 = vadd.f32 %v1988, %v2596
      %v2675 = vadd.f32 %v1989, %v2599
      %v2676 = vadd.f32 %v1990, %v2604
      %v2677 = vadd.f32 %v1991, %v2607
      %v2678 = vadd.f32 %v1992, %v2612
      %v2679 = vadd.f32 %v1993, %v2615
      %v2680 = vadd.f32 %v1994, %v2620
      %v2681 = vadd.f32 %v1995, %v2623
      %v2682 = vadd.f32 %v1996, %v2628
      %v2683 = vadd.f32 %v1997, %v2631
      %v2684 = vadd.f32 %v1998, %v2636
      %v2685 = vadd.f32 %v1999, %v2639
      %v2686 = vadd.f32 %v2000, %v2644
      %v2687 = vadd.f32 %v2001, %v2647
      %v2688 = vadd.f32 %v2002, %v2652
      %v2689 = vadd.f32 %v2003, %v2655
      %v2690 = vld [vmem:[%s1645] sm:$0xe]
      %v2691 = vld [vmem:[%s1645 + $0x14] sm:$0xe]
      %v2692 = vld [vmem:[%s1645 + $0x28] sm:$0xe]
      %v2693 = vld [vmem:[%s1645 + $0x3c] sm:$0xe]
      %v2694 = vld [vmem:[%s1645 + $0x50] sm:$0xe]
      %v2695 = vld [vmem:[%s1645 + $0x64] sm:$0xe]
      %v2696 = vld [vmem:[%s1645 + $0x78] sm:$0xe]
      %v2697 = vld [vmem:[%s1645 + $0x8c] sm:$0xe]
      %v2738 = vrot.slane %v2690, 5
      %v2739 = vrot.slane %v2738, 4
      %v2740 = vrot.slane %v2005, 5
      %v2741 = vsel %vm1243, %v2739, %v2740
      %v2742 = vrot.slane %v2740, 4
      %v2743 = vrot.slane %v2006, 5
      %v2744 = vsel %vm1243, %v2742, %v2743
      %v2745 = vrot.slane %v2743, 4
      %v2746 = vrot.slane %v2007, 5
      %v2747 = vsel %vm1243, %v2745, %v2746
      %v2748 = vrot.slane %v2746, 4
      %v2749 = vrot.slane %v2008, 5
      %v2750 = vsel %vm1243, %v2748, %v2749
      %v2751 = vrot.slane %v2691, 5
      %v2752 = vrot.slane %v2751, 4
      %v2753 = vrot.slane %v2010, 5
      %v2754 = vsel %vm1243, %v2752, %v2753
      %v2755 = vrot.slane %v2753, 4
      %v2756 = vrot.slane %v2011, 5
      %v2757 = vsel %vm1243, %v2755, %v2756
      %v2758 = vrot.slane %v2756, 4
      %v2759 = vrot.slane %v2012, 5
      %v2760 = vsel %vm1243, %v2758, %v2759
      %v2761 = vrot.slane %v2759, 4
      %v2762 = vrot.slane %v2013, 5
      %v2763 = vsel %vm1243, %v2761, %v2762
      %v2764 = vrot.slane %v2692, 5
      %v2765 = vrot.slane %v2764, 4
      %v2766 = vrot.slane %v2015, 5
      %v2767 = vsel %vm1243, %v2765, %v2766
      %v2768 = vrot.slane %v2766, 4
      %v2769 = vrot.slane %v2016, 5
      %v2770 = vsel %vm1243, %v2768, %v2769
      %v2771 = vrot.slane %v2769, 4
      %v2772 = vrot.slane %v2017, 5
      %v2773 = vsel %vm1243, %v2771, %v2772
      %v2774 = vrot.slane %v2772, 4
      %v2775 = vrot.slane %v2018, 5
      %v2776 = vsel %vm1243, %v2774, %v2775
      %v2777 = vrot.slane %v2693, 5
      %v2778 = vrot.slane %v2777, 4
      %v2779 = vrot.slane %v2020, 5
      %v2780 = vsel %vm1243, %v2778, %v2779
      %v2781 = vrot.slane %v2779, 4
      %v2782 = vrot.slane %v2021, 5
      %v2783 = vsel %vm1243, %v2781, %v2782
      %v2784 = vrot.slane %v2782, 4
      %v2785 = vrot.slane %v2022, 5
      %v2786 = vsel %vm1243, %v2784, %v2785
      %v2787 = vrot.slane %v2785, 4
      %v2788 = vrot.slane %v2023, 5
      %v2789 = vsel %vm1243, %v2787, %v2788
      %v2790 = vrot.slane %v2694, 5
      %v2791 = vrot.slane %v2790, 4
      %v2792 = vrot.slane %v2025, 5
      %v2793 = vsel %vm1243, %v2791, %v2792
      %v2794 = vrot.slane %v2792, 4
      %v2795 = vrot.slane %v2026, 5
      %v2796 = vsel %vm1243, %v2794, %v2795
      %v2797 = vrot.slane %v2795, 4
      %v2798 = vrot.slane %v2027, 5
      %v2799 = vsel %vm1243, %v2797, %v2798
      %v2800 = vrot.slane %v2798, 4
      %v2801 = vrot.slane %v2028, 5
      %v2802 = vsel %vm1243, %v2800, %v2801
      %v2803 = vrot.slane %v2695, 5
      %v2804 = vrot.slane %v2803, 4
      %v2805 = vrot.slane %v2030, 5
      %v2806 = vsel %vm1243, %v2804, %v2805
      %v2807 = vrot.slane %v2805, 4
      %v2808 = vrot.slane %v2031, 5
      %v2809 = vsel %vm1243, %v2807, %v2808
      %v2810 = vrot.slane %v2808, 4
      %v2811 = vrot.slane %v2032, 5
      %v2812 = vsel %vm1243, %v2810, %v2811
      %v2813 = vrot.slane %v2811, 4
      %v2814 = vrot.slane %v2033, 5
      %v2815 = vsel %vm1243, %v2813, %v2814
      %v2816 = vrot.slane %v2696, 5
      %v2817 = vrot.slane %v2816, 4
      %v2818 = vrot.slane %v2035, 5
      %v2819 = vsel %vm1243, %v2817, %v2818
      %v2820 = vrot.slane %v2818, 4
      %v2821 = vrot.slane %v2036, 5
      %v2822 = vsel %vm1243, %v2820, %v2821
      %v2823 = vrot.slane %v2821, 4
      %v2824 = vrot.slane %v2037, 5
      %v2825 = vsel %vm1243, %v2823, %v2824
      %v2826 = vrot.slane %v2824, 4
      %v2827 = vrot.slane %v2038, 5
      %v2828 = vsel %vm1243, %v2826, %v2827
      %v2829 = vrot.slane %v2697, 5
      %v2830 = vrot.slane %v2829, 4
      %v2831 = vrot.slane %v2040, 5
      %v2832 = vsel %vm1243, %v2830, %v2831
      %v2833 = vrot.slane %v2831, 4
      %v2834 = vrot.slane %v2041, 5
      %v2835 = vsel %vm1243, %v2833, %v2834
      %v2836 = vrot.slane %v2834, 4
      %v2837 = vrot.slane %v2042, 5
      %v2838 = vsel %vm1243, %v2836, %v2837
      %v2839 = vrot.slane %v2837, 4
      %v2840 = vrot.slane %v2043, 5
      %v2841 = vsel %vm1243, %v2839, %v2840
      %s2842 = scalar_lea.vmem %s1, 10
      %v2843 = vld [vmem:[%s2842] sm:$0x3]
      %v2844 = vunpack.c.l.b16 %v2741
      %v2845 = vunpack.c.l.b16 %v2744
      %v2846 = vunpack.c.l.b16 %v2747
      %v2847 = vunpack.c.l.b16 %v2750
      %v2848 = vunpack.c.l.b16 %v2754
      %v2849 = vunpack.c.l.b16 %v2757
      %v2850 = vunpack.c.l.b16 %v2760
      %v2851 = vunpack.c.l.b16 %v2763
      %v2852 = vunpack.c.l.b16 %v2767
      %v2853 = vunpack.c.l.b16 %v2770
      %v2854 = vunpack.c.l.b16 %v2773
      %v2855 = vunpack.c.l.b16 %v2776
      %v2856 = vunpack.c.l.b16 %v2780
      %v2857 = vunpack.c.l.b16 %v2783
      %v2858 = vunpack.c.l.b16 %v2786
      %v2859 = vunpack.c.l.b16 %v2789
      %v2860 = vunpack.c.l.b16 %v2793
      %v2861 = vunpack.c.l.b16 %v2796
      %v2862 = vunpack.c.l.b16 %v2799
      %v2863 = vunpack.c.l.b16 %v2802
      %v2864 = vunpack.c.l.b16 %v2806
      %v2865 = vunpack.c.l.b16 %v2809
      %v2866 = vunpack.c.l.b16 %v2812
      %v2867 = vunpack.c.l.b16 %v2815
      %v2868 = vunpack.c.l.b16 %v2819
      %v2869 = vunpack.c.l.b16 %v2822
      %v2870 = vunpack.c.l.b16 %v2825
      %v2871 = vunpack.c.l.b16 %v2828
      %v2872 = vunpack.c.l.b16 %v2832
      %v2873 = vunpack.c.l.b16 %v2835
      %v2874 = vunpack.c.l.b16 %v2838
      %v2875 = vunpack.c.l.b16 %v2841
      %v2876 = vpack.c.b16 %v2845, %v2844
      %v2877 = vpack.c.b16 %v2847, %v2846
      %v2878 = vpack.c.b16 %v2849, %v2848
      %v2879 = vpack.c.b16 %v2851, %v2850
      %v2880 = vpack.c.b16 %v2853, %v2852
      %v2881 = vpack.c.b16 %v2855, %v2854
      %v2882 = vpack.c.b16 %v2857, %v2856
      %v2883 = vpack.c.b16 %v2859, %v2858
      %v2884 = vpack.c.b16 %v2861, %v2860
      %v2885 = vpack.c.b16 %v2863, %v2862
      %v2886 = vpack.c.b16 %v2865, %v2864
      %v2887 = vpack.c.b16 %v2867, %v2866
      %v2888 = vpack.c.b16 %v2869, %v2868
      %v2889 = vpack.c.b16 %v2871, %v2870
      %v2890 = vpack.c.b16 %v2873, %v2872
      %v2891 = vpack.c.b16 %v2875, %v2874
      %v2893 = vsel %vm711, %v2876, 0
      %v2896 = vsel %vm711, %v2877, 0
      %v2899 = vsel %vm711, %v2878, 0
      %v2902 = vsel %vm711, %v2879, 0
      %v2905 = vsel %vm711, %v2880, 0
      %v2908 = vsel %vm711, %v2881, 0
      %v2911 = vsel %vm711, %v2882, 0
      %v2914 = vsel %vm711, %v2883, 0
      %v2917 = vsel %vm711, %v2884, 0
      %v2920 = vsel %vm711, %v2885, 0
      %v2923 = vsel %vm711, %v2886, 0
      %v2926 = vsel %vm711, %v2887, 0
      %v2929 = vsel %vm711, %v2888, 0
      %v2932 = vsel %vm711, %v2889, 0
      %v2935 = vsel %vm711, %v2890, 0
      %v2938 = vsel %vm711, %v2891, 0
      %v2941 = vsel %vm760, %v2843, 0
      %2943 = vmatprep.subr.bf16.mxu0 0
      %2944 = vmatpush1.bf16.msra.mxu0 %v2941
      %2945 = vmatprep.subr.bf16.mxu0 0
      %2946 = vmatpush1.bf16.msra.mxu0 0
      %2947 = vmatprep.subr.bf16.mxu0 0
      %2948 = vmatpush1.bf16.msra.mxu0 0
      %2949 = vmatprep.subr.bf16.mxu0 0
      %2950 = vmatpush1.bf16.msra.mxu0 0
      %2951 = vmatprep.subr.bf16.mxu0 0
      %2952 = vmatpush1.bf16.msra.mxu0 0
      %2953 = vmatprep.subr.bf16.mxu0 0
      %2954 = vmatpush1.bf16.msra.mxu0 0
      %2955 = vmatprep.subr.bf16.mxu0 0
      %2956 = vmatpush1.bf16.msra.mxu0 0
      %2957 = vmatprep.subr.bf16.mxu0 0
      %2958 = vmatpush1.bf16.msra.mxu0 0
      %2959 = vmatprep.subr.bf16.mxu0 0
      %2960 = vmatpush1.bf16.msra.mxu0 0
      %2961 = vmatprep.subr.bf16.mxu0 0
      %2962 = vmatpush1.bf16.msra.mxu0 0
      %2963 = vmatprep.subr.bf16.mxu0 0
      %2964 = vmatpush1.bf16.msra.mxu0 0
      %2965 = vmatprep.subr.bf16.mxu0 0
      %2966 = vmatpush1.bf16.msra.mxu0 0
      %2967 = vmatprep.subr.bf16.mxu0 0
      %2968 = vmatpush1.bf16.msra.mxu0 0
      %2969 = vmatprep.subr.bf16.mxu0 0
      %2970 = vmatpush1.bf16.msra.mxu0 0
      %2971 = vmatprep.subr.bf16.mxu0 0
      %2972 = vmatpush1.bf16.msra.mxu0 0
      %2973 = vmatprep.subr.bf16.mxu0 0
      %2974 = vmatpush1.bf16.msra.mxu0 0
      %2975 = vmatprep.mubr.bf16.mxu0 0
      %2976 = vmatmul.mubr.bf16.gmra.mrb[0].mxu0 %v2893
      %v2977 = vpop.f32.mrb[0].mxu0
      %v2978 = vadd.f32 0.0, %v2977
      %v2979 = vpop.f32.mrb[0].mxu0
      %v2980 = vpop.f32.mrb[0].mxu0
      %v2981 = vadd.f32 0.0, %v2980
      %v2982 = vpop.f32.mrb[0].mxu0
      %2983 = vmatprep.mubr.bf16.mxu0 0
      %2984 = vmatmul.mubr.bf16.gmra.mrb[0].mxu0 %v2896
      %v2985 = vpop.f32.mrb[0].mxu0
      %v2986 = vadd.f32 0.0, %v2985
      %v2987 = vpop.f32.mrb[0].mxu0
      %v2988 = vpop.f32.mrb[0].mxu0
      %v2989 = vadd.f32 0.0, %v2988
      %v2990 = vpop.f32.mrb[0].mxu0
      %2991 = vmatprep.mubr.bf16.mxu0 0
      %2992 = vmatmul.mubr.bf16.gmra.mrb[0].mxu0 %v2899
      %v2993 = vpop.f32.mrb[0].mxu0
      %v2994 = vadd.f32 0.0, %v2993
      %v2995 = vpop.f32.mrb[0].mxu0
      %v2996 = vpop.f32.mrb[0].mxu0
      %v2997 = vadd.f32 0.0, %v2996
      %v2998 = vpop.f32.mrb[0].mxu0
      %2999 = vmatprep.mubr.bf16.mxu0 0
      %3000 = vmatmul.mubr.bf16.gmra.mrb[0].mxu0 %v2902
      %v3001 = vpop.f32.mrb[0].mxu0
      %v3002 = vadd.f32 0.0, %v3001
      %v3003 = vpop.f32.mrb[0].mxu0
      %v3004 = vpop.f32.mrb[0].mxu0
      %v3005 = vadd.f32 0.0, %v3004
      %v3006 = vpop.f32.mrb[0].mxu0
      %3007 = vmatprep.mubr.bf16.mxu0 0
      %3008 = vmatmul.mubr.bf16.gmra.mrb[0].mxu0 %v2905
      %v3009 = vpop.f32.mrb[0].mxu0
      %v3010 = vadd.f32 0.0, %v3009
      %v3011 = vpop.f32.mrb[0].mxu0
      %v3012 = vpop.f32.mrb[0].mxu0
      %v3013 = vadd.f32 0.0, %v3012
      %v3014 = vpop.f32.mrb[0].mxu0
      %3015 = vmatprep.mubr.bf16.mxu0 0
      %3016 = vmatmul.mubr.bf16.gmra.mrb[0].mxu0 %v2908
      %v3017 = vpop.f32.mrb[0].mxu0
      %v3018 = vadd.f32 0.0, %v3017
      %v3019 = vpop.f32.mrb[0].mxu0
      %v3020 = vpop.f32.mrb[0].mxu0
      %v3021 = vadd.f32 0.0, %v3020
      %v3022 = vpop.f32.mrb[0].mxu0
      %3023 = vmatprep.mubr.bf16.mxu0 0
      %3024 = vmatmul.mubr.bf16.gmra.mrb[0].mxu0 %v2911
      %v3025 = vpop.f32.mrb[0].mxu0
      %v3026 = vadd.f32 0.0, %v3025
      %v3027 = vpop.f32.mrb[0].mxu0
      %v3028 = vpop.f32.mrb[0].mxu0
      %v3029 = vadd.f32 0.0, %v3028
      %v3030 = vpop.f32.mrb[0].mxu0
      %3031 = vmatprep.mubr.bf16.mxu0 0
      %3032 = vmatmul.mubr.bf16.gmra.mrb[0].mxu0 %v2914
      %v3033 = vpop.f32.mrb[0].mxu0
      %v3034 = vadd.f32 0.0, %v3033
      %v3035 = vpop.f32.mrb[0].mxu0
      %v3036 = vpop.f32.mrb[0].mxu0
      %v3037 = vadd.f32 0.0, %v3036
      %v3038 = vpop.f32.mrb[0].mxu0
      %3039 = vmatprep.mubr.bf16.mxu0 0
      %3040 = vmatmul.mubr.bf16.gmra.mrb[0].mxu0 %v2917
      %v3041 = vpop.f32.mrb[0].mxu0
      %v3042 = vadd.f32 0.0, %v3041
      %v3043 = vpop.f32.mrb[0].mxu0
      %v3044 = vpop.f32.mrb[0].mxu0
      %v3045 = vadd.f32 0.0, %v3044
      %v3046 = vpop.f32.mrb[0].mxu0
      %3047 = vmatprep.mubr.bf16.mxu0 0
      %3048 = vmatmul.mubr.bf16.gmra.mrb[0].mxu0 %v2920
      %v3049 = vpop.f32.mrb[0].mxu0
      %v3050 = vadd.f32 0.0, %v3049
      %v3051 = vpop.f32.mrb[0].mxu0
      %v3052 = vpop.f32.mrb[0].mxu0
      %v3053 = vadd.f32 0.0, %v3052
      %v3054 = vpop.f32.mrb[0].mxu0
      %3055 = vmatprep.mubr.bf16.mxu0 0
      %3056 = vmatmul.mubr.bf16.gmra.mrb[0].mxu0 %v2923
      %v3057 = vpop.f32.mrb[0].mxu0
      %v3058 = vadd.f32 0.0, %v3057
      %v3059 = vpop.f32.mrb[0].mxu0
      %v3060 = vpop.f32.mrb[0].mxu0
      %v3061 = vadd.f32 0.0, %v3060
      %v3062 = vpop.f32.mrb[0].mxu0
      %3063 = vmatprep.mubr.bf16.mxu0 0
      %3064 = vmatmul.mubr.bf16.gmra.mrb[0].mxu0 %v2926
      %v3065 = vpop.f32.mrb[0].mxu0
      %v3066 = vadd.f32 0.0, %v3065
      %v3067 = vpop.f32.mrb[0].mxu0
      %v3068 = vpop.f32.mrb[0].mxu0
      %v3069 = vadd.f32 0.0, %v3068
      %v3070 = vpop.f32.mrb[0].mxu0
      %3071 = vmatprep.mubr.bf16.mxu0 0
      %3072 = vmatmul.mubr.bf16.gmra.mrb[0].mxu0 %v2929
      %v3073 = vpop.f32.mrb[0].mxu0
      %v3074 = vadd.f32 0.0, %v3073
      %v3075 = vpop.f32.mrb[0].mxu0
      %v3076 = vpop.f32.mrb[0].mxu0
      %v3077 = vadd.f32 0.0, %v3076
      %v3078 = vpop.f32.mrb[0].mxu0
      %3079 = vmatprep.mubr.bf16.mxu0 0
      %3080 = vmatmul.mubr.bf16.gmra.mrb[0].mxu0 %v2932
      %v3081 = vpop.f32.mrb[0].mxu0
      %v3082 = vadd.f32 0.0, %v3081
      %v3083 = vpop.f32.mrb[0].mxu0
      %v3084 = vpop.f32.mrb[0].mxu0
      %v3085 = vadd.f32 0.0, %v3084
      %v3086 = vpop.f32.mrb[0].mxu0
      %3087 = vmatprep.mubr.bf16.mxu0 0
      %3088 = vmatmul.mubr.bf16.gmra.mrb[0].mxu0 %v2935
      %v3089 = vpop.f32.mrb[0].mxu0
      %v3090 = vadd.f32 0.0, %v3089
      %v3091 = vpop.f32.mrb[0].mxu0
      %v3092 = vpop.f32.mrb[0].mxu0
      %v3093 = vadd.f32 0.0, %v3092
      %v3094 = vpop.f32.mrb[0].mxu0
      %3095 = vmatprep.mubr.bf16.mxu0 0
      %3096 = vmatmul.mubr.bf16.gmra.mrb[0].mxu0 %v2938
      %v3097 = vpop.f32.mrb[0].mxu0
      %v3098 = vadd.f32 0.0, %v3097
      %v3099 = vpop.f32.mrb[0].mxu0
      %v3100 = vpop.f32.mrb[0].mxu0
      %v3101 = vadd.f32 0.0, %v3100
      %v3102 = vpop.f32.mrb[0].mxu0
      %3103 = vdwg.mxu0
      %v3104 = vadd.f32 %v2658, %v2978
      %v3105 = vadd.f32 %v2659, %v2981
      %v3106 = vadd.f32 %v2660, %v2986
      %v3107 = vadd.f32 %v2661, %v2989
      %v3108 = vadd.f32 %v2662, %v2994
      %v3109 = vadd.f32 %v2663, %v2997
      %v3110 = vadd.f32 %v2664, %v3002
      %v3111 = vadd.f32 %v2665, %v3005
      %v3112 = vadd.f32 %v2666, %v3010
      %v3113 = vadd.f32 %v2667, %v3013
      %v3114 = vadd.f32 %v2668, %v3018
      %v3115 = vadd.f32 %v2669, %v3021
      %v3116 = vadd.f32 %v2670, %v3026
      %v3117 = vadd.f32 %v2671, %v3029
      %v3118 = vadd.f32 %v2672, %v3034
      %v3119 = vadd.f32 %v2673, %v3037
      %v3120 = vadd.f32 %v2674, %v3042
      %v3121 = vadd.f32 %v2675, %v3045
      %v3122 = vadd.f32 %v2676, %v3050
      %v3123 = vadd.f32 %v2677, %v3053
      %v3124 = vadd.f32 %v2678, %v3058
      %v3125 = vadd.f32 %v2679, %v3061
      %v3126 = vadd.f32 %v2680, %v3066
      %v3127 = vadd.f32 %v2681, %v3069
      %v3128 = vadd.f32 %v2682, %v3074
      %v3129 = vadd.f32 %v2683, %v3077
      %v3130 = vadd.f32 %v2684, %v3082
      %v3131 = vadd.f32 %v2685, %v3085
      %v3132 = vadd.f32 %v2686, %v3090
      %v3133 = vadd.f32 %v2687, %v3093
      %v3134 = vadd.f32 %v2688, %v3098
      %v3135 = vadd.f32 %v2689, %v3101
      %s3136 = sadd.s32 %s261, 2
      %s3137 = smul.u32 %s3136, 5
      %s3138 = smul.addr %s3137, 4
      %s3139 = scalar_lea.vmem %s234, %s3138
      %v3140 = vld [vmem:[%s3139] sm:$0xf]
      %v3141 = vld [vmem:[%s3139 + $0x4] sm:$0xf]
      %v3142 = vld [vmem:[%s3139 + $0x8] sm:$0xf]
      %v3143 = vld [vmem:[%s3139 + $0xc] sm:$0xf]
      %v3144 = vld [vmem:[%s3139 + $0x14] sm:$0xf]
      %v3145 = vld [vmem:[%s3139 + $0x18] sm:$0xf]
      %v3146 = vld [vmem:[%s3139 + $0x1c] sm:$0xf]
      %v3147 = vld [vmem:[%s3139 + $0x20] sm:$0xf]
      %v3148 = vld [vmem:[%s3139 + $0x28] sm:$0xf]
      %v3149 = vld [vmem:[%s3139 + $0x2c] sm:$0xf]
      %v3150 = vld [vmem:[%s3139 + $0x30] sm:$0xf]
      %v3151 = vld [vmem:[%s3139 + $0x34] sm:$0xf]
      %v3152 = vld [vmem:[%s3139 + $0x3c] sm:$0xf]
      %v3153 = vld [vmem:[%s3139 + $0x40] sm:$0xf]
      %v3154 = vld [vmem:[%s3139 + $0x44] sm:$0xf]
      %v3155 = vld [vmem:[%s3139 + $0x48] sm:$0xf]
      %v3156 = vld [vmem:[%s3139 + $0x50] sm:$0xf]
      %v3157 = vld [vmem:[%s3139 + $0x54] sm:$0xf]
      %v3158 = vld [vmem:[%s3139 + $0x58] sm:$0xf]
      %v3159 = vld [vmem:[%s3139 + $0x5c] sm:$0xf]
      %v3160 = vld [vmem:[%s3139 + $0x64] sm:$0xf]
      %v3161 = vld [vmem:[%s3139 + $0x68] sm:$0xf]
      %v3162 = vld [vmem:[%s3139 + $0x6c] sm:$0xf]
      %v3163 = vld [vmem:[%s3139 + $0x70] sm:$0xf]
      %v3164 = vld [vmem:[%s3139 + $0x78] sm:$0xf]
      %v3165 = vld [vmem:[%s3139 + $0x7c] sm:$0xf]
      %v3166 = vld [vmem:[%s3139 + $0x80] sm:$0xf]
      %v3167 = vld [vmem:[%s3139 + $0x84] sm:$0xf]
      %v3168 = vld [vmem:[%s3139 + $0x8c] sm:$0xf]
      %v3169 = vld [vmem:[%s3139 + $0x90] sm:$0xf]
      %v3170 = vld [vmem:[%s3139 + $0x94] sm:$0xf]
      %v3171 = vld [vmem:[%s3139 + $0x98] sm:$0xf]
      %s3172 = scalar_lea.vmem %s1, 12
      %v3173 = vld [vmem:[%s3172] sm:$0x3]
      %v3206 = vunpack.c.l.b16 %v3140
      %v3207 = vunpack.c.l.b16 %v3141
      %v3208 = vunpack.c.l.b16 %v3142
      %v3209 = vunpack.c.l.b16 %v3143
      %v3210 = vunpack.c.l.b16 %v3144
      %v3211 = vunpack.c.l.b16 %v3145
      %v3212 = vunpack.c.l.b16 %v3146
      %v3213 = vunpack.c.l.b16 %v3147
      %v3214 = vunpack.c.l.b16 %v3148
      %v3215 = vunpack.c.l.b16 %v3149
      %v3216 = vunpack.c.l.b16 %v3150
      %v3217 = vunpack.c.l.b16 %v3151
      %v3218 = vunpack.c.l.b16 %v3152
      %v3219 = vunpack.c.l.b16 %v3153
      %v3220 = vunpack.c.l.b16 %v3154
      %v3221 = vunpack.c.l.b16 %v3155
      %v3222 = vunpack.c.l.b16 %v3156
      %v3223 = vunpack.c.l.b16 %v3157
      %v3224 = vunpack.c.l.b16 %v3158
      %v3225 = vunpack.c.l.b16 %v3159
      %v3226 = vunpack.c.l.b16 %v3160
      %v3227 = vunpack.c.l.b16 %v3161
      %v3228 = vunpack.c.l.b16 %v3162
      %v3229 = vunpack.c.l.b16 %v3163
      %v3230 = vunpack.c.l.b16 %v3164
      %v3231 = vunpack.c.l.b16 %v3165
      %v3232 = vunpack.c.l.b16 %v3166
      %v3233 = vunpack.c.l.b16 %v3167
      %v3234 = vunpack.c.l.b16 %v3168
      %v3235 = vunpack.c.l.b16 %v3169
      %v3236 = vunpack.c.l.b16 %v3170
      %v3237 = vunpack.c.l.b16 %v3171
      %v3238 = vpack.c.b16 %v3207, %v3206
      %v3239 = vpack.c.b16 %v3209, %v3208
      %v3240 = vpack.c.b16 %v3211, %v3210
      %v3241 = vpack.c.b16 %v3213, %v3212
      %v3242 = vpack.c.b16 %v3215, %v3214
      %v3243 = vpack.c.b16 %v3217, %v3216
      %v3244 = vpack.c.b16 %v3219, %v3218
      %v3245 = vpack.c.b16 %v3221, %v3220
      %v3246 = vpack.c.b16 %v3223, %v3222
      %v3247 = vpack.c.b16 %v3225, %v3224
      %v3248 = vpack.c.b16 %v3227, %v3226
      %v3249 = vpack.c.b16 %v3229, %v3228
      %v3250 = vpack.c.b16 %v3231, %v3230
      %v3251 = vpack.c.b16 %v3233, %v3232
      %v3252 = vpack.c.b16 %v3235, %v3234
      %v3253 = vpack.c.b16 %v3237, %v3236
      %v3255 = vsel %vm711, %v3238, 0
      %v3258 = vsel %vm711, %v3239, 0
      %v3261 = vsel %vm711, %v3240, 0
      %v3264 = vsel %vm711, %v3241, 0
      %v3267 = vsel %vm711, %v3242, 0
      %v3270 = vsel %vm711, %v3243, 0
      %v3273 = vsel %vm711, %v3244, 0
      %v3276 = vsel %vm711, %v3245, 0
      %v3279 = vsel %vm711, %v3246, 0
      %v3282 = vsel %vm711, %v3247, 0
      %v3285 = vsel %vm711, %v3248, 0
      %v3288 = vsel %vm711, %v3249, 0
      %v3291 = vsel %vm711, %v3250, 0
      %v3294 = vsel %vm711, %v3251, 0
      %v3297 = vsel %vm711, %v3252, 0
      %v3300 = vsel %vm711, %v3253, 0
      %v3303 = vsel %vm760, %v3173, 0
      %3305 = vmatprep.subr.bf16.mxu0 0
      %3306 = vmatpush1.bf16.msra.mxu0 %v3303
      %3307 = vmatprep.subr.bf16.mxu0 0
      %3308 = vmatpush1.bf16.msra.mxu0 0
      %3309 = vmatprep.subr.bf16.mxu0 0
      %3310 = vmatpush1.bf16.msra.mxu0 0
      %3311 = vmatprep.subr.bf16.mxu0 0
      %3312 = vmatpush1.bf16.msra.mxu0 0
      %3313 = vmatprep.subr.bf16.mxu0 0
      %3314 = vmatpush1.bf16.msra.mxu0 0
      %3315 = vmatprep.subr.bf16.mxu0 0
      %3316 = vmatpush1.bf16.msra.mxu0 0
      %3317 = vmatprep.subr.bf16.mxu0 0
      %3318 = vmatpush1.bf16.msra.mxu0 0
      %3319 = vmatprep.subr.bf16.mxu0 0
      %3320 = vmatpush1.bf16.msra.mxu0 0
      %3321 = vmatprep.subr.bf16.mxu0 0
      %3322 = vmatpush1.bf16.msra.mxu0 0
      %3323 = vmatprep.subr.bf16.mxu0 0
      %3324 = vmatpush1.bf16.msra.mxu0 0
      %3325 = vmatprep.subr.bf16.mxu0 0
      %3326 = vmatpush1.bf16.msra.mxu0 0
      %3327 = vmatprep.subr.bf16.mxu0 0
      %3328 = vmatpush1.bf16.msra.mxu0 0
      %3329 = vmatprep.subr.bf16.mxu0 0
      %3330 = vmatpush1.bf16.msra.mxu0 0
      %3331 = vmatprep.subr.bf16.mxu0 0
      %3332 = vmatpush1.bf16.msra.mxu0 0
      %3333 = vmatprep.subr.bf16.mxu0 0
      %3334 = vmatpush1.bf16.msra.mxu0 0
      %3335 = vmatprep.subr.bf16.mxu0 0
      %3336 = vmatpush1.bf16.msra.mxu0 0
      %3337 = vmatprep.mubr.bf16.mxu0 0
      %3338 = vmatmul.mubr.bf16.gmra.mrb[0].mxu0 %v3255
      %v3339 = vpop.f32.mrb[0].mxu0
      %v3340 = vadd.f32 0.0, %v3339
      %v3341 = vpop.f32.mrb[0].mxu0
      %v3342 = vpop.f32.mrb[0].mxu0
      %v3343 = vadd.f32 0.0, %v3342
      %v3344 = vpop.f32.mrb[0].mxu0
      %3345 = vmatprep.mubr.bf16.mxu0 0
      %3346 = vmatmul.mubr.bf16.gmra.mrb[0].mxu0 %v3258
      %v3347 = vpop.f32.mrb[0].mxu0
      %v3348 = vadd.f32 0.0, %v3347
      %v3349 = vpop.f32.mrb[0].mxu0
      %v3350 = vpop.f32.mrb[0].mxu0
      %v3351 = vadd.f32 0.0, %v3350
      %v3352 = vpop.f32.mrb[0].mxu0
      %3353 = vmatprep.mubr.bf16.mxu0 0
      %3354 = vmatmul.mubr.bf16.gmra.mrb[0].mxu0 %v3261
      %v3355 = vpop.f32.mrb[0].mxu0
      %v3356 = vadd.f32 0.0, %v3355
      %v3357 = vpop.f32.mrb[0].mxu0
      %v3358 = vpop.f32.mrb[0].mxu0
      %v3359 = vadd.f32 0.0, %v3358
      %v3360 = vpop.f32.mrb[0].mxu0
      %3361 = vmatprep.mubr.bf16.mxu0 0
      %3362 = vmatmul.mubr.bf16.gmra.mrb[0].mxu0 %v3264
      %v3363 = vpop.f32.mrb[0].mxu0
      %v3364 = vadd.f32 0.0, %v3363
      %v3365 = vpop.f32.mrb[0].mxu0
      %v3366 = vpop.f32.mrb[0].mxu0
      %v3367 = vadd.f32 0.0, %v3366
      %v3368 = vpop.f32.mrb[0].mxu0
      %3369 = vmatprep.mubr.bf16.mxu0 0
      %3370 = vmatmul.mubr.bf16.gmra.mrb[0].mxu0 %v3267
      %v3371 = vpop.f32.mrb[0].mxu0
      %v3372 = vadd.f32 0.0, %v3371
      %v3373 = vpop.f32.mrb[0].mxu0
      %v3374 = vpop.f32.mrb[0].mxu0
      %v3375 = vadd.f32 0.0, %v3374
      %v3376 = vpop.f32.mrb[0].mxu0
      %3377 = vmatprep.mubr.bf16.mxu0 0
      %3378 = vmatmul.mubr.bf16.gmra.mrb[0].mxu0 %v3270
      %v3379 = vpop.f32.mrb[0].mxu0
      %v3380 = vadd.f32 0.0, %v3379
      %v3381 = vpop.f32.mrb[0].mxu0
      %v3382 = vpop.f32.mrb[0].mxu0
      %v3383 = vadd.f32 0.0, %v3382
      %v3384 = vpop.f32.mrb[0].mxu0
      %3385 = vmatprep.mubr.bf16.mxu0 0
      %3386 = vmatmul.mubr.bf16.gmra.mrb[0].mxu0 %v3273
      %v3387 = vpop.f32.mrb[0].mxu0
      %v3388 = vadd.f32 0.0, %v3387
      %v3389 = vpop.f32.mrb[0].mxu0
      %v3390 = vpop.f32.mrb[0].mxu0
      %v3391 = vadd.f32 0.0, %v3390
      %v3392 = vpop.f32.mrb[0].mxu0
      %3393 = vmatprep.mubr.bf16.mxu0 0
      %3394 = vmatmul.mubr.bf16.gmra.mrb[0].mxu0 %v3276
      %v3395 = vpop.f32.mrb[0].mxu0
      %v3396 = vadd.f32 0.0, %v3395
      %v3397 = vpop.f32.mrb[0].mxu0
      %v3398 = vpop.f32.mrb[0].mxu0
      %v3399 = vadd.f32 0.0, %v3398
      %v3400 = vpop.f32.mrb[0].mxu0
      %3401 = vmatprep.mubr.bf16.mxu0 0
      %3402 = vmatmul.mubr.bf16.gmra.mrb[0].mxu0 %v3279
      %v3403 = vpop.f32.mrb[0].mxu0
      %v3404 = vadd.f32 0.0, %v3403
      %v3405 = vpop.f32.mrb[0].mxu0
      %v3406 = vpop.f32.mrb[0].mxu0
      %v3407 = vadd.f32 0.0, %v3406
      %v3408 = vpop.f32.mrb[0].mxu0
      %3409 = vmatprep.mubr.bf16.mxu0 0
      %3410 = vmatmul.mubr.bf16.gmra.mrb[0].mxu0 %v3282
      %v3411 = vpop.f32.mrb[0].mxu0
      %v3412 = vadd.f32 0.0, %v3411
      %v3413 = vpop.f32.mrb[0].mxu0
      %v3414 = vpop.f32.mrb[0].mxu0
      %v3415 = vadd.f32 0.0, %v3414
      %v3416 = vpop.f32.mrb[0].mxu0
      %3417 = vmatprep.mubr.bf16.mxu0 0
      %3418 = vmatmul.mubr.bf16.gmra.mrb[0].mxu0 %v3285
      %v3419 = vpop.f32.mrb[0].mxu0
      %v3420 = vadd.f32 0.0, %v3419
      %v3421 = vpop.f32.mrb[0].mxu0
      %v3422 = vpop.f32.mrb[0].mxu0
      %v3423 = vadd.f32 0.0, %v3422
      %v3424 = vpop.f32.mrb[0].mxu0
      %3425 = vmatprep.mubr.bf16.mxu0 0
      %3426 = vmatmul.mubr.bf16.gmra.mrb[0].mxu0 %v3288
      %v3427 = vpop.f32.mrb[0].mxu0
      %v3428 = vadd.f32 0.0, %v3427
      %v3429 = vpop.f32.mrb[0].mxu0
      %v3430 = vpop.f32.mrb[0].mxu0
      %v3431 = vadd.f32 0.0, %v3430
      %v3432 = vpop.f32.mrb[0].mxu0
      %3433 = vmatprep.mubr.bf16.mxu0 0
      %3434 = vmatmul.mubr.bf16.gmra.mrb[0].mxu0 %v3291
      %v3435 = vpop.f32.mrb[0].mxu0
      %v3436 = vadd.f32 0.0, %v3435
      %v3437 = vpop.f32.mrb[0].mxu0
      %v3438 = vpop.f32.mrb[0].mxu0
      %v3439 = vadd.f32 0.0, %v3438
      %v3440 = vpop.f32.mrb[0].mxu0
      %3441 = vmatprep.mubr.bf16.mxu0 0
      %3442 = vmatmul.mubr.bf16.gmra.mrb[0].mxu0 %v3294
      %v3443 = vpop.f32.mrb[0].mxu0
      %v3444 = vadd.f32 0.0, %v3443
      %v3445 = vpop.f32.mrb[0].mxu0
      %v3446 = vpop.f32.mrb[0].mxu0
      %v3447 = vadd.f32 0.0, %v3446
      %v3448 = vpop.f32.mrb[0].mxu0
      %3449 = vmatprep.mubr.bf16.mxu0 0
      %3450 = vmatmul.mubr.bf16.gmra.mrb[0].mxu0 %v3297
      %v3451 = vpop.f32.mrb[0].mxu0
      %v3452 = vadd.f32 0.0, %v3451
      %v3453 = vpop.f32.mrb[0].mxu0
      %v3454 = vpop.f32.mrb[0].mxu0
      %v3455 = vadd.f32 0.0, %v3454
      %v3456 = vpop.f32.mrb[0].mxu0
      %3457 = vmatprep.mubr.bf16.mxu0 0
      %3458 = vmatmul.mubr.bf16.gmra.mrb[0].mxu0 %v3300
      %v3459 = vpop.f32.mrb[0].mxu0
      %v3460 = vadd.f32 0.0, %v3459
      %v3461 = vpop.f32.mrb[0].mxu0
      %v3462 = vpop.f32.mrb[0].mxu0
      %v3463 = vadd.f32 0.0, %v3462
      %v3464 = vpop.f32.mrb[0].mxu0
      %3465 = vdwg.mxu0
      %v3466 = vadd.f32 %v3104, %v3340
      %v3467 = vadd.f32 %v3105, %v3343
      %v3468 = vadd.f32 %v3106, %v3348
      %v3469 = vadd.f32 %v3107, %v3351
      %v3470 = vadd.f32 %v3108, %v3356
      %v3471 = vadd.f32 %v3109, %v3359
      %v3472 = vadd.f32 %v3110, %v3364
      %v3473 = vadd.f32 %v3111, %v3367
      %v3474 = vadd.f32 %v3112, %v3372
      %v3475 = vadd.f32 %v3113, %v3375
      %v3476 = vadd.f32 %v3114, %v3380
      %v3477 = vadd.f32 %v3115, %v3383
      %v3478 = vadd.f32 %v3116, %v3388
      %v3479 = vadd.f32 %v3117, %v3391
      %v3480 = vadd.f32 %v3118, %v3396
      %v3481 = vadd.f32 %v3119, %v3399
      %v3482 = vadd.f32 %v3120, %v3404
      %v3483 = vadd.f32 %v3121, %v3407
      %v3484 = vadd.f32 %v3122, %v3412
      %v3485 = vadd.f32 %v3123, %v3415
      %v3486 = vadd.f32 %v3124, %v3420
      %v3487 = vadd.f32 %v3125, %v3423
      %v3488 = vadd.f32 %v3126, %v3428
      %v3489 = vadd.f32 %v3127, %v3431
      %v3490 = vadd.f32 %v3128, %v3436
      %v3491 = vadd.f32 %v3129, %v3439
      %v3492 = vadd.f32 %v3130, %v3444
      %v3493 = vadd.f32 %v3131, %v3447
      %v3494 = vadd.f32 %v3132, %v3452
      %v3495 = vadd.f32 %v3133, %v3455
      %v3496 = vadd.f32 %v3134, %v3460
      %v3497 = vadd.f32 %v3135, %v3463
      %v3498 = vld [vmem:[%s3139] sm:$0xf]
      %v3499 = vld [vmem:[%s3139 + $0x4] sm:$0xf]
      %v3500 = vld [vmem:[%s3139 + $0x8] sm:$0xf]
      %v3501 = vld [vmem:[%s3139 + $0xc] sm:$0xf]
      %v3502 = vld [vmem:[%s3139 + $0x10] sm:$0x1]
      %v3503 = vld [vmem:[%s3139 + $0x14] sm:$0xf]
      %v3504 = vld [vmem:[%s3139 + $0x18] sm:$0xf]
      %v3505 = vld [vmem:[%s3139 + $0x1c] sm:$0xf]
      %v3506 = vld [vmem:[%s3139 + $0x20] sm:$0xf]
      %v3507 = vld [vmem:[%s3139 + $0x24] sm:$0x1]
      %v3508 = vld [vmem:[%s3139 + $0x28] sm:$0xf]
      %v3509 = vld [vmem:[%s3139 + $0x2c] sm:$0xf]
      %v3510 = vld [vmem:[%s3139 + $0x30] sm:$0xf]
      %v3511 = vld [vmem:[%s3139 + $0x34] sm:$0xf]
      %v3512 = vld [vmem:[%s3139 + $0x38] sm:$0x1]
      %v3513 = vld [vmem:[%s3139 + $0x3c] sm:$0xf]
      %v3514 = vld [vmem:[%s3139 + $0x40] sm:$0xf]
      %v3515 = vld [vmem:[%s3139 + $0x44] sm:$0xf]
      %v3516 = vld [vmem:[%s3139 + $0x48] sm:$0xf]
      %v3517 = vld [vmem:[%s3139 + $0x4c] sm:$0x1]
      %v3518 = vld [vmem:[%s3139 + $0x50] sm:$0xf]
      %v3519 = vld [vmem:[%s3139 + $0x54] sm:$0xf]
      %v3520 = vld [vmem:[%s3139 + $0x58] sm:$0xf]
      %v3521 = vld [vmem:[%s3139 + $0x5c] sm:$0xf]
      %v3522 = vld [vmem:[%s3139 + $0x60] sm:$0x1]
      %v3523 = vld [vmem:[%s3139 + $0x64] sm:$0xf]
      %v3524 = vld [vmem:[%s3139 + $0x68] sm:$0xf]
      %v3525 = vld [vmem:[%s3139 + $0x6c] sm:$0xf]
      %v3526 = vld [vmem:[%s3139 + $0x70] sm:$0xf]
      %v3527 = vld [vmem:[%s3139 + $0x74] sm:$0x1]
      %v3528 = vld [vmem:[%s3139 + $0x78] sm:$0xf]
      %v3529 = vld [vmem:[%s3139 + $0x7c] sm:$0xf]
      %v3530 = vld [vmem:[%s3139 + $0x80] sm:$0xf]
      %v3531 = vld [vmem:[%s3139 + $0x84] sm:$0xf]
      %v3532 = vld [vmem:[%s3139 + $0x88] sm:$0x1]
      %v3533 = vld [vmem:[%s3139 + $0x8c] sm:$0xf]
      %v3534 = vld [vmem:[%s3139 + $0x90] sm:$0xf]
      %v3535 = vld [vmem:[%s3139 + $0x94] sm:$0xf]
      %v3536 = vld [vmem:[%s3139 + $0x98] sm:$0xf]
      %v3537 = vld [vmem:[%s3139 + $0x9c] sm:$0x1]
      %v3539 = vshrl.u32 %v3498, 16
      %v3541 = vrot.slane %v3539, 4
      %v3542 = vshll.u32 %v3498, 16
      %v3544 = vrot.slane %v3542, 5
      %v3545 = vor.u32 %v3541, %v3544
      %v3546 = vrot.slane %v3545, 4
      %v3548 = vshll.u32 %v3499, 16
      %v3550 = vrot.slane %v3548, 5
      %v3551 = vsel %vm308, %v3546, %v3550
      %v3552 = vshrl.u32 %v3499, 16
      %v3554 = vrot.slane %v3552, 4
      %v3555 = vor.u32 %v3554, %v3550
      %v3556 = vrot.slane %v3555, 4
      %v3558 = vshll.u32 %v3500, 16
      %v3560 = vrot.slane %v3558, 5
      %v3561 = vsel %vm308, %v3556, %v3560
      %v3562 = vshrl.u32 %v3500, 16
      %v3564 = vrot.slane %v3562, 4
      %v3565 = vor.u32 %v3564, %v3560
      %v3566 = vrot.slane %v3565, 4
      %v3568 = vshll.u32 %v3501, 16
      %v3570 = vrot.slane %v3568, 5
      %v3571 = vsel %vm308, %v3566, %v3570
      %v3572 = vshrl.u32 %v3501, 16
      %v3574 = vrot.slane %v3572, 4
      %v3575 = vor.u32 %v3574, %v3570
      %v3576 = vrot.slane %v3575, 4
      %v3578 = vshll.u32 %v3502, 16
      %v3580 = vrot.slane %v3578, 5
      %v3581 = vsel %vm308, %v3576, %v3580
      %v3583 = vshrl.u32 %v3503, 16
      %v3585 = vrot.slane %v3583, 4
      %v3586 = vshll.u32 %v3503, 16
      %v3588 = vrot.slane %v3586, 5
      %v3589 = vor.u32 %v3585, %v3588
      %v3590 = vrot.slane %v3589, 4
      %v3592 = vshll.u32 %v3504, 16
      %v3594 = vrot.slane %v3592, 5
      %v3595 = vsel %vm308, %v3590, %v3594
      %v3596 = vshrl.u32 %v3504, 16
      %v3598 = vrot.slane %v3596, 4
      %v3599 = vor.u32 %v3598, %v3594
      %v3600 = vrot.slane %v3599, 4
      %v3602 = vshll.u32 %v3505, 16
      %v3604 = vrot.slane %v3602, 5
      %v3605 = vsel %vm308, %v3600, %v3604
      %v3606 = vshrl.u32 %v3505, 16
      %v3608 = vrot.slane %v3606, 4
      %v3609 = vor.u32 %v3608, %v3604
      %v3610 = vrot.slane %v3609, 4
      %v3612 = vshll.u32 %v3506, 16
      %v3614 = vrot.slane %v3612, 5
      %v3615 = vsel %vm308, %v3610, %v3614
      %v3616 = vshrl.u32 %v3506, 16
      %v3618 = vrot.slane %v3616, 4
      %v3619 = vor.u32 %v3618, %v3614
      %v3620 = vrot.slane %v3619, 4
      %v3622 = vshll.u32 %v3507, 16
      %v3624 = vrot.slane %v3622, 5
      %v3625 = vsel %vm308, %v3620, %v3624
      %v3627 = vshrl.u32 %v3508, 16
      %v3629 = vrot.slane %v3627, 4
      %v3630 = vshll.u32 %v3508, 16
      %v3632 = vrot.slane %v3630, 5
      %v3633 = vor.u32 %v3629, %v3632
      %v3634 = vrot.slane %v3633, 4
      %v3636 = vshll.u32 %v3509, 16
      %v3638 = vrot.slane %v3636, 5
      %v3639 = vsel %vm308, %v3634, %v3638
      %v3640 = vshrl.u32 %v3509, 16
      %v3642 = vrot.slane %v3640, 4
      %v3643 = vor.u32 %v3642, %v3638
      %v3644 = vrot.slane %v3643, 4
      %v3646 = vshll.u32 %v3510, 16
      %v3648 = vrot.slane %v3646, 5
      %v3649 = vsel %vm308, %v3644, %v3648
      %v3650 = vshrl.u32 %v3510, 16
      %v3652 = vrot.slane %v3650, 4
      %v3653 = vor.u32 %v3652, %v3648
      %v3654 = vrot.slane %v3653, 4
      %v3656 = vshll.u32 %v3511, 16
      %v3658 = vrot.slane %v3656, 5
      %v3659 = vsel %vm308, %v3654, %v3658
      %v3660 = vshrl.u32 %v3511, 16
      %v3662 = vrot.slane %v3660, 4
      %v3663 = vor.u32 %v3662, %v3658
      %v3664 = vrot.slane %v3663, 4
      %v3666 = vshll.u32 %v3512, 16
      %v3668 = vrot.slane %v3666, 5
      %v3669 = vsel %vm308, %v3664, %v3668
      %v3671 = vshrl.u32 %v3513, 16
      %v3673 = vrot.slane %v3671, 4
      %v3674 = vshll.u32 %v3513, 16
      %v3676 = vrot.slane %v3674, 5
      %v3677 = vor.u32 %v3673, %v3676
      %v3678 = vrot.slane %v3677, 4
      %v3680 = vshll.u32 %v3514, 16
      %v3682 = vrot.slane %v3680, 5
      %v3683 = vsel %vm308, %v3678, %v3682
      %v3684 = vshrl.u32 %v3514, 16
      %v3686 = vrot.slane %v3684, 4
      %v3687 = vor.u32 %v3686, %v3682
      %v3688 = vrot.slane %v3687, 4
      %v3690 = vshll.u32 %v3515, 16
      %v3692 = vrot.slane %v3690, 5
      %v3693 = vsel %vm308, %v3688, %v3692
      %v3694 = vshrl.u32 %v3515, 16
      %v3696 = vrot.slane %v3694, 4
      %v3697 = vor.u32 %v3696, %v3692
      %v3698 = vrot.slane %v3697, 4
      %v3700 = vshll.u32 %v3516, 16
      %v3702 = vrot.slane %v3700, 5
      %v3703 = vsel %vm308, %v3698, %v3702
      %v3704 = vshrl.u32 %v3516, 16
      %v3706 = vrot.slane %v3704, 4
      %v3707 = vor.u32 %v3706, %v3702
      %v3708 = vrot.slane %v3707, 4
      %v3710 = vshll.u32 %v3517, 16
      %v3712 = vrot.slane %v3710, 5
      %v3713 = vsel %vm308, %v3708, %v3712
      %v3715 = vshrl.u32 %v3518, 16
      %v3717 = vrot.slane %v3715, 4
      %v3718 = vshll.u32 %v3518, 16
      %v3720 = vrot.slane %v3718, 5
      %v3721 = vor.u32 %v3717, %v3720
      %v3722 = vrot.slane %v3721, 4
      %v3724 = vshll.u32 %v3519, 16
      %v3726 = vrot.slane %v3724, 5
      %v3727 = vsel %vm308, %v3722, %v3726
      %v3728 = vshrl.u32 %v3519, 16
      %v3730 = vrot.slane %v3728, 4
      %v3731 = vor.u32 %v3730, %v3726
      %v3732 = vrot.slane %v3731, 4
      %v3734 = vshll.u32 %v3520, 16
      %v3736 = vrot.slane %v3734, 5
      %v3737 = vsel %vm308, %v3732, %v3736
      %v3738 = vshrl.u32 %v3520, 16
      %v3740 = vrot.slane %v3738, 4
      %v3741 = vor.u32 %v3740, %v3736
      %v3742 = vrot.slane %v3741, 4
      %v3744 = vshll.u32 %v3521, 16
      %v3746 = vrot.slane %v3744, 5
      %v3747 = vsel %vm308, %v3742, %v3746
      %v3748 = vshrl.u32 %v3521, 16
      %v3750 = vrot.slane %v3748, 4
      %v3751 = vor.u32 %v3750, %v3746
      %v3752 = vrot.slane %v3751, 4
      %v3754 = vshll.u32 %v3522, 16
      %v3756 = vrot.slane %v3754, 5
      %v3757 = vsel %vm308, %v3752, %v3756
      %v3759 = vshrl.u32 %v3523, 16
      %v3761 = vrot.slane %v3759, 4
      %v3762 = vshll.u32 %v3523, 16
      %v3764 = vrot.slane %v3762, 5
      %v3765 = vor.u32 %v3761, %v3764
      %v3766 = vrot.slane %v3765, 4
      %v3768 = vshll.u32 %v3524, 16
      %v3770 = vrot.slane %v3768, 5
      %v3771 = vsel %vm308, %v3766, %v3770
      %v3772 = vshrl.u32 %v3524, 16
      %v3774 = vrot.slane %v3772, 4
      %v3775 = vor.u32 %v3774, %v3770
      %v3776 = vrot.slane %v3775, 4
      %v3778 = vshll.u32 %v3525, 16
      %v3780 = vrot.slane %v3778, 5
      %v3781 = vsel %vm308, %v3776, %v3780
      %v3782 = vshrl.u32 %v3525, 16
      %v3784 = vrot.slane %v3782, 4
      %v3785 = vor.u32 %v3784, %v3780
      %v3786 = vrot.slane %v3785, 4
      %v3788 = vshll.u32 %v3526, 16
      %v3790 = vrot.slane %v3788, 5
      %v3791 = vsel %vm308, %v3786, %v3790
      %v3792 = vshrl.u32 %v3526, 16
      %v3794 = vrot.slane %v3792, 4
      %v3795 = vor.u32 %v3794, %v3790
      %v3796 = vrot.slane %v3795, 4
      %v3798 = vshll.u32 %v3527, 16
      %v3800 = vrot.slane %v3798, 5
      %v3801 = vsel %vm308, %v3796, %v3800
      %v3803 = vshrl.u32 %v3528, 16
      %v3805 = vrot.slane %v3803, 4
      %v3806 = vshll.u32 %v3528, 16
      %v3808 = vrot.slane %v3806, 5
      %v3809 = vor.u32 %v3805, %v3808
      %v3810 = vrot.slane %v3809, 4
      %v3812 = vshll.u32 %v3529, 16
      %v3814 = vrot.slane %v3812, 5
      %v3815 = vsel %vm308, %v3810, %v3814
      %v3816 = vshrl.u32 %v3529, 16
      %v3818 = vrot.slane %v3816, 4
      %v3819 = vor.u32 %v3818, %v3814
      %v3820 = vrot.slane %v3819, 4
      %v3822 = vshll.u32 %v3530, 16
      %v3824 = vrot.slane %v3822, 5
      %v3825 = vsel %vm308, %v3820, %v3824
      %v3826 = vshrl.u32 %v3530, 16
      %v3828 = vrot.slane %v3826, 4
      %v3829 = vor.u32 %v3828, %v3824
      %v3830 = vrot.slane %v3829, 4
      %v3832 = vshll.u32 %v3531, 16
      %v3834 = vrot.slane %v3832, 5
      %v3835 = vsel %vm308, %v3830, %v3834
      %v3836 = vshrl.u32 %v3531, 16
      %v3838 = vrot.slane %v3836, 4
      %v3839 = vor.u32 %v3838, %v3834
      %v3840 = vrot.slane %v3839, 4
      %v3842 = vshll.u32 %v3532, 16
      %v3844 = vrot.slane %v3842, 5
      %v3845 = vsel %vm308, %v3840, %v3844
      %v3847 = vshrl.u32 %v3533, 16
      %v3849 = vrot.slane %v3847, 4
      %v3850 = vshll.u32 %v3533, 16
      %v3852 = vrot.slane %v3850, 5
      %v3853 = vor.u32 %v3849, %v3852
      %v3854 = vrot.slane %v3853, 4
      %v3856 = vshll.u32 %v3534, 16
      %v3858 = vrot.slane %v3856, 5
      %v3859 = vsel %vm308, %v3854, %v3858
      %v3860 = vshrl.u32 %v3534, 16
      %v3862 = vrot.slane %v3860, 4
      %v3863 = vor.u32 %v3862, %v3858
      %v3864 = vrot.slane %v3863, 4
      %v3866 = vshll.u32 %v3535, 16
      %v3868 = vrot.slane %v3866, 5
      %v3869 = vsel %vm308, %v3864, %v3868
      %v3870 = vshrl.u32 %v3535, 16
      %v3872 = vrot.slane %v3870, 4
      %v3873 = vor.u32 %v3872, %v3868
      %v3874 = vrot.slane %v3873, 4
      %v3876 = vshll.u32 %v3536, 16
      %v3878 = vrot.slane %v3876, 5
      %v3879 = vsel %vm308, %v3874, %v3878
      %v3880 = vshrl.u32 %v3536, 16
      %v3882 = vrot.slane %v3880, 4
      %v3883 = vor.u32 %v3882, %v3878
      %v3884 = vrot.slane %v3883, 4
      %v3886 = vshll.u32 %v3537, 16
      %v3888 = vrot.slane %v3886, 5
      %v3889 = vsel %vm308, %v3884, %v3888
      %s3890 = scalar_lea.vmem %s1, 14
      %v3891 = vld [vmem:[%s3890] sm:$0x3]
      %v3892 = vunpack.c.l.b16 %v3551
      %v3893 = vunpack.c.l.b16 %v3561
      %v3894 = vunpack.c.l.b16 %v3571
      %v3895 = vunpack.c.l.b16 %v3581
      %v3896 = vunpack.c.l.b16 %v3595
      %v3897 = vunpack.c.l.b16 %v3605
      %v3898 = vunpack.c.l.b16 %v3615
      %v3899 = vunpack.c.l.b16 %v3625
      %v3900 = vunpack.c.l.b16 %v3639
      %v3901 = vunpack.c.l.b16 %v3649
      %v3902 = vunpack.c.l.b16 %v3659
      %v3903 = vunpack.c.l.b16 %v3669
      %v3904 = vunpack.c.l.b16 %v3683
      %v3905 = vunpack.c.l.b16 %v3693
      %v3906 = vunpack.c.l.b16 %v3703
      %v3907 = vunpack.c.l.b16 %v3713
      %v3908 = vunpack.c.l.b16 %v3727
      %v3909 = vunpack.c.l.b16 %v3737
      %v3910 = vunpack.c.l.b16 %v3747
      %v3911 = vunpack.c.l.b16 %v3757
      %v3912 = vunpack.c.l.b16 %v3771
      %v3913 = vunpack.c.l.b16 %v3781
      %v3914 = vunpack.c.l.b16 %v3791
      %v3915 = vunpack.c.l.b16 %v3801
      %v3916 = vunpack.c.l.b16 %v3815
      %v3917 = vunpack.c.l.b16 %v3825
      %v3918 = vunpack.c.l.b16 %v3835
      %v3919 = vunpack.c.l.b16 %v3845
      %v3920 = vunpack.c.l.b16 %v3859
      %v3921 = vunpack.c.l.b16 %v3869
      %v3922 = vunpack.c.l.b16 %v3879
      %v3923 = vunpack.c.l.b16 %v3889
      %v3924 = vpack.c.b16 %v3893, %v3892
      %v3925 = vpack.c.b16 %v3895, %v3894
      %v3926 = vpack.c.b16 %v3897, %v3896
      %v3927 = vpack.c.b16 %v3899, %v3898
      %v3928 = vpack.c.b16 %v3901, %v3900
      %v3929 = vpack.c.b16 %v3903, %v3902
      %v3930 = vpack.c.b16 %v3905, %v3904
      %v3931 = vpack.c.b16 %v3907, %v3906
      %v3932 = vpack.c.b16 %v3909, %v3908
      %v3933 = vpack.c.b16 %v3911, %v3910
      %v3934 = vpack.c.b16 %v3913, %v3912
      %v3935 = vpack.c.b16 %v3915, %v3914
      %v3936 = vpack.c.b16 %v3917, %v3916
      %v3937 = vpack.c.b16 %v3919, %v3918
      %v3938 = vpack.c.b16 %v3921, %v3920
      %v3939 = vpack.c.b16 %v3923, %v3922
      %v3941 = vsel %vm711, %v3924, 0
      %v3944 = vsel %vm711, %v3925, 0
      %v3947 = vsel %vm711, %v3926, 0
      %v3950 = vsel %vm711, %v3927, 0
      %v3953 = vsel %vm711, %v3928, 0
      %v3956 = vsel %vm711, %v3929, 0
      %v3959 = vsel %vm711, %v3930, 0
      %v3962 = vsel %vm711, %v3931, 0
      %v3965 = vsel %vm711, %v3932, 0
      %v3968 = vsel %vm711, %v3933, 0
      %v3971 = vsel %vm711, %v3934, 0
      %v3974 = vsel %vm711, %v3935, 0
      %v3977 = vsel %vm711, %v3936, 0
      %v3980 = vsel %vm711, %v3937, 0
      %v3983 = vsel %vm711, %v3938, 0
      %v3986 = vsel %vm711, %v3939, 0
      %v3989 = vsel %vm760, %v3891, 0
      %3991 = vmatprep.subr.bf16.mxu0 0
      %3992 = vmatpush1.bf16.msra.mxu0 %v3989
      %3993 = vmatprep.subr.bf16.mxu0 0
      %3994 = vmatpush1.bf16.msra.mxu0 0
      %3995 = vmatprep.subr.bf16.mxu0 0
      %3996 = vmatpush1.bf16.msra.mxu0 0
      %3997 = vmatprep.subr.bf16.mxu0 0
      %3998 = vmatpush1.bf16.msra.mxu0 0
      %3999 = vmatprep.subr.bf16.mxu0 0
      %4000 = vmatpush1.bf16.msra.mxu0 0
      %4001 = vmatprep.subr.bf16.mxu0 0
      %4002 = vmatpush1.bf16.msra.mxu0 0
      %4003 = vmatprep.subr.bf16.mxu0 0
      %4004 = vmatpush1.bf16.msra.mxu0 0
      %4005 = vmatprep.subr.bf16.mxu0 0
      %4006 = vmatpush1.bf16.msra.mxu0 0
      %4007 = vmatprep.subr.bf16.mxu0 0
      %4008 = vmatpush1.bf16.msra.mxu0 0
      %4009 = vmatprep.subr.bf16.mxu0 0
      %4010 = vmatpush1.bf16.msra.mxu0 0
      %4011 = vmatprep.subr.bf16.mxu0 0
      %4012 = vmatpush1.bf16.msra.mxu0 0
      %4013 = vmatprep.subr.bf16.mxu0 0
      %4014 = vmatpush1.bf16.msra.mxu0 0
      %4015 = vmatprep.subr.bf16.mxu0 0
      %4016 = vmatpush1.bf16.msra.mxu0 0
      %4017 = vmatprep.subr.bf16.mxu0 0
      %4018 = vmatpush1.bf16.msra.mxu0 0
      %4019 = vmatprep.subr.bf16.mxu0 0
      %4020 = vmatpush1.bf16.msra.mxu0 0
      %4021 = vmatprep.subr.bf16.mxu0 0
      %4022 = vmatpush1.bf16.msra.mxu0 0
      %4023 = vmatprep.mubr.bf16.mxu0 0
      %4024 = vmatmul.mubr.bf16.gmra.mrb[0].mxu0 %v3941
      %v4025 = vpop.f32.mrb[0].mxu0
      %v4026 = vadd.f32 0.0, %v4025
      %v4027 = vpop.f32.mrb[0].mxu0
      %v4028 = vpop.f32.mrb[0].mxu0
      %v4029 = vadd.f32 0.0, %v4028
      %v4030 = vpop.f32.mrb[0].mxu0
      %4031 = vmatprep.mubr.bf16.mxu0 0
      %4032 = vmatmul.mubr.bf16.gmra.mrb[0].mxu0 %v3944
      %v4033 = vpop.f32.mrb[0].mxu0
      %v4034 = vadd.f32 0.0, %v4033
      %v4035 = vpop.f32.mrb[0].mxu0
      %v4036 = vpop.f32.mrb[0].mxu0
      %v4037 = vadd.f32 0.0, %v4036
      %v4038 = vpop.f32.mrb[0].mxu0
      %4039 = vmatprep.mubr.bf16.mxu0 0
      %4040 = vmatmul.mubr.bf16.gmra.mrb[0].mxu0 %v3947
      %v4041 = vpop.f32.mrb[0].mxu0
      %v4042 = vadd.f32 0.0, %v4041
      %v4043 = vpop.f32.mrb[0].mxu0
      %v4044 = vpop.f32.mrb[0].mxu0
      %v4045 = vadd.f32 0.0, %v4044
      %v4046 = vpop.f32.mrb[0].mxu0
      %4047 = vmatprep.mubr.bf16.mxu0 0
      %4048 = vmatmul.mubr.bf16.gmra.mrb[0].mxu0 %v3950
      %v4049 = vpop.f32.mrb[0].mxu0
      %v4050 = vadd.f32 0.0, %v4049
      %v4051 = vpop.f32.mrb[0].mxu0
      %v4052 = vpop.f32.mrb[0].mxu0
      %v4053 = vadd.f32 0.0, %v4052
      %v4054 = vpop.f32.mrb[0].mxu0
      %4055 = vmatprep.mubr.bf16.mxu0 0
      %4056 = vmatmul.mubr.bf16.gmra.mrb[0].mxu0 %v3953
      %v4057 = vpop.f32.mrb[0].mxu0
      %v4058 = vadd.f32 0.0, %v4057
      %v4059 = vpop.f32.mrb[0].mxu0
      %v4060 = vpop.f32.mrb[0].mxu0
      %v4061 = vadd.f32 0.0, %v4060
      %v4062 = vpop.f32.mrb[0].mxu0
      %4063 = vmatprep.mubr.bf16.mxu0 0
      %4064 = vmatmul.mubr.bf16.gmra.mrb[0].mxu0 %v3956
      %v4065 = vpop.f32.mrb[0].mxu0
      %v4066 = vadd.f32 0.0, %v4065
      %v4067 = vpop.f32.mrb[0].mxu0
      %v4068 = vpop.f32.mrb[0].mxu0
      %v4069 = vadd.f32 0.0, %v4068
      %v4070 = vpop.f32.mrb[0].mxu0
      %4071 = vmatprep.mubr.bf16.mxu0 0
      %4072 = vmatmul.mubr.bf16.gmra.mrb[0].mxu0 %v3959
      %v4073 = vpop.f32.mrb[0].mxu0
      %v4074 = vadd.f32 0.0, %v4073
      %v4075 = vpop.f32.mrb[0].mxu0
      %v4076 = vpop.f32.mrb[0].mxu0
      %v4077 = vadd.f32 0.0, %v4076
      %v4078 = vpop.f32.mrb[0].mxu0
      %4079 = vmatprep.mubr.bf16.mxu0 0
      %4080 = vmatmul.mubr.bf16.gmra.mrb[0].mxu0 %v3962
      %v4081 = vpop.f32.mrb[0].mxu0
      %v4082 = vadd.f32 0.0, %v4081
      %v4083 = vpop.f32.mrb[0].mxu0
      %v4084 = vpop.f32.mrb[0].mxu0
      %v4085 = vadd.f32 0.0, %v4084
      %v4086 = vpop.f32.mrb[0].mxu0
      %4087 = vmatprep.mubr.bf16.mxu0 0
      %4088 = vmatmul.mubr.bf16.gmra.mrb[0].mxu0 %v3965
      %v4089 = vpop.f32.mrb[0].mxu0
      %v4090 = vadd.f32 0.0, %v4089
      %v4091 = vpop.f32.mrb[0].mxu0
      %v4092 = vpop.f32.mrb[0].mxu0
      %v4093 = vadd.f32 0.0, %v4092
      %v4094 = vpop.f32.mrb[0].mxu0
      %4095 = vmatprep.mubr.bf16.mxu0 0
      %4096 = vmatmul.mubr.bf16.gmra.mrb[0].mxu0 %v3968
      %v4097 = vpop.f32.mrb[0].mxu0
      %v4098 = vadd.f32 0.0, %v4097
      %v4099 = vpop.f32.mrb[0].mxu0
      %v4100 = vpop.f32.mrb[0].mxu0
      %v4101 = vadd.f32 0.0, %v4100
      %v4102 = vpop.f32.mrb[0].mxu0
      %4103 = vmatprep.mubr.bf16.mxu0 0
      %4104 = vmatmul.mubr.bf16.gmra.mrb[0].mxu0 %v3971
      %v4105 = vpop.f32.mrb[0].mxu0
      %v4106 = vadd.f32 0.0, %v4105
      %v4107 = vpop.f32.mrb[0].mxu0
      %v4108 = vpop.f32.mrb[0].mxu0
      %v4109 = vadd.f32 0.0, %v4108
      %v4110 = vpop.f32.mrb[0].mxu0
      %4111 = vmatprep.mubr.bf16.mxu0 0
      %4112 = vmatmul.mubr.bf16.gmra.mrb[0].mxu0 %v3974
      %v4113 = vpop.f32.mrb[0].mxu0
      %v4114 = vadd.f32 0.0, %v4113
      %v4115 = vpop.f32.mrb[0].mxu0
      %v4116 = vpop.f32.mrb[0].mxu0
      %v4117 = vadd.f32 0.0, %v4116
      %v4118 = vpop.f32.mrb[0].mxu0
      %4119 = vmatprep.mubr.bf16.mxu0 0
      %4120 = vmatmul.mubr.bf16.gmra.mrb[0].mxu0 %v3977
      %v4121 = vpop.f32.mrb[0].mxu0
      %v4122 = vadd.f32 0.0, %v4121
      %v4123 = vpop.f32.mrb[0].mxu0
      %v4124 = vpop.f32.mrb[0].mxu0
      %v4125 = vadd.f32 0.0, %v4124
      %v4126 = vpop.f32.mrb[0].mxu0
      %4127 = vmatprep.mubr.bf16.mxu0 0
      %4128 = vmatmul.mubr.bf16.gmra.mrb[0].mxu0 %v3980
      %v4129 = vpop.f32.mrb[0].mxu0
      %v4130 = vadd.f32 0.0, %v4129
      %v4131 = vpop.f32.mrb[0].mxu0
      %v4132 = vpop.f32.mrb[0].mxu0
      %v4133 = vadd.f32 0.0, %v4132
      %v4134 = vpop.f32.mrb[0].mxu0
      %4135 = vmatprep.mubr.bf16.mxu0 0
      %4136 = vmatmul.mubr.bf16.gmra.mrb[0].mxu0 %v3983
      %v4137 = vpop.f32.mrb[0].mxu0
      %v4138 = vadd.f32 0.0, %v4137
      %v4139 = vpop.f32.mrb[0].mxu0
      %v4140 = vpop.f32.mrb[0].mxu0
      %v4141 = vadd.f32 0.0, %v4140
      %v4142 = vpop.f32.mrb[0].mxu0
      %4143 = vmatprep.mubr.bf16.mxu0 0
      %4144 = vmatmul.mubr.bf16.gmra.mrb[0].mxu0 %v3986
      %v4145 = vpop.f32.mrb[0].mxu0
      %v4146 = vadd.f32 0.0, %v4145
      %v4147 = vpop.f32.mrb[0].mxu0
      %v4148 = vpop.f32.mrb[0].mxu0
      %v4149 = vadd.f32 0.0, %v4148
      %v4150 = vpop.f32.mrb[0].mxu0
      %4151 = vdwg.mxu0
      %v4152 = vadd.f32 %v3466, %v4026
      %v4153 = vadd.f32 %v3467, %v4029
      %v4154 = vadd.f32 %v3468, %v4034
      %v4155 = vadd.f32 %v3469, %v4037
      %v4156 = vadd.f32 %v3470, %v4042
      %v4157 = vadd.f32 %v3471, %v4045
      %v4158 = vadd.f32 %v3472, %v4050
      %v4159 = vadd.f32 %v3473, %v4053
      %v4160 = vadd.f32 %v3474, %v4058
      %v4161 = vadd.f32 %v3475, %v4061
      %v4162 = vadd.f32 %v3476, %v4066
      %v4163 = vadd.f32 %v3477, %v4069
      %v4164 = vadd.f32 %v3478, %v4074
      %v4165 = vadd.f32 %v3479, %v4077
      %v4166 = vadd.f32 %v3480, %v4082
      %v4167 = vadd.f32 %v3481, %v4085
      %v4168 = vadd.f32 %v3482, %v4090
      %v4169 = vadd.f32 %v3483, %v4093
      %v4170 = vadd.f32 %v3484, %v4098
      %v4171 = vadd.f32 %v3485, %v4101
      %v4172 = vadd.f32 %v3486, %v4106
      %v4173 = vadd.f32 %v3487, %v4109
      %v4174 = vadd.f32 %v3488, %v4114
      %v4175 = vadd.f32 %v3489, %v4117
      %v4176 = vadd.f32 %v3490, %v4122
      %v4177 = vadd.f32 %v3491, %v4125
      %v4178 = vadd.f32 %v3492, %v4130
      %v4179 = vadd.f32 %v3493, %v4133
      %v4180 = vadd.f32 %v3494, %v4138
      %v4181 = vadd.f32 %v3495, %v4141
      %v4182 = vadd.f32 %v3496, %v4146
      %v4183 = vadd.f32 %v3497, %v4149
      %v4184 = vld [vmem:[%s3139] sm:$0xe]
      %v4185 = vld [vmem:[%s3139 + $0x14] sm:$0xe]
      %v4186 = vld [vmem:[%s3139 + $0x28] sm:$0xe]
      %v4187 = vld [vmem:[%s3139 + $0x3c] sm:$0xe]
      %v4188 = vld [vmem:[%s3139 + $0x50] sm:$0xe]
      %v4189 = vld [vmem:[%s3139 + $0x64] sm:$0xe]
      %v4190 = vld [vmem:[%s3139 + $0x78] sm:$0xe]
      %v4191 = vld [vmem:[%s3139 + $0x8c] sm:$0xe]
      %v4232 = vrot.slane %v4184, 5
      %v4233 = vrot.slane %v4232, 4
      %v4234 = vrot.slane %v3499, 5
      %v4235 = vsel %vm1243, %v4233, %v4234
      %v4236 = vrot.slane %v4234, 4
      %v4237 = vrot.slane %v3500, 5
      %v4238 = vsel %vm1243, %v4236, %v4237
      %v4239 = vrot.slane %v4237, 4
      %v4240 = vrot.slane %v3501, 5
      %v4241 = vsel %vm1243, %v4239, %v4240
      %v4242 = vrot.slane %v4240, 4
      %v4243 = vrot.slane %v3502, 5
      %v4244 = vsel %vm1243, %v4242, %v4243
      %v4245 = vrot.slane %v4185, 5
      %v4246 = vrot.slane %v4245, 4
      %v4247 = vrot.slane %v3504, 5
      %v4248 = vsel %vm1243, %v4246, %v4247
      %v4249 = vrot.slane %v4247, 4
      %v4250 = vrot.slane %v3505, 5
      %v4251 = vsel %vm1243, %v4249, %v4250
      %v4252 = vrot.slane %v4250, 4
      %v4253 = vrot.slane %v3506, 5
      %v4254 = vsel %vm1243, %v4252, %v4253
      %v4255 = vrot.slane %v4253, 4
      %v4256 = vrot.slane %v3507, 5
      %v4257 = vsel %vm1243, %v4255, %v4256
      %v4258 = vrot.slane %v4186, 5
      %v4259 = vrot.slane %v4258, 4
      %v4260 = vrot.slane %v3509, 5
      %v4261 = vsel %vm1243, %v4259, %v4260
      %v4262 = vrot.slane %v4260, 4
      %v4263 = vrot.slane %v3510, 5
      %v4264 = vsel %vm1243, %v4262, %v4263
      %v4265 = vrot.slane %v4263, 4
      %v4266 = vrot.slane %v3511, 5
      %v4267 = vsel %vm1243, %v4265, %v4266
      %v4268 = vrot.slane %v4266, 4
      %v4269 = vrot.slane %v3512, 5
      %v4270 = vsel %vm1243, %v4268, %v4269
      %v4271 = vrot.slane %v4187, 5
      %v4272 = vrot.slane %v4271, 4
      %v4273 = vrot.slane %v3514, 5
      %v4274 = vsel %vm1243, %v4272, %v4273
      %v4275 = vrot.slane %v4273, 4
      %v4276 = vrot.slane %v3515, 5
      %v4277 = vsel %vm1243, %v4275, %v4276
      %v4278 = vrot.slane %v4276, 4
      %v4279 = vrot.slane %v3516, 5
      %v4280 = vsel %vm1243, %v4278, %v4279
      %v4281 = vrot.slane %v4279, 4
      %v4282 = vrot.slane %v3517, 5
      %v4283 = vsel %vm1243, %v4281, %v4282
      %v4284 = vrot.slane %v4188, 5
      %v4285 = vrot.slane %v4284, 4
      %v4286 = vrot.slane %v3519, 5
      %v4287 = vsel %vm1243, %v4285, %v4286
      %v4288 = vrot.slane %v4286, 4
      %v4289 = vrot.slane %v3520, 5
      %v4290 = vsel %vm1243, %v4288, %v4289
      %v4291 = vrot.slane %v4289, 4
      %v4292 = vrot.slane %v3521, 5
      %v4293 = vsel %vm1243, %v4291, %v4292
      %v4294 = vrot.slane %v4292, 4
      %v4295 = vrot.slane %v3522, 5
      %v4296 = vsel %vm1243, %v4294, %v4295
      %v4297 = vrot.slane %v4189, 5
      %v4298 = vrot.slane %v4297, 4
      %v4299 = vrot.slane %v3524, 5
      %v4300 = vsel %vm1243, %v4298, %v4299
      %v4301 = vrot.slane %v4299, 4
      %v4302 = vrot.slane %v3525, 5
      %v4303 = vsel %vm1243, %v4301, %v4302
      %v4304 = vrot.slane %v4302, 4
      %v4305 = vrot.slane %v3526, 5
      %v4306 = vsel %vm1243, %v4304, %v4305
      %v4307 = vrot.slane %v4305, 4
      %v4308 = vrot.slane %v3527, 5
      %v4309 = vsel %vm1243, %v4307, %v4308
      %v4310 = vrot.slane %v4190, 5
      %v4311 = vrot.slane %v4310, 4
      %v4312 = vrot.slane %v3529, 5
      %v4313 = vsel %vm1243, %v4311, %v4312
      %v4314 = vrot.slane %v4312, 4
      %v4315 = vrot.slane %v3530, 5
      %v4316 = vsel %vm1243, %v4314, %v4315
      %v4317 = vrot.slane %v4315, 4
      %v4318 = vrot.slane %v3531, 5
      %v4319 = vsel %vm1243, %v4317, %v4318
      %v4320 = vrot.slane %v4318, 4
      %v4321 = vrot.slane %v3532, 5
      %v4322 = vsel %vm1243, %v4320, %v4321
      %v4323 = vrot.slane %v4191, 5
      %v4324 = vrot.slane %v4323, 4
      %v4325 = vrot.slane %v3534, 5
      %v4326 = vsel %vm1243, %v4324, %v4325
      %v4327 = vrot.slane %v4325, 4
      %v4328 = vrot.slane %v3535, 5
      %v4329 = vsel %vm1243, %v4327, %v4328
      %v4330 = vrot.slane %v4328, 4
      %v4331 = vrot.slane %v3536, 5
      %v4332 = vsel %vm1243, %v4330, %v4331
      %v4333 = vrot.slane %v4331, 4
      %v4334 = vrot.slane %v3537, 5
      %v4335 = vsel %vm1243, %v4333, %v4334
      %s4336 = scalar_lea.vmem %s1, 16
      %v4337 = vld [vmem:[%s4336] sm:$0x3]
      %v4338 = vunpack.c.l.b16 %v4235
      %v4339 = vunpack.c.l.b16 %v4238
      %v4340 = vunpack.c.l.b16 %v4241
      %v4341 = vunpack.c.l.b16 %v4244
      %v4342 = vunpack.c.l.b16 %v4248
      %v4343 = vunpack.c.l.b16 %v4251
      %v4344 = vunpack.c.l.b16 %v4254
      %v4345 = vunpack.c.l.b16 %v4257
      %v4346 = vunpack.c.l.b16 %v4261
      %v4347 = vunpack.c.l.b16 %v4264
      %v4348 = vunpack.c.l.b16 %v4267
      %v4349 = vunpack.c.l.b16 %v4270
      %v4350 = vunpack.c.l.b16 %v4274
      %v4351 = vunpack.c.l.b16 %v4277
      %v4352 = vunpack.c.l.b16 %v4280
      %v4353 = vunpack.c.l.b16 %v4283
      %v4354 = vunpack.c.l.b16 %v4287
      %v4355 = vunpack.c.l.b16 %v4290
      %v4356 = vunpack.c.l.b16 %v4293
      %v4357 = vunpack.c.l.b16 %v4296
      %v4358 = vunpack.c.l.b16 %v4300
      %v4359 = vunpack.c.l.b16 %v4303
      %v4360 = vunpack.c.l.b16 %v4306
      %v4361 = vunpack.c.l.b16 %v4309
      %v4362 = vunpack.c.l.b16 %v4313
      %v4363 = vunpack.c.l.b16 %v4316
      %v4364 = vunpack.c.l.b16 %v4319
      %v4365 = vunpack.c.l.b16 %v4322
      %v4366 = vunpack.c.l.b16 %v4326
      %v4367 = vunpack.c.l.b16 %v4329
      %v4368 = vunpack.c.l.b16 %v4332
      %v4369 = vunpack.c.l.b16 %v4335
      %v4370 = vpack.c.b16 %v4339, %v4338
      %v4371 = vpack.c.b16 %v4341, %v4340
      %v4372 = vpack.c.b16 %v4343, %v4342
      %v4373 = vpack.c.b16 %v4345, %v4344
      %v4374 = vpack.c.b16 %v4347, %v4346
      %v4375 = vpack.c.b16 %v4349, %v4348
      %v4376 = vpack.c.b16 %v4351, %v4350
      %v4377 = vpack.c.b16 %v4353, %v4352
      %v4378 = vpack.c.b16 %v4355, %v4354
      %v4379 = vpack.c.b16 %v4357, %v4356
      %v4380 = vpack.c.b16 %v4359, %v4358
      %v4381 = vpack.c.b16 %v4361, %v4360
      %v4382 = vpack.c.b16 %v4363, %v4362
      %v4383 = vpack.c.b16 %v4365, %v4364
      %v4384 = vpack.c.b16 %v4367, %v4366
      %v4385 = vpack.c.b16 %v4369, %v4368
      %v4387 = vsel %vm711, %v4370, 0
      %v4390 = vsel %vm711, %v4371, 0
      %v4393 = vsel %vm711, %v4372, 0
      %v4396 = vsel %vm711, %v4373, 0
      %v4399 = vsel %vm711, %v4374, 0
      %v4402 = vsel %vm711, %v4375, 0
      %v4405 = vsel %vm711, %v4376, 0
      %v4408 = vsel %vm711, %v4377, 0
      %v4411 = vsel %vm711, %v4378, 0
      %v4414 = vsel %vm711, %v4379, 0
      %v4417 = vsel %vm711, %v4380, 0
      %v4420 = vsel %vm711, %v4381, 0
      %v4423 = vsel %vm711, %v4382, 0
      %v4426 = vsel %vm711, %v4383, 0
      %v4429 = vsel %vm711, %v4384, 0
      %v4432 = vsel %vm711, %v4385, 0
      %v4435 = vsel %vm760, %v4337, 0
      %4437 = vmatprep.subr.bf16.mxu0 0
      %4438 = vmatpush1.bf16.msra.mxu0 %v4435
      %4439 = vmatprep.subr.bf16.mxu0 0
      %4440 = vmatpush1.bf16.msra.mxu0 0
      %4441 = vmatprep.subr.bf16.mxu0 0
      %4442 = vmatpush1.bf16.msra.mxu0 0
      %4443 = vmatprep.subr.bf16.mxu0 0
      %4444 = vmatpush1.bf16.msra.mxu0 0
      %4445 = vmatprep.subr.bf16.mxu0 0
      %4446 = vmatpush1.bf16.msra.mxu0 0
      %4447 = vmatprep.subr.bf16.mxu0 0
      %4448 = vmatpush1.bf16.msra.mxu0 0
      %4449 = vmatprep.subr.bf16.mxu0 0
      %4450 = vmatpush1.bf16.msra.mxu0 0
      %4451 = vmatprep.subr.bf16.mxu0 0
      %4452 = vmatpush1.bf16.msra.mxu0 0
      %4453 = vmatprep.subr.bf16.mxu0 0
      %4454 = vmatpush1.bf16.msra.mxu0 0
      %4455 = vmatprep.subr.bf16.mxu0 0
      %4456 = vmatpush1.bf16.msra.mxu0 0
      %4457 = vmatprep.subr.bf16.mxu0 0
      %4458 = vmatpush1.bf16.msra.mxu0 0
      %4459 = vmatprep.subr.bf16.mxu0 0
      %4460 = vmatpush1.bf16.msra.mxu0 0
      %4461 = vmatprep.subr.bf16.mxu0 0
      %4462 = vmatpush1.bf16.msra.mxu0 0
      %4463 = vmatprep.subr.bf16.mxu0 0
      %4464 = vmatpush1.bf16.msra.mxu0 0
      %4465 = vmatprep.subr.bf16.mxu0 0
      %4466 = vmatpush1.bf16.msra.mxu0 0
      %4467 = vmatprep.subr.bf16.mxu0 0
      %4468 = vmatpush1.bf16.msra.mxu0 0
      %4469 = vmatprep.mubr.bf16.mxu0 0
      %4470 = vmatmul.mubr.bf16.gmra.mrb[0].mxu0 %v4387
      %v4471 = vpop.f32.mrb[0].mxu0
      %v4472 = vadd.f32 0.0, %v4471
      %v4473 = vpop.f32.mrb[0].mxu0
      %v4474 = vpop.f32.mrb[0].mxu0
      %v4475 = vadd.f32 0.0, %v4474
      %v4476 = vpop.f32.mrb[0].mxu0
      %4477 = vmatprep.mubr.bf16.mxu0 0
      %4478 = vmatmul.mubr.bf16.gmra.mrb[0].mxu0 %v4390
      %v4479 = vpop.f32.mrb[0].mxu0
      %v4480 = vadd.f32 0.0, %v4479
      %v4481 = vpop.f32.mrb[0].mxu0
      %v4482 = vpop.f32.mrb[0].mxu0
      %v4483 = vadd.f32 0.0, %v4482
      %v4484 = vpop.f32.mrb[0].mxu0
      %4485 = vmatprep.mubr.bf16.mxu0 0
      %4486 = vmatmul.mubr.bf16.gmra.mrb[0].mxu0 %v4393
      %v4487 = vpop.f32.mrb[0].mxu0
      %v4488 = vadd.f32 0.0, %v4487
      %v4489 = vpop.f32.mrb[0].mxu0
      %v4490 = vpop.f32.mrb[0].mxu0
      %v4491 = vadd.f32 0.0, %v4490
      %v4492 = vpop.f32.mrb[0].mxu0
      %4493 = vmatprep.mubr.bf16.mxu0 0
      %4494 = vmatmul.mubr.bf16.gmra.mrb[0].mxu0 %v4396
      %v4495 = vpop.f32.mrb[0].mxu0
      %v4496 = vadd.f32 0.0, %v4495
      %v4497 = vpop.f32.mrb[0].mxu0
      %v4498 = vpop.f32.mrb[0].mxu0
      %v4499 = vadd.f32 0.0, %v4498
      %v4500 = vpop.f32.mrb[0].mxu0
      %4501 = vmatprep.mubr.bf16.mxu0 0
      %4502 = vmatmul.mubr.bf16.gmra.mrb[0].mxu0 %v4399
      %v4503 = vpop.f32.mrb[0].mxu0
      %v4504 = vadd.f32 0.0, %v4503
      %v4505 = vpop.f32.mrb[0].mxu0
      %v4506 = vpop.f32.mrb[0].mxu0
      %v4507 = vadd.f32 0.0, %v4506
      %v4508 = vpop.f32.mrb[0].mxu0
      %4509 = vmatprep.mubr.bf16.mxu0 0
      %4510 = vmatmul.mubr.bf16.gmra.mrb[0].mxu0 %v4402
      %v4511 = vpop.f32.mrb[0].mxu0
      %v4512 = vadd.f32 0.0, %v4511
      %v4513 = vpop.f32.mrb[0].mxu0
      %v4514 = vpop.f32.mrb[0].mxu0
      %v4515 = vadd.f32 0.0, %v4514
      %v4516 = vpop.f32.mrb[0].mxu0
      %4517 = vmatprep.mubr.bf16.mxu0 0
      %4518 = vmatmul.mubr.bf16.gmra.mrb[0].mxu0 %v4405
      %v4519 = vpop.f32.mrb[0].mxu0
      %v4520 = vadd.f32 0.0, %v4519
      %v4521 = vpop.f32.mrb[0].mxu0
      %v4522 = vpop.f32.mrb[0].mxu0
      %v4523 = vadd.f32 0.0, %v4522
      %v4524 = vpop.f32.mrb[0].mxu0
      %4525 = vmatprep.mubr.bf16.mxu0 0
      %4526 = vmatmul.mubr.bf16.gmra.mrb[0].mxu0 %v4408
      %v4527 = vpop.f32.mrb[0].mxu0
      %v4528 = vadd.f32 0.0, %v4527
      %v4529 = vpop.f32.mrb[0].mxu0
      %v4530 = vpop.f32.mrb[0].mxu0
      %v4531 = vadd.f32 0.0, %v4530
      %v4532 = vpop.f32.mrb[0].mxu0
      %4533 = vmatprep.mubr.bf16.mxu0 0
      %4534 = vmatmul.mubr.bf16.gmra.mrb[0].mxu0 %v4411
      %v4535 = vpop.f32.mrb[0].mxu0
      %v4536 = vadd.f32 0.0, %v4535
      %v4537 = vpop.f32.mrb[0].mxu0
      %v4538 = vpop.f32.mrb[0].mxu0
      %v4539 = vadd.f32 0.0, %v4538
      %v4540 = vpop.f32.mrb[0].mxu0
      %4541 = vmatprep.mubr.bf16.mxu0 0
      %4542 = vmatmul.mubr.bf16.gmra.mrb[0].mxu0 %v4414
      %v4543 = vpop.f32.mrb[0].mxu0
      %v4544 = vadd.f32 0.0, %v4543
      %v4545 = vpop.f32.mrb[0].mxu0
      %v4546 = vpop.f32.mrb[0].mxu0
      %v4547 = vadd.f32 0.0, %v4546
      %v4548 = vpop.f32.mrb[0].mxu0
      %4549 = vmatprep.mubr.bf16.mxu0 0
      %4550 = vmatmul.mubr.bf16.gmra.mrb[0].mxu0 %v4417
      %v4551 = vpop.f32.mrb[0].mxu0
      %v4552 = vadd.f32 0.0, %v4551
      %v4553 = vpop.f32.mrb[0].mxu0
      %v4554 = vpop.f32.mrb[0].mxu0
      %v4555 = vadd.f32 0.0, %v4554
      %v4556 = vpop.f32.mrb[0].mxu0
      %4557 = vmatprep.mubr.bf16.mxu0 0
      %4558 = vmatmul.mubr.bf16.gmra.mrb[0].mxu0 %v4420
      %v4559 = vpop.f32.mrb[0].mxu0
      %v4560 = vadd.f32 0.0, %v4559
      %v4561 = vpop.f32.mrb[0].mxu0
      %v4562 = vpop.f32.mrb[0].mxu0
      %v4563 = vadd.f32 0.0, %v4562
      %v4564 = vpop.f32.mrb[0].mxu0
      %4565 = vmatprep.mubr.bf16.mxu0 0
      %4566 = vmatmul.mubr.bf16.gmra.mrb[0].mxu0 %v4423
      %v4567 = vpop.f32.mrb[0].mxu0
      %v4568 = vadd.f32 0.0, %v4567
      %v4569 = vpop.f32.mrb[0].mxu0
      %v4570 = vpop.f32.mrb[0].mxu0
      %v4571 = vadd.f32 0.0, %v4570
      %v4572 = vpop.f32.mrb[0].mxu0
      %4573 = vmatprep.mubr.bf16.mxu0 0
      %4574 = vmatmul.mubr.bf16.gmra.mrb[0].mxu0 %v4426
      %v4575 = vpop.f32.mrb[0].mxu0
      %v4576 = vadd.f32 0.0, %v4575
      %v4577 = vpop.f32.mrb[0].mxu0
      %v4578 = vpop.f32.mrb[0].mxu0
      %v4579 = vadd.f32 0.0, %v4578
      %v4580 = vpop.f32.mrb[0].mxu0
      %4581 = vmatprep.mubr.bf16.mxu0 0
      %4582 = vmatmul.mubr.bf16.gmra.mrb[0].mxu0 %v4429
      %v4583 = vpop.f32.mrb[0].mxu0
      %v4584 = vadd.f32 0.0, %v4583
      %v4585 = vpop.f32.mrb[0].mxu0
      %v4586 = vpop.f32.mrb[0].mxu0
      %v4587 = vadd.f32 0.0, %v4586
      %v4588 = vpop.f32.mrb[0].mxu0
      %4589 = vmatprep.mubr.bf16.mxu0 0
      %4590 = vmatmul.mubr.bf16.gmra.mrb[0].mxu0 %v4432
      %v4591 = vpop.f32.mrb[0].mxu0
      %v4592 = vadd.f32 0.0, %v4591
      %v4593 = vpop.f32.mrb[0].mxu0
      %v4594 = vpop.f32.mrb[0].mxu0
      %v4595 = vadd.f32 0.0, %v4594
      %v4596 = vpop.f32.mrb[0].mxu0
      %4597 = vdwg.mxu0
      %v4598 = vadd.f32 %v4152, %v4472
      %v4599 = vadd.f32 %v4153, %v4475
      %v4600 = vadd.f32 %v4154, %v4480
      %v4601 = vadd.f32 %v4155, %v4483
      %v4602 = vadd.f32 %v4156, %v4488
      %v4603 = vadd.f32 %v4157, %v4491
      %v4604 = vadd.f32 %v4158, %v4496
      %v4605 = vadd.f32 %v4159, %v4499
      %v4606 = vadd.f32 %v4160, %v4504
      %v4607 = vadd.f32 %v4161, %v4507
      %v4608 = vadd.f32 %v4162, %v4512
      %v4609 = vadd.f32 %v4163, %v4515
      %v4610 = vadd.f32 %v4164, %v4520
      %v4611 = vadd.f32 %v4165, %v4523
      %v4612 = vadd.f32 %v4166, %v4528
      %v4613 = vadd.f32 %v4167, %v4531
      %v4614 = vadd.f32 %v4168, %v4536
      %v4615 = vadd.f32 %v4169, %v4539
      %v4616 = vadd.f32 %v4170, %v4544
      %v4617 = vadd.f32 %v4171, %v4547
      %v4618 = vadd.f32 %v4172, %v4552
      %v4619 = vadd.f32 %v4173, %v4555
      %v4620 = vadd.f32 %v4174, %v4560
      %v4621 = vadd.f32 %v4175, %v4563
      %v4622 = vadd.f32 %v4176, %v4568
      %v4623 = vadd.f32 %v4177, %v4571
      %v4624 = vadd.f32 %v4178, %v4576
      %v4625 = vadd.f32 %v4179, %v4579
      %v4626 = vadd.f32 %v4180, %v4584
      %v4627 = vadd.f32 %v4181, %v4587
      %v4628 = vadd.f32 %v4182, %v4592
      %v4629 = vadd.f32 %v4183, %v4595
      %v4630 = vpack.c.bf16 %v4599, %v4598
      %v4631 = vpack.c.bf16 %v4601, %v4600
      %v4632 = vpack.c.bf16 %v4603, %v4602
      %v4633 = vpack.c.bf16 %v4605, %v4604
      %v4634 = vpack.c.bf16 %v4607, %v4606
      %v4635 = vpack.c.bf16 %v4609, %v4608
      %v4636 = vpack.c.bf16 %v4611, %v4610
      %v4637 = vpack.c.bf16 %v4613, %v4612
      %v4638 = vpack.c.bf16 %v4615, %v4614
      %v4639 = vpack.c.bf16 %v4617, %v4616
      %v4640 = vpack.c.bf16 %v4619, %v4618
      %v4641 = vpack.c.bf16 %v4621, %v4620
      %v4642 = vpack.c.bf16 %v4623, %v4622
      %v4643 = vpack.c.bf16 %v4625, %v4624
      %v4644 = vpack.c.bf16 %v4627, %v4626
      %v4645 = vpack.c.bf16 %v4629, %v4628
      %v4662 = vunpack.c.l.b16 %v4630
      %v4663 = vunpack.c.h.b16 %v4630
      %v4664 = vunpack.c.l.b16 %v4631
      %v4665 = vunpack.c.h.b16 %v4631
      %v4666 = vunpack.c.l.b16 %v4632
      %v4667 = vunpack.c.h.b16 %v4632
      %v4668 = vunpack.c.l.b16 %v4633
      %v4669 = vunpack.c.h.b16 %v4633
      %v4670 = vunpack.c.l.b16 %v4634
      %v4671 = vunpack.c.h.b16 %v4634
      %v4672 = vunpack.c.l.b16 %v4635
      %v4673 = vunpack.c.h.b16 %v4635
      %v4674 = vunpack.c.l.b16 %v4636
      %v4675 = vunpack.c.h.b16 %v4636
      %v4676 = vunpack.c.l.b16 %v4637
      %v4677 = vunpack.c.h.b16 %v4637
      %v4678 = vunpack.c.l.b16 %v4638
      %v4679 = vunpack.c.h.b16 %v4638
      %v4680 = vunpack.c.l.b16 %v4639
      %v4681 = vunpack.c.h.b16 %v4639
      %v4682 = vunpack.c.l.b16 %v4640
      %v4683 = vunpack.c.h.b16 %v4640
      %v4684 = vunpack.c.l.b16 %v4641
      %v4685 = vunpack.c.h.b16 %v4641
      %v4686 = vunpack.c.l.b16 %v4642
      %v4687 = vunpack.c.h.b16 %v4642
      %v4688 = vunpack.c.l.b16 %v4643
      %v4689 = vunpack.c.h.b16 %v4643
      %v4690 = vunpack.c.l.b16 %v4644
      %v4691 = vunpack.c.h.b16 %v4644
      %v4692 = vunpack.c.l.b16 %v4645
      %v4693 = vunpack.c.h.b16 %v4645
      %v4694 = vpack.c.b16 %v4662, %v4662
      %v4695 = vpack.c.b16 %v4663, %v4663
      %v4696 = vpack.c.b16 %v4664, %v4664
      %v4697 = vpack.c.b16 %v4665, %v4665
      %v4698 = vpack.c.b16 %v4666, %v4666
      %v4699 = vpack.c.b16 %v4667, %v4667
      %v4700 = vpack.c.b16 %v4668, %v4668
      %v4701 = vpack.c.b16 %v4669, %v4669
      %v4702 = vpack.c.b16 %v4670, %v4670
      %v4703 = vpack.c.b16 %v4671, %v4671
      %v4704 = vpack.c.b16 %v4672, %v4672
      %v4705 = vpack.c.b16 %v4673, %v4673
      %v4706 = vpack.c.b16 %v4674, %v4674
      %v4707 = vpack.c.b16 %v4675, %v4675
      %v4708 = vpack.c.b16 %v4676, %v4676
      %v4709 = vpack.c.b16 %v4677, %v4677
      %v4710 = vpack.c.b16 %v4678, %v4678
      %v4711 = vpack.c.b16 %v4679, %v4679
      %v4712 = vpack.c.b16 %v4680, %v4680
      %v4713 = vpack.c.b16 %v4681, %v4681
      %v4714 = vpack.c.b16 %v4682, %v4682
      %v4715 = vpack.c.b16 %v4683, %v4683
      %v4716 = vpack.c.b16 %v4684, %v4684
      %v4717 = vpack.c.b16 %v4685, %v4685
      %v4718 = vpack.c.b16 %v4686, %v4686
      %v4719 = vpack.c.b16 %v4687, %v4687
      %v4720 = vpack.c.b16 %v4688, %v4688
      %v4721 = vpack.c.b16 %v4689, %v4689
      %v4722 = vpack.c.b16 %v4690, %v4690
      %v4723 = vpack.c.b16 %v4691, %v4691
      %v4724 = vpack.c.b16 %v4692, %v4692
      %v4725 = vpack.c.b16 %v4693, %v4693
      %4758 = vst [vmem:[%s244] sm:$0xf] %v4694
      %4759 = vst [vmem:[%s244 + $0x4] sm:$0xf] %v4695
      %4760 = vst [vmem:[%s244 + $0x8] sm:$0xf] %v4696
      %4761 = vst [vmem:[%s244 + $0xc] sm:$0xf] %v4697
      %4762 = vst [vmem:[%s244 + $0x10] sm:$0xf] %v4698
      %4763 = vst [vmem:[%s244 + $0x14] sm:$0xf] %v4699
      %4764 = vst [vmem:[%s244 + $0x18] sm:$0xf] %v4700
      %4765 = vst [vmem:[%s244 + $0x1c] sm:$0xf] %v4701
      %4766 = vst [vmem:[%s244 + $0x20] sm:$0xf] %v4702
      %4767 = vst [vmem:[%s244 + $0x24] sm:$0xf] %v4703
      %4768 = vst [vmem:[%s244 + $0x28] sm:$0xf] %v4704
      %4769 = vst [vmem:[%s244 + $0x2c] sm:$0xf] %v4705
      %4770 = vst [vmem:[%s244 + $0x30] sm:$0xf] %v4706
      %4771 = vst [vmem:[%s244 + $0x34] sm:$0xf] %v4707
      %4772 = vst [vmem:[%s244 + $0x38] sm:$0xf] %v4708
      %4773 = vst [vmem:[%s244 + $0x3c] sm:$0xf] %v4709
      %4774 = vst [vmem:[%s244 + $0x40] sm:$0xf] %v4710
      %4775 = vst [vmem:[%s244 + $0x44] sm:$0xf] %v4711
      %4776 = vst [vmem:[%s244 + $0x48] sm:$0xf] %v4712
      %4777 = vst [vmem:[%s244 + $0x4c] sm:$0xf] %v4713
      %4778 = vst [vmem:[%s244 + $0x50] sm:$0xf] %v4714
      %4779 = vst [vmem:[%s244 + $0x54] sm:$0xf] %v4715
      %4780 = vst [vmem:[%s244 + $0x58] sm:$0xf] %v4716
      %4781 = vst [vmem:[%s244 + $0x5c] sm:$0xf] %v4717
      %4782 = vst [vmem:[%s244 + $0x60] sm:$0xf] %v4718
      %4783 = vst [vmem:[%s244 + $0x64] sm:$0xf] %v4719
      %4784 = vst [vmem:[%s244 + $0x68] sm:$0xf] %v4720
      %4785 = vst [vmem:[%s244 + $0x6c] sm:$0xf] %v4721
      %4786 = vst [vmem:[%s244 + $0x70] sm:$0xf] %v4722
      %4787 = vst [vmem:[%s244 + $0x74] sm:$0xf] %v4723
      %4788 = vst [vmem:[%s244 + $0x78] sm:$0xf] %v4724
      %4789 = vst [vmem:[%s244 + $0x7c] sm:$0xf] %v4725
      %v4790 = vadd.f32 %v4598, %v4599
      %v4791 = vadd.f32 %v4790, %v4600
      %v4792 = vadd.f32 %v4791, %v4601
      %v4793 = vadd.f32 %v4792, %v4602
      %v4794 = vadd.f32 %v4793, %v4603
      %v4795 = vadd.f32 %v4794, %v4604
      %v4796 = vadd.f32 %v4795, %v4605
      %v4797 = vadd.f32 %v4796, %v4606
      %v4798 = vadd.f32 %v4797, %v4607
      %v4799 = vadd.f32 %v4798, %v4608
      %v4800 = vadd.f32 %v4799, %v4609
      %v4801 = vadd.f32 %v4800, %v4610
      %v4802 = vadd.f32 %v4801, %v4611
      %v4803 = vadd.f32 %v4802, %v4612
      %v4804 = vadd.f32 %v4803, %v4613
      %v4805 = vadd.f32 %v4804, %v4614
      %v4806 = vadd.f32 %v4805, %v4615
      %v4807 = vadd.f32 %v4806, %v4616
      %v4808 = vadd.f32 %v4807, %v4617
      %v4809 = vadd.f32 %v4808, %v4618
      %v4810 = vadd.f32 %v4809, %v4619
      %v4811 = vadd.f32 %v4810, %v4620
      %v4812 = vadd.f32 %v4811, %v4621
      %v4813 = vadd.f32 %v4812, %v4622
      %v4814 = vadd.f32 %v4813, %v4623
      %v4815 = vadd.f32 %v4814, %v4624
      %v4816 = vadd.f32 %v4815, %v4625
      %v4817 = vadd.f32 %v4816, %v4626
      %v4818 = vadd.f32 %v4817, %v4627
      %v4819 = vadd.f32 %v4818, %v4628
      %v4820 = vadd.f32 %v4819, %v4629
      %v4821 = vrot.slane %v4820, 4
      %v4822 = vadd.f32 %v4820, %v4821
      %v4823 = vrot.slane %v4822, 2
      %v4824 = vadd.f32 %v4822, %v4823
      %v4825 = vrot.slane %v4824, 1
      %v4826 = vadd.f32 %v4824, %v4825
      %4827 = vst [vmem:[%s252] sm:$0x1] %v4826
      %v4828 = vmul.f32 %v4598, %v4598
      %v4829 = vmul.f32 %v4599, %v4599
      %v4830 = vmul.f32 %v4600, %v4600
      %v4831 = vmul.f32 %v4601, %v4601
      %v4832 = vmul.f32 %v4602, %v4602
      %v4833 = vmul.f32 %v4603, %v4603
      %v4834 = vmul.f32 %v4604, %v4604
      %v4835 = vmul.f32 %v4605, %v4605
      %v4836 = vmul.f32 %v4606, %v4606
      %v4837 = vmul.f32 %v4607, %v4607
      %v4838 = vmul.f32 %v4608, %v4608
      %v4839 = vmul.f32 %v4609, %v4609
      %v4840 = vmul.f32 %v4610, %v4610
      %v4841 = vmul.f32 %v4611, %v4611
      %v4842 = vmul.f32 %v4612, %v4612
      %v4843 = vmul.f32 %v4613, %v4613
      %v4844 = vmul.f32 %v4614, %v4614
      %v4845 = vmul.f32 %v4615, %v4615
      %v4846 = vmul.f32 %v4616, %v4616
      %v4847 = vmul.f32 %v4617, %v4617
      %v4848 = vmul.f32 %v4618, %v4618
      %v4849 = vmul.f32 %v4619, %v4619
      %v4850 = vmul.f32 %v4620, %v4620
      %v4851 = vmul.f32 %v4621, %v4621
      %v4852 = vmul.f32 %v4622, %v4622
      %v4853 = vmul.f32 %v4623, %v4623
      %v4854 = vmul.f32 %v4624, %v4624
      %v4855 = vmul.f32 %v4625, %v4625
      %v4856 = vmul.f32 %v4626, %v4626
      %v4857 = vmul.f32 %v4627, %v4627
      %v4858 = vmul.f32 %v4628, %v4628
      %v4859 = vmul.f32 %v4629, %v4629
      %v4860 = vadd.f32 %v4828, %v4829
      %v4861 = vadd.f32 %v4860, %v4830
      %v4862 = vadd.f32 %v4861, %v4831
      %v4863 = vadd.f32 %v4862, %v4832
      %v4864 = vadd.f32 %v4863, %v4833
      %v4865 = vadd.f32 %v4864, %v4834
      %v4866 = vadd.f32 %v4865, %v4835
      %v4867 = vadd.f32 %v4866, %v4836
      %v4868 = vadd.f32 %v4867, %v4837
      %v4869 = vadd.f32 %v4868, %v4838
      %v4870 = vadd.f32 %v4869, %v4839
      %v4871 = vadd.f32 %v4870, %v4840
      %v4872 = vadd.f32 %v4871, %v4841
      %v4873 = vadd.f32 %v4872, %v4842
      %v4874 = vadd.f32 %v4873, %v4843
      %v4875 = vadd.f32 %v4874, %v4844
      %v4876 = vadd.f32 %v4875, %v4845
      %v4877 = vadd.f32 %v4876, %v4846
      %v4878 = vadd.f32 %v4877, %v4847
      %v4879 = vadd.f32 %v4878, %v4848
      %v4880 = vadd.f32 %v4879, %v4849
      %v4881 = vadd.f32 %v4880, %v4850
      %v4882 = vadd.f32 %v4881, %v4851
      %v4883 = vadd.f32 %v4882, %v4852
      %v4884 = vadd.f32 %v4883, %v4853
      %v4885 = vadd.f32 %v4884, %v4854
      %v4886 = vadd.f32 %v4885, %v4855
      %v4887 = vadd.f32 %v4886, %v4856
      %v4888 = vadd.f32 %v4887, %v4857
      %v4889 = vadd.f32 %v4888, %v4858
      %v4890 = vadd.f32 %v4889, %v4859
      %v4891 = vrot.slane %v4890, 4
      %v4892 = vadd.f32 %v4890, %v4891
      %v4893 = vrot.slane %v4892, 2
      %v4894 = vadd.f32 %v4892, %v4893
      %v4895 = vrot.slane %v4894, 1
      %v4896 = vadd.f32 %v4894, %v4895
      %4897 = vst [vmem:[%s259] sm:$0x1] %v4896
      %s4898 = smul.u32 8, %s21
      %p4899 = scmp.lt.s32.totalorder %s20, 1
      %s4900 = scalar_select %p4899, %s20, 1
      %p4901 = scmp.lt.s32.totalorder %s4898, 31
      %s4902 = scalar_select %p4901, %s4898, 31
      %s4903 = smul.addr %s4902, 4
      %s4904 = smul.addr %s4900, 128
      %s4905 = sadd.s32 %s4903, %s4904
      %s4906 = smul.addr %s4905, 4
      %s4907 = scalar_lea.vmem %s2, %s4906
      %p4908 = scmp.lt.s32.totalorder %s20, 1
      %s4909 = scalar_select %p4908, %s20, 1
      %p4910 = scmp.lt.s32.totalorder %s21, 3
      %s4911 = scalar_select %p4910, %s21, 3
      %s4912 = smul.addr %s4909, 4
      %s4913 = sadd.s32 %s4911, %s4912
      %s4914 = scalar_lea.vmem %s3, %s4913
      %p4915 = scmp.lt.s32.totalorder %s20, 1
      %s4916 = scalar_select %p4915, %s20, 1
      %p4917 = scmp.lt.s32.totalorder %s21, 3
      %s4918 = scalar_select %p4917, %s21, 3
      %s4919 = smul.addr %s4916, 4
      %s4920 = sadd.s32 %s4918, %s4919
      %s4921 = scalar_lea.vmem %s4, %s4920
      // Predicated region
      $region29: #{upsampling_forward.2} parent=27 // pred_check
        %p4922 = pneg %p95
      $region30: #{upsampling_forward.2} parent=27 // pred_check_branch
        %4924 = sbr.rel (%p4922) target = $region32
      $region31: #{upsampling_forward.2} parent=27 // pred_region
        %s4925 = smul.u32 8, %s21
      $region32: #{upsampling_forward.2} parent=27 // pred_fallthru
        _
      // Predicated region
      $region33: #{upsampling_forward.2} parent=27 // pred_check
        %p4926 = pneg %p123
      $region34: #{upsampling_forward.2} parent=27 // pred_check_branch
        %4928 = sbr.rel (%p4926) target = $region36
      $region35: #{upsampling_forward.2} parent=27 // pred_region
        _
      $region36: #{upsampling_forward.2} parent=27 // pred_fallthru
        _
      // Predicated region
      $region37: #{upsampling_forward.2} parent=27 // pred_check
        %p4929 = pneg %p151
      $region38: #{upsampling_forward.2} parent=27 // pred_check_branch
        %4931 = sbr.rel (%p4929) target = $region40
      $region39: #{upsampling_forward.2} parent=27 // pred_region
        _
      $region40: #{upsampling_forward.2} parent=27 // pred_fallthru
        _
    $region28: #{upsampling_forward.2} parent=5 // pred_fallthru
      _
    %p4932 = scmp.le.s32.totalorder 2, %s11
    // Predicated region
    $region41: #{upsampling_forward.2} parent=5 // pred_check
      %p4933 = pneg %p4932
    $region42: #{upsampling_forward.2} parent=5 // pred_check_branch
      %4935 = sbr.rel (%p4933) target = $region44
    $region43: #{upsampling_forward.2} parent=5 // pred_region
      %s4936 = ssub.s32 %s11, 2
      // Predicated region
      $region45: #{upsampling_forward.2} parent=43 // pred_check
        %p4937 = pneg %p101
      $region46: #{upsampling_forward.2} parent=43 // pred_check_branch
        %4939 = sbr.rel (%p4937) target = $region48
      $region47: #{upsampling_forward.2} parent=43 // pred_region
        %s4940 = smul.u32 8, %s23
        %p4941 = scmp.lt.s32.totalorder %s22, 1
        %s4942 = scalar_select %p4941, %s22, 1
        %p4943 = scmp.lt.s32.totalorder %s4940, 31
        %s4944 = scalar_select %p4943, %s4940, 31
        %s4945 = smul.addr %s4944, 4
        %s4946 = smul.addr %s4942, 128
        %s4947 = sadd.s32 %s4945, %s4946
        %s4948 = smul.addr %s4947, 4
        %s4949 = scalar_lea.vmem %s2, %s4948
      $region48: #{upsampling_forward.2} parent=43 // pred_fallthru
        _
      // Predicated region
      $region49: #{upsampling_forward.2} parent=43 // pred_check
        %p4950 = pneg %p129
      $region50: #{upsampling_forward.2} parent=43 // pred_check_branch
        %4952 = sbr.rel (%p4950) target = $region52
      $region51: #{upsampling_forward.2} parent=43 // pred_region
        %p4953 = scmp.lt.s32.totalorder %s22, 1
        %s4954 = scalar_select %p4953, %s22, 1
        %p4955 = scmp.lt.s32.totalorder %s23, 3
        %s4956 = scalar_select %p4955, %s23, 3
        %s4957 = smul.addr %s4954, 4
        %s4958 = sadd.s32 %s4956, %s4957
        %s4959 = scalar_lea.vmem %s3, %s4958
      $region52: #{upsampling_forward.2} parent=43 // pred_fallthru
        _
      // Predicated region
      $region53: #{upsampling_forward.2} parent=43 // pred_check
        %p4960 = pneg %p157
      $region54: #{upsampling_forward.2} parent=43 // pred_check_branch
        %4962 = sbr.rel (%p4960) target = $region56
      $region55: #{upsampling_forward.2} parent=43 // pred_region
        %p4963 = scmp.lt.s32.totalorder %s22, 1
        %s4964 = scalar_select %p4963, %s22, 1
        %p4965 = scmp.lt.s32.totalorder %s23, 3
        %s4966 = scalar_select %p4965, %s23, 3
        %s4967 = smul.addr %s4964, 4
        %s4968 = sadd.s32 %s4966, %s4967
        %s4969 = scalar_lea.vmem %s4, %s4968
      $region56: #{upsampling_forward.2} parent=43 // pred_fallthru
        _
    $region44: #{upsampling_forward.2} parent=5 // pred_fallthru
      _
  $region6: #{upsampling_forward.2} parent=0 // loop_footer
    %s15 = sadd.s32 1, %s11
  $region7: #{upsampling_forward.2} parent=0 // loop_footer_branch
    %10 = sbr.rel target = $region3
  $region8: #{upsampling_forward.2} parent=0 // loop_exit
    _

// kernel: upsampling_forward.3
$region0: #{upsampling_forward.3}
  #allocation0 [shape = 'u32[]', space=smem, size = 0x4, offset = 0x4, fixed_abs, tag = 'smem constant byte address 0x4 - core index']
  #allocation1 [shape = 'u32[144,128]{1,0:T(1,128)}', space=vmem, size = 0x12000, scoped, tag = 'internal scratch']
  %s0 = inlined_call_operand.vmem [shape: bf16[2,34,34,8], index: 0, kind: input, shape index: {}]
  %s1 = inlined_call_operand.vmem [shape: bf16[9,8,128], index: 1, kind: input, shape index: {}]
  %s2 = inlined_call_operand.vmem [shape: bf16[2,32,32,128], index: 2, kind: output, shape index: {0}]
  %s3 = inlined_call_operand.vmem [shape: f32[2,4,1,128], index: 3, kind: output, shape index: {1}]
  %s4 = inlined_call_operand.vmem [shape: f32[2,4,1,128], index: 4, kind: output, shape index: {2}]
  %5 = xla_tuple %s2, %s3, %s4
  %s6 = sld [smem:[#allocation0]]
  $region57: #{upsampling_forward.3} parent=0
    _
  %s8 = ssub.s32 1, %s6
  %s9 = scalar_select 0, %s8, %s6
  loop: start=0, step=1, limit=10
  $region2: #{upsampling_forward.3} parent=0 // loop_pre_header
    _
  $region3: #{upsampling_forward.3} parent=0 // loop_header
    %s11 = sphi 0, %s15
    %p12 = scmp.ge.s32.totalorder %s11, 10
    %s18 = sphi 0, %s30
    %s19 = sphi 0, %s26
    %s20 = sphi 0, %s18
    %s21 = sphi 0, %s19
    %s22 = sphi 0, %s20
    %s23 = sphi 0, %s21
    %s33 = sphi 0, %s35
    %s36 = sphi 0, %s33
    %s37 = sphi 0, %s36
    %s53 = sphi 0, %s37
    %s57 = sphi 0, %s57
    %s59 = sphi 0, %s57
    %s60 = sphi 0, %s59
    %s74 = sphi 0, %s60
    %s82 = sphi 0, %s84
    %s85 = sphi 0, %s82
    %s86 = sphi 0, %s85
    %s102 = sphi 0, %s86
    %s110 = sphi 0, %s112
    %s113 = sphi 0, %s110
    %s114 = sphi 0, %s113
    %s130 = sphi 0, %s114
    %s138 = sphi 0, %s140
    %s141 = sphi 0, %s138
    %s142 = sphi 0, %s141
    %s158 = sphi 0, %s142
  $region4: #{upsampling_forward.3} parent=0 // loop_header_branch
    %14 = sbr.rel (%p12) target = $region8
  $region5: #{upsampling_forward.3} parent=0 // loop_body
    %s16 = ssub.s32 %s11, 1
    %s17 = ssub.s32 %s11, 2
    %s24 = sadd.s32 1, %s19
    %p25 = scmp.ge.s32.totalorder %s24, 4
    %s26 = scalar_select %p25, 0, %s24
    %s27 = sadd.s32 1, %s18
    %s28 = scalar_select %p25, %s27, %s18
    %p29 = scmp.ge.s32.totalorder %s28, 2
    %s30 = scalar_select %p29, 0, %s28
    %s31 = ssub.s32 %s18, %s30
    %p32 = scmp.eq.s32.totalorder %s31, 0
    %s34 = sadd.s32 %s33, 1
    %s35 = scalar_select %p32, %s33, %s34
    %p38 = pneg %p32
    %p39 = scmp.eq.s32.totalorder %s11, 7
    %p40 = por %p38, %p39
    %p41 = scmp.ne.s32.totalorder %s33, %s36
    %p42 = scmp.eq.s32.totalorder %s11, 0
    %p43 = por %p41, %p42
    %p44 = scmp.ne.s32.totalorder %s33, %s36
    %p45 = scmp.eq.s32.totalorder %s16, 7
    %p46 = por %p44, %p45
    %p47 = scmp.ne.s32.totalorder %s36, %s37
    %p48 = scmp.eq.s32.totalorder %s16, 0
    %p49 = por %p47, %p48
    %p50 = scmp.ne.s32.totalorder %s36, %s37
    %p51 = scmp.eq.s32.totalorder %s17, 7
    %p52 = por %p50, %p51
    %p54 = scmp.ne.s32.totalorder %s37, %s53
    %p55 = scmp.eq.s32.totalorder %s17, 0
    %p56 = por %p54, %p55
    %s58 = sadd.s32 %s57, 1
    %p61 = scmp.eq.s32.totalorder %s11, 7
    %p62 = scmp.ne.s32.totalorder %s57, %s59
    %p63 = scmp.eq.s32.totalorder %s11, 0
    %p64 = por %p62, %p63
    %p65 = scmp.ne.s32.totalorder %s57, %s59
    %p66 = scmp.eq.s32.totalorder %s16, 7
    %p67 = por %p65, %p66
    %p68 = scmp.ne.s32.totalorder %s59, %s60
    %p69 = scmp.eq.s32.totalorder %s16, 0
    %p70 = por %p68, %p69
    %p71 = scmp.ne.s32.totalorder %s59, %s60
    %p72 = scmp.eq.s32.totalorder %s17, 7
    %p73 = por %p71, %p72
    %p75 = scmp.ne.s32.totalorder %s60, %s74
    %p76 = scmp.eq.s32.totalorder %s17, 0
    %p77 = por %p75, %p76
    %s78 = ssub.s32 %s18, %s30
    %s79 = ssub.s32 %s19, %s26
    %s80 = sor.u32 %s78, %s79
    %p81 = scmp.eq.s32.totalorder %s80, 0
    %s83 = sadd.s32 %s82, 1
    %s84 = scalar_select %p81, %s82, %s83
    %p87 = pneg %p81
    %p88 = scmp.eq.s32.totalorder %s11, 7
    %p89 = por %p87, %p88
    %p90 = scmp.ne.s32.totalorder %s82, %s85
    %p91 = scmp.eq.s32.totalorder %s11, 0
    %p92 = por %p90, %p91
    %p93 = scmp.ne.s32.totalorder %s82, %s85
    %p94 = scmp.eq.s32.totalorder %s16, 7
    %p95 = por %p93, %p94
    %p96 = scmp.ne.s32.totalorder %s85, %s86
    %p97 = scmp.eq.s32.totalorder %s16, 0
    %p98 = por %p96, %p97
    %p99 = scmp.ne.s32.totalorder %s85, %s86
    %p100 = scmp.eq.s32.totalorder %s17, 7
    %p101 = por %p99, %p100
    %p103 = scmp.ne.s32.totalorder %s86, %s102
    %p104 = scmp.eq.s32.totalorder %s17, 0
    %p105 = por %p103, %p104
    %s106 = ssub.s32 %s18, %s30
    %s107 = ssub.s32 %s19, %s26
    %s108 = sor.u32 %s106, %s107
    %p109 = scmp.eq.s32.totalorder %s108, 0
    %s111 = sadd.s32 %s110, 1
    %s112 = scalar_select %p109, %s110, %s111
    %p115 = pneg %p109
    %p116 = scmp.eq.s32.totalorder %s11, 7
    %p117 = por %p115, %p116
    %p118 = scmp.ne.s32.totalorder %s110, %s113
    %p119 = scmp.eq.s32.totalorder %s11, 0
    %p120 = por %p118, %p119
    %p121 = scmp.ne.s32.totalorder %s110, %s113
    %p122 = scmp.eq.s32.totalorder %s16, 7
    %p123 = por %p121, %p122
    %p124 = scmp.ne.s32.totalorder %s113, %s114
    %p125 = scmp.eq.s32.totalorder %s16, 0
    %p126 = por %p124, %p125
    %p127 = scmp.ne.s32.totalorder %s113, %s114
    %p128 = scmp.eq.s32.totalorder %s17, 7
    %p129 = por %p127, %p128
    %p131 = scmp.ne.s32.totalorder %s114, %s130
    %p132 = scmp.eq.s32.totalorder %s17, 0
    %p133 = por %p131, %p132
    %s134 = ssub.s32 %s18, %s30
    %s135 = ssub.s32 %s19, %s26
    %s136 = sor.u32 %s134, %s135
    %p137 = scmp.eq.s32.totalorder %s136, 0
    %s139 = sadd.s32 %s138, 1
    %s140 = scalar_select %p137, %s138, %s139
    %p143 = pneg %p137
    %p144 = scmp.eq.s32.totalorder %s11, 7
    %p145 = por %p143, %p144
    %p146 = scmp.ne.s32.totalorder %s138, %s141
    %p147 = scmp.eq.s32.totalorder %s11, 0
    %p148 = por %p146, %p147
    %p149 = scmp.ne.s32.totalorder %s138, %s141
    %p150 = scmp.eq.s32.totalorder %s16, 7
    %p151 = por %p149, %p150
    %p152 = scmp.ne.s32.totalorder %s141, %s142
    %p153 = scmp.eq.s32.totalorder %s16, 0
    %p154 = por %p152, %p153
    %p155 = scmp.ne.s32.totalorder %s141, %s142
    %p156 = scmp.eq.s32.totalorder %s17, 7
    %p157 = por %p155, %p156
    %p159 = scmp.ne.s32.totalorder %s142, %s158
    %p160 = scmp.eq.s32.totalorder %s17, 0
    %p161 = por %p159, %p160
    %p162 = scmp.le.s32.totalorder 1, %s11
    %p163 = scmp.lt.s32.totalorder %s11, 9
    %p164 = pnand %p162, %p163
    %p165 = pneg %p164
    // Predicated region
    $region9: #{upsampling_forward.3} parent=5 // pred_check
      _
    $region10: #{upsampling_forward.3} parent=5 // pred_check_branch
      %167 = sbr.rel (%p164) target = $region12
    $region11: #{upsampling_forward.3} parent=5 // pred_region
      %s168 = ssub.s32 %s11, 1
      // Predicated region
      $region13: #{upsampling_forward.3} parent=11 // pred_check
        %p169 = pneg %p70
      $region14: #{upsampling_forward.3} parent=11 // pred_check_branch
        %171 = sbr.rel (%p169) target = $region16
      $region15: #{upsampling_forward.3} parent=11 // pred_region
        _
      $region16: #{upsampling_forward.3} parent=11 // pred_fallthru
        _
    $region12: #{upsampling_forward.3} parent=5 // pred_fallthru
      _
    %p172 = scmp.lt.s32.totalorder %s11, 8
    // Predicated region
    $region17: #{upsampling_forward.3} parent=5 // pred_check
      %p173 = pneg %p172
    $region18: #{upsampling_forward.3} parent=5 // pred_check_branch
      %175 = sbr.rel (%p173) target = $region20
    $region19: #{upsampling_forward.3} parent=5 // pred_region
      // Predicated region
      $region21: #{upsampling_forward.3} parent=19 // pred_check
        %p176 = pneg %p43
      $region22: #{upsampling_forward.3} parent=19 // pred_check_branch
        %178 = sbr.rel (%p176) target = $region24
      $region23: #{upsampling_forward.3} parent=19 // pred_region
        %p179 = scmp.lt.s32.totalorder %s18, 1
        %s180 = scalar_select %p179, %s18, 1
        %s181 = smul.addr %s180, 170
        %s182 = smul.addr %s181, 4
        %s183 = scalar_lea.vmem %s0, %s182
      $region24: #{upsampling_forward.3} parent=19 // pred_fallthru
        _
    $region20: #{upsampling_forward.3} parent=5 // pred_fallthru
      _
    %p184 = scmp.le.s32.totalorder 1, %s11
    %p185 = scmp.lt.s32.totalorder %s11, 9
    %p186 = pnand %p184, %p185
    %p187 = pneg %p186
    // Predicated region
    $region25: #{upsampling_forward.3} parent=5 // pred_check
      _
    $region26: #{upsampling_forward.3} parent=5 // pred_check_branch
      %189 = sbr.rel (%p186) target = $region28
    $region27: #{upsampling_forward.3} parent=5 // pred_region
      %s190 = ssub.s32 %s11, 1
      %p191 = scmp.lt.s32.totalorder %s20, 1
      %s192 = scalar_select %p191, %s20, 1
      %s193 = smul.addr %s192, 170
      %s194 = smul.addr %s193, 4
      %s195 = scalar_lea.vmem %s0, %s194
      %p196 = pneg %p49
      %p197 = pneg %p46
      %p198 = pneg %p70
      %p199 = pneg %p67
      %p200 = pneg %p98
      %p201 = pneg %p95
      %s202 = smul.u32 8, %s21
      %p203 = scmp.lt.s32.totalorder %s20, 1
      %s204 = scalar_select %p203, %s20, 1
      %p205 = scmp.lt.s32.totalorder %s202, 31
      %s206 = scalar_select %p205, %s202, 31
      %s207 = smul.addr %s206, 4
      %s208 = smul.addr %s204, 128
      %s209 = sadd.s32 %s207, %s208
      %s210 = smul.addr %s209, 4
      %s211 = scalar_lea.vmem %s2, %s210
      %p212 = pneg %p126
      %p213 = pneg %p123
      %p214 = scmp.lt.s32.totalorder %s20, 1
      %s215 = scalar_select %p214, %s20, 1
      %p216 = scmp.lt.s32.totalorder %s21, 3
      %s217 = scalar_select %p216, %s21, 3
      %s218 = smul.addr %s215, 4
      %s219 = sadd.s32 %s217, %s218
      %s220 = scalar_lea.vmem %s3, %s219
      %p221 = pneg %p154
      %p222 = pneg %p151
      %p223 = scmp.lt.s32.totalorder %s20, 1
      %s224 = scalar_select %p223, %s20, 1
      %p225 = scmp.lt.s32.totalorder %s21, 3
      %s226 = scalar_select %p225, %s21, 3
      %s227 = smul.addr %s224, 4
      %s228 = sadd.s32 %s226, %s227
      %s229 = scalar_lea.vmem %s4, %s228
      %p230 = scmp.lt.s32.totalorder %s20, 1
      %s231 = scalar_select %p230, %s20, 1
      %s232 = smul.addr %s231, 170
      %s233 = smul.addr %s232, 4
      %s234 = scalar_lea.vmem %s0, %s233
      %s235 = smul.u32 8, %s21
      %p236 = scmp.lt.s32.totalorder %s20, 1
      %s237 = scalar_select %p236, %s20, 1
      %p238 = scmp.lt.s32.totalorder %s235, 31
      %s239 = scalar_select %p238, %s235, 31
      %s240 = smul.addr %s239, 4
      %s241 = smul.addr %s237, 128
      %s242 = sadd.s32 %s240, %s241
      %s243 = smul.addr %s242, 4
      %s244 = scalar_lea.vmem %s2, %s243
      %s245 = smul.u32 8, %s21
      %p246 = scmp.lt.s32.totalorder %s20, 1
      %s247 = scalar_select %p246, %s20, 1
      %p248 = scmp.lt.s32.totalorder %s21, 3
      %s249 = scalar_select %p248, %s21, 3
      %s250 = smul.addr %s247, 4
      %s251 = sadd.s32 %s249, %s250
      %s252 = scalar_lea.vmem %s3, %s251
      %p253 = scmp.lt.s32.totalorder %s20, 1
      %s254 = scalar_select %p253, %s20, 1
      %p255 = scmp.lt.s32.totalorder %s21, 3
      %s256 = scalar_select %p255, %s21, 3
      %s257 = smul.addr %s254, 4
      %s258 = sadd.s32 %s256, %s257
      %s259 = scalar_lea.vmem %s4, %s258
      %s261 = smul.u32 %s21, 8
      %s262 = smul.u32 %s261, 5
      %s263 = smul.addr %s262, 4
      %s264 = scalar_lea.vmem %s234, %s263
      %v265 = vld [vmem:[%s264] sm:$0xf]
      %v266 = vld [vmem:[%s264 + $0x4] sm:$0xf]
      %v267 = vld [vmem:[%s264 + $0x8] sm:$0xf]
      %v268 = vld [vmem:[%s264 + $0xc] sm:$0xf]
      %v269 = vld [vmem:[%s264 + $0x14] sm:$0xf]
      %v270 = vld [vmem:[%s264 + $0x18] sm:$0xf]
      %v271 = vld [vmem:[%s264 + $0x1c] sm:$0xf]
      %v272 = vld [vmem:[%s264 + $0x20] sm:$0xf]
      %v273 = vld [vmem:[%s264 + $0x28] sm:$0xf]
      %v274 = vld [vmem:[%s264 + $0x2c] sm:$0xf]
      %v275 = vld [vmem:[%s264 + $0x30] sm:$0xf]
      %v276 = vld [vmem:[%s264 + $0x34] sm:$0xf]
      %v277 = vld [vmem:[%s264 + $0x3c] sm:$0xf]
      %v278 = vld [vmem:[%s264 + $0x40] sm:$0xf]
      %v279 = vld [vmem:[%s264 + $0x44] sm:$0xf]
      %v280 = vld [vmem:[%s264 + $0x48] sm:$0xf]
      %v281 = vld [vmem:[%s264 + $0x50] sm:$0xf]
      %v282 = vld [vmem:[%s264 + $0x54] sm:$0xf]
      %v283 = vld [vmem:[%s264 + $0x58] sm:$0xf]
      %v284 = vld [vmem:[%s264 + $0x5c] sm:$0xf]
      %v285 = vld [vmem:[%s264 + $0x64] sm:$0xf]
      %v286 = vld [vmem:[%s264 + $0x68] sm:$0xf]
      %v287 = vld [vmem:[%s264 + $0x6c] sm:$0xf]
      %v288 = vld [vmem:[%s264 + $0x70] sm:$0xf]
      %v289 = vld [vmem:[%s264 + $0x78] sm:$0xf]
      %v290 = vld [vmem:[%s264 + $0x7c] sm:$0xf]
      %v291 = vld [vmem:[%s264 + $0x80] sm:$0xf]
      %v292 = vld [vmem:[%s264 + $0x84] sm:$0xf]
      %v293 = vld [vmem:[%s264 + $0x8c] sm:$0xf]
      %v294 = vld [vmem:[%s264 + $0x90] sm:$0xf]
      %v295 = vld [vmem:[%s264 + $0x94] sm:$0xf]
      %v296 = vld [vmem:[%s264 + $0x98] sm:$0xf]
      %v297 = vld [vmem:[%s1] sm:$0xf]
      %v298 = vld [vmem:[%s264 + $0x10] sm:$0x1]
      %v299 = vld [vmem:[%s264 + $0x24] sm:$0x1]
      %v300 = vld [vmem:[%s264 + $0x38] sm:$0x1]
      %v301 = vld [vmem:[%s264 + $0x4c] sm:$0x1]
      %v302 = vld [vmem:[%s264 + $0x60] sm:$0x1]
      %v303 = vld [vmem:[%s264 + $0x74] sm:$0x1]
      %v304 = vld [vmem:[%s264 + $0x88] sm:$0x1]
      %v305 = vld [vmem:[%s264 + $0x9c] sm:$0x1]
      %vm306 = vsmask.f32 3328
      %vm307 = vsmask.f32 7440
      %vm308 = vmor %vm306, %vm307
      %v310 = vshrl.u32 %v265, 16
      %v312 = vrot.slane %v310, 4
      %v313 = vshll.u32 %v265, 16
      %v315 = vrot.slane %v313, 5
      %v316 = vor.u32 %v312, %v315
      %v317 = vrot.slane %v316, 4
      %v319 = vshll.u32 %v266, 16
      %v321 = vrot.slane %v319, 5
      %v322 = vsel %vm308, %v317, %v321
      %v323 = vshrl.u32 %v266, 16
      %v325 = vrot.slane %v323, 4
      %v326 = vor.u32 %v325, %v321
      %v327 = vrot.slane %v326, 4
      %v329 = vshll.u32 %v267, 16
      %v331 = vrot.slane %v329, 5
      %v332 = vsel %vm308, %v327, %v331
      %v333 = vshrl.u32 %v267, 16
      %v335 = vrot.slane %v333, 4
      %v336 = vor.u32 %v335, %v331
      %v337 = vrot.slane %v336, 4
      %v339 = vshll.u32 %v268, 16
      %v341 = vrot.slane %v339, 5
      %v342 = vsel %vm308, %v337, %v341
      %v343 = vshrl.u32 %v268, 16
      %v345 = vrot.slane %v343, 4
      %v346 = vor.u32 %v345, %v341
      %v347 = vrot.slane %v346, 4
      %v349 = vshll.u32 %v298, 16
      %v351 = vrot.slane %v349, 5
      %v352 = vsel %vm308, %v347, %v351
      %v354 = vshrl.u32 %v269, 16
      %v356 = vrot.slane %v354, 4
      %v357 = vshll.u32 %v269, 16
      %v359 = vrot.slane %v357, 5
      %v360 = vor.u32 %v356, %v359
      %v361 = vrot.slane %v360, 4
      %v363 = vshll.u32 %v270, 16
      %v365 = vrot.slane %v363, 5
      %v366 = vsel %vm308, %v361, %v365
      %v367 = vshrl.u32 %v270, 16
      %v369 = vrot.slane %v367, 4
      %v370 = vor.u32 %v369, %v365
      %v371 = vrot.slane %v370, 4
      %v373 = vshll.u32 %v271, 16
      %v375 = vrot.slane %v373, 5
      %v376 = vsel %vm308, %v371, %v375
      %v377 = vshrl.u32 %v271, 16
      %v379 = vrot.slane %v377, 4
      %v380 = vor.u32 %v379, %v375
      %v381 = vrot.slane %v380, 4
      %v383 = vshll.u32 %v272, 16
      %v385 = vrot.slane %v383, 5
      %v386 = vsel %vm308, %v381, %v385
      %v387 = vshrl.u32 %v272, 16
      %v389 = vrot.slane %v387, 4
      %v390 = vor.u32 %v389, %v385
      %v391 = vrot.slane %v390, 4
      %v393 = vshll.u32 %v299, 16
      %v395 = vrot.slane %v393, 5
      %v396 = vsel %vm308, %v391, %v395
      %v398 = vshrl.u32 %v273, 16
      %v400 = vrot.slane %v398, 4
      %v401 = vshll.u32 %v273, 16
      %v403 = vrot.slane %v401, 5
      %v404 = vor.u32 %v400, %v403
      %v405 = vrot.slane %v404, 4
      %v407 = vshll.u32 %v274, 16
      %v409 = vrot.slane %v407, 5
      %v410 = vsel %vm308, %v405, %v409
      %v411 = vshrl.u32 %v274, 16
      %v413 = vrot.slane %v411, 4
      %v414 = vor.u32 %v413, %v409
      %v415 = vrot.slane %v414, 4
      %v417 = vshll.u32 %v275, 16
      %v419 = vrot.slane %v417, 5
      %v420 = vsel %vm308, %v415, %v419
      %v421 = vshrl.u32 %v275, 16
      %v423 = vrot.slane %v421, 4
      %v424 = vor.u32 %v423, %v419
      %v425 = vrot.slane %v424, 4
      %v427 = vshll.u32 %v276, 16
      %v429 = vrot.slane %v427, 5
      %v430 = vsel %vm308, %v425, %v429
      %v431 = vshrl.u32 %v276, 16
      %v433 = vrot.slane %v431, 4
      %v434 = vor.u32 %v433, %v429
      %v435 = vrot.slane %v434, 4
      %v437 = vshll.u32 %v300, 16
      %v439 = vrot.slane %v437, 5
      %v440 = vsel %vm308, %v435, %v439
      %v442 = vshrl.u32 %v277, 16
      %v444 = vrot.slane %v442, 4
      %v445 = vshll.u32 %v277, 16
      %v447 = vrot.slane %v445, 5
      %v448 = vor.u32 %v444, %v447
      %v449 = vrot.slane %v448, 4
      %v451 = vshll.u32 %v278, 16
      %v453 = vrot.slane %v451, 5
      %v454 = vsel %vm308, %v449, %v453
      %v455 = vshrl.u32 %v278, 16
      %v457 = vrot.slane %v455, 4
      %v458 = vor.u32 %v457, %v453
      %v459 = vrot.slane %v458, 4
      %v461 = vshll.u32 %v279, 16
      %v463 = vrot.slane %v461, 5
      %v464 = vsel %vm308, %v459, %v463
      %v465 = vshrl.u32 %v279, 16
      %v467 = vrot.slane %v465, 4
      %v468 = vor.u32 %v467, %v463
      %v469 = vrot.slane %v468, 4
      %v471 = vshll.u32 %v280, 16
      %v473 = vrot.slane %v471, 5
      %v474 = vsel %vm308, %v469, %v473
      %v475 = vshrl.u32 %v280, 16
      %v477 = vrot.slane %v475, 4
      %v478 = vor.u32 %v477, %v473
      %v479 = vrot.slane %v478, 4
      %v481 = vshll.u32 %v301, 16
      %v483 = vrot.slane %v481, 5
      %v484 = vsel %vm308, %v479, %v483
      %v486 = vshrl.u32 %v281, 16
      %v488 = vrot.slane %v486, 4
      %v489 = vshll.u32 %v281, 16
      %v491 = vrot.slane %v489, 5
      %v492 = vor.u32 %v488, %v491
      %v493 = vrot.slane %v492, 4
      %v495 = vshll.u32 %v282, 16
      %v497 = vrot.slane %v495, 5
      %v498 = vsel %vm308, %v493, %v497
      %v499 = vshrl.u32 %v282, 16
      %v501 = vrot.slane %v499, 4
      %v502 = vor.u32 %v501, %v497
      %v503 = vrot.slane %v502, 4
      %v505 = vshll.u32 %v283, 16
      %v507 = vrot.slane %v505, 5
      %v508 = vsel %vm308, %v503, %v507
      %v509 = vshrl.u32 %v283, 16
      %v511 = vrot.slane %v509, 4
      %v512 = vor.u32 %v511, %v507
      %v513 = vrot.slane %v512, 4
      %v515 = vshll.u32 %v284, 16
      %v517 = vrot.slane %v515, 5
      %v518 = vsel %vm308, %v513, %v517
      %v519 = vshrl.u32 %v284, 16
      %v521 = vrot.slane %v519, 4
      %v522 = vor.u32 %v521, %v517
      %v523 = vrot.slane %v522, 4
      %v525 = vshll.u32 %v302, 16
      %v527 = vrot.slane %v525, 5
      %v528 = vsel %vm308, %v523, %v527
      %v530 = vshrl.u32 %v285, 16
      %v532 = vrot.slane %v530, 4
      %v533 = vshll.u32 %v285, 16
      %v535 = vrot.slane %v533, 5
      %v536 = vor.u32 %v532, %v535
      %v537 = vrot.slane %v536, 4
      %v539 = vshll.u32 %v286, 16
      %v541 = vrot.slane %v539, 5
      %v542 = vsel %vm308, %v537, %v541
      %v543 = vshrl.u32 %v286, 16
      %v545 = vrot.slane %v543, 4
      %v546 = vor.u32 %v545, %v541
      %v547 = vrot.slane %v546, 4
      %v549 = vshll.u32 %v287, 16
      %v551 = vrot.slane %v549, 5
      %v552 = vsel %vm308, %v547, %v551
      %v553 = vshrl.u32 %v287, 16
      %v555 = vrot.slane %v553, 4
      %v556 = vor.u32 %v555, %v551
      %v557 = vrot.slane %v556, 4
      %v559 = vshll.u32 %v288, 16
      %v561 = vrot.slane %v559, 5
      %v562 = vsel %vm308, %v557, %v561
      %v563 = vshrl.u32 %v288, 16
      %v565 = vrot.slane %v563, 4
      %v566 = vor.u32 %v565, %v561
      %v567 = vrot.slane %v566, 4
      %v569 = vshll.u32 %v303, 16
      %v571 = vrot.slane %v569, 5
      %v572 = vsel %vm308, %v567, %v571
      %v574 = vshrl.u32 %v289, 16
      %v576 = vrot.slane %v574, 4
      %v577 = vshll.u32 %v289, 16
      %v579 = vrot.slane %v577, 5
      %v580 = vor.u32 %v576, %v579
      %v581 = vrot.slane %v580, 4
      %v583 = vshll.u32 %v290, 16
      %v585 = vrot.slane %v583, 5
      %v586 = vsel %vm308, %v581, %v585
      %v587 = vshrl.u32 %v290, 16
      %v589 = vrot.slane %v587, 4
      %v590 = vor.u32 %v589, %v585
      %v591 = vrot.slane %v590, 4
      %v593 = vshll.u32 %v291, 16
      %v595 = vrot.slane %v593, 5
      %v596 = vsel %vm308, %v591, %v595
      %v597 = vshrl.u32 %v291, 16
      %v599 = vrot.slane %v597, 4
      %v600 = vor.u32 %v599, %v595
      %v601 = vrot.slane %v600, 4
      %v603 = vshll.u32 %v292, 16
      %v605 = vrot.slane %v603, 5
      %v606 = vsel %vm308, %v601, %v605
      %v607 = vshrl.u32 %v292, 16
      %v609 = vrot.slane %v607, 4
      %v610 = vor.u32 %v609, %v605
      %v611 = vrot.slane %v610, 4
      %v613 = vshll.u32 %v304, 16
      %v615 = vrot.slane %v613, 5
      %v616 = vsel %vm308, %v611, %v615
      %v618 = vshrl.u32 %v293, 16
      %v620 = vrot.slane %v618, 4
      %v621 = vshll.u32 %v293, 16
      %v623 = vrot.slane %v621, 5
      %v624 = vor.u32 %v620, %v623
      %v625 = vrot.slane %v624, 4
      %v627 = vshll.u32 %v294, 16
      %v629 = vrot.slane %v627, 5
      %v630 = vsel %vm308, %v625, %v629
      %v631 = vshrl.u32 %v294, 16
      %v633 = vrot.slane %v631, 4
      %v634 = vor.u32 %v633, %v629
      %v635 = vrot.slane %v634, 4
      %v637 = vshll.u32 %v295, 16
      %v639 = vrot.slane %v637, 5
      %v640 = vsel %vm308, %v635, %v639
      %v641 = vshrl.u32 %v295, 16
      %v643 = vrot.slane %v641, 4
      %v644 = vor.u32 %v643, %v639
      %v645 = vrot.slane %v644, 4
      %v647 = vshll.u32 %v296, 16
      %v649 = vrot.slane %v647, 5
      %v650 = vsel %vm308, %v645, %v649
      %v651 = vshrl.u32 %v296, 16
      %v653 = vrot.slane %v651, 4
      %v654 = vor.u32 %v653, %v649
      %v655 = vrot.slane %v654, 4
      %v657 = vshll.u32 %v305, 16
      %v659 = vrot.slane %v657, 5
      %v660 = vsel %vm308, %v655, %v659
      %s661 = scalar_lea.vmem %s1, 4
      %v662 = vld [vmem:[%s661] sm:$0xf]
      %v663 = vunpack.c.l.b16 %v322
      %v664 = vunpack.c.l.b16 %v332
      %v665 = vunpack.c.l.b16 %v342
      %v666 = vunpack.c.l.b16 %v352
      %v667 = vunpack.c.l.b16 %v366
      %v668 = vunpack.c.l.b16 %v376
      %v669 = vunpack.c.l.b16 %v386
      %v670 = vunpack.c.l.b16 %v396
      %v671 = vunpack.c.l.b16 %v410
      %v672 = vunpack.c.l.b16 %v420
      %v673 = vunpack.c.l.b16 %v430
      %v674 = vunpack.c.l.b16 %v440
      %v675 = vunpack.c.l.b16 %v454
      %v676 = vunpack.c.l.b16 %v464
      %v677 = vunpack.c.l.b16 %v474
      %v678 = vunpack.c.l.b16 %v484
      %v679 = vunpack.c.l.b16 %v498
      %v680 = vunpack.c.l.b16 %v508
      %v681 = vunpack.c.l.b16 %v518
      %v682 = vunpack.c.l.b16 %v528
      %v683 = vunpack.c.l.b16 %v542
      %v684 = vunpack.c.l.b16 %v552
      %v685 = vunpack.c.l.b16 %v562
      %v686 = vunpack.c.l.b16 %v572
      %v687 = vunpack.c.l.b16 %v586
      %v688 = vunpack.c.l.b16 %v596
      %v689 = vunpack.c.l.b16 %v606
      %v690 = vunpack.c.l.b16 %v616
      %v691 = vunpack.c.l.b16 %v630
      %v692 = vunpack.c.l.b16 %v640
      %v693 = vunpack.c.l.b16 %v650
      %v694 = vunpack.c.l.b16 %v660
      %v695 = vpack.c.b16 %v664, %v663
      %v696 = vpack.c.b16 %v666, %v665
      %v697 = vpack.c.b16 %v668, %v667
      %v698 = vpack.c.b16 %v670, %v669
      %v699 = vpack.c.b16 %v672, %v671
      %v700 = vpack.c.b16 %v674, %v673
      %v701 = vpack.c.b16 %v676, %v675
      %v702 = vpack.c.b16 %v678, %v677
      %v703 = vpack.c.b16 %v680, %v679
      %v704 = vpack.c.b16 %v682, %v681
      %v705 = vpack.c.b16 %v684, %v683
      %v706 = vpack.c.b16 %v686, %v685
      %v707 = vpack.c.b16 %v688, %v687
      %v708 = vpack.c.b16 %v690, %v689
      %v709 = vpack.c.b16 %v692, %v691
      %v710 = vpack.c.b16 %v694, %v693
      %vm711 = vcmask 64512
      %v713 = vsel %vm711, %v695, 0
      %v716 = vsel %vm711, %v696, 0
      %v719 = vsel %vm711, %v697, 0
      %v722 = vsel %vm711, %v698, 0
      %v725 = vsel %vm711, %v699, 0
      %v728 = vsel %vm711, %v700, 0
      %v731 = vsel %vm711, %v701, 0
      %v734 = vsel %vm711, %v702, 0
      %v737 = vsel %vm711, %v703, 0
      %v740 = vsel %vm711, %v704, 0
      %v743 = vsel %vm711, %v705, 0
      %v746 = vsel %vm711, %v706, 0
      %v749 = vsel %vm711, %v707, 0
      %v752 = vsel %vm711, %v708, 0
      %v755 = vsel %vm711, %v709, 0
      %v758 = vsel %vm711, %v710, 0
      %vm760 = vcmask 1043456
      %v762 = vsel %vm760, %v662, 0
      %764 = vmatprep.subr.bf16.mxu0 0
      %765 = vmatpush1.bf16.msra.mxu0 %v762
      %766 = vmatprep.subr.bf16.mxu0 0
      %767 = vmatpush1.bf16.msra.mxu0 0
      %768 = vmatprep.subr.bf16.mxu0 0
      %769 = vmatpush1.bf16.msra.mxu0 0
      %770 = vmatprep.subr.bf16.mxu0 0
      %771 = vmatpush1.bf16.msra.mxu0 0
      %772 = vmatprep.subr.bf16.mxu0 0
      %773 = vmatpush1.bf16.msra.mxu0 0
      %774 = vmatprep.subr.bf16.mxu0 0
      %775 = vmatpush1.bf16.msra.mxu0 0
      %776 = vmatprep.subr.bf16.mxu0 0
      %777 = vmatpush1.bf16.msra.mxu0 0
      %778 = vmatprep.subr.bf16.mxu0 0
      %779 = vmatpush1.bf16.msra.mxu0 0
      %780 = vmatprep.subr.bf16.mxu0 0
      %781 = vmatpush1.bf16.msra.mxu0 0
      %782 = vmatprep.subr.bf16.mxu0 0
      %783 = vmatpush1.bf16.msra.mxu0 0
      %784 = vmatprep.subr.bf16.mxu0 0
      %785 = vmatpush1.bf16.msra.mxu0 0
      %786 = vmatprep.subr.bf16.mxu0 0
      %787 = vmatpush1.bf16.msra.mxu0 0
      %788 = vmatprep.subr.bf16.mxu0 0
      %789 = vmatpush1.bf16.msra.mxu0 0
      %790 = vmatprep.subr.bf16.mxu0 0
      %791 = vmatpush1.bf16.msra.mxu0 0
      %792 = vmatprep.subr.bf16.mxu0 0
      %793 = vmatpush1.bf16.msra.mxu0 0
      %794 = vmatprep.subr.bf16.mxu0 0
      %795 = vmatpush1.bf16.msra.mxu0 0
      %796 = vmatprep.mubr.bf16.mxu0 0
      %797 = vmatmul.mubr.bf16.gmra.mrb[0].mxu0 %v713
      %v798 = vpop.f32.mrb[0].mxu0
      %v799 = vadd.f32 0.0, %v798
      %v800 = vpop.f32.mrb[0].mxu0
      %v801 = vpop.f32.mrb[0].mxu0
      %v802 = vadd.f32 0.0, %v801
      %v803 = vpop.f32.mrb[0].mxu0
      %804 = vmatprep.mubr.bf16.mxu0 0
      %805 = vmatmul.mubr.bf16.gmra.mrb[0].mxu0 %v716
      %v806 = vpop.f32.mrb[0].mxu0
      %v807 = vadd.f32 0.0, %v806
      %v808 = vpop.f32.mrb[0].mxu0
      %v809 = vpop.f32.mrb[0].mxu0
      %v810 = vadd.f32 0.0, %v809
      %v811 = vpop.f32.mrb[0].mxu0
      %812 = vmatprep.mubr.bf16.mxu0 0
      %813 = vmatmul.mubr.bf16.gmra.mrb[0].mxu0 %v719
      %v814 = vpop.f32.mrb[0].mxu0
      %v815 = vadd.f32 0.0, %v814
      %v816 = vpop.f32.mrb[0].mxu0
      %v817 = vpop.f32.mrb[0].mxu0
      %v818 = vadd.f32 0.0, %v817
      %v819 = vpop.f32.mrb[0].mxu0
      %820 = vmatprep.mubr.bf16.mxu0 0
      %821 = vmatmul.mubr.bf16.gmra.mrb[0].mxu0 %v722
      %v822 = vpop.f32.mrb[0].mxu0
      %v823 = vadd.f32 0.0, %v822
      %v824 = vpop.f32.mrb[0].mxu0
      %v825 = vpop.f32.mrb[0].mxu0
      %v826 = vadd.f32 0.0, %v825
      %v827 = vpop.f32.mrb[0].mxu0
      %828 = vmatprep.mubr.bf16.mxu0 0
      %829 = vmatmul.mubr.bf16.gmra.mrb[0].mxu0 %v725
      %v830 = vpop.f32.mrb[0].mxu0
      %v831 = vadd.f32 0.0, %v830
      %v832 = vpop.f32.mrb[0].mxu0
      %v833 = vpop.f32.mrb[0].mxu0
      %v834 = vadd.f32 0.0, %v833
      %v835 = vpop.f32.mrb[0].mxu0
      %836 = vmatprep.mubr.bf16.mxu0 0
      %837 = vmatmul.mubr.bf16.gmra.mrb[0].mxu0 %v728
      %v838 = vpop.f32.mrb[0].mxu0
      %v839 = vadd.f32 0.0, %v838
      %v840 = vpop.f32.mrb[0].mxu0
      %v841 = vpop.f32.mrb[0].mxu0
      %v842 = vadd.f32 0.0, %v841
      %v843 = vpop.f32.mrb[0].mxu0
      %844 = vmatprep.mubr.bf16.mxu0 0
      %845 = vmatmul.mubr.bf16.gmra.mrb[0].mxu0 %v731
      %v846 = vpop.f32.mrb[0].mxu0
      %v847 = vadd.f32 0.0, %v846
      %v848 = vpop.f32.mrb[0].mxu0
      %v849 = vpop.f32.mrb[0].mxu0
      %v850 = vadd.f32 0.0, %v849
      %v851 = vpop.f32.mrb[0].mxu0
      %852 = vmatprep.mubr.bf16.mxu0 0
      %853 = vmatmul.mubr.bf16.gmra.mrb[0].mxu0 %v734
      %v854 = vpop.f32.mrb[0].mxu0
      %v855 = vadd.f32 0.0, %v854
      %v856 = vpop.f32.mrb[0].mxu0
      %v857 = vpop.f32.mrb[0].mxu0
      %v858 = vadd.f32 0.0, %v857
      %v859 = vpop.f32.mrb[0].mxu0
      %860 = vmatprep.mubr.bf16.mxu0 0
      %861 = vmatmul.mubr.bf16.gmra.mrb[0].mxu0 %v737
      %v862 = vpop.f32.mrb[0].mxu0
      %v863 = vadd.f32 0.0, %v862
      %v864 = vpop.f32.mrb[0].mxu0
      %v865 = vpop.f32.mrb[0].mxu0
      %v866 = vadd.f32 0.0, %v865
      %v867 = vpop.f32.mrb[0].mxu0
      %868 = vmatprep.mubr.bf16.mxu0 0
      %869 = vmatmul.mubr.bf16.gmra.mrb[0].mxu0 %v740
      %v870 = vpop.f32.mrb[0].mxu0
      %v871 = vadd.f32 0.0, %v870
      %v872 = vpop.f32.mrb[0].mxu0
      %v873 = vpop.f32.mrb[0].mxu0
      %v874 = vadd.f32 0.0, %v873
      %v875 = vpop.f32.mrb[0].mxu0
      %876 = vmatprep.mubr.bf16.mxu0 0
      %877 = vmatmul.mubr.bf16.gmra.mrb[0].mxu0 %v743
      %v878 = vpop.f32.mrb[0].mxu0
      %v879 = vadd.f32 0.0, %v878
      %v880 = vpop.f32.mrb[0].mxu0
      %v881 = vpop.f32.mrb[0].mxu0
      %v882 = vadd.f32 0.0, %v881
      %v883 = vpop.f32.mrb[0].mxu0
      %884 = vmatprep.mubr.bf16.mxu0 0
      %885 = vmatmul.mubr.bf16.gmra.mrb[0].mxu0 %v746
      %v886 = vpop.f32.mrb[0].mxu0
      %v887 = vadd.f32 0.0, %v886
      %v888 = vpop.f32.mrb[0].mxu0
      %v889 = vpop.f32.mrb[0].mxu0
      %v890 = vadd.f32 0.0, %v889
      %v891 = vpop.f32.mrb[0].mxu0
      %892 = vmatprep.mubr.bf16.mxu0 0
      %893 = vmatmul.mubr.bf16.gmra.mrb[0].mxu0 %v749
      %v894 = vpop.f32.mrb[0].mxu0
      %v895 = vadd.f32 0.0, %v894
      %v896 = vpop.f32.mrb[0].mxu0
      %v897 = vpop.f32.mrb[0].mxu0
      %v898 = vadd.f32 0.0, %v897
      %v899 = vpop.f32.mrb[0].mxu0
      %900 = vmatprep.mubr.bf16.mxu0 0
      %901 = vmatmul.mubr.bf16.gmra.mrb[0].mxu0 %v752
      %v902 = vpop.f32.mrb[0].mxu0
      %v903 = vadd.f32 0.0, %v902
      %v904 = vpop.f32.mrb[0].mxu0
      %v905 = vpop.f32.mrb[0].mxu0
      %v906 = vadd.f32 0.0, %v905
      %v907 = vpop.f32.mrb[0].mxu0
      %908 = vmatprep.mubr.bf16.mxu0 0
      %909 = vmatmul.mubr.bf16.gmra.mrb[0].mxu0 %v755
      %v910 = vpop.f32.mrb[0].mxu0
      %v911 = vadd.f32 0.0, %v910
      %v912 = vpop.f32.mrb[0].mxu0
      %v913 = vpop.f32.mrb[0].mxu0
      %v914 = vadd.f32 0.0, %v913
      %v915 = vpop.f32.mrb[0].mxu0
      %916 = vmatprep.mubr.bf16.mxu0 0
      %917 = vmatmul.mubr.bf16.gmra.mrb[0].mxu0 %v758
      %v918 = vpop.f32.mrb[0].mxu0
      %v919 = vadd.f32 0.0, %v918
      %v920 = vpop.f32.mrb[0].mxu0
      %v921 = vpop.f32.mrb[0].mxu0
      %v922 = vadd.f32 0.0, %v921
      %v923 = vpop.f32.mrb[0].mxu0
      %924 = vdwg.mxu0
      %v957 = vunpack.c.l.b16 %v265
      %v958 = vunpack.c.l.b16 %v266
      %v959 = vunpack.c.l.b16 %v267
      %v960 = vunpack.c.l.b16 %v268
      %v961 = vunpack.c.l.b16 %v269
      %v962 = vunpack.c.l.b16 %v270
      %v963 = vunpack.c.l.b16 %v271
      %v964 = vunpack.c.l.b16 %v272
      %v965 = vunpack.c.l.b16 %v273
      %v966 = vunpack.c.l.b16 %v274
      %v967 = vunpack.c.l.b16 %v275
      %v968 = vunpack.c.l.b16 %v276
      %v969 = vunpack.c.l.b16 %v277
      %v970 = vunpack.c.l.b16 %v278
      %v971 = vunpack.c.l.b16 %v279
      %v972 = vunpack.c.l.b16 %v280
      %v973 = vunpack.c.l.b16 %v281
      %v974 = vunpack.c.l.b16 %v282
      %v975 = vunpack.c.l.b16 %v283
      %v976 = vunpack.c.l.b16 %v284
      %v977 = vunpack.c.l.b16 %v285
      %v978 = vunpack.c.l.b16 %v286
      %v979 = vunpack.c.l.b16 %v287
      %v980 = vunpack.c.l.b16 %v288
      %v981 = vunpack.c.l.b16 %v289
      %v982 = vunpack.c.l.b16 %v290
      %v983 = vunpack.c.l.b16 %v291
      %v984 = vunpack.c.l.b16 %v292
      %v985 = vunpack.c.l.b16 %v293
      %v986 = vunpack.c.l.b16 %v294
      %v987 = vunpack.c.l.b16 %v295
      %v988 = vunpack.c.l.b16 %v296
      %v989 = vpack.c.b16 %v958, %v957
      %v990 = vpack.c.b16 %v960, %v959
      %v991 = vpack.c.b16 %v962, %v961
      %v992 = vpack.c.b16 %v964, %v963
      %v993 = vpack.c.b16 %v966, %v965
      %v994 = vpack.c.b16 %v968, %v967
      %v995 = vpack.c.b16 %v970, %v969
      %v996 = vpack.c.b16 %v972, %v971
      %v997 = vpack.c.b16 %v974, %v973
      %v998 = vpack.c.b16 %v976, %v975
      %v999 = vpack.c.b16 %v978, %v977
      %v1000 = vpack.c.b16 %v980, %v979
      %v1001 = vpack.c.b16 %v982, %v981
      %v1002 = vpack.c.b16 %v984, %v983
      %v1003 = vpack.c.b16 %v986, %v985
      %v1004 = vpack.c.b16 %v988, %v987
      %v1006 = vsel %vm711, %v989, 0
      %v1009 = vsel %vm711, %v990, 0
      %v1012 = vsel %vm711, %v991, 0
      %v1015 = vsel %vm711, %v992, 0
      %v1018 = vsel %vm711, %v993, 0
      %v1021 = vsel %vm711, %v994, 0
      %v1024 = vsel %vm711, %v995, 0
      %v1027 = vsel %vm711, %v996, 0
      %v1030 = vsel %vm711, %v997, 0
      %v1033 = vsel %vm711, %v998, 0
      %v1036 = vsel %vm711, %v999, 0
      %v1039 = vsel %vm711, %v1000, 0
      %v1042 = vsel %vm711, %v1001, 0
      %v1045 = vsel %vm711, %v1002, 0
      %v1048 = vsel %vm711, %v1003, 0
      %v1051 = vsel %vm711, %v1004, 0
      %v1054 = vsel %vm760, %v297, 0
      %1056 = vmatprep.subr.bf16.mxu0 0
      %1057 = vmatpush1.bf16.msra.mxu0 %v1054
      %1058 = vmatprep.subr.bf16.mxu0 0
      %1059 = vmatpush1.bf16.msra.mxu0 0
      %1060 = vmatprep.subr.bf16.mxu0 0
      %1061 = vmatpush1.bf16.msra.mxu0 0
      %1062 = vmatprep.subr.bf16.mxu0 0
      %1063 = vmatpush1.bf16.msra.mxu0 0
      %1064 = vmatprep.subr.bf16.mxu0 0
      %1065 = vmatpush1.bf16.msra.mxu0 0
      %1066 = vmatprep.subr.bf16.mxu0 0
      %1067 = vmatpush1.bf16.msra.mxu0 0
      %1068 = vmatprep.subr.bf16.mxu0 0
      %1069 = vmatpush1.bf16.msra.mxu0 0
      %1070 = vmatprep.subr.bf16.mxu0 0
      %1071 = vmatpush1.bf16.msra.mxu0 0
      %1072 = vmatprep.subr.bf16.mxu0 0
      %1073 = vmatpush1.bf16.msra.mxu0 0
      %1074 = vmatprep.subr.bf16.mxu0 0
      %1075 = vmatpush1.bf16.msra.mxu0 0
      %1076 = vmatprep.subr.bf16.mxu0 0
      %1077 = vmatpush1.bf16.msra.mxu0 0
      %1078 = vmatprep.subr.bf16.mxu0 0
      %1079 = vmatpush1.bf16.msra.mxu0 0
      %1080 = vmatprep.subr.bf16.mxu0 0
      %1081 = vmatpush1.bf16.msra.mxu0 0
      %1082 = vmatprep.subr.bf16.mxu0 0
      %1083 = vmatpush1.bf16.msra.mxu0 0
      %1084 = vmatprep.subr.bf16.mxu0 0
      %1085 = vmatpush1.bf16.msra.mxu0 0
      %1086 = vmatprep.subr.bf16.mxu0 0
      %1087 = vmatpush1.bf16.msra.mxu0 0
      %1088 = vmatprep.mubr.bf16.mxu0 0
      %1089 = vmatmul.mubr.bf16.gmra.mrb[0].mxu0 %v1006
      %v1090 = vpop.f32.mrb[0].mxu0
      %v1091 = vadd.f32 %v799, %v1090
      %v1092 = vpop.f32.mrb[0].mxu0
      %v1093 = vpop.f32.mrb[0].mxu0
      %v1094 = vadd.f32 %v802, %v1093
      %v1095 = vpop.f32.mrb[0].mxu0
      %1096 = vmatprep.mubr.bf16.mxu0 0
      %1097 = vmatmul.mubr.bf16.gmra.mrb[0].mxu0 %v1009
      %v1098 = vpop.f32.mrb[0].mxu0
      %v1099 = vadd.f32 %v807, %v1098
      %v1100 = vpop.f32.mrb[0].mxu0
      %v1101 = vpop.f32.mrb[0].mxu0
      %v1102 = vadd.f32 %v810, %v1101
      %v1103 = vpop.f32.mrb[0].mxu0
      %1104 = vmatprep.mubr.bf16.mxu0 0
      %1105 = vmatmul.mubr.bf16.gmra.mrb[0].mxu0 %v1012
      %v1106 = vpop.f32.mrb[0].mxu0
      %v1107 = vadd.f32 %v815, %v1106
      %v1108 = vpop.f32.mrb[0].mxu0
      %v1109 = vpop.f32.mrb[0].mxu0
      %v1110 = vadd.f32 %v818, %v1109
      %v1111 = vpop.f32.mrb[0].mxu0
      %1112 = vmatprep.mubr.bf16.mxu0 0
      %1113 = vmatmul.mubr.bf16.gmra.mrb[0].mxu0 %v1015
      %v1114 = vpop.f32.mrb[0].mxu0
      %v1115 = vadd.f32 %v823, %v1114
      %v1116 = vpop.f32.mrb[0].mxu0
      %v1117 = vpop.f32.mrb[0].mxu0
      %v1118 = vadd.f32 %v826, %v1117
      %v1119 = vpop.f32.mrb[0].mxu0
      %1120 = vmatprep.mubr.bf16.mxu0 0
      %1121 = vmatmul.mubr.bf16.gmra.mrb[0].mxu0 %v1018
      %v1122 = vpop.f32.mrb[0].mxu0
      %v1123 = vadd.f32 %v831, %v1122
      %v1124 = vpop.f32.mrb[0].mxu0
      %v1125 = vpop.f32.mrb[0].mxu0
      %v1126 = vadd.f32 %v834, %v1125
      %v1127 = vpop.f32.mrb[0].mxu0
      %1128 = vmatprep.mubr.bf16.mxu0 0
      %1129 = vmatmul.mubr.bf16.gmra.mrb[0].mxu0 %v1021
      %v1130 = vpop.f32.mrb[0].mxu0
      %v1131 = vadd.f32 %v839, %v1130
      %v1132 = vpop.f32.mrb[0].mxu0
      %v1133 = vpop.f32.mrb[0].mxu0
      %v1134 = vadd.f32 %v842, %v1133
      %v1135 = vpop.f32.mrb[0].mxu0
      %1136 = vmatprep.mubr.bf16.mxu0 0
      %1137 = vmatmul.mubr.bf16.gmra.mrb[0].mxu0 %v1024
      %v1138 = vpop.f32.mrb[0].mxu0
      %v1139 = vadd.f32 %v847, %v1138
      %v1140 = vpop.f32.mrb[0].mxu0
      %v1141 = vpop.f32.mrb[0].mxu0
      %v1142 = vadd.f32 %v850, %v1141
      %v1143 = vpop.f32.mrb[0].mxu0
      %1144 = vmatprep.mubr.bf16.mxu0 0
      %1145 = vmatmul.mubr.bf16.gmra.mrb[0].mxu0 %v1027
      %v1146 = vpop.f32.mrb[0].mxu0
      %v1147 = vadd.f32 %v855, %v1146
      %v1148 = vpop.f32.mrb[0].mxu0
      %v1149 = vpop.f32.mrb[0].mxu0
      %v1150 = vadd.f32 %v858, %v1149
      %v1151 = vpop.f32.mrb[0].mxu0
      %1152 = vmatprep.mubr.bf16.mxu0 0
      %1153 = vmatmul.mubr.bf16.gmra.mrb[0].mxu0 %v1030
      %v1154 = vpop.f32.mrb[0].mxu0
      %v1155 = vadd.f32 %v863, %v1154
      %v1156 = vpop.f32.mrb[0].mxu0
      %v1157 = vpop.f32.mrb[0].mxu0
      %v1158 = vadd.f32 %v866, %v1157
      %v1159 = vpop.f32.mrb[0].mxu0
      %1160 = vmatprep.mubr.bf16.mxu0 0
      %1161 = vmatmul.mubr.bf16.gmra.mrb[0].mxu0 %v1033
      %v1162 = vpop.f32.mrb[0].mxu0
      %v1163 = vadd.f32 %v871, %v1162
      %v1164 = vpop.f32.mrb[0].mxu0
      %v1165 = vpop.f32.mrb[0].mxu0
      %v1166 = vadd.f32 %v874, %v1165
      %v1167 = vpop.f32.mrb[0].mxu0
      %1168 = vmatprep.mubr.bf16.mxu0 0
      %1169 = vmatmul.mubr.bf16.gmra.mrb[0].mxu0 %v1036
      %v1170 = vpop.f32.mrb[0].mxu0
      %v1171 = vadd.f32 %v879, %v1170
      %v1172 = vpop.f32.mrb[0].mxu0
      %v1173 = vpop.f32.mrb[0].mxu0
      %v1174 = vadd.f32 %v882, %v1173
      %v1175 = vpop.f32.mrb[0].mxu0
      %1176 = vmatprep.mubr.bf16.mxu0 0
      %1177 = vmatmul.mubr.bf16.gmra.mrb[0].mxu0 %v1039
      %v1178 = vpop.f32.mrb[0].mxu0
      %v1179 = vadd.f32 %v887, %v1178
      %v1180 = vpop.f32.mrb[0].mxu0
      %v1181 = vpop.f32.mrb[0].mxu0
      %v1182 = vadd.f32 %v890, %v1181
      %v1183 = vpop.f32.mrb[0].mxu0
      %1184 = vmatprep.mubr.bf16.mxu0 0
      %1185 = vmatmul.mubr.bf16.gmra.mrb[0].mxu0 %v1042
      %v1186 = vpop.f32.mrb[0].mxu0
      %v1187 = vadd.f32 %v895, %v1186
      %v1188 = vpop.f32.mrb[0].mxu0
      %v1189 = vpop.f32.mrb[0].mxu0
      %v1190 = vadd.f32 %v898, %v1189
      %v1191 = vpop.f32.mrb[0].mxu0
      %1192 = vmatprep.mubr.bf16.mxu0 0
      %1193 = vmatmul.mubr.bf16.gmra.mrb[0].mxu0 %v1045
      %v1194 = vpop.f32.mrb[0].mxu0
      %v1195 = vadd.f32 %v903, %v1194
      %v1196 = vpop.f32.mrb[0].mxu0
      %v1197 = vpop.f32.mrb[0].mxu0
      %v1198 = vadd.f32 %v906, %v1197
      %v1199 = vpop.f32.mrb[0].mxu0
      %1200 = vmatprep.mubr.bf16.mxu0 0
      %1201 = vmatmul.mubr.bf16.gmra.mrb[0].mxu0 %v1048
      %v1202 = vpop.f32.mrb[0].mxu0
      %v1203 = vadd.f32 %v911, %v1202
      %v1204 = vpop.f32.mrb[0].mxu0
      %v1205 = vpop.f32.mrb[0].mxu0
      %v1206 = vadd.f32 %v914, %v1205
      %v1207 = vpop.f32.mrb[0].mxu0
      %1208 = vmatprep.mubr.bf16.mxu0 0
      %1209 = vmatmul.mubr.bf16.gmra.mrb[0].mxu0 %v1051
      %v1210 = vpop.f32.mrb[0].mxu0
      %v1211 = vadd.f32 %v919, %v1210
      %v1212 = vpop.f32.mrb[0].mxu0
      %v1213 = vpop.f32.mrb[0].mxu0
      %v1214 = vadd.f32 %v922, %v1213
      %v1215 = vpop.f32.mrb[0].mxu0
      %1216 = vdwg.mxu0
      %v1217 = vld [vmem:[%s264] sm:$0xe]
      %v1218 = vld [vmem:[%s264 + $0x14] sm:$0xe]
      %v1219 = vld [vmem:[%s264 + $0x28] sm:$0xe]
      %v1220 = vld [vmem:[%s264 + $0x3c] sm:$0xe]
      %v1221 = vld [vmem:[%s264 + $0x50] sm:$0xe]
      %v1222 = vld [vmem:[%s264 + $0x64] sm:$0xe]
      %v1223 = vld [vmem:[%s264 + $0x78] sm:$0xe]
      %v1224 = vld [vmem:[%s264 + $0x8c] sm:$0xe]
      %vm1241 = vcmask 1042432
      %vm1242 = vcmask 1046532
      %vm1243 = vmor %vm1241, %vm1242
      %v1244 = vrot.slane %v1217, 5
      %v1245 = vrot.slane %v1244, 4
      %v1246 = vrot.slane %v266, 5
      %v1247 = vsel %vm1243, %v1245, %v1246
      %v1248 = vrot.slane %v1246, 4
      %v1249 = vrot.slane %v267, 5
      %v1250 = vsel %vm1243, %v1248, %v1249
      %v1251 = vrot.slane %v1249, 4
      %v1252 = vrot.slane %v268, 5
      %v1253 = vsel %vm1243, %v1251, %v1252
      %v1254 = vrot.slane %v1252, 4
      %v1255 = vrot.slane %v298, 5
      %v1256 = vsel %vm1243, %v1254, %v1255
      %v1257 = vrot.slane %v1218, 5
      %v1258 = vrot.slane %v1257, 4
      %v1259 = vrot.slane %v270, 5
      %v1260 = vsel %vm1243, %v1258, %v1259
      %v1261 = vrot.slane %v1259, 4
      %v1262 = vrot.slane %v271, 5
      %v1263 = vsel %vm1243, %v1261, %v1262
      %v1264 = vrot.slane %v1262, 4
      %v1265 = vrot.slane %v272, 5
      %v1266 = vsel %vm1243, %v1264, %v1265
      %v1267 = vrot.slane %v1265, 4
      %v1268 = vrot.slane %v299, 5
      %v1269 = vsel %vm1243, %v1267, %v1268
      %v1270 = vrot.slane %v1219, 5
      %v1271 = vrot.slane %v1270, 4
      %v1272 = vrot.slane %v274, 5
      %v1273 = vsel %vm1243, %v1271, %v1272
      %v1274 = vrot.slane %v1272, 4
      %v1275 = vrot.slane %v275, 5
      %v1276 = vsel %vm1243, %v1274, %v1275
      %v1277 = vrot.slane %v1275, 4
      %v1278 = vrot.slane %v276, 5
      %v1279 = vsel %vm1243, %v1277, %v1278
      %v1280 = vrot.slane %v1278, 4
      %v1281 = vrot.slane %v300, 5
      %v1282 = vsel %vm1243, %v1280, %v1281
      %v1283 = vrot.slane %v1220, 5
      %v1284 = vrot.slane %v1283, 4
      %v1285 = vrot.slane %v278, 5
      %v1286 = vsel %vm1243, %v1284, %v1285
      %v1287 = vrot.slane %v1285, 4
      %v1288 = vrot.slane %v279, 5
      %v1289 = vsel %vm1243, %v1287, %v1288
      %v1290 = vrot.slane %v1288, 4
      %v1291 = vrot.slane %v280, 5
      %v1292 = vsel %vm1243, %v1290, %v1291
      %v1293 = vrot.slane %v1291, 4
      %v1294 = vrot.slane %v301, 5
      %v1295 = vsel %vm1243, %v1293, %v1294
      %v1296 = vrot.slane %v1221, 5
      %v1297 = vrot.slane %v1296, 4
      %v1298 = vrot.slane %v282, 5
      %v1299 = vsel %vm1243, %v1297, %v1298
      %v1300 = vrot.slane %v1298, 4
      %v1301 = vrot.slane %v283, 5
      %v1302 = vsel %vm1243, %v1300, %v1301
      %v1303 = vrot.slane %v1301, 4
      %v1304 = vrot.slane %v284, 5
      %v1305 = vsel %vm1243, %v1303, %v1304
      %v1306 = vrot.slane %v1304, 4
      %v1307 = vrot.slane %v302, 5
      %v1308 = vsel %vm1243, %v1306, %v1307
      %v1309 = vrot.slane %v1222, 5
      %v1310 = vrot.slane %v1309, 4
      %v1311 = vrot.slane %v286, 5
      %v1312 = vsel %vm1243, %v1310, %v1311
      %v1313 = vrot.slane %v1311, 4
      %v1314 = vrot.slane %v287, 5
      %v1315 = vsel %vm1243, %v1313, %v1314
      %v1316 = vrot.slane %v1314, 4
      %v1317 = vrot.slane %v288, 5
      %v1318 = vsel %vm1243, %v1316, %v1317
      %v1319 = vrot.slane %v1317, 4
      %v1320 = vrot.slane %v303, 5
      %v1321 = vsel %vm1243, %v1319, %v1320
      %v1322 = vrot.slane %v1223, 5
      %v1323 = vrot.slane %v1322, 4
      %v1324 = vrot.slane %v290, 5
      %v1325 = vsel %vm1243, %v1323, %v1324
      %v1326 = vrot.slane %v1324, 4
      %v1327 = vrot.slane %v291, 5
      %v1328 = vsel %vm1243, %v1326, %v1327
      %v1329 = vrot.slane %v1327, 4
      %v1330 = vrot.slane %v292, 5
      %v1331 = vsel %vm1243, %v1329, %v1330
      %v1332 = vrot.slane %v1330, 4
      %v1333 = vrot.slane %v304, 5
      %v1334 = vsel %vm1243, %v1332, %v1333
      %v1335 = vrot.slane %v1224, 5
      %v1336 = vrot.slane %v1335, 4
      %v1337 = vrot.slane %v294, 5
      %v1338 = vsel %vm1243, %v1336, %v1337
      %v1339 = vrot.slane %v1337, 4
      %v1340 = vrot.slane %v295, 5
      %v1341 = vsel %vm1243, %v1339, %v1340
      %v1342 = vrot.slane %v1340, 4
      %v1343 = vrot.slane %v296, 5
      %v1344 = vsel %vm1243, %v1342, %v1343
      %v1345 = vrot.slane %v1343, 4
      %v1346 = vrot.slane %v305, 5
      %v1347 = vsel %vm1243, %v1345, %v1346
      %s1348 = scalar_lea.vmem %s1, 8
      %v1349 = vld [vmem:[%s1348] sm:$0xf]
      %v1350 = vunpack.c.l.b16 %v1247
      %v1351 = vunpack.c.l.b16 %v1250
      %v1352 = vunpack.c.l.b16 %v1253
      %v1353 = vunpack.c.l.b16 %v1256
      %v1354 = vunpack.c.l.b16 %v1260
      %v1355 = vunpack.c.l.b16 %v1263
      %v1356 = vunpack.c.l.b16 %v1266
      %v1357 = vunpack.c.l.b16 %v1269
      %v1358 = vunpack.c.l.b16 %v1273
      %v1359 = vunpack.c.l.b16 %v1276
      %v1360 = vunpack.c.l.b16 %v1279
      %v1361 = vunpack.c.l.b16 %v1282
      %v1362 = vunpack.c.l.b16 %v1286
      %v1363 = vunpack.c.l.b16 %v1289
      %v1364 = vunpack.c.l.b16 %v1292
      %v1365 = vunpack.c.l.b16 %v1295
      %v1366 = vunpack.c.l.b16 %v1299
      %v1367 = vunpack.c.l.b16 %v1302
      %v1368 = vunpack.c.l.b16 %v1305
      %v1369 = vunpack.c.l.b16 %v1308
      %v1370 = vunpack.c.l.b16 %v1312
      %v1371 = vunpack.c.l.b16 %v1315
      %v1372 = vunpack.c.l.b16 %v1318
      %v1373 = vunpack.c.l.b16 %v1321
      %v1374 = vunpack.c.l.b16 %v1325
      %v1375 = vunpack.c.l.b16 %v1328
      %v1376 = vunpack.c.l.b16 %v1331
      %v1377 = vunpack.c.l.b16 %v1334
      %v1378 = vunpack.c.l.b16 %v1338
      %v1379 = vunpack.c.l.b16 %v1341
      %v1380 = vunpack.c.l.b16 %v1344
      %v1381 = vunpack.c.l.b16 %v1347
      %v1382 = vpack.c.b16 %v1351, %v1350
      %v1383 = vpack.c.b16 %v1353, %v1352
      %v1384 = vpack.c.b16 %v1355, %v1354
      %v1385 = vpack.c.b16 %v1357, %v1356
      %v1386 = vpack.c.b16 %v1359, %v1358
      %v1387 = vpack.c.b16 %v1361, %v1360
      %v1388 = vpack.c.b16 %v1363, %v1362
      %v1389 = vpack.c.b16 %v1365, %v1364
      %v1390 = vpack.c.b16 %v1367, %v1366
      %v1391 = vpack.c.b16 %v1369, %v1368
      %v1392 = vpack.c.b16 %v1371, %v1370
      %v1393 = vpack.c.b16 %v1373, %v1372
      %v1394 = vpack.c.b16 %v1375, %v1374
      %v1395 = vpack.c.b16 %v1377, %v1376
      %v1396 = vpack.c.b16 %v1379, %v1378
      %v1397 = vpack.c.b16 %v1381, %v1380
      %v1399 = vsel %vm711, %v1382, 0
      %v1402 = vsel %vm711, %v1383, 0
      %v1405 = vsel %vm711, %v1384, 0
      %v1408 = vsel %vm711, %v1385, 0
      %v1411 = vsel %vm711, %v1386, 0
      %v1414 = vsel %vm711, %v1387, 0
      %v1417 = vsel %vm711, %v1388, 0
      %v1420 = vsel %vm711, %v1389, 0
      %v1423 = vsel %vm711, %v1390, 0
      %v1426 = vsel %vm711, %v1391, 0
      %v1429 = vsel %vm711, %v1392, 0
      %v1432 = vsel %vm711, %v1393, 0
      %v1435 = vsel %vm711, %v1394, 0
      %v1438 = vsel %vm711, %v1395, 0
      %v1441 = vsel %vm711, %v1396, 0
      %v1444 = vsel %vm711, %v1397, 0
      %v1447 = vsel %vm760, %v1349, 0
      %1449 = vmatprep.subr.bf16.mxu0 0
      %1450 = vmatpush1.bf16.msra.mxu0 %v1447
      %1451 = vmatprep.subr.bf16.mxu0 0
      %1452 = vmatpush1.bf16.msra.mxu0 0
      %1453 = vmatprep.subr.bf16.mxu0 0
      %1454 = vmatpush1.bf16.msra.mxu0 0
      %1455 = vmatprep.subr.bf16.mxu0 0
      %1456 = vmatpush1.bf16.msra.mxu0 0
      %1457 = vmatprep.subr.bf16.mxu0 0
      %1458 = vmatpush1.bf16.msra.mxu0 0
      %1459 = vmatprep.subr.bf16.mxu0 0
      %1460 = vmatpush1.bf16.msra.mxu0 0
      %1461 = vmatprep.subr.bf16.mxu0 0
      %1462 = vmatpush1.bf16.msra.mxu0 0
      %1463 = vmatprep.subr.bf16.mxu0 0
      %1464 = vmatpush1.bf16.msra.mxu0 0
      %1465 = vmatprep.subr.bf16.mxu0 0
      %1466 = vmatpush1.bf16.msra.mxu0 0
      %1467 = vmatprep.subr.bf16.mxu0 0
      %1468 = vmatpush1.bf16.msra.mxu0 0
      %1469 = vmatprep.subr.bf16.mxu0 0
      %1470 = vmatpush1.bf16.msra.mxu0 0
      %1471 = vmatprep.subr.bf16.mxu0 0
      %1472 = vmatpush1.bf16.msra.mxu0 0
      %1473 = vmatprep.subr.bf16.mxu0 0
      %1474 = vmatpush1.bf16.msra.mxu0 0
      %1475 = vmatprep.subr.bf16.mxu0 0
      %1476 = vmatpush1.bf16.msra.mxu0 0
      %1477 = vmatprep.subr.bf16.mxu0 0
      %1478 = vmatpush1.bf16.msra.mxu0 0
      %1479 = vmatprep.subr.bf16.mxu0 0
      %1480 = vmatpush1.bf16.msra.mxu0 0
      %1481 = vmatprep.mubr.bf16.mxu0 0
      %1482 = vmatmul.mubr.bf16.gmra.mrb[0].mxu0 %v1399
      %v1483 = vpop.f32.mrb[0].mxu0
      %v1484 = vadd.f32 0.0, %v1483
      %v1485 = vpop.f32.mrb[0].mxu0
      %v1486 = vpop.f32.mrb[0].mxu0
      %v1487 = vadd.f32 0.0, %v1486
      %v1488 = vpop.f32.mrb[0].mxu0
      %1489 = vmatprep.mubr.bf16.mxu0 0
      %1490 = vmatmul.mubr.bf16.gmra.mrb[0].mxu0 %v1402
      %v1491 = vpop.f32.mrb[0].mxu0
      %v1492 = vadd.f32 0.0, %v1491
      %v1493 = vpop.f32.mrb[0].mxu0
      %v1494 = vpop.f32.mrb[0].mxu0
      %v1495 = vadd.f32 0.0, %v1494
      %v1496 = vpop.f32.mrb[0].mxu0
      %1497 = vmatprep.mubr.bf16.mxu0 0
      %1498 = vmatmul.mubr.bf16.gmra.mrb[0].mxu0 %v1405
      %v1499 = vpop.f32.mrb[0].mxu0
      %v1500 = vadd.f32 0.0, %v1499
      %v1501 = vpop.f32.mrb[0].mxu0
      %v1502 = vpop.f32.mrb[0].mxu0
      %v1503 = vadd.f32 0.0, %v1502
      %v1504 = vpop.f32.mrb[0].mxu0
      %1505 = vmatprep.mubr.bf16.mxu0 0
      %1506 = vmatmul.mubr.bf16.gmra.mrb[0].mxu0 %v1408
      %v1507 = vpop.f32.mrb[0].mxu0
      %v1508 = vadd.f32 0.0, %v1507
      %v1509 = vpop.f32.mrb[0].mxu0
      %v1510 = vpop.f32.mrb[0].mxu0
      %v1511 = vadd.f32 0.0, %v1510
      %v1512 = vpop.f32.mrb[0].mxu0
      %1513 = vmatprep.mubr.bf16.mxu0 0
      %1514 = vmatmul.mubr.bf16.gmra.mrb[0].mxu0 %v1411
      %v1515 = vpop.f32.mrb[0].mxu0
      %v1516 = vadd.f32 0.0, %v1515
      %v1517 = vpop.f32.mrb[0].mxu0
      %v1518 = vpop.f32.mrb[0].mxu0
      %v1519 = vadd.f32 0.0, %v1518
      %v1520 = vpop.f32.mrb[0].mxu0
      %1521 = vmatprep.mubr.bf16.mxu0 0
      %1522 = vmatmul.mubr.bf16.gmra.mrb[0].mxu0 %v1414
      %v1523 = vpop.f32.mrb[0].mxu0
      %v1524 = vadd.f32 0.0, %v1523
      %v1525 = vpop.f32.mrb[0].mxu0
      %v1526 = vpop.f32.mrb[0].mxu0
      %v1527 = vadd.f32 0.0, %v1526
      %v1528 = vpop.f32.mrb[0].mxu0
      %1529 = vmatprep.mubr.bf16.mxu0 0
      %1530 = vmatmul.mubr.bf16.gmra.mrb[0].mxu0 %v1417
      %v1531 = vpop.f32.mrb[0].mxu0
      %v1532 = vadd.f32 0.0, %v1531
      %v1533 = vpop.f32.mrb[0].mxu0
      %v1534 = vpop.f32.mrb[0].mxu0
      %v1535 = vadd.f32 0.0, %v1534
      %v1536 = vpop.f32.mrb[0].mxu0
      %1537 = vmatprep.mubr.bf16.mxu0 0
      %1538 = vmatmul.mubr.bf16.gmra.mrb[0].mxu0 %v1420
      %v1539 = vpop.f32.mrb[0].mxu0
      %v1540 = vadd.f32 0.0, %v1539
      %v1541 = vpop.f32.mrb[0].mxu0
      %v1542 = vpop.f32.mrb[0].mxu0
      %v1543 = vadd.f32 0.0, %v1542
      %v1544 = vpop.f32.mrb[0].mxu0
      %1545 = vmatprep.mubr.bf16.mxu0 0
      %1546 = vmatmul.mubr.bf16.gmra.mrb[0].mxu0 %v1423
      %v1547 = vpop.f32.mrb[0].mxu0
      %v1548 = vadd.f32 0.0, %v1547
      %v1549 = vpop.f32.mrb[0].mxu0
      %v1550 = vpop.f32.mrb[0].mxu0
      %v1551 = vadd.f32 0.0, %v1550
      %v1552 = vpop.f32.mrb[0].mxu0
      %1553 = vmatprep.mubr.bf16.mxu0 0
      %1554 = vmatmul.mubr.bf16.gmra.mrb[0].mxu0 %v1426
      %v1555 = vpop.f32.mrb[0].mxu0
      %v1556 = vadd.f32 0.0, %v1555
      %v1557 = vpop.f32.mrb[0].mxu0
      %v1558 = vpop.f32.mrb[0].mxu0
      %v1559 = vadd.f32 0.0, %v1558
      %v1560 = vpop.f32.mrb[0].mxu0
      %1561 = vmatprep.mubr.bf16.mxu0 0
      %1562 = vmatmul.mubr.bf16.gmra.mrb[0].mxu0 %v1429
      %v1563 = vpop.f32.mrb[0].mxu0
      %v1564 = vadd.f32 0.0, %v1563
      %v1565 = vpop.f32.mrb[0].mxu0
      %v1566 = vpop.f32.mrb[0].mxu0
      %v1567 = vadd.f32 0.0, %v1566
      %v1568 = vpop.f32.mrb[0].mxu0
      %1569 = vmatprep.mubr.bf16.mxu0 0
      %1570 = vmatmul.mubr.bf16.gmra.mrb[0].mxu0 %v1432
      %v1571 = vpop.f32.mrb[0].mxu0
      %v1572 = vadd.f32 0.0, %v1571
      %v1573 = vpop.f32.mrb[0].mxu0
      %v1574 = vpop.f32.mrb[0].mxu0
      %v1575 = vadd.f32 0.0, %v1574
      %v1576 = vpop.f32.mrb[0].mxu0
      %1577 = vmatprep.mubr.bf16.mxu0 0
      %1578 = vmatmul.mubr.bf16.gmra.mrb[0].mxu0 %v1435
      %v1579 = vpop.f32.mrb[0].mxu0
      %v1580 = vadd.f32 0.0, %v1579
      %v1581 = vpop.f32.mrb[0].mxu0
      %v1582 = vpop.f32.mrb[0].mxu0
      %v1583 = vadd.f32 0.0, %v1582
      %v1584 = vpop.f32.mrb[0].mxu0
      %1585 = vmatprep.mubr.bf16.mxu0 0
      %1586 = vmatmul.mubr.bf16.gmra.mrb[0].mxu0 %v1438
      %v1587 = vpop.f32.mrb[0].mxu0
      %v1588 = vadd.f32 0.0, %v1587
      %v1589 = vpop.f32.mrb[0].mxu0
      %v1590 = vpop.f32.mrb[0].mxu0
      %v1591 = vadd.f32 0.0, %v1590
      %v1592 = vpop.f32.mrb[0].mxu0
      %1593 = vmatprep.mubr.bf16.mxu0 0
      %1594 = vmatmul.mubr.bf16.gmra.mrb[0].mxu0 %v1441
      %v1595 = vpop.f32.mrb[0].mxu0
      %v1596 = vadd.f32 0.0, %v1595
      %v1597 = vpop.f32.mrb[0].mxu0
      %v1598 = vpop.f32.mrb[0].mxu0
      %v1599 = vadd.f32 0.0, %v1598
      %v1600 = vpop.f32.mrb[0].mxu0
      %1601 = vmatprep.mubr.bf16.mxu0 0
      %1602 = vmatmul.mubr.bf16.gmra.mrb[0].mxu0 %v1444
      %v1603 = vpop.f32.mrb[0].mxu0
      %v1604 = vadd.f32 0.0, %v1603
      %v1605 = vpop.f32.mrb[0].mxu0
      %v1606 = vpop.f32.mrb[0].mxu0
      %v1607 = vadd.f32 0.0, %v1606
      %v1608 = vpop.f32.mrb[0].mxu0
      %1609 = vdwg.mxu0
      %v1610 = vadd.f32 %v1091, %v1484
      %v1611 = vadd.f32 %v1094, %v1487
      %v1612 = vadd.f32 %v1099, %v1492
      %v1613 = vadd.f32 %v1102, %v1495
      %v1614 = vadd.f32 %v1107, %v1500
      %v1615 = vadd.f32 %v1110, %v1503
      %v1616 = vadd.f32 %v1115, %v1508
      %v1617 = vadd.f32 %v1118, %v1511
      %v1618 = vadd.f32 %v1123, %v1516
      %v1619 = vadd.f32 %v1126, %v1519
      %v1620 = vadd.f32 %v1131, %v1524
      %v1621 = vadd.f32 %v1134, %v1527
      %v1622 = vadd.f32 %v1139, %v1532
      %v1623 = vadd.f32 %v1142, %v1535
      %v1624 = vadd.f32 %v1147, %v1540
      %v1625 = vadd.f32 %v1150, %v1543
      %v1626 = vadd.f32 %v1155, %v1548
      %v1627 = vadd.f32 %v1158, %v1551
      %v1628 = vadd.f32 %v1163, %v1556
      %v1629 = vadd.f32 %v1166, %v1559
      %v1630 = vadd.f32 %v1171, %v1564
      %v1631 = vadd.f32 %v1174, %v1567
      %v1632 = vadd.f32 %v1179, %v1572
      %v1633 = vadd.f32 %v1182, %v1575
      %v1634 = vadd.f32 %v1187, %v1580
      %v1635 = vadd.f32 %v1190, %v1583
      %v1636 = vadd.f32 %v1195, %v1588
      %v1637 = vadd.f32 %v1198, %v1591
      %v1638 = vadd.f32 %v1203, %v1596
      %v1639 = vadd.f32 %v1206, %v1599
      %v1640 = vadd.f32 %v1211, %v1604
      %v1641 = vadd.f32 %v1214, %v1607
      %s1642 = sadd.s32 %s261, 1
      %s1643 = smul.u32 %s1642, 5
      %s1644 = smul.addr %s1643, 4
      %s1645 = scalar_lea.vmem %s234, %s1644
      %v1646 = vld [vmem:[%s1645] sm:$0xf]
      %v1647 = vld [vmem:[%s1645 + $0x4] sm:$0xf]
      %v1648 = vld [vmem:[%s1645 + $0x8] sm:$0xf]
      %v1649 = vld [vmem:[%s1645 + $0xc] sm:$0xf]
      %v1650 = vld [vmem:[%s1645 + $0x14] sm:$0xf]
      %v1651 = vld [vmem:[%s1645 + $0x18] sm:$0xf]
      %v1652 = vld [vmem:[%s1645 + $0x1c] sm:$0xf]
      %v1653 = vld [vmem:[%s1645 + $0x20] sm:$0xf]
      %v1654 = vld [vmem:[%s1645 + $0x28] sm:$0xf]
      %v1655 = vld [vmem:[%s1645 + $0x2c] sm:$0xf]
      %v1656 = vld [vmem:[%s1645 + $0x30] sm:$0xf]
      %v1657 = vld [vmem:[%s1645 + $0x34] sm:$0xf]
      %v1658 = vld [vmem:[%s1645 + $0x3c] sm:$0xf]
      %v1659 = vld [vmem:[%s1645 + $0x40] sm:$0xf]
      %v1660 = vld [vmem:[%s1645 + $0x44] sm:$0xf]
      %v1661 = vld [vmem:[%s1645 + $0x48] sm:$0xf]
      %v1662 = vld [vmem:[%s1645 + $0x50] sm:$0xf]
      %v1663 = vld [vmem:[%s1645 + $0x54] sm:$0xf]
      %v1664 = vld [vmem:[%s1645 + $0x58] sm:$0xf]
      %v1665 = vld [vmem:[%s1645 + $0x5c] sm:$0xf]
      %v1666 = vld [vmem:[%s1645 + $0x64] sm:$0xf]
      %v1667 = vld [vmem:[%s1645 + $0x68] sm:$0xf]
      %v1668 = vld [vmem:[%s1645 + $0x6c] sm:$0xf]
      %v1669 = vld [vmem:[%s1645 + $0x70] sm:$0xf]
      %v1670 = vld [vmem:[%s1645 + $0x78] sm:$0xf]
      %v1671 = vld [vmem:[%s1645 + $0x7c] sm:$0xf]
      %v1672 = vld [vmem:[%s1645 + $0x80] sm:$0xf]
      %v1673 = vld [vmem:[%s1645 + $0x84] sm:$0xf]
      %v1674 = vld [vmem:[%s1645 + $0x8c] sm:$0xf]
      %v1675 = vld [vmem:[%s1645 + $0x90] sm:$0xf]
      %v1676 = vld [vmem:[%s1645 + $0x94] sm:$0xf]
      %v1677 = vld [vmem:[%s1645 + $0x98] sm:$0xf]
      %s1678 = scalar_lea.vmem %s1, 12
      %v1679 = vld [vmem:[%s1678] sm:$0xf]
      %v1712 = vunpack.c.l.b16 %v1646
      %v1713 = vunpack.c.l.b16 %v1647
      %v1714 = vunpack.c.l.b16 %v1648
      %v1715 = vunpack.c.l.b16 %v1649
      %v1716 = vunpack.c.l.b16 %v1650
      %v1717 = vunpack.c.l.b16 %v1651
      %v1718 = vunpack.c.l.b16 %v1652
      %v1719 = vunpack.c.l.b16 %v1653
      %v1720 = vunpack.c.l.b16 %v1654
      %v1721 = vunpack.c.l.b16 %v1655
      %v1722 = vunpack.c.l.b16 %v1656
      %v1723 = vunpack.c.l.b16 %v1657
      %v1724 = vunpack.c.l.b16 %v1658
      %v1725 = vunpack.c.l.b16 %v1659
      %v1726 = vunpack.c.l.b16 %v1660
      %v1727 = vunpack.c.l.b16 %v1661
      %v1728 = vunpack.c.l.b16 %v1662
      %v1729 = vunpack.c.l.b16 %v1663
      %v1730 = vunpack.c.l.b16 %v1664
      %v1731 = vunpack.c.l.b16 %v1665
      %v1732 = vunpack.c.l.b16 %v1666
      %v1733 = vunpack.c.l.b16 %v1667
      %v1734 = vunpack.c.l.b16 %v1668
      %v1735 = vunpack.c.l.b16 %v1669
      %v1736 = vunpack.c.l.b16 %v1670
      %v1737 = vunpack.c.l.b16 %v1671
      %v1738 = vunpack.c.l.b16 %v1672
      %v1739 = vunpack.c.l.b16 %v1673
      %v1740 = vunpack.c.l.b16 %v1674
      %v1741 = vunpack.c.l.b16 %v1675
      %v1742 = vunpack.c.l.b16 %v1676
      %v1743 = vunpack.c.l.b16 %v1677
      %v1744 = vpack.c.b16 %v1713, %v1712
      %v1745 = vpack.c.b16 %v1715, %v1714
      %v1746 = vpack.c.b16 %v1717, %v1716
      %v1747 = vpack.c.b16 %v1719, %v1718
      %v1748 = vpack.c.b16 %v1721, %v1720
      %v1749 = vpack.c.b16 %v1723, %v1722
      %v1750 = vpack.c.b16 %v1725, %v1724
      %v1751 = vpack.c.b16 %v1727, %v1726
      %v1752 = vpack.c.b16 %v1729, %v1728
      %v1753 = vpack.c.b16 %v1731, %v1730
      %v1754 = vpack.c.b16 %v1733, %v1732
      %v1755 = vpack.c.b16 %v1735, %v1734
      %v1756 = vpack.c.b16 %v1737, %v1736
      %v1757 = vpack.c.b16 %v1739, %v1738
      %v1758 = vpack.c.b16 %v1741, %v1740
      %v1759 = vpack.c.b16 %v1743, %v1742
      %v1761 = vsel %vm711, %v1744, 0
      %v1764 = vsel %vm711, %v1745, 0
      %v1767 = vsel %vm711, %v1746, 0
      %v1770 = vsel %vm711, %v1747, 0
      %v1773 = vsel %vm711, %v1748, 0
      %v1776 = vsel %vm711, %v1749, 0
      %v1779 = vsel %vm711, %v1750, 0
      %v1782 = vsel %vm711, %v1751, 0
      %v1785 = vsel %vm711, %v1752, 0
      %v1788 = vsel %vm711, %v1753, 0
      %v1791 = vsel %vm711, %v1754, 0
      %v1794 = vsel %vm711, %v1755, 0
      %v1797 = vsel %vm711, %v1756, 0
      %v1800 = vsel %vm711, %v1757, 0
      %v1803 = vsel %vm711, %v1758, 0
      %v1806 = vsel %vm711, %v1759, 0
      %v1809 = vsel %vm760, %v1679, 0
      %1811 = vmatprep.subr.bf16.mxu0 0
      %1812 = vmatpush1.bf16.msra.mxu0 %v1809
      %1813 = vmatprep.subr.bf16.mxu0 0
      %1814 = vmatpush1.bf16.msra.mxu0 0
      %1815 = vmatprep.subr.bf16.mxu0 0
      %1816 = vmatpush1.bf16.msra.mxu0 0
      %1817 = vmatprep.subr.bf16.mxu0 0
      %1818 = vmatpush1.bf16.msra.mxu0 0
      %1819 = vmatprep.subr.bf16.mxu0 0
      %1820 = vmatpush1.bf16.msra.mxu0 0
      %1821 = vmatprep.subr.bf16.mxu0 0
      %1822 = vmatpush1.bf16.msra.mxu0 0
      %1823 = vmatprep.subr.bf16.mxu0 0
      %1824 = vmatpush1.bf16.msra.mxu0 0
      %1825 = vmatprep.subr.bf16.mxu0 0
      %1826 = vmatpush1.bf16.msra.mxu0 0
      %1827 = vmatprep.subr.bf16.mxu0 0
      %1828 = vmatpush1.bf16.msra.mxu0 0
      %1829 = vmatprep.subr.bf16.mxu0 0
      %1830 = vmatpush1.bf16.msra.mxu0 0
      %1831 = vmatprep.subr.bf16.mxu0 0
      %1832 = vmatpush1.bf16.msra.mxu0 0
      %1833 = vmatprep.subr.bf16.mxu0 0
      %1834 = vmatpush1.bf16.msra.mxu0 0
      %1835 = vmatprep.subr.bf16.mxu0 0
      %1836 = vmatpush1.bf16.msra.mxu0 0
      %1837 = vmatprep.subr.bf16.mxu0 0
      %1838 = vmatpush1.bf16.msra.mxu0 0
      %1839 = vmatprep.subr.bf16.mxu0 0
      %1840 = vmatpush1.bf16.msra.mxu0 0
      %1841 = vmatprep.subr.bf16.mxu0 0
      %1842 = vmatpush1.bf16.msra.mxu0 0
      %1843 = vmatprep.mubr.bf16.mxu0 0
      %1844 = vmatmul.mubr.bf16.gmra.mrb[0].mxu0 %v1761
      %v1845 = vpop.f32.mrb[0].mxu0
      %v1846 = vadd.f32 0.0, %v1845
      %v1847 = vpop.f32.mrb[0].mxu0
      %v1848 = vpop.f32.mrb[0].mxu0
      %v1849 = vadd.f32 0.0, %v1848
      %v1850 = vpop.f32.mrb[0].mxu0
      %1851 = vmatprep.mubr.bf16.mxu0 0
      %1852 = vmatmul.mubr.bf16.gmra.mrb[0].mxu0 %v1764
      %v1853 = vpop.f32.mrb[0].mxu0
      %v1854 = vadd.f32 0.0, %v1853
      %v1855 = vpop.f32.mrb[0].mxu0
      %v1856 = vpop.f32.mrb[0].mxu0
      %v1857 = vadd.f32 0.0, %v1856
      %v1858 = vpop.f32.mrb[0].mxu0
      %1859 = vmatprep.mubr.bf16.mxu0 0
      %1860 = vmatmul.mubr.bf16.gmra.mrb[0].mxu0 %v1767
      %v1861 = vpop.f32.mrb[0].mxu0
      %v1862 = vadd.f32 0.0, %v1861
      %v1863 = vpop.f32.mrb[0].mxu0
      %v1864 = vpop.f32.mrb[0].mxu0
      %v1865 = vadd.f32 0.0, %v1864
      %v1866 = vpop.f32.mrb[0].mxu0
      %1867 = vmatprep.mubr.bf16.mxu0 0
      %1868 = vmatmul.mubr.bf16.gmra.mrb[0].mxu0 %v1770
      %v1869 = vpop.f32.mrb[0].mxu0
      %v1870 = vadd.f32 0.0, %v1869
      %v1871 = vpop.f32.mrb[0].mxu0
      %v1872 = vpop.f32.mrb[0].mxu0
      %v1873 = vadd.f32 0.0, %v1872
      %v1874 = vpop.f32.mrb[0].mxu0
      %1875 = vmatprep.mubr.bf16.mxu0 0
      %1876 = vmatmul.mubr.bf16.gmra.mrb[0].mxu0 %v1773
      %v1877 = vpop.f32.mrb[0].mxu0
      %v1878 = vadd.f32 0.0, %v1877
      %v1879 = vpop.f32.mrb[0].mxu0
      %v1880 = vpop.f32.mrb[0].mxu0
      %v1881 = vadd.f32 0.0, %v1880
      %v1882 = vpop.f32.mrb[0].mxu0
      %1883 = vmatprep.mubr.bf16.mxu0 0
      %1884 = vmatmul.mubr.bf16.gmra.mrb[0].mxu0 %v1776
      %v1885 = vpop.f32.mrb[0].mxu0
      %v1886 = vadd.f32 0.0, %v1885
      %v1887 = vpop.f32.mrb[0].mxu0
      %v1888 = vpop.f32.mrb[0].mxu0
      %v1889 = vadd.f32 0.0, %v1888
      %v1890 = vpop.f32.mrb[0].mxu0
      %1891 = vmatprep.mubr.bf16.mxu0 0
      %1892 = vmatmul.mubr.bf16.gmra.mrb[0].mxu0 %v1779
      %v1893 = vpop.f32.mrb[0].mxu0
      %v1894 = vadd.f32 0.0, %v1893
      %v1895 = vpop.f32.mrb[0].mxu0
      %v1896 = vpop.f32.mrb[0].mxu0
      %v1897 = vadd.f32 0.0, %v1896
      %v1898 = vpop.f32.mrb[0].mxu0
      %1899 = vmatprep.mubr.bf16.mxu0 0
      %1900 = vmatmul.mubr.bf16.gmra.mrb[0].mxu0 %v1782
      %v1901 = vpop.f32.mrb[0].mxu0
      %v1902 = vadd.f32 0.0, %v1901
      %v1903 = vpop.f32.mrb[0].mxu0
      %v1904 = vpop.f32.mrb[0].mxu0
      %v1905 = vadd.f32 0.0, %v1904
      %v1906 = vpop.f32.mrb[0].mxu0
      %1907 = vmatprep.mubr.bf16.mxu0 0
      %1908 = vmatmul.mubr.bf16.gmra.mrb[0].mxu0 %v1785
      %v1909 = vpop.f32.mrb[0].mxu0
      %v1910 = vadd.f32 0.0, %v1909
      %v1911 = vpop.f32.mrb[0].mxu0
      %v1912 = vpop.f32.mrb[0].mxu0
      %v1913 = vadd.f32 0.0, %v1912
      %v1914 = vpop.f32.mrb[0].mxu0
      %1915 = vmatprep.mubr.bf16.mxu0 0
      %1916 = vmatmul.mubr.bf16.gmra.mrb[0].mxu0 %v1788
      %v1917 = vpop.f32.mrb[0].mxu0
      %v1918 = vadd.f32 0.0, %v1917
      %v1919 = vpop.f32.mrb[0].mxu0
      %v1920 = vpop.f32.mrb[0].mxu0
      %v1921 = vadd.f32 0.0, %v1920
      %v1922 = vpop.f32.mrb[0].mxu0
      %1923 = vmatprep.mubr.bf16.mxu0 0
      %1924 = vmatmul.mubr.bf16.gmra.mrb[0].mxu0 %v1791
      %v1925 = vpop.f32.mrb[0].mxu0
      %v1926 = vadd.f32 0.0, %v1925
      %v1927 = vpop.f32.mrb[0].mxu0
      %v1928 = vpop.f32.mrb[0].mxu0
      %v1929 = vadd.f32 0.0, %v1928
      %v1930 = vpop.f32.mrb[0].mxu0
      %1931 = vmatprep.mubr.bf16.mxu0 0
      %1932 = vmatmul.mubr.bf16.gmra.mrb[0].mxu0 %v1794
      %v1933 = vpop.f32.mrb[0].mxu0
      %v1934 = vadd.f32 0.0, %v1933
      %v1935 = vpop.f32.mrb[0].mxu0
      %v1936 = vpop.f32.mrb[0].mxu0
      %v1937 = vadd.f32 0.0, %v1936
      %v1938 = vpop.f32.mrb[0].mxu0
      %1939 = vmatprep.mubr.bf16.mxu0 0
      %1940 = vmatmul.mubr.bf16.gmra.mrb[0].mxu0 %v1797
      %v1941 = vpop.f32.mrb[0].mxu0
      %v1942 = vadd.f32 0.0, %v1941
      %v1943 = vpop.f32.mrb[0].mxu0
      %v1944 = vpop.f32.mrb[0].mxu0
      %v1945 = vadd.f32 0.0, %v1944
      %v1946 = vpop.f32.mrb[0].mxu0
      %1947 = vmatprep.mubr.bf16.mxu0 0
      %1948 = vmatmul.mubr.bf16.gmra.mrb[0].mxu0 %v1800
      %v1949 = vpop.f32.mrb[0].mxu0
      %v1950 = vadd.f32 0.0, %v1949
      %v1951 = vpop.f32.mrb[0].mxu0
      %v1952 = vpop.f32.mrb[0].mxu0
      %v1953 = vadd.f32 0.0, %v1952
      %v1954 = vpop.f32.mrb[0].mxu0
      %1955 = vmatprep.mubr.bf16.mxu0 0
      %1956 = vmatmul.mubr.bf16.gmra.mrb[0].mxu0 %v1803
      %v1957 = vpop.f32.mrb[0].mxu0
      %v1958 = vadd.f32 0.0, %v1957
      %v1959 = vpop.f32.mrb[0].mxu0
      %v1960 = vpop.f32.mrb[0].mxu0
      %v1961 = vadd.f32 0.0, %v1960
      %v1962 = vpop.f32.mrb[0].mxu0
      %1963 = vmatprep.mubr.bf16.mxu0 0
      %1964 = vmatmul.mubr.bf16.gmra.mrb[0].mxu0 %v1806
      %v1965 = vpop.f32.mrb[0].mxu0
      %v1966 = vadd.f32 0.0, %v1965
      %v1967 = vpop.f32.mrb[0].mxu0
      %v1968 = vpop.f32.mrb[0].mxu0
      %v1969 = vadd.f32 0.0, %v1968
      %v1970 = vpop.f32.mrb[0].mxu0
      %1971 = vdwg.mxu0
      %v1972 = vadd.f32 %v1610, %v1846
      %v1973 = vadd.f32 %v1611, %v1849
      %v1974 = vadd.f32 %v1612, %v1854
      %v1975 = vadd.f32 %v1613, %v1857
      %v1976 = vadd.f32 %v1614, %v1862
      %v1977 = vadd.f32 %v1615, %v1865
      %v1978 = vadd.f32 %v1616, %v1870
      %v1979 = vadd.f32 %v1617, %v1873
      %v1980 = vadd.f32 %v1618, %v1878
      %v1981 = vadd.f32 %v1619, %v1881
      %v1982 = vadd.f32 %v1620, %v1886
      %v1983 = vadd.f32 %v1621, %v1889
      %v1984 = vadd.f32 %v1622, %v1894
      %v1985 = vadd.f32 %v1623, %v1897
      %v1986 = vadd.f32 %v1624, %v1902
      %v1987 = vadd.f32 %v1625, %v1905
      %v1988 = vadd.f32 %v1626, %v1910
      %v1989 = vadd.f32 %v1627, %v1913
      %v1990 = vadd.f32 %v1628, %v1918
      %v1991 = vadd.f32 %v1629, %v1921
      %v1992 = vadd.f32 %v1630, %v1926
      %v1993 = vadd.f32 %v1631, %v1929
      %v1994 = vadd.f32 %v1632, %v1934
      %v1995 = vadd.f32 %v1633, %v1937
      %v1996 = vadd.f32 %v1634, %v1942
      %v1997 = vadd.f32 %v1635, %v1945
      %v1998 = vadd.f32 %v1636, %v1950
      %v1999 = vadd.f32 %v1637, %v1953
      %v2000 = vadd.f32 %v1638, %v1958
      %v2001 = vadd.f32 %v1639, %v1961
      %v2002 = vadd.f32 %v1640, %v1966
      %v2003 = vadd.f32 %v1641, %v1969
      %v2004 = vld [vmem:[%s1645] sm:$0xf]
      %v2005 = vld [vmem:[%s1645 + $0x4] sm:$0xf]
      %v2006 = vld [vmem:[%s1645 + $0x8] sm:$0xf]
      %v2007 = vld [vmem:[%s1645 + $0xc] sm:$0xf]
      %v2008 = vld [vmem:[%s1645 + $0x10] sm:$0x1]
      %v2009 = vld [vmem:[%s1645 + $0x14] sm:$0xf]
      %v2010 = vld [vmem:[%s1645 + $0x18] sm:$0xf]
      %v2011 = vld [vmem:[%s1645 + $0x1c] sm:$0xf]
      %v2012 = vld [vmem:[%s1645 + $0x20] sm:$0xf]
      %v2013 = vld [vmem:[%s1645 + $0x24] sm:$0x1]
      %v2014 = vld [vmem:[%s1645 + $0x28] sm:$0xf]
      %v2015 = vld [vmem:[%s1645 + $0x2c] sm:$0xf]
      %v2016 = vld [vmem:[%s1645 + $0x30] sm:$0xf]
      %v2017 = vld [vmem:[%s1645 + $0x34] sm:$0xf]
      %v2018 = vld [vmem:[%s1645 + $0x38] sm:$0x1]
      %v2019 = vld [vmem:[%s1645 + $0x3c] sm:$0xf]
      %v2020 = vld [vmem:[%s1645 + $0x40] sm:$0xf]
      %v2021 = vld [vmem:[%s1645 + $0x44] sm:$0xf]
      %v2022 = vld [vmem:[%s1645 + $0x48] sm:$0xf]
      %v2023 = vld [vmem:[%s1645 + $0x4c] sm:$0x1]
      %v2024 = vld [vmem:[%s1645 + $0x50] sm:$0xf]
      %v2025 = vld [vmem:[%s1645 + $0x54] sm:$0xf]
      %v2026 = vld [vmem:[%s1645 + $0x58] sm:$0xf]
      %v2027 = vld [vmem:[%s1645 + $0x5c] sm:$0xf]
      %v2028 = vld [vmem:[%s1645 + $0x60] sm:$0x1]
      %v2029 = vld [vmem:[%s1645 + $0x64] sm:$0xf]
      %v2030 = vld [vmem:[%s1645 + $0x68] sm:$0xf]
      %v2031 = vld [vmem:[%s1645 + $0x6c] sm:$0xf]
      %v2032 = vld [vmem:[%s1645 + $0x70] sm:$0xf]
      %v2033 = vld [vmem:[%s1645 + $0x74] sm:$0x1]
      %v2034 = vld [vmem:[%s1645 + $0x78] sm:$0xf]
      %v2035 = vld [vmem:[%s1645 + $0x7c] sm:$0xf]
      %v2036 = vld [vmem:[%s1645 + $0x80] sm:$0xf]
      %v2037 = vld [vmem:[%s1645 + $0x84] sm:$0xf]
      %v2038 = vld [vmem:[%s1645 + $0x88] sm:$0x1]
      %v2039 = vld [vmem:[%s1645 + $0x8c] sm:$0xf]
      %v2040 = vld [vmem:[%s1645 + $0x90] sm:$0xf]
      %v2041 = vld [vmem:[%s1645 + $0x94] sm:$0xf]
      %v2042 = vld [vmem:[%s1645 + $0x98] sm:$0xf]
      %v2043 = vld [vmem:[%s1645 + $0x9c] sm:$0x1]
      %v2045 = vshrl.u32 %v2004, 16
      %v2047 = vrot.slane %v2045, 4
      %v2048 = vshll.u32 %v2004, 16
      %v2050 = vrot.slane %v2048, 5
      %v2051 = vor.u32 %v2047, %v2050
      %v2052 = vrot.slane %v2051, 4
      %v2054 = vshll.u32 %v2005, 16
      %v2056 = vrot.slane %v2054, 5
      %v2057 = vsel %vm308, %v2052, %v2056
      %v2058 = vshrl.u32 %v2005, 16
      %v2060 = vrot.slane %v2058, 4
      %v2061 = vor.u32 %v2060, %v2056
      %v2062 = vrot.slane %v2061, 4
      %v2064 = vshll.u32 %v2006, 16
      %v2066 = vrot.slane %v2064, 5
      %v2067 = vsel %vm308, %v2062, %v2066
      %v2068 = vshrl.u32 %v2006, 16
      %v2070 = vrot.slane %v2068, 4
      %v2071 = vor.u32 %v2070, %v2066
      %v2072 = vrot.slane %v2071, 4
      %v2074 = vshll.u32 %v2007, 16
      %v2076 = vrot.slane %v2074, 5
      %v2077 = vsel %vm308, %v2072, %v2076
      %v2078 = vshrl.u32 %v2007, 16
      %v2080 = vrot.slane %v2078, 4
      %v2081 = vor.u32 %v2080, %v2076
      %v2082 = vrot.slane %v2081, 4
      %v2084 = vshll.u32 %v2008, 16
      %v2086 = vrot.slane %v2084, 5
      %v2087 = vsel %vm308, %v2082, %v2086
      %v2089 = vshrl.u32 %v2009, 16
      %v2091 = vrot.slane %v2089, 4
      %v2092 = vshll.u32 %v2009, 16
      %v2094 = vrot.slane %v2092, 5
      %v2095 = vor.u32 %v2091, %v2094
      %v2096 = vrot.slane %v2095, 4
      %v2098 = vshll.u32 %v2010, 16
      %v2100 = vrot.slane %v2098, 5
      %v2101 = vsel %vm308, %v2096, %v2100
      %v2102 = vshrl.u32 %v2010, 16
      %v2104 = vrot.slane %v2102, 4
      %v2105 = vor.u32 %v2104, %v2100
      %v2106 = vrot.slane %v2105, 4
      %v2108 = vshll.u32 %v2011, 16
      %v2110 = vrot.slane %v2108, 5
      %v2111 = vsel %vm308, %v2106, %v2110
      %v2112 = vshrl.u32 %v2011, 16
      %v2114 = vrot.slane %v2112, 4
      %v2115 = vor.u32 %v2114, %v2110
      %v2116 = vrot.slane %v2115, 4
      %v2118 = vshll.u32 %v2012, 16
      %v2120 = vrot.slane %v2118, 5
      %v2121 = vsel %vm308, %v2116, %v2120
      %v2122 = vshrl.u32 %v2012, 16
      %v2124 = vrot.slane %v2122, 4
      %v2125 = vor.u32 %v2124, %v2120
      %v2126 = vrot.slane %v2125, 4
      %v2128 = vshll.u32 %v2013, 16
      %v2130 = vrot.slane %v2128, 5
      %v2131 = vsel %vm308, %v2126, %v2130
      %v2133 = vshrl.u32 %v2014, 16
      %v2135 = vrot.slane %v2133, 4
      %v2136 = vshll.u32 %v2014, 16
      %v2138 = vrot.slane %v2136, 5
      %v2139 = vor.u32 %v2135, %v2138
      %v2140 = vrot.slane %v2139, 4
      %v2142 = vshll.u32 %v2015, 16
      %v2144 = vrot.slane %v2142, 5
      %v2145 = vsel %vm308, %v2140, %v2144
      %v2146 = vshrl.u32 %v2015, 16
      %v2148 = vrot.slane %v2146, 4
      %v2149 = vor.u32 %v2148, %v2144
      %v2150 = vrot.slane %v2149, 4
      %v2152 = vshll.u32 %v2016, 16
      %v2154 = vrot.slane %v2152, 5
      %v2155 = vsel %vm308, %v2150, %v2154
      %v2156 = vshrl.u32 %v2016, 16
      %v2158 = vrot.slane %v2156, 4
      %v2159 = vor.u32 %v2158, %v2154
      %v2160 = vrot.slane %v2159, 4
      %v2162 = vshll.u32 %v2017, 16
      %v2164 = vrot.slane %v2162, 5
      %v2165 = vsel %vm308, %v2160, %v2164
      %v2166 = vshrl.u32 %v2017, 16
      %v2168 = vrot.slane %v2166, 4
      %v2169 = vor.u32 %v2168, %v2164
      %v2170 = vrot.slane %v2169, 4
      %v2172 = vshll.u32 %v2018, 16
      %v2174 = vrot.slane %v2172, 5
      %v2175 = vsel %vm308, %v2170, %v2174
      %v2177 = vshrl.u32 %v2019, 16
      %v2179 = vrot.slane %v2177, 4
      %v2180 = vshll.u32 %v2019, 16
      %v2182 = vrot.slane %v2180, 5
      %v2183 = vor.u32 %v2179, %v2182
      %v2184 = vrot.slane %v2183, 4
      %v2186 = vshll.u32 %v2020, 16
      %v2188 = vrot.slane %v2186, 5
      %v2189 = vsel %vm308, %v2184, %v2188
      %v2190 = vshrl.u32 %v2020, 16
      %v2192 = vrot.slane %v2190, 4
      %v2193 = vor.u32 %v2192, %v2188
      %v2194 = vrot.slane %v2193, 4
      %v2196 = vshll.u32 %v2021, 16
      %v2198 = vrot.slane %v2196, 5
      %v2199 = vsel %vm308, %v2194, %v2198
      %v2200 = vshrl.u32 %v2021, 16
      %v2202 = vrot.slane %v2200, 4
      %v2203 = vor.u32 %v2202, %v2198
      %v2204 = vrot.slane %v2203, 4
      %v2206 = vshll.u32 %v2022, 16
      %v2208 = vrot.slane %v2206, 5
      %v2209 = vsel %vm308, %v2204, %v2208
      %v2210 = vshrl.u32 %v2022, 16
      %v2212 = vrot.slane %v2210, 4
      %v2213 = vor.u32 %v2212, %v2208
      %v2214 = vrot.slane %v2213, 4
      %v2216 = vshll.u32 %v2023, 16
      %v2218 = vrot.slane %v2216, 5
      %v2219 = vsel %vm308, %v2214, %v2218
      %v2221 = vshrl.u32 %v2024, 16
      %v2223 = vrot.slane %v2221, 4
      %v2224 = vshll.u32 %v2024, 16
      %v2226 = vrot.slane %v2224, 5
      %v2227 = vor.u32 %v2223, %v2226
      %v2228 = vrot.slane %v2227, 4
      %v2230 = vshll.u32 %v2025, 16
      %v2232 = vrot.slane %v2230, 5
      %v2233 = vsel %vm308, %v2228, %v2232
      %v2234 = vshrl.u32 %v2025, 16
      %v2236 = vrot.slane %v2234, 4
      %v2237 = vor.u32 %v2236, %v2232
      %v2238 = vrot.slane %v2237, 4
      %v2240 = vshll.u32 %v2026, 16
      %v2242 = vrot.slane %v2240, 5
      %v2243 = vsel %vm308, %v2238, %v2242
      %v2244 = vshrl.u32 %v2026, 16
      %v2246 = vrot.slane %v2244, 4
      %v2247 = vor.u32 %v2246, %v2242
      %v2248 = vrot.slane %v2247, 4
      %v2250 = vshll.u32 %v2027, 16
      %v2252 = vrot.slane %v2250, 5
      %v2253 = vsel %vm308, %v2248, %v2252
      %v2254 = vshrl.u32 %v2027, 16
      %v2256 = vrot.slane %v2254, 4
      %v2257 = vor.u32 %v2256, %v2252
      %v2258 = vrot.slane %v2257, 4
      %v2260 = vshll.u32 %v2028, 16
      %v2262 = vrot.slane %v2260, 5
      %v2263 = vsel %vm308, %v2258, %v2262
      %v2265 = vshrl.u32 %v2029, 16
      %v2267 = vrot.slane %v2265, 4
      %v2268 = vshll.u32 %v2029, 16
      %v2270 = vrot.slane %v2268, 5
      %v2271 = vor.u32 %v2267, %v2270
      %v2272 = vrot.slane %v2271, 4
      %v2274 = vshll.u32 %v2030, 16
      %v2276 = vrot.slane %v2274, 5
      %v2277 = vsel %vm308, %v2272, %v2276
      %v2278 = vshrl.u32 %v2030, 16
      %v2280 = vrot.slane %v2278, 4
      %v2281 = vor.u32 %v2280, %v2276
      %v2282 = vrot.slane %v2281, 4
      %v2284 = vshll.u32 %v2031, 16
      %v2286 = vrot.slane %v2284, 5
      %v2287 = vsel %vm308, %v2282, %v2286
      %v2288 = vshrl.u32 %v2031, 16
      %v2290 = vrot.slane %v2288, 4
      %v2291 = vor.u32 %v2290, %v2286
      %v2292 = vrot.slane %v2291, 4
      %v2294 = vshll.u32 %v2032, 16
      %v2296 = vrot.slane %v2294, 5
      %v2297 = vsel %vm308, %v2292, %v2296
      %v2298 = vshrl.u32 %v2032, 16
      %v2300 = vrot.slane %v2298, 4
      %v2301 = vor.u32 %v2300, %v2296
      %v2302 = vrot.slane %v2301, 4
      %v2304 = vshll.u32 %v2033, 16
      %v2306 = vrot.slane %v2304, 5
      %v2307 = vsel %vm308, %v2302, %v2306
      %v2309 = vshrl.u32 %v2034, 16
      %v2311 = vrot.slane %v2309, 4
      %v2312 = vshll.u32 %v2034, 16
      %v2314 = vrot.slane %v2312, 5
      %v2315 = vor.u32 %v2311, %v2314
      %v2316 = vrot.slane %v2315, 4
      %v2318 = vshll.u32 %v2035, 16
      %v2320 = vrot.slane %v2318, 5
      %v2321 = vsel %vm308, %v2316, %v2320
      %v2322 = vshrl.u32 %v2035, 16
      %v2324 = vrot.slane %v2322, 4
      %v2325 = vor.u32 %v2324, %v2320
      %v2326 = vrot.slane %v2325, 4
      %v2328 = vshll.u32 %v2036, 16
      %v2330 = vrot.slane %v2328, 5
      %v2331 = vsel %vm308, %v2326, %v2330
      %v2332 = vshrl.u32 %v2036, 16
      %v2334 = vrot.slane %v2332, 4
      %v2335 = vor.u32 %v2334, %v2330
      %v2336 = vrot.slane %v2335, 4
      %v2338 = vshll.u32 %v2037, 16
      %v2340 = vrot.slane %v2338, 5
      %v2341 = vsel %vm308, %v2336, %v2340
      %v2342 = vshrl.u32 %v2037, 16
      %v2344 = vrot.slane %v2342, 4
      %v2345 = vor.u32 %v2344, %v2340
      %v2346 = vrot.slane %v2345, 4
      %v2348 = vshll.u32 %v2038, 16
      %v2350 = vrot.slane %v2348, 5
      %v2351 = vsel %vm308, %v2346, %v2350
      %v2353 = vshrl.u32 %v2039, 16
      %v2355 = vrot.slane %v2353, 4
      %v2356 = vshll.u32 %v2039, 16
      %v2358 = vrot.slane %v2356, 5
      %v2359 = vor.u32 %v2355, %v2358
      %v2360 = vrot.slane %v2359, 4
      %v2362 = vshll.u32 %v2040, 16
      %v2364 = vrot.slane %v2362, 5
      %v2365 = vsel %vm308, %v2360, %v2364
      %v2366 = vshrl.u32 %v2040, 16
      %v2368 = vrot.slane %v2366, 4
      %v2369 = vor.u32 %v2368, %v2364
      %v2370 = vrot.slane %v2369, 4
      %v2372 = vshll.u32 %v2041, 16
      %v2374 = vrot.slane %v2372, 5
      %v2375 = vsel %vm308, %v2370, %v2374
      %v2376 = vshrl.u32 %v2041, 16
      %v2378 = vrot.slane %v2376, 4
      %v2379 = vor.u32 %v2378, %v2374
      %v2380 = vrot.slane %v2379, 4
      %v2382 = vshll.u32 %v2042, 16
      %v2384 = vrot.slane %v2382, 5
      %v2385 = vsel %vm308, %v2380, %v2384
      %v2386 = vshrl.u32 %v2042, 16
      %v2388 = vrot.slane %v2386, 4
      %v2389 = vor.u32 %v2388, %v2384
      %v2390 = vrot.slane %v2389, 4
      %v2392 = vshll.u32 %v2043, 16
      %v2394 = vrot.slane %v2392, 5
      %v2395 = vsel %vm308, %v2390, %v2394
      %s2396 = scalar_lea.vmem %s1, 16
      %v2397 = vld [vmem:[%s2396] sm:$0xf]
      %v2398 = vunpack.c.l.b16 %v2057
      %v2399 = vunpack.c.l.b16 %v2067
      %v2400 = vunpack.c.l.b16 %v2077
      %v2401 = vunpack.c.l.b16 %v2087
      %v2402 = vunpack.c.l.b16 %v2101
      %v2403 = vunpack.c.l.b16 %v2111
      %v2404 = vunpack.c.l.b16 %v2121
      %v2405 = vunpack.c.l.b16 %v2131
      %v2406 = vunpack.c.l.b16 %v2145
      %v2407 = vunpack.c.l.b16 %v2155
      %v2408 = vunpack.c.l.b16 %v2165
      %v2409 = vunpack.c.l.b16 %v2175
      %v2410 = vunpack.c.l.b16 %v2189
      %v2411 = vunpack.c.l.b16 %v2199
      %v2412 = vunpack.c.l.b16 %v2209
      %v2413 = vunpack.c.l.b16 %v2219
      %v2414 = vunpack.c.l.b16 %v2233
      %v2415 = vunpack.c.l.b16 %v2243
      %v2416 = vunpack.c.l.b16 %v2253
      %v2417 = vunpack.c.l.b16 %v2263
      %v2418 = vunpack.c.l.b16 %v2277
      %v2419 = vunpack.c.l.b16 %v2287
      %v2420 = vunpack.c.l.b16 %v2297
      %v2421 = vunpack.c.l.b16 %v2307
      %v2422 = vunpack.c.l.b16 %v2321
      %v2423 = vunpack.c.l.b16 %v2331
      %v2424 = vunpack.c.l.b16 %v2341
      %v2425 = vunpack.c.l.b16 %v2351
      %v2426 = vunpack.c.l.b16 %v2365
      %v2427 = vunpack.c.l.b16 %v2375
      %v2428 = vunpack.c.l.b16 %v2385
      %v2429 = vunpack.c.l.b16 %v2395
      %v2430 = vpack.c.b16 %v2399, %v2398
      %v2431 = vpack.c.b16 %v2401, %v2400
      %v2432 = vpack.c.b16 %v2403, %v2402
      %v2433 = vpack.c.b16 %v2405, %v2404
      %v2434 = vpack.c.b16 %v2407, %v2406
      %v2435 = vpack.c.b16 %v2409, %v2408
      %v2436 = vpack.c.b16 %v2411, %v2410
      %v2437 = vpack.c.b16 %v2413, %v2412
      %v2438 = vpack.c.b16 %v2415, %v2414
      %v2439 = vpack.c.b16 %v2417, %v2416
      %v2440 = vpack.c.b16 %v2419, %v2418
      %v2441 = vpack.c.b16 %v2421, %v2420
      %v2442 = vpack.c.b16 %v2423, %v2422
      %v2443 = vpack.c.b16 %v2425, %v2424
      %v2444 = vpack.c.b16 %v2427, %v2426
      %v2445 = vpack.c.b16 %v2429, %v2428
      %v2447 = vsel %vm711, %v2430, 0
      %v2450 = vsel %vm711, %v2431, 0
      %v2453 = vsel %vm711, %v2432, 0
      %v2456 = vsel %vm711, %v2433, 0
      %v2459 = vsel %vm711, %v2434, 0
      %v2462 = vsel %vm711, %v2435, 0
      %v2465 = vsel %vm711, %v2436, 0
      %v2468 = vsel %vm711, %v2437, 0
      %v2471 = vsel %vm711, %v2438, 0
      %v2474 = vsel %vm711, %v2439, 0
      %v2477 = vsel %vm711, %v2440, 0
      %v2480 = vsel %vm711, %v2441, 0
      %v2483 = vsel %vm711, %v2442, 0
      %v2486 = vsel %vm711, %v2443, 0
      %v2489 = vsel %vm711, %v2444, 0
      %v2492 = vsel %vm711, %v2445, 0
      %v2495 = vsel %vm760, %v2397, 0
      %2497 = vmatprep.subr.bf16.mxu0 0
      %2498 = vmatpush1.bf16.msra.mxu0 %v2495
      %2499 = vmatprep.subr.bf16.mxu0 0
      %2500 = vmatpush1.bf16.msra.mxu0 0
      %2501 = vmatprep.subr.bf16.mxu0 0
      %2502 = vmatpush1.bf16.msra.mxu0 0
      %2503 = vmatprep.subr.bf16.mxu0 0
      %2504 = vmatpush1.bf16.msra.mxu0 0
      %2505 = vmatprep.subr.bf16.mxu0 0
      %2506 = vmatpush1.bf16.msra.mxu0 0
      %2507 = vmatprep.subr.bf16.mxu0 0
      %2508 = vmatpush1.bf16.msra.mxu0 0
      %2509 = vmatprep.subr.bf16.mxu0 0
      %2510 = vmatpush1.bf16.msra.mxu0 0
      %2511 = vmatprep.subr.bf16.mxu0 0
      %2512 = vmatpush1.bf16.msra.mxu0 0
      %2513 = vmatprep.subr.bf16.mxu0 0
      %2514 = vmatpush1.bf16.msra.mxu0 0
      %2515 = vmatprep.subr.bf16.mxu0 0
      %2516 = vmatpush1.bf16.msra.mxu0 0
      %2517 = vmatprep.subr.bf16.mxu0 0
      %2518 = vmatpush1.bf16.msra.mxu0 0
      %2519 = vmatprep.subr.bf16.mxu0 0
      %2520 = vmatpush1.bf16.msra.mxu0 0
      %2521 = vmatprep.subr.bf16.mxu0 0
      %2522 = vmatpush1.bf16.msra.mxu0 0
      %2523 = vmatprep.subr.bf16.mxu0 0
      %2524 = vmatpush1.bf16.msra.mxu0 0
      %2525 = vmatprep.subr.bf16.mxu0 0
      %2526 = vmatpush1.bf16.msra.mxu0 0
      %2527 = vmatprep.subr.bf16.mxu0 0
      %2528 = vmatpush1.bf16.msra.mxu0 0
      %2529 = vmatprep.mubr.bf16.mxu0 0
      %2530 = vmatmul.mubr.bf16.gmra.mrb[0].mxu0 %v2447
      %v2531 = vpop.f32.mrb[0].mxu0
      %v2532 = vadd.f32 0.0, %v2531
      %v2533 = vpop.f32.mrb[0].mxu0
      %v2534 = vpop.f32.mrb[0].mxu0
      %v2535 = vadd.f32 0.0, %v2534
      %v2536 = vpop.f32.mrb[0].mxu0
      %2537 = vmatprep.mubr.bf16.mxu0 0
      %2538 = vmatmul.mubr.bf16.gmra.mrb[0].mxu0 %v2450
      %v2539 = vpop.f32.mrb[0].mxu0
      %v2540 = vadd.f32 0.0, %v2539
      %v2541 = vpop.f32.mrb[0].mxu0
      %v2542 = vpop.f32.mrb[0].mxu0
      %v2543 = vadd.f32 0.0, %v2542
      %v2544 = vpop.f32.mrb[0].mxu0
      %2545 = vmatprep.mubr.bf16.mxu0 0
      %2546 = vmatmul.mubr.bf16.gmra.mrb[0].mxu0 %v2453
      %v2547 = vpop.f32.mrb[0].mxu0
      %v2548 = vadd.f32 0.0, %v2547
      %v2549 = vpop.f32.mrb[0].mxu0
      %v2550 = vpop.f32.mrb[0].mxu0
      %v2551 = vadd.f32 0.0, %v2550
      %v2552 = vpop.f32.mrb[0].mxu0
      %2553 = vmatprep.mubr.bf16.mxu0 0
      %2554 = vmatmul.mubr.bf16.gmra.mrb[0].mxu0 %v2456
      %v2555 = vpop.f32.mrb[0].mxu0
      %v2556 = vadd.f32 0.0, %v2555
      %v2557 = vpop.f32.mrb[0].mxu0
      %v2558 = vpop.f32.mrb[0].mxu0
      %v2559 = vadd.f32 0.0, %v2558
      %v2560 = vpop.f32.mrb[0].mxu0
      %2561 = vmatprep.mubr.bf16.mxu0 0
      %2562 = vmatmul.mubr.bf16.gmra.mrb[0].mxu0 %v2459
      %v2563 = vpop.f32.mrb[0].mxu0
      %v2564 = vadd.f32 0.0, %v2563
      %v2565 = vpop.f32.mrb[0].mxu0
      %v2566 = vpop.f32.mrb[0].mxu0
      %v2567 = vadd.f32 0.0, %v2566
      %v2568 = vpop.f32.mrb[0].mxu0
      %2569 = vmatprep.mubr.bf16.mxu0 0
      %2570 = vmatmul.mubr.bf16.gmra.mrb[0].mxu0 %v2462
      %v2571 = vpop.f32.mrb[0].mxu0
      %v2572 = vadd.f32 0.0, %v2571
      %v2573 = vpop.f32.mrb[0].mxu0
      %v2574 = vpop.f32.mrb[0].mxu0
      %v2575 = vadd.f32 0.0, %v2574
      %v2576 = vpop.f32.mrb[0].mxu0
      %2577 = vmatprep.mubr.bf16.mxu0 0
      %2578 = vmatmul.mubr.bf16.gmra.mrb[0].mxu0 %v2465
      %v2579 = vpop.f32.mrb[0].mxu0
      %v2580 = vadd.f32 0.0, %v2579
      %v2581 = vpop.f32.mrb[0].mxu0
      %v2582 = vpop.f32.mrb[0].mxu0
      %v2583 = vadd.f32 0.0, %v2582
      %v2584 = vpop.f32.mrb[0].mxu0
      %2585 = vmatprep.mubr.bf16.mxu0 0
      %2586 = vmatmul.mubr.bf16.gmra.mrb[0].mxu0 %v2468
      %v2587 = vpop.f32.mrb[0].mxu0
      %v2588 = vadd.f32 0.0, %v2587
      %v2589 = vpop.f32.mrb[0].mxu0
      %v2590 = vpop.f32.mrb[0].mxu0
      %v2591 = vadd.f32 0.0, %v2590
      %v2592 = vpop.f32.mrb[0].mxu0
      %2593 = vmatprep.mubr.bf16.mxu0 0
      %2594 = vmatmul.mubr.bf16.gmra.mrb[0].mxu0 %v2471
      %v2595 = vpop.f32.mrb[0].mxu0
      %v2596 = vadd.f32 0.0, %v2595
      %v2597 = vpop.f32.mrb[0].mxu0
      %v2598 = vpop.f32.mrb[0].mxu0
      %v2599 = vadd.f32 0.0, %v2598
      %v2600 = vpop.f32.mrb[0].mxu0
      %2601 = vmatprep.mubr.bf16.mxu0 0
      %2602 = vmatmul.mubr.bf16.gmra.mrb[0].mxu0 %v2474
      %v2603 = vpop.f32.mrb[0].mxu0
      %v2604 = vadd.f32 0.0, %v2603
      %v2605 = vpop.f32.mrb[0].mxu0
      %v2606 = vpop.f32.mrb[0].mxu0
      %v2607 = vadd.f32 0.0, %v2606
      %v2608 = vpop.f32.mrb[0].mxu0
      %2609 = vmatprep.mubr.bf16.mxu0 0
      %2610 = vmatmul.mubr.bf16.gmra.mrb[0].mxu0 %v2477
      %v2611 = vpop.f32.mrb[0].mxu0
      %v2612 = vadd.f32 0.0, %v2611
      %v2613 = vpop.f32.mrb[0].mxu0
      %v2614 = vpop.f32.mrb[0].mxu0
      %v2615 = vadd.f32 0.0, %v2614
      %v2616 = vpop.f32.mrb[0].mxu0
      %2617 = vmatprep.mubr.bf16.mxu0 0
      %2618 = vmatmul.mubr.bf16.gmra.mrb[0].mxu0 %v2480
      %v2619 = vpop.f32.mrb[0].mxu0
      %v2620 = vadd.f32 0.0, %v2619
      %v2621 = vpop.f32.mrb[0].mxu0
      %v2622 = vpop.f32.mrb[0].mxu0
      %v2623 = vadd.f32 0.0, %v2622
      %v2624 = vpop.f32.mrb[0].mxu0
      %2625 = vmatprep.mubr.bf16.mxu0 0
      %2626 = vmatmul.mubr.bf16.gmra.mrb[0].mxu0 %v2483
      %v2627 = vpop.f32.mrb[0].mxu0
      %v2628 = vadd.f32 0.0, %v2627
      %v2629 = vpop.f32.mrb[0].mxu0
      %v2630 = vpop.f32.mrb[0].mxu0
      %v2631 = vadd.f32 0.0, %v2630
      %v2632 = vpop.f32.mrb[0].mxu0
      %2633 = vmatprep.mubr.bf16.mxu0 0
      %2634 = vmatmul.mubr.bf16.gmra.mrb[0].mxu0 %v2486
      %v2635 = vpop.f32.mrb[0].mxu0
      %v2636 = vadd.f32 0.0, %v2635
      %v2637 = vpop.f32.mrb[0].mxu0
      %v2638 = vpop.f32.mrb[0].mxu0
      %v2639 = vadd.f32 0.0, %v2638
      %v2640 = vpop.f32.mrb[0].mxu0
      %2641 = vmatprep.mubr.bf16.mxu0 0
      %2642 = vmatmul.mubr.bf16.gmra.mrb[0].mxu0 %v2489
      %v2643 = vpop.f32.mrb[0].mxu0
      %v2644 = vadd.f32 0.0, %v2643
      %v2645 = vpop.f32.mrb[0].mxu0
      %v2646 = vpop.f32.mrb[0].mxu0
      %v2647 = vadd.f32 0.0, %v2646
      %v2648 = vpop.f32.mrb[0].mxu0
      %2649 = vmatprep.mubr.bf16.mxu0 0
      %2650 = vmatmul.mubr.bf16.gmra.mrb[0].mxu0 %v2492
      %v2651 = vpop.f32.mrb[0].mxu0
      %v2652 = vadd.f32 0.0, %v2651
      %v2653 = vpop.f32.mrb[0].mxu0
      %v2654 = vpop.f32.mrb[0].mxu0
      %v2655 = vadd.f32 0.0, %v2654
      %v2656 = vpop.f32.mrb[0].mxu0
      %2657 = vdwg.mxu0
      %v2658 = vadd.f32 %v1972, %v2532
      %v2659 = vadd.f32 %v1973, %v2535
      %v2660 = vadd.f32 %v1974, %v2540
      %v2661 = vadd.f32 %v1975, %v2543
      %v2662 = vadd.f32 %v1976, %v2548
      %v2663 = vadd.f32 %v1977, %v2551
      %v2664 = vadd.f32 %v1978, %v2556
      %v2665 = vadd.f32 %v1979, %v2559
      %v2666 = vadd.f32 %v1980, %v2564
      %v2667 = vadd.f32 %v1981, %v2567
      %v2668 = vadd.f32 %v1982, %v2572
      %v2669 = vadd.f32 %v1983, %v2575
      %v2670 = vadd.f32 %v1984, %v2580
      %v2671 = vadd.f32 %v1985, %v2583
      %v2672 = vadd.f32 %v1986, %v2588
      %v2673 = vadd.f32 %v1987, %v2591
      %v2674 = vadd.f32 %v1988, %v2596
      %v2675 = vadd.f32 %v1989, %v2599
      %v2676 = vadd.f32 %v1990, %v2604
      %v2677 = vadd.f32 %v1991, %v2607
      %v2678 = vadd.f32 %v1992, %v2612
      %v2679 = vadd.f32 %v1993, %v2615
      %v2680 = vadd.f32 %v1994, %v2620
      %v2681 = vadd.f32 %v1995, %v2623
      %v2682 = vadd.f32 %v1996, %v2628
      %v2683 = vadd.f32 %v1997, %v2631
      %v2684 = vadd.f32 %v1998, %v2636
      %v2685 = vadd.f32 %v1999, %v2639
      %v2686 = vadd.f32 %v2000, %v2644
      %v2687 = vadd.f32 %v2001, %v2647
      %v2688 = vadd.f32 %v2002, %v2652
      %v2689 = vadd.f32 %v2003, %v2655
      %v2690 = vld [vmem:[%s1645] sm:$0xe]
      %v2691 = vld [vmem:[%s1645 + $0x14] sm:$0xe]
      %v2692 = vld [vmem:[%s1645 + $0x28] sm:$0xe]
      %v2693 = vld [vmem:[%s1645 + $0x3c] sm:$0xe]
      %v2694 = vld [vmem:[%s1645 + $0x50] sm:$0xe]
      %v2695 = vld [vmem:[%s1645 + $0x64] sm:$0xe]
      %v2696 = vld [vmem:[%s1645 + $0x78] sm:$0xe]
      %v2697 = vld [vmem:[%s1645 + $0x8c] sm:$0xe]
      %v2738 = vrot.slane %v2690, 5
      %v2739 = vrot.slane %v2738, 4
      %v2740 = vrot.slane %v2005, 5
      %v2741 = vsel %vm1243, %v2739, %v2740
      %v2742 = vrot.slane %v2740, 4
      %v2743 = vrot.slane %v2006, 5
      %v2744 = vsel %vm1243, %v2742, %v2743
      %v2745 = vrot.slane %v2743, 4
      %v2746 = vrot.slane %v2007, 5
      %v2747 = vsel %vm1243, %v2745, %v2746
      %v2748 = vrot.slane %v2746, 4
      %v2749 = vrot.slane %v2008, 5
      %v2750 = vsel %vm1243, %v2748, %v2749
      %v2751 = vrot.slane %v2691, 5
      %v2752 = vrot.slane %v2751, 4
      %v2753 = vrot.slane %v2010, 5
      %v2754 = vsel %vm1243, %v2752, %v2753
      %v2755 = vrot.slane %v2753, 4
      %v2756 = vrot.slane %v2011, 5
      %v2757 = vsel %vm1243, %v2755, %v2756
      %v2758 = vrot.slane %v2756, 4
      %v2759 = vrot.slane %v2012, 5
      %v2760 = vsel %vm1243, %v2758, %v2759
      %v2761 = vrot.slane %v2759, 4
      %v2762 = vrot.slane %v2013, 5
      %v2763 = vsel %vm1243, %v2761, %v2762
      %v2764 = vrot.slane %v2692, 5
      %v2765 = vrot.slane %v2764, 4
      %v2766 = vrot.slane %v2015, 5
      %v2767 = vsel %vm1243, %v2765, %v2766
      %v2768 = vrot.slane %v2766, 4
      %v2769 = vrot.slane %v2016, 5
      %v2770 = vsel %vm1243, %v2768, %v2769
      %v2771 = vrot.slane %v2769, 4
      %v2772 = vrot.slane %v2017, 5
      %v2773 = vsel %vm1243, %v2771, %v2772
      %v2774 = vrot.slane %v2772, 4
      %v2775 = vrot.slane %v2018, 5
      %v2776 = vsel %vm1243, %v2774, %v2775
      %v2777 = vrot.slane %v2693, 5
      %v2778 = vrot.slane %v2777, 4
      %v2779 = vrot.slane %v2020, 5
      %v2780 = vsel %vm1243, %v2778, %v2779
      %v2781 = vrot.slane %v2779, 4
      %v2782 = vrot.slane %v2021, 5
      %v2783 = vsel %vm1243, %v2781, %v2782
      %v2784 = vrot.slane %v2782, 4
      %v2785 = vrot.slane %v2022, 5
      %v2786 = vsel %vm1243, %v2784, %v2785
      %v2787 = vrot.slane %v2785, 4
      %v2788 = vrot.slane %v2023, 5
      %v2789 = vsel %vm1243, %v2787, %v2788
      %v2790 = vrot.slane %v2694, 5
      %v2791 = vrot.slane %v2790, 4
      %v2792 = vrot.slane %v2025, 5
      %v2793 = vsel %vm1243, %v2791, %v2792
      %v2794 = vrot.slane %v2792, 4
      %v2795 = vrot.slane %v2026, 5
      %v2796 = vsel %vm1243, %v2794, %v2795
      %v2797 = vrot.slane %v2795, 4
      %v2798 = vrot.slane %v2027, 5
      %v2799 = vsel %vm1243, %v2797, %v2798
      %v2800 = vrot.slane %v2798, 4
      %v2801 = vrot.slane %v2028, 5
      %v2802 = vsel %vm1243, %v2800, %v2801
      %v2803 = vrot.slane %v2695, 5
      %v2804 = vrot.slane %v2803, 4
      %v2805 = vrot.slane %v2030, 5
      %v2806 = vsel %vm1243, %v2804, %v2805
      %v2807 = vrot.slane %v2805, 4
      %v2808 = vrot.slane %v2031, 5
      %v2809 = vsel %vm1243, %v2807, %v2808
      %v2810 = vrot.slane %v2808, 4
      %v2811 = vrot.slane %v2032, 5
      %v2812 = vsel %vm1243, %v2810, %v2811
      %v2813 = vrot.slane %v2811, 4
      %v2814 = vrot.slane %v2033, 5
      %v2815 = vsel %vm1243, %v2813, %v2814
      %v2816 = vrot.slane %v2696, 5
      %v2817 = vrot.slane %v2816, 4
      %v2818 = vrot.slane %v2035, 5
      %v2819 = vsel %vm1243, %v2817, %v2818
      %v2820 = vrot.slane %v2818, 4
      %v2821 = vrot.slane %v2036, 5
      %v2822 = vsel %vm1243, %v2820, %v2821
      %v2823 = vrot.slane %v2821, 4
      %v2824 = vrot.slane %v2037, 5
      %v2825 = vsel %vm1243, %v2823, %v2824
      %v2826 = vrot.slane %v2824, 4
      %v2827 = vrot.slane %v2038, 5
      %v2828 = vsel %vm1243, %v2826, %v2827
      %v2829 = vrot.slane %v2697, 5
      %v2830 = vrot.slane %v2829, 4
      %v2831 = vrot.slane %v2040, 5
      %v2832 = vsel %vm1243, %v2830, %v2831
      %v2833 = vrot.slane %v2831, 4
      %v2834 = vrot.slane %v2041, 5
      %v2835 = vsel %vm1243, %v2833, %v2834
      %v2836 = vrot.slane %v2834, 4
      %v2837 = vrot.slane %v2042, 5
      %v2838 = vsel %vm1243, %v2836, %v2837
      %v2839 = vrot.slane %v2837, 4
      %v2840 = vrot.slane %v2043, 5
      %v2841 = vsel %vm1243, %v2839, %v2840
      %s2842 = scalar_lea.vmem %s1, 20
      %v2843 = vld [vmem:[%s2842] sm:$0xf]
      %v2844 = vunpack.c.l.b16 %v2741
      %v2845 = vunpack.c.l.b16 %v2744
      %v2846 = vunpack.c.l.b16 %v2747
      %v2847 = vunpack.c.l.b16 %v2750
      %v2848 = vunpack.c.l.b16 %v2754
      %v2849 = vunpack.c.l.b16 %v2757
      %v2850 = vunpack.c.l.b16 %v2760
      %v2851 = vunpack.c.l.b16 %v2763
      %v2852 = vunpack.c.l.b16 %v2767
      %v2853 = vunpack.c.l.b16 %v2770
      %v2854 = vunpack.c.l.b16 %v2773
      %v2855 = vunpack.c.l.b16 %v2776
      %v2856 = vunpack.c.l.b16 %v2780
      %v2857 = vunpack.c.l.b16 %v2783
      %v2858 = vunpack.c.l.b16 %v2786
      %v2859 = vunpack.c.l.b16 %v2789
      %v2860 = vunpack.c.l.b16 %v2793
      %v2861 = vunpack.c.l.b16 %v2796
      %v2862 = vunpack.c.l.b16 %v2799
      %v2863 = vunpack.c.l.b16 %v2802
      %v2864 = vunpack.c.l.b16 %v2806
      %v2865 = vunpack.c.l.b16 %v2809
      %v2866 = vunpack.c.l.b16 %v2812
      %v2867 = vunpack.c.l.b16 %v2815
      %v2868 = vunpack.c.l.b16 %v2819
      %v2869 = vunpack.c.l.b16 %v2822
      %v2870 = vunpack.c.l.b16 %v2825
      %v2871 = vunpack.c.l.b16 %v2828
      %v2872 = vunpack.c.l.b16 %v2832
      %v2873 = vunpack.c.l.b16 %v2835
      %v2874 = vunpack.c.l.b16 %v2838
      %v2875 = vunpack.c.l.b16 %v2841
      %v2876 = vpack.c.b16 %v2845, %v2844
      %v2877 = vpack.c.b16 %v2847, %v2846
      %v2878 = vpack.c.b16 %v2849, %v2848
      %v2879 = vpack.c.b16 %v2851, %v2850
      %v2880 = vpack.c.b16 %v2853, %v2852
      %v2881 = vpack.c.b16 %v2855, %v2854
      %v2882 = vpack.c.b16 %v2857, %v2856
      %v2883 = vpack.c.b16 %v2859, %v2858
      %v2884 = vpack.c.b16 %v2861, %v2860
      %v2885 = vpack.c.b16 %v2863, %v2862
      %v2886 = vpack.c.b16 %v2865, %v2864
      %v2887 = vpack.c.b16 %v2867, %v2866
      %v2888 = vpack.c.b16 %v2869, %v2868
      %v2889 = vpack.c.b16 %v2871, %v2870
      %v2890 = vpack.c.b16 %v2873, %v2872
      %v2891 = vpack.c.b16 %v2875, %v2874
      %v2893 = vsel %vm711, %v2876, 0
      %v2896 = vsel %vm711, %v2877, 0
      %v2899 = vsel %vm711, %v2878, 0
      %v2902 = vsel %vm711, %v2879, 0
      %v2905 = vsel %vm711, %v2880, 0
      %v2908 = vsel %vm711, %v2881, 0
      %v2911 = vsel %vm711, %v2882, 0
      %v2914 = vsel %vm711, %v2883, 0
      %v2917 = vsel %vm711, %v2884, 0
      %v2920 = vsel %vm711, %v2885, 0
      %v2923 = vsel %vm711, %v2886, 0
      %v2926 = vsel %vm711, %v2887, 0
      %v2929 = vsel %vm711, %v2888, 0
      %v2932 = vsel %vm711, %v2889, 0
      %v2935 = vsel %vm711, %v2890, 0
      %v2938 = vsel %vm711, %v2891, 0
      %v2941 = vsel %vm760, %v2843, 0
      %2943 = vmatprep.subr.bf16.mxu0 0
      %2944 = vmatpush1.bf16.msra.mxu0 %v2941
      %2945 = vmatprep.subr.bf16.mxu0 0
      %2946 = vmatpush1.bf16.msra.mxu0 0
      %2947 = vmatprep.subr.bf16.mxu0 0
      %2948 = vmatpush1.bf16.msra.mxu0 0
      %2949 = vmatprep.subr.bf16.mxu0 0
      %2950 = vmatpush1.bf16.msra.mxu0 0
      %2951 = vmatprep.subr.bf16.mxu0 0
      %2952 = vmatpush1.bf16.msra.mxu0 0
      %2953 = vmatprep.subr.bf16.mxu0 0
      %2954 = vmatpush1.bf16.msra.mxu0 0
      %2955 = vmatprep.subr.bf16.mxu0 0
      %2956 = vmatpush1.bf16.msra.mxu0 0
      %2957 = vmatprep.subr.bf16.mxu0 0
      %2958 = vmatpush1.bf16.msra.mxu0 0
      %2959 = vmatprep.subr.bf16.mxu0 0
      %2960 = vmatpush1.bf16.msra.mxu0 0
      %2961 = vmatprep.subr.bf16.mxu0 0
      %2962 = vmatpush1.bf16.msra.mxu0 0
      %2963 = vmatprep.subr.bf16.mxu0 0
      %2964 = vmatpush1.bf16.msra.mxu0 0
      %2965 = vmatprep.subr.bf16.mxu0 0
      %2966 = vmatpush1.bf16.msra.mxu0 0
      %2967 = vmatprep.subr.bf16.mxu0 0
      %2968 = vmatpush1.bf16.msra.mxu0 0
      %2969 = vmatprep.subr.bf16.mxu0 0
      %2970 = vmatpush1.bf16.msra.mxu0 0
      %2971 = vmatprep.subr.bf16.mxu0 0
      %2972 = vmatpush1.bf16.msra.mxu0 0
      %2973 = vmatprep.subr.bf16.mxu0 0
      %2974 = vmatpush1.bf16.msra.mxu0 0
      %2975 = vmatprep.mubr.bf16.mxu0 0
      %2976 = vmatmul.mubr.bf16.gmra.mrb[0].mxu0 %v2893
      %v2977 = vpop.f32.mrb[0].mxu0
      %v2978 = vadd.f32 0.0, %v2977
      %v2979 = vpop.f32.mrb[0].mxu0
      %v2980 = vpop.f32.mrb[0].mxu0
      %v2981 = vadd.f32 0.0, %v2980
      %v2982 = vpop.f32.mrb[0].mxu0
      %2983 = vmatprep.mubr.bf16.mxu0 0
      %2984 = vmatmul.mubr.bf16.gmra.mrb[0].mxu0 %v2896
      %v2985 = vpop.f32.mrb[0].mxu0
      %v2986 = vadd.f32 0.0, %v2985
      %v2987 = vpop.f32.mrb[0].mxu0
      %v2988 = vpop.f32.mrb[0].mxu0
      %v2989 = vadd.f32 0.0, %v2988
      %v2990 = vpop.f32.mrb[0].mxu0
      %2991 = vmatprep.mubr.bf16.mxu0 0
      %2992 = vmatmul.mubr.bf16.gmra.mrb[0].mxu0 %v2899
      %v2993 = vpop.f32.mrb[0].mxu0
      %v2994 = vadd.f32 0.0, %v2993
      %v2995 = vpop.f32.mrb[0].mxu0
      %v2996 = vpop.f32.mrb[0].mxu0
      %v2997 = vadd.f32 0.0, %v2996
      %v2998 = vpop.f32.mrb[0].mxu0
      %2999 = vmatprep.mubr.bf16.mxu0 0
      %3000 = vmatmul.mubr.bf16.gmra.mrb[0].mxu0 %v2902
      %v3001 = vpop.f32.mrb[0].mxu0
      %v3002 = vadd.f32 0.0, %v3001
      %v3003 = vpop.f32.mrb[0].mxu0
      %v3004 = vpop.f32.mrb[0].mxu0
      %v3005 = vadd.f32 0.0, %v3004
      %v3006 = vpop.f32.mrb[0].mxu0
      %3007 = vmatprep.mubr.bf16.mxu0 0
      %3008 = vmatmul.mubr.bf16.gmra.mrb[0].mxu0 %v2905
      %v3009 = vpop.f32.mrb[0].mxu0
      %v3010 = vadd.f32 0.0, %v3009
      %v3011 = vpop.f32.mrb[0].mxu0
      %v3012 = vpop.f32.mrb[0].mxu0
      %v3013 = vadd.f32 0.0, %v3012
      %v3014 = vpop.f32.mrb[0].mxu0
      %3015 = vmatprep.mubr.bf16.mxu0 0
      %3016 = vmatmul.mubr.bf16.gmra.mrb[0].mxu0 %v2908
      %v3017 = vpop.f32.mrb[0].mxu0
      %v3018 = vadd.f32 0.0, %v3017
      %v3019 = vpop.f32.mrb[0].mxu0
      %v3020 = vpop.f32.mrb[0].mxu0
      %v3021 = vadd.f32 0.0, %v3020
      %v3022 = vpop.f32.mrb[0].mxu0
      %3023 = vmatprep.mubr.bf16.mxu0 0
      %3024 = vmatmul.mubr.bf16.gmra.mrb[0].mxu0 %v2911
      %v3025 = vpop.f32.mrb[0].mxu0
      %v3026 = vadd.f32 0.0, %v3025
      %v3027 = vpop.f32.mrb[0].mxu0
      %v3028 = vpop.f32.mrb[0].mxu0
      %v3029 = vadd.f32 0.0, %v3028
      %v3030 = vpop.f32.mrb[0].mxu0
      %3031 = vmatprep.mubr.bf16.mxu0 0
      %3032 = vmatmul.mubr.bf16.gmra.mrb[0].mxu0 %v2914
      %v3033 = vpop.f32.mrb[0].mxu0
      %v3034 = vadd.f32 0.0, %v3033
      %v3035 = vpop.f32.mrb[0].mxu0
      %v3036 = vpop.f32.mrb[0].mxu0
      %v3037 = vadd.f32 0.0, %v3036
      %v3038 = vpop.f32.mrb[0].mxu0
      %3039 = vmatprep.mubr.bf16.mxu0 0
      %3040 = vmatmul.mubr.bf16.gmra.mrb[0].mxu0 %v2917
      %v3041 = vpop.f32.mrb[0].mxu0
      %v3042 = vadd.f32 0.0, %v3041
      %v3043 = vpop.f32.mrb[0].mxu0
      %v3044 = vpop.f32.mrb[0].mxu0
      %v3045 = vadd.f32 0.0, %v3044
      %v3046 = vpop.f32.mrb[0].mxu0
      %3047 = vmatprep.mubr.bf16.mxu0 0
      %3048 = vmatmul.mubr.bf16.gmra.mrb[0].mxu0 %v2920
      %v3049 = vpop.f32.mrb[0].mxu0
      %v3050 = vadd.f32 0.0, %v3049
      %v3051 = vpop.f32.mrb[0].mxu0
      %v3052 = vpop.f32.mrb[0].mxu0
      %v3053 = vadd.f32 0.0, %v3052
      %v3054 = vpop.f32.mrb[0].mxu0
      %3055 = vmatprep.mubr.bf16.mxu0 0
      %3056 = vmatmul.mubr.bf16.gmra.mrb[0].mxu0 %v2923
      %v3057 = vpop.f32.mrb[0].mxu0
      %v3058 = vadd.f32 0.0, %v3057
      %v3059 = vpop.f32.mrb[0].mxu0
      %v3060 = vpop.f32.mrb[0].mxu0
      %v3061 = vadd.f32 0.0, %v3060
      %v3062 = vpop.f32.mrb[0].mxu0
      %3063 = vmatprep.mubr.bf16.mxu0 0
      %3064 = vmatmul.mubr.bf16.gmra.mrb[0].mxu0 %v2926
      %v3065 = vpop.f32.mrb[0].mxu0
      %v3066 = vadd.f32 0.0, %v3065
      %v3067 = vpop.f32.mrb[0].mxu0
      %v3068 = vpop.f32.mrb[0].mxu0
      %v3069 = vadd.f32 0.0, %v3068
      %v3070 = vpop.f32.mrb[0].mxu0
      %3071 = vmatprep.mubr.bf16.mxu0 0
      %3072 = vmatmul.mubr.bf16.gmra.mrb[0].mxu0 %v2929
      %v3073 = vpop.f32.mrb[0].mxu0
      %v3074 = vadd.f32 0.0, %v3073
      %v3075 = vpop.f32.mrb[0].mxu0
      %v3076 = vpop.f32.mrb[0].mxu0
      %v3077 = vadd.f32 0.0, %v3076
      %v3078 = vpop.f32.mrb[0].mxu0
      %3079 = vmatprep.mubr.bf16.mxu0 0
      %3080 = vmatmul.mubr.bf16.gmra.mrb[0].mxu0 %v2932
      %v3081 = vpop.f32.mrb[0].mxu0
      %v3082 = vadd.f32 0.0, %v3081
      %v3083 = vpop.f32.mrb[0].mxu0
      %v3084 = vpop.f32.mrb[0].mxu0
      %v3085 = vadd.f32 0.0, %v3084
      %v3086 = vpop.f32.mrb[0].mxu0
      %3087 = vmatprep.mubr.bf16.mxu0 0
      %3088 = vmatmul.mubr.bf16.gmra.mrb[0].mxu0 %v2935
      %v3089 = vpop.f32.mrb[0].mxu0
      %v3090 = vadd.f32 0.0, %v3089
      %v3091 = vpop.f32.mrb[0].mxu0
      %v3092 = vpop.f32.mrb[0].mxu0
      %v3093 = vadd.f32 0.0, %v3092
      %v3094 = vpop.f32.mrb[0].mxu0
      %3095 = vmatprep.mubr.bf16.mxu0 0
      %3096 = vmatmul.mubr.bf16.gmra.mrb[0].mxu0 %v2938
      %v3097 = vpop.f32.mrb[0].mxu0
      %v3098 = vadd.f32 0.0, %v3097
      %v3099 = vpop.f32.mrb[0].mxu0
      %v3100 = vpop.f32.mrb[0].mxu0
      %v3101 = vadd.f32 0.0, %v3100
      %v3102 = vpop.f32.mrb[0].mxu0
      %3103 = vdwg.mxu0
      %v3104 = vadd.f32 %v2658, %v2978
      %v3105 = vadd.f32 %v2659, %v2981
      %v3106 = vadd.f32 %v2660, %v2986
      %v3107 = vadd.f32 %v2661, %v2989
      %v3108 = vadd.f32 %v2662, %v2994
      %v3109 = vadd.f32 %v2663, %v2997
      %v3110 = vadd.f32 %v2664, %v3002
      %v3111 = vadd.f32 %v2665, %v3005
      %v3112 = vadd.f32 %v2666, %v3010
      %v3113 = vadd.f32 %v2667, %v3013
      %v3114 = vadd.f32 %v2668, %v3018
      %v3115 = vadd.f32 %v2669, %v3021
      %v3116 = vadd.f32 %v2670, %v3026
      %v3117 = vadd.f32 %v2671, %v3029
      %v3118 = vadd.f32 %v2672, %v3034
      %v3119 = vadd.f32 %v2673, %v3037
      %v3120 = vadd.f32 %v2674, %v3042
      %v3121 = vadd.f32 %v2675, %v3045
      %v3122 = vadd.f32 %v2676, %v3050
      %v3123 = vadd.f32 %v2677, %v3053
      %v3124 = vadd.f32 %v2678, %v3058
      %v3125 = vadd.f32 %v2679, %v3061
      %v3126 = vadd.f32 %v2680, %v3066
      %v3127 = vadd.f32 %v2681, %v3069
      %v3128 = vadd.f32 %v2682, %v3074
      %v3129 = vadd.f32 %v2683, %v3077
      %v3130 = vadd.f32 %v2684, %v3082
      %v3131 = vadd.f32 %v2685, %v3085
      %v3132 = vadd.f32 %v2686, %v3090
      %v3133 = vadd.f32 %v2687, %v3093
      %v3134 = vadd.f32 %v2688, %v3098
      %v3135 = vadd.f32 %v2689, %v3101
      %s3136 = sadd.s32 %s261, 2
      %s3137 = smul.u32 %s3136, 5
      %s3138 = smul.addr %s3137, 4
      %s3139 = scalar_lea.vmem %s234, %s3138
      %v3140 = vld [vmem:[%s3139] sm:$0xf]
      %v3141 = vld [vmem:[%s3139 + $0x4] sm:$0xf]
      %v3142 = vld [vmem:[%s3139 + $0x8] sm:$0xf]
      %v3143 = vld [vmem:[%s3139 + $0xc] sm:$0xf]
      %v3144 = vld [vmem:[%s3139 + $0x14] sm:$0xf]
      %v3145 = vld [vmem:[%s3139 + $0x18] sm:$0xf]
      %v3146 = vld [vmem:[%s3139 + $0x1c] sm:$0xf]
      %v3147 = vld [vmem:[%s3139 + $0x20] sm:$0xf]
      %v3148 = vld [vmem:[%s3139 + $0x28] sm:$0xf]
      %v3149 = vld [vmem:[%s3139 + $0x2c] sm:$0xf]
      %v3150 = vld [vmem:[%s3139 + $0x30] sm:$0xf]
      %v3151 = vld [vmem:[%s3139 + $0x34] sm:$0xf]
      %v3152 = vld [vmem:[%s3139 + $0x3c] sm:$0xf]
      %v3153 = vld [vmem:[%s3139 + $0x40] sm:$0xf]
      %v3154 = vld [vmem:[%s3139 + $0x44] sm:$0xf]
      %v3155 = vld [vmem:[%s3139 + $0x48] sm:$0xf]
      %v3156 = vld [vmem:[%s3139 + $0x50] sm:$0xf]
      %v3157 = vld [vmem:[%s3139 + $0x54] sm:$0xf]
      %v3158 = vld [vmem:[%s3139 + $0x58] sm:$0xf]
      %v3159 = vld [vmem:[%s3139 + $0x5c] sm:$0xf]
      %v3160 = vld [vmem:[%s3139 + $0x64] sm:$0xf]
      %v3161 = vld [vmem:[%s3139 + $0x68] sm:$0xf]
      %v3162 = vld [vmem:[%s3139 + $0x6c] sm:$0xf]
      %v3163 = vld [vmem:[%s3139 + $0x70] sm:$0xf]
      %v3164 = vld [vmem:[%s3139 + $0x78] sm:$0xf]
      %v3165 = vld [vmem:[%s3139 + $0x7c] sm:$0xf]
      %v3166 = vld [vmem:[%s3139 + $0x80] sm:$0xf]
      %v3167 = vld [vmem:[%s3139 + $0x84] sm:$0xf]
      %v3168 = vld [vmem:[%s3139 + $0x8c] sm:$0xf]
      %v3169 = vld [vmem:[%s3139 + $0x90] sm:$0xf]
      %v3170 = vld [vmem:[%s3139 + $0x94] sm:$0xf]
      %v3171 = vld [vmem:[%s3139 + $0x98] sm:$0xf]
      %s3172 = scalar_lea.vmem %s1, 24
      %v3173 = vld [vmem:[%s3172] sm:$0xf]
      %v3206 = vunpack.c.l.b16 %v3140
      %v3207 = vunpack.c.l.b16 %v3141
      %v3208 = vunpack.c.l.b16 %v3142
      %v3209 = vunpack.c.l.b16 %v3143
      %v3210 = vunpack.c.l.b16 %v3144
      %v3211 = vunpack.c.l.b16 %v3145
      %v3212 = vunpack.c.l.b16 %v3146
      %v3213 = vunpack.c.l.b16 %v3147
      %v3214 = vunpack.c.l.b16 %v3148
      %v3215 = vunpack.c.l.b16 %v3149
      %v3216 = vunpack.c.l.b16 %v3150
      %v3217 = vunpack.c.l.b16 %v3151
      %v3218 = vunpack.c.l.b16 %v3152
      %v3219 = vunpack.c.l.b16 %v3153
      %v3220 = vunpack.c.l.b16 %v3154
      %v3221 = vunpack.c.l.b16 %v3155
      %v3222 = vunpack.c.l.b16 %v3156
      %v3223 = vunpack.c.l.b16 %v3157
      %v3224 = vunpack.c.l.b16 %v3158
      %v3225 = vunpack.c.l.b16 %v3159
      %v3226 = vunpack.c.l.b16 %v3160
      %v3227 = vunpack.c.l.b16 %v3161
      %v3228 = vunpack.c.l.b16 %v3162
      %v3229 = vunpack.c.l.b16 %v3163
      %v3230 = vunpack.c.l.b16 %v3164
      %v3231 = vunpack.c.l.b16 %v3165
      %v3232 = vunpack.c.l.b16 %v3166
      %v3233 = vunpack.c.l.b16 %v3167
      %v3234 = vunpack.c.l.b16 %v3168
      %v3235 = vunpack.c.l.b16 %v3169
      %v3236 = vunpack.c.l.b16 %v3170
      %v3237 = vunpack.c.l.b16 %v3171
      %v3238 = vpack.c.b16 %v3207, %v3206
      %v3239 = vpack.c.b16 %v3209, %v3208
      %v3240 = vpack.c.b16 %v3211, %v3210
      %v3241 = vpack.c.b16 %v3213, %v3212
      %v3242 = vpack.c.b16 %v3215, %v3214
      %v3243 = vpack.c.b16 %v3217, %v3216
      %v3244 = vpack.c.b16 %v3219, %v3218
      %v3245 = vpack.c.b16 %v3221, %v3220
      %v3246 = vpack.c.b16 %v3223, %v3222
      %v3247 = vpack.c.b16 %v3225, %v3224
      %v3248 = vpack.c.b16 %v3227, %v3226
      %v3249 = vpack.c.b16 %v3229, %v3228
      %v3250 = vpack.c.b16 %v3231, %v3230
      %v3251 = vpack.c.b16 %v3233, %v3232
      %v3252 = vpack.c.b16 %v3235, %v3234
      %v3253 = vpack.c.b16 %v3237, %v3236
      %v3255 = vsel %vm711, %v3238, 0
      %v3258 = vsel %vm711, %v3239, 0
      %v3261 = vsel %vm711, %v3240, 0
      %v3264 = vsel %vm711, %v3241, 0
      %v3267 = vsel %vm711, %v3242, 0
      %v3270 = vsel %vm711, %v3243, 0
      %v3273 = vsel %vm711, %v3244, 0
      %v3276 = vsel %vm711, %v3245, 0
      %v3279 = vsel %vm711, %v3246, 0
      %v3282 = vsel %vm711, %v3247, 0
      %v3285 = vsel %vm711, %v3248, 0
      %v3288 = vsel %vm711, %v3249, 0
      %v3291 = vsel %vm711, %v3250, 0
      %v3294 = vsel %vm711, %v3251, 0
      %v3297 = vsel %vm711, %v3252, 0
      %v3300 = vsel %vm711, %v3253, 0
      %v3303 = vsel %vm760, %v3173, 0
      %3305 = vmatprep.subr.bf16.mxu0 0
      %3306 = vmatpush1.bf16.msra.mxu0 %v3303
      %3307 = vmatprep.subr.bf16.mxu0 0
      %3308 = vmatpush1.bf16.msra.mxu0 0
      %3309 = vmatprep.subr.bf16.mxu0 0
      %3310 = vmatpush1.bf16.msra.mxu0 0
      %3311 = vmatprep.subr.bf16.mxu0 0
      %3312 = vmatpush1.bf16.msra.mxu0 0
      %3313 = vmatprep.subr.bf16.mxu0 0
      %3314 = vmatpush1.bf16.msra.mxu0 0
      %3315 = vmatprep.subr.bf16.mxu0 0
      %3316 = vmatpush1.bf16.msra.mxu0 0
      %3317 = vmatprep.subr.bf16.mxu0 0
      %3318 = vmatpush1.bf16.msra.mxu0 0
      %3319 = vmatprep.subr.bf16.mxu0 0
      %3320 = vmatpush1.bf16.msra.mxu0 0
      %3321 = vmatprep.subr.bf16.mxu0 0
      %3322 = vmatpush1.bf16.msra.mxu0 0
      %3323 = vmatprep.subr.bf16.mxu0 0
      %3324 = vmatpush1.bf16.msra.mxu0 0
      %3325 = vmatprep.subr.bf16.mxu0 0
      %3326 = vmatpush1.bf16.msra.mxu0 0
      %3327 = vmatprep.subr.bf16.mxu0 0
      %3328 = vmatpush1.bf16.msra.mxu0 0
      %3329 = vmatprep.subr.bf16.mxu0 0
      %3330 = vmatpush1.bf16.msra.mxu0 0
      %3331 = vmatprep.subr.bf16.mxu0 0
      %3332 = vmatpush1.bf16.msra.mxu0 0
      %3333 = vmatprep.subr.bf16.mxu0 0
      %3334 = vmatpush1.bf16.msra.mxu0 0
      %3335 = vmatprep.subr.bf16.mxu0 0
      %3336 = vmatpush1.bf16.msra.mxu0 0
      %3337 = vmatprep.mubr.bf16.mxu0 0
      %3338 = vmatmul.mubr.bf16.gmra.mrb[0].mxu0 %v3255
      %v3339 = vpop.f32.mrb[0].mxu0
      %v3340 = vadd.f32 0.0, %v3339
      %v3341 = vpop.f32.mrb[0].mxu0
      %v3342 = vpop.f32.mrb[0].mxu0
      %v3343 = vadd.f32 0.0, %v3342
      %v3344 = vpop.f32.mrb[0].mxu0
      %3345 = vmatprep.mubr.bf16.mxu0 0
      %3346 = vmatmul.mubr.bf16.gmra.mrb[0].mxu0 %v3258
      %v3347 = vpop.f32.mrb[0].mxu0
      %v3348 = vadd.f32 0.0, %v3347
      %v3349 = vpop.f32.mrb[0].mxu0
      %v3350 = vpop.f32.mrb[0].mxu0
      %v3351 = vadd.f32 0.0, %v3350
      %v3352 = vpop.f32.mrb[0].mxu0
      %3353 = vmatprep.mubr.bf16.mxu0 0
      %3354 = vmatmul.mubr.bf16.gmra.mrb[0].mxu0 %v3261
      %v3355 = vpop.f32.mrb[0].mxu0
      %v3356 = vadd.f32 0.0, %v3355
      %v3357 = vpop.f32.mrb[0].mxu0
      %v3358 = vpop.f32.mrb[0].mxu0
      %v3359 = vadd.f32 0.0, %v3358
      %v3360 = vpop.f32.mrb[0].mxu0
      %3361 = vmatprep.mubr.bf16.mxu0 0
      %3362 = vmatmul.mubr.bf16.gmra.mrb[0].mxu0 %v3264
      %v3363 = vpop.f32.mrb[0].mxu0
      %v3364 = vadd.f32 0.0, %v3363
      %v3365 = vpop.f32.mrb[0].mxu0
      %v3366 = vpop.f32.mrb[0].mxu0
      %v3367 = vadd.f32 0.0, %v3366
      %v3368 = vpop.f32.mrb[0].mxu0
      %3369 = vmatprep.mubr.bf16.mxu0 0
      %3370 = vmatmul.mubr.bf16.gmra.mrb[0].mxu0 %v3267
      %v3371 = vpop.f32.mrb[0].mxu0
      %v3372 = vadd.f32 0.0, %v3371
      %v3373 = vpop.f32.mrb[0].mxu0
      %v3374 = vpop.f32.mrb[0].mxu0
      %v3375 = vadd.f32 0.0, %v3374
      %v3376 = vpop.f32.mrb[0].mxu0
      %3377 = vmatprep.mubr.bf16.mxu0 0
      %3378 = vmatmul.mubr.bf16.gmra.mrb[0].mxu0 %v3270
      %v3379 = vpop.f32.mrb[0].mxu0
      %v3380 = vadd.f32 0.0, %v3379
      %v3381 = vpop.f32.mrb[0].mxu0
      %v3382 = vpop.f32.mrb[0].mxu0
      %v3383 = vadd.f32 0.0, %v3382
      %v3384 = vpop.f32.mrb[0].mxu0
      %3385 = vmatprep.mubr.bf16.mxu0 0
      %3386 = vmatmul.mubr.bf16.gmra.mrb[0].mxu0 %v3273
      %v3387 = vpop.f32.mrb[0].mxu0
      %v3388 = vadd.f32 0.0, %v3387
      %v3389 = vpop.f32.mrb[0].mxu0
      %v3390 = vpop.f32.mrb[0].mxu0
      %v3391 = vadd.f32 0.0, %v3390
      %v3392 = vpop.f32.mrb[0].mxu0
      %3393 = vmatprep.mubr.bf16.mxu0 0
      %3394 = vmatmul.mubr.bf16.gmra.mrb[0].mxu0 %v3276
      %v3395 = vpop.f32.mrb[0].mxu0
      %v3396 = vadd.f32 0.0, %v3395
      %v3397 = vpop.f32.mrb[0].mxu0
      %v3398 = vpop.f32.mrb[0].mxu0
      %v3399 = vadd.f32 0.0, %v3398
      %v3400 = vpop.f32.mrb[0].mxu0
      %3401 = vmatprep.mubr.bf16.mxu0 0
      %3402 = vmatmul.mubr.bf16.gmra.mrb[0].mxu0 %v3279
      %v3403 = vpop.f32.mrb[0].mxu0
      %v3404 = vadd.f32 0.0, %v3403
      %v3405 = vpop.f32.mrb[0].mxu0
      %v3406 = vpop.f32.mrb[0].mxu0
      %v3407 = vadd.f32 0.0, %v3406
      %v3408 = vpop.f32.mrb[0].mxu0
      %3409 = vmatprep.mubr.bf16.mxu0 0
      %3410 = vmatmul.mubr.bf16.gmra.mrb[0].mxu0 %v3282
      %v3411 = vpop.f32.mrb[0].mxu0
      %v3412 = vadd.f32 0.0, %v3411
      %v3413 = vpop.f32.mrb[0].mxu0
      %v3414 = vpop.f32.mrb[0].mxu0
      %v3415 = vadd.f32 0.0, %v3414
      %v3416 = vpop.f32.mrb[0].mxu0
      %3417 = vmatprep.mubr.bf16.mxu0 0
      %3418 = vmatmul.mubr.bf16.gmra.mrb[0].mxu0 %v3285
      %v3419 = vpop.f32.mrb[0].mxu0
      %v3420 = vadd.f32 0.0, %v3419
      %v3421 = vpop.f32.mrb[0].mxu0
      %v3422 = vpop.f32.mrb[0].mxu0
      %v3423 = vadd.f32 0.0, %v3422
      %v3424 = vpop.f32.mrb[0].mxu0
      %3425 = vmatprep.mubr.bf16.mxu0 0
      %3426 = vmatmul.mubr.bf16.gmra.mrb[0].mxu0 %v3288
      %v3427 = vpop.f32.mrb[0].mxu0
      %v3428 = vadd.f32 0.0, %v3427
      %v3429 = vpop.f32.mrb[0].mxu0
      %v3430 = vpop.f32.mrb[0].mxu0
      %v3431 = vadd.f32 0.0, %v3430
      %v3432 = vpop.f32.mrb[0].mxu0
      %3433 = vmatprep.mubr.bf16.mxu0 0
      %3434 = vmatmul.mubr.bf16.gmra.mrb[0].mxu0 %v3291
      %v3435 = vpop.f32.mrb[0].mxu0
      %v3436 = vadd.f32 0.0, %v3435
      %v3437 = vpop.f32.mrb[0].mxu0
      %v3438 = vpop.f32.mrb[0].mxu0
      %v3439 = vadd.f32 0.0, %v3438
      %v3440 = vpop.f32.mrb[0].mxu0
      %3441 = vmatprep.mubr.bf16.mxu0 0
      %3442 = vmatmul.mubr.bf16.gmra.mrb[0].mxu0 %v3294
      %v3443 = vpop.f32.mrb[0].mxu0
      %v3444 = vadd.f32 0.0, %v3443
      %v3445 = vpop.f32.mrb[0].mxu0
      %v3446 = vpop.f32.mrb[0].mxu0
      %v3447 = vadd.f32 0.0, %v3446
      %v3448 = vpop.f32.mrb[0].mxu0
      %3449 = vmatprep.mubr.bf16.mxu0 0
      %3450 = vmatmul.mubr.bf16.gmra.mrb[0].mxu0 %v3297
      %v3451 = vpop.f32.mrb[0].mxu0
      %v3452 = vadd.f32 0.0, %v3451
      %v3453 = vpop.f32.mrb[0].mxu0
      %v3454 = vpop.f32.mrb[0].mxu0
      %v3455 = vadd.f32 0.0, %v3454
      %v3456 = vpop.f32.mrb[0].mxu0
      %3457 = vmatprep.mubr.bf16.mxu0 0
      %3458 = vmatmul.mubr.bf16.gmra.mrb[0].mxu0 %v3300
      %v3459 = vpop.f32.mrb[0].mxu0
      %v3460 = vadd.f32 0.0, %v3459
      %v3461 = vpop.f32.mrb[0].mxu0
      %v3462 = vpop.f32.mrb[0].mxu0
      %v3463 = vadd.f32 0.0, %v3462
      %v3464 = vpop.f32.mrb[0].mxu0
      %3465 = vdwg.mxu0
      %v3466 = vadd.f32 %v3104, %v3340
      %v3467 = vadd.f32 %v3105, %v3343
      %v3468 = vadd.f32 %v3106, %v3348
      %v3469 = vadd.f32 %v3107, %v3351
      %v3470 = vadd.f32 %v3108, %v3356
      %v3471 = vadd.f32 %v3109, %v3359
      %v3472 = vadd.f32 %v3110, %v3364
      %v3473 = vadd.f32 %v3111, %v3367
      %v3474 = vadd.f32 %v3112, %v3372
      %v3475 = vadd.f32 %v3113, %v3375
      %v3476 = vadd.f32 %v3114, %v3380
      %v3477 = vadd.f32 %v3115, %v3383
      %v3478 = vadd.f32 %v3116, %v3388
      %v3479 = vadd.f32 %v3117, %v3391
      %v3480 = vadd.f32 %v3118, %v3396
      %v3481 = vadd.f32 %v3119, %v3399
      %v3482 = vadd.f32 %v3120, %v3404
      %v3483 = vadd.f32 %v3121, %v3407
      %v3484 = vadd.f32 %v3122, %v3412
      %v3485 = vadd.f32 %v3123, %v3415
      %v3486 = vadd.f32 %v3124, %v3420
      %v3487 = vadd.f32 %v3125, %v3423
      %v3488 = vadd.f32 %v3126, %v3428
      %v3489 = vadd.f32 %v3127, %v3431
      %v3490 = vadd.f32 %v3128, %v3436
      %v3491 = vadd.f32 %v3129, %v3439
      %v3492 = vadd.f32 %v3130, %v3444
      %v3493 = vadd.f32 %v3131, %v3447
      %v3494 = vadd.f32 %v3132, %v3452
      %v3495 = vadd.f32 %v3133, %v3455
      %v3496 = vadd.f32 %v3134, %v3460
      %v3497 = vadd.f32 %v3135, %v3463
      %v3498 = vld [vmem:[%s3139] sm:$0xf]
      %v3499 = vld [vmem:[%s3139 + $0x4] sm:$0xf]
      %v3500 = vld [vmem:[%s3139 + $0x8] sm:$0xf]
      %v3501 = vld [vmem:[%s3139 + $0xc] sm:$0xf]
      %v3502 = vld [vmem:[%s3139 + $0x10] sm:$0x1]
      %v3503 = vld [vmem:[%s3139 + $0x14] sm:$0xf]
      %v3504 = vld [vmem:[%s3139 + $0x18] sm:$0xf]
      %v3505 = vld [vmem:[%s3139 + $0x1c] sm:$0xf]
      %v3506 = vld [vmem:[%s3139 + $0x20] sm:$0xf]
      %v3507 = vld [vmem:[%s3139 + $0x24] sm:$0x1]
      %v3508 = vld [vmem:[%s3139 + $0x28] sm:$0xf]
      %v3509 = vld [vmem:[%s3139 + $0x2c] sm:$0xf]
      %v3510 = vld [vmem:[%s3139 + $0x30] sm:$0xf]
      %v3511 = vld [vmem:[%s3139 + $0x34] sm:$0xf]
      %v3512 = vld [vmem:[%s3139 + $0x38] sm:$0x1]
      %v3513 = vld [vmem:[%s3139 + $0x3c] sm:$0xf]
      %v3514 = vld [vmem:[%s3139 + $0x40] sm:$0xf]
      %v3515 = vld [vmem:[%s3139 + $0x44] sm:$0xf]
      %v3516 = vld [vmem:[%s3139 + $0x48] sm:$0xf]
      %v3517 = vld [vmem:[%s3139 + $0x4c] sm:$0x1]
      %v3518 = vld [vmem:[%s3139 + $0x50] sm:$0xf]
      %v3519 = vld [vmem:[%s3139 + $0x54] sm:$0xf]
      %v3520 = vld [vmem:[%s3139 + $0x58] sm:$0xf]
      %v3521 = vld [vmem:[%s3139 + $0x5c] sm:$0xf]
      %v3522 = vld [vmem:[%s3139 + $0x60] sm:$0x1]
      %v3523 = vld [vmem:[%s3139 + $0x64] sm:$0xf]
      %v3524 = vld [vmem:[%s3139 + $0x68] sm:$0xf]
      %v3525 = vld [vmem:[%s3139 + $0x6c] sm:$0xf]
      %v3526 = vld [vmem:[%s3139 + $0x70] sm:$0xf]
      %v3527 = vld [vmem:[%s3139 + $0x74] sm:$0x1]
      %v3528 = vld [vmem:[%s3139 + $0x78] sm:$0xf]
      %v3529 = vld [vmem:[%s3139 + $0x7c] sm:$0xf]
      %v3530 = vld [vmem:[%s3139 + $0x80] sm:$0xf]
      %v3531 = vld [vmem:[%s3139 + $0x84] sm:$0xf]
      %v3532 = vld [vmem:[%s3139 + $0x88] sm:$0x1]
      %v3533 = vld [vmem:[%s3139 + $0x8c] sm:$0xf]
      %v3534 = vld [vmem:[%s3139 + $0x90] sm:$0xf]
      %v3535 = vld [vmem:[%s3139 + $0x94] sm:$0xf]
      %v3536 = vld [vmem:[%s3139 + $0x98] sm:$0xf]
      %v3537 = vld [vmem:[%s3139 + $0x9c] sm:$0x1]
      %v3539 = vshrl.u32 %v3498, 16
      %v3541 = vrot.slane %v3539, 4
      %v3542 = vshll.u32 %v3498, 16
      %v3544 = vrot.slane %v3542, 5
      %v3545 = vor.u32 %v3541, %v3544
      %v3546 = vrot.slane %v3545, 4
      %v3548 = vshll.u32 %v3499, 16
      %v3550 = vrot.slane %v3548, 5
      %v3551 = vsel %vm308, %v3546, %v3550
      %v3552 = vshrl.u32 %v3499, 16
      %v3554 = vrot.slane %v3552, 4
      %v3555 = vor.u32 %v3554, %v3550
      %v3556 = vrot.slane %v3555, 4
      %v3558 = vshll.u32 %v3500, 16
      %v3560 = vrot.slane %v3558, 5
      %v3561 = vsel %vm308, %v3556, %v3560
      %v3562 = vshrl.u32 %v3500, 16
      %v3564 = vrot.slane %v3562, 4
      %v3565 = vor.u32 %v3564, %v3560
      %v3566 = vrot.slane %v3565, 4
      %v3568 = vshll.u32 %v3501, 16
      %v3570 = vrot.slane %v3568, 5
      %v3571 = vsel %vm308, %v3566, %v3570
      %v3572 = vshrl.u32 %v3501, 16
      %v3574 = vrot.slane %v3572, 4
      %v3575 = vor.u32 %v3574, %v3570
      %v3576 = vrot.slane %v3575, 4
      %v3578 = vshll.u32 %v3502, 16
      %v3580 = vrot.slane %v3578, 5
      %v3581 = vsel %vm308, %v3576, %v3580
      %v3583 = vshrl.u32 %v3503, 16
      %v3585 = vrot.slane %v3583, 4
      %v3586 = vshll.u32 %v3503, 16
      %v3588 = vrot.slane %v3586, 5
      %v3589 = vor.u32 %v3585, %v3588
      %v3590 = vrot.slane %v3589, 4
      %v3592 = vshll.u32 %v3504, 16
      %v3594 = vrot.slane %v3592, 5
      %v3595 = vsel %vm308, %v3590, %v3594
      %v3596 = vshrl.u32 %v3504, 16
      %v3598 = vrot.slane %v3596, 4
      %v3599 = vor.u32 %v3598, %v3594
      %v3600 = vrot.slane %v3599, 4
      %v3602 = vshll.u32 %v3505, 16
      %v3604 = vrot.slane %v3602, 5
      %v3605 = vsel %vm308, %v3600, %v3604
      %v3606 = vshrl.u32 %v3505, 16
      %v3608 = vrot.slane %v3606, 4
      %v3609 = vor.u32 %v3608, %v3604
      %v3610 = vrot.slane %v3609, 4
      %v3612 = vshll.u32 %v3506, 16
      %v3614 = vrot.slane %v3612, 5
      %v3615 = vsel %vm308, %v3610, %v3614
      %v3616 = vshrl.u32 %v3506, 16
      %v3618 = vrot.slane %v3616, 4
      %v3619 = vor.u32 %v3618, %v3614
      %v3620 = vrot.slane %v3619, 4
      %v3622 = vshll.u32 %v3507, 16
      %v3624 = vrot.slane %v3622, 5
      %v3625 = vsel %vm308, %v3620, %v3624
      %v3627 = vshrl.u32 %v3508, 16
      %v3629 = vrot.slane %v3627, 4
      %v3630 = vshll.u32 %v3508, 16
      %v3632 = vrot.slane %v3630, 5
      %v3633 = vor.u32 %v3629, %v3632
      %v3634 = vrot.slane %v3633, 4
      %v3636 = vshll.u32 %v3509, 16
      %v3638 = vrot.slane %v3636, 5
      %v3639 = vsel %vm308, %v3634, %v3638
      %v3640 = vshrl.u32 %v3509, 16
      %v3642 = vrot.slane %v3640, 4
      %v3643 = vor.u32 %v3642, %v3638
      %v3644 = vrot.slane %v3643, 4
      %v3646 = vshll.u32 %v3510, 16
      %v3648 = vrot.slane %v3646, 5
      %v3649 = vsel %vm308, %v3644, %v3648
      %v3650 = vshrl.u32 %v3510, 16
      %v3652 = vrot.slane %v3650, 4
      %v3653 = vor.u32 %v3652, %v3648
      %v3654 = vrot.slane %v3653, 4
      %v3656 = vshll.u32 %v3511, 16
      %v3658 = vrot.slane %v3656, 5
      %v3659 = vsel %vm308, %v3654, %v3658
      %v3660 = vshrl.u32 %v3511, 16
      %v3662 = vrot.slane %v3660, 4
      %v3663 = vor.u32 %v3662, %v3658
      %v3664 = vrot.slane %v3663, 4
      %v3666 = vshll.u32 %v3512, 16
      %v3668 = vrot.slane %v3666, 5
      %v3669 = vsel %vm308, %v3664, %v3668
      %v3671 = vshrl.u32 %v3513, 16
      %v3673 = vrot.slane %v3671, 4
      %v3674 = vshll.u32 %v3513, 16
      %v3676 = vrot.slane %v3674, 5
      %v3677 = vor.u32 %v3673, %v3676
      %v3678 = vrot.slane %v3677, 4
      %v3680 = vshll.u32 %v3514, 16
      %v3682 = vrot.slane %v3680, 5
      %v3683 = vsel %vm308, %v3678, %v3682
      %v3684 = vshrl.u32 %v3514, 16
      %v3686 = vrot.slane %v3684, 4
      %v3687 = vor.u32 %v3686, %v3682
      %v3688 = vrot.slane %v3687, 4
      %v3690 = vshll.u32 %v3515, 16
      %v3692 = vrot.slane %v3690, 5
      %v3693 = vsel %vm308, %v3688, %v3692
      %v3694 = vshrl.u32 %v3515, 16
      %v3696 = vrot.slane %v3694, 4
      %v3697 = vor.u32 %v3696, %v3692
      %v3698 = vrot.slane %v3697, 4
      %v3700 = vshll.u32 %v3516, 16
      %v3702 = vrot.slane %v3700, 5
      %v3703 = vsel %vm308, %v3698, %v3702
      %v3704 = vshrl.u32 %v3516, 16
      %v3706 = vrot.slane %v3704, 4
      %v3707 = vor.u32 %v3706, %v3702
      %v3708 = vrot.slane %v3707, 4
      %v3710 = vshll.u32 %v3517, 16
      %v3712 = vrot.slane %v3710, 5
      %v3713 = vsel %vm308, %v3708, %v3712
      %v3715 = vshrl.u32 %v3518, 16
      %v3717 = vrot.slane %v3715, 4
      %v3718 = vshll.u32 %v3518, 16
      %v3720 = vrot.slane %v3718, 5
      %v3721 = vor.u32 %v3717, %v3720
      %v3722 = vrot.slane %v3721, 4
      %v3724 = vshll.u32 %v3519, 16
      %v3726 = vrot.slane %v3724, 5
      %v3727 = vsel %vm308, %v3722, %v3726
      %v3728 = vshrl.u32 %v3519, 16
      %v3730 = vrot.slane %v3728, 4
      %v3731 = vor.u32 %v3730, %v3726
      %v3732 = vrot.slane %v3731, 4
      %v3734 = vshll.u32 %v3520, 16
      %v3736 = vrot.slane %v3734, 5
      %v3737 = vsel %vm308, %v3732, %v3736
      %v3738 = vshrl.u32 %v3520, 16
      %v3740 = vrot.slane %v3738, 4
      %v3741 = vor.u32 %v3740, %v3736
      %v3742 = vrot.slane %v3741, 4
      %v3744 = vshll.u32 %v3521, 16
      %v3746 = vrot.slane %v3744, 5
      %v3747 = vsel %vm308, %v3742, %v3746
      %v3748 = vshrl.u32 %v3521, 16
      %v3750 = vrot.slane %v3748, 4
      %v3751 = vor.u32 %v3750, %v3746
      %v3752 = vrot.slane %v3751, 4
      %v3754 = vshll.u32 %v3522, 16
      %v3756 = vrot.slane %v3754, 5
      %v3757 = vsel %vm308, %v3752, %v3756
      %v3759 = vshrl.u32 %v3523, 16
      %v3761 = vrot.slane %v3759, 4
      %v3762 = vshll.u32 %v3523, 16
      %v3764 = vrot.slane %v3762, 5
      %v3765 = vor.u32 %v3761, %v3764
      %v3766 = vrot.slane %v3765, 4
      %v3768 = vshll.u32 %v3524, 16
      %v3770 = vrot.slane %v3768, 5
      %v3771 = vsel %vm308, %v3766, %v3770
      %v3772 = vshrl.u32 %v3524, 16
      %v3774 = vrot.slane %v3772, 4
      %v3775 = vor.u32 %v3774, %v3770
      %v3776 = vrot.slane %v3775, 4
      %v3778 = vshll.u32 %v3525, 16
      %v3780 = vrot.slane %v3778, 5
      %v3781 = vsel %vm308, %v3776, %v3780
      %v3782 = vshrl.u32 %v3525, 16
      %v3784 = vrot.slane %v3782, 4
      %v3785 = vor.u32 %v3784, %v3780
      %v3786 = vrot.slane %v3785, 4
      %v3788 = vshll.u32 %v3526, 16
      %v3790 = vrot.slane %v3788, 5
      %v3791 = vsel %vm308, %v3786, %v3790
      %v3792 = vshrl.u32 %v3526, 16
      %v3794 = vrot.slane %v3792, 4
      %v3795 = vor.u32 %v3794, %v3790
      %v3796 = vrot.slane %v3795, 4
      %v3798 = vshll.u32 %v3527, 16
      %v3800 = vrot.slane %v3798, 5
      %v3801 = vsel %vm308, %v3796, %v3800
      %v3803 = vshrl.u32 %v3528, 16
      %v3805 = vrot.slane %v3803, 4
      %v3806 = vshll.u32 %v3528, 16
      %v3808 = vrot.slane %v3806, 5
      %v3809 = vor.u32 %v3805, %v3808
      %v3810 = vrot.slane %v3809, 4
      %v3812 = vshll.u32 %v3529, 16
      %v3814 = vrot.slane %v3812, 5
      %v3815 = vsel %vm308, %v3810, %v3814
      %v3816 = vshrl.u32 %v3529, 16
      %v3818 = vrot.slane %v3816, 4
      %v3819 = vor.u32 %v3818, %v3814
      %v3820 = vrot.slane %v3819, 4
      %v3822 = vshll.u32 %v3530, 16
      %v3824 = vrot.slane %v3822, 5
      %v3825 = vsel %vm308, %v3820, %v3824
      %v3826 = vshrl.u32 %v3530, 16
      %v3828 = vrot.slane %v3826, 4
      %v3829 = vor.u32 %v3828, %v3824
      %v3830 = vrot.slane %v3829, 4
      %v3832 = vshll.u32 %v3531, 16
      %v3834 = vrot.slane %v3832, 5
      %v3835 = vsel %vm308, %v3830, %v3834
      %v3836 = vshrl.u32 %v3531, 16
      %v3838 = vrot.slane %v3836, 4
      %v3839 = vor.u32 %v3838, %v3834
      %v3840 = vrot.slane %v3839, 4
      %v3842 = vshll.u32 %v3532, 16
      %v3844 = vrot.slane %v3842, 5
      %v3845 = vsel %vm308, %v3840, %v3844
      %v3847 = vshrl.u32 %v3533, 16
      %v3849 = vrot.slane %v3847, 4
      %v3850 = vshll.u32 %v3533, 16
      %v3852 = vrot.slane %v3850, 5
      %v3853 = vor.u32 %v3849, %v3852
      %v3854 = vrot.slane %v3853, 4
      %v3856 = vshll.u32 %v3534, 16
      %v3858 = vrot.slane %v3856, 5
      %v3859 = vsel %vm308, %v3854, %v3858
      %v3860 = vshrl.u32 %v3534, 16
      %v3862 = vrot.slane %v3860, 4
      %v3863 = vor.u32 %v3862, %v3858
      %v3864 = vrot.slane %v3863, 4
      %v3866 = vshll.u32 %v3535, 16
      %v3868 = vrot.slane %v3866, 5
      %v3869 = vsel %vm308, %v3864, %v3868
      %v3870 = vshrl.u32 %v3535, 16
      %v3872 = vrot.slane %v3870, 4
      %v3873 = vor.u32 %v3872, %v3868
      %v3874 = vrot.slane %v3873, 4
      %v3876 = vshll.u32 %v3536, 16
      %v3878 = vrot.slane %v3876, 5
      %v3879 = vsel %vm308, %v3874, %v3878
      %v3880 = vshrl.u32 %v3536, 16
      %v3882 = vrot.slane %v3880, 4
      %v3883 = vor.u32 %v3882, %v3878
      %v3884 = vrot.slane %v3883, 4
      %v3886 = vshll.u32 %v3537, 16
      %v3888 = vrot.slane %v3886, 5
      %v3889 = vsel %vm308, %v3884, %v3888
      %s3890 = scalar_lea.vmem %s1, 28
      %v3891 = vld [vmem:[%s3890] sm:$0xf]
      %v3892 = vunpack.c.l.b16 %v3551
      %v3893 = vunpack.c.l.b16 %v3561
      %v3894 = vunpack.c.l.b16 %v3571
      %v3895 = vunpack.c.l.b16 %v3581
      %v3896 = vunpack.c.l.b16 %v3595
      %v3897 = vunpack.c.l.b16 %v3605
      %v3898 = vunpack.c.l.b16 %v3615
      %v3899 = vunpack.c.l.b16 %v3625
      %v3900 = vunpack.c.l.b16 %v3639
      %v3901 = vunpack.c.l.b16 %v3649
      %v3902 = vunpack.c.l.b16 %v3659
      %v3903 = vunpack.c.l.b16 %v3669
      %v3904 = vunpack.c.l.b16 %v3683
      %v3905 = vunpack.c.l.b16 %v3693
      %v3906 = vunpack.c.l.b16 %v3703
      %v3907 = vunpack.c.l.b16 %v3713
      %v3908 = vunpack.c.l.b16 %v3727
      %v3909 = vunpack.c.l.b16 %v3737
      %v3910 = vunpack.c.l.b16 %v3747
      %v3911 = vunpack.c.l.b16 %v3757
      %v3912 = vunpack.c.l.b16 %v3771
      %v3913 = vunpack.c.l.b16 %v3781
      %v3914 = vunpack.c.l.b16 %v3791
      %v3915 = vunpack.c.l.b16 %v3801
      %v3916 = vunpack.c.l.b16 %v3815
      %v3917 = vunpack.c.l.b16 %v3825
      %v3918 = vunpack.c.l.b16 %v3835
      %v3919 = vunpack.c.l.b16 %v3845
      %v3920 = vunpack.c.l.b16 %v3859
      %v3921 = vunpack.c.l.b16 %v3869
      %v3922 = vunpack.c.l.b16 %v3879
      %v3923 = vunpack.c.l.b16 %v3889
      %v3924 = vpack.c.b16 %v3893, %v3892
      %v3925 = vpack.c.b16 %v3895, %v3894
      %v3926 = vpack.c.b16 %v3897, %v3896
      %v3927 = vpack.c.b16 %v3899, %v3898
      %v3928 = vpack.c.b16 %v3901, %v3900
      %v3929 = vpack.c.b16 %v3903, %v3902
      %v3930 = vpack.c.b16 %v3905, %v3904
      %v3931 = vpack.c.b16 %v3907, %v3906
      %v3932 = vpack.c.b16 %v3909, %v3908
      %v3933 = vpack.c.b16 %v3911, %v3910
      %v3934 = vpack.c.b16 %v3913, %v3912
      %v3935 = vpack.c.b16 %v3915, %v3914
      %v3936 = vpack.c.b16 %v3917, %v3916
      %v3937 = vpack.c.b16 %v3919, %v3918
      %v3938 = vpack.c.b16 %v3921, %v3920
      %v3939 = vpack.c.b16 %v3923, %v3922
      %v3941 = vsel %vm711, %v3924, 0
      %v3944 = vsel %vm711, %v3925, 0
      %v3947 = vsel %vm711, %v3926, 0
      %v3950 = vsel %vm711, %v3927, 0
      %v3953 = vsel %vm711, %v3928, 0
      %v3956 = vsel %vm711, %v3929, 0
      %v3959 = vsel %vm711, %v3930, 0
      %v3962 = vsel %vm711, %v3931, 0
      %v3965 = vsel %vm711, %v3932, 0
      %v3968 = vsel %vm711, %v3933, 0
      %v3971 = vsel %vm711, %v3934, 0
      %v3974 = vsel %vm711, %v3935, 0
      %v3977 = vsel %vm711, %v3936, 0
      %v3980 = vsel %vm711, %v3937, 0
      %v3983 = vsel %vm711, %v3938, 0
      %v3986 = vsel %vm711, %v3939, 0
      %v3989 = vsel %vm760, %v3891, 0
      %3991 = vmatprep.subr.bf16.mxu0 0
      %3992 = vmatpush1.bf16.msra.mxu0 %v3989
      %3993 = vmatprep.subr.bf16.mxu0 0
      %3994 = vmatpush1.bf16.msra.mxu0 0
      %3995 = vmatprep.subr.bf16.mxu0 0
      %3996 = vmatpush1.bf16.msra.mxu0 0
      %3997 = vmatprep.subr.bf16.mxu0 0
      %3998 = vmatpush1.bf16.msra.mxu0 0
      %3999 = vmatprep.subr.bf16.mxu0 0
      %4000 = vmatpush1.bf16.msra.mxu0 0
      %4001 = vmatprep.subr.bf16.mxu0 0
      %4002 = vmatpush1.bf16.msra.mxu0 0
      %4003 = vmatprep.subr.bf16.mxu0 0
      %4004 = vmatpush1.bf16.msra.mxu0 0
      %4005 = vmatprep.subr.bf16.mxu0 0
      %4006 = vmatpush1.bf16.msra.mxu0 0
      %4007 = vmatprep.subr.bf16.mxu0 0
      %4008 = vmatpush1.bf16.msra.mxu0 0
      %4009 = vmatprep.subr.bf16.mxu0 0
      %4010 = vmatpush1.bf16.msra.mxu0 0
      %4011 = vmatprep.subr.bf16.mxu0 0
      %4012 = vmatpush1.bf16.msra.mxu0 0
      %4013 = vmatprep.subr.bf16.mxu0 0
      %4014 = vmatpush1.bf16.msra.mxu0 0
      %4015 = vmatprep.subr.bf16.mxu0 0
      %4016 = vmatpush1.bf16.msra.mxu0 0
      %4017 = vmatprep.subr.bf16.mxu0 0
      %4018 = vmatpush1.bf16.msra.mxu0 0
      %4019 = vmatprep.subr.bf16.mxu0 0
      %4020 = vmatpush1.bf16.msra.mxu0 0
      %4021 = vmatprep.subr.bf16.mxu0 0
      %4022 = vmatpush1.bf16.msra.mxu0 0
      %4023 = vmatprep.mubr.bf16.mxu0 0
      %4024 = vmatmul.mubr.bf16.gmra.mrb[0].mxu0 %v3941
      %v4025 = vpop.f32.mrb[0].mxu0
      %v4026 = vadd.f32 0.0, %v4025
      %v4027 = vpop.f32.mrb[0].mxu0
      %v4028 = vpop.f32.mrb[0].mxu0
      %v4029 = vadd.f32 0.0, %v4028
      %v4030 = vpop.f32.mrb[0].mxu0
      %4031 = vmatprep.mubr.bf16.mxu0 0
      %4032 = vmatmul.mubr.bf16.gmra.mrb[0].mxu0 %v3944
      %v4033 = vpop.f32.mrb[0].mxu0
      %v4034 = vadd.f32 0.0, %v4033
      %v4035 = vpop.f32.mrb[0].mxu0
      %v4036 = vpop.f32.mrb[0].mxu0
      %v4037 = vadd.f32 0.0, %v4036
      %v4038 = vpop.f32.mrb[0].mxu0
      %4039 = vmatprep.mubr.bf16.mxu0 0
      %4040 = vmatmul.mubr.bf16.gmra.mrb[0].mxu0 %v3947
      %v4041 = vpop.f32.mrb[0].mxu0
      %v4042 = vadd.f32 0.0, %v4041
      %v4043 = vpop.f32.mrb[0].mxu0
      %v4044 = vpop.f32.mrb[0].mxu0
      %v4045 = vadd.f32 0.0, %v4044
      %v4046 = vpop.f32.mrb[0].mxu0
      %4047 = vmatprep.mubr.bf16.mxu0 0
      %4048 = vmatmul.mubr.bf16.gmra.mrb[0].mxu0 %v3950
      %v4049 = vpop.f32.mrb[0].mxu0
      %v4050 = vadd.f32 0.0, %v4049
      %v4051 = vpop.f32.mrb[0].mxu0
      %v4052 = vpop.f32.mrb[0].mxu0
      %v4053 = vadd.f32 0.0, %v4052
      %v4054 = vpop.f32.mrb[0].mxu0
      %4055 = vmatprep.mubr.bf16.mxu0 0
      %4056 = vmatmul.mubr.bf16.gmra.mrb[0].mxu0 %v3953
      %v4057 = vpop.f32.mrb[0].mxu0
      %v4058 = vadd.f32 0.0, %v4057
      %v4059 = vpop.f32.mrb[0].mxu0
      %v4060 = vpop.f32.mrb[0].mxu0
      %v4061 = vadd.f32 0.0, %v4060
      %v4062 = vpop.f32.mrb[0].mxu0
      %4063 = vmatprep.mubr.bf16.mxu0 0
      %4064 = vmatmul.mubr.bf16.gmra.mrb[0].mxu0 %v3956
      %v4065 = vpop.f32.mrb[0].mxu0
      %v4066 = vadd.f32 0.0, %v4065
      %v4067 = vpop.f32.mrb[0].mxu0
      %v4068 = vpop.f32.mrb[0].mxu0
      %v4069 = vadd.f32 0.0, %v4068
      %v4070 = vpop.f32.mrb[0].mxu0
      %4071 = vmatprep.mubr.bf16.mxu0 0
      %4072 = vmatmul.mubr.bf16.gmra.mrb[0].mxu0 %v3959
      %v4073 = vpop.f32.mrb[0].mxu0
      %v4074 = vadd.f32 0.0, %v4073
      %v4075 = vpop.f32.mrb[0].mxu0
      %v4076 = vpop.f32.mrb[0].mxu0
      %v4077 = vadd.f32 0.0, %v4076
      %v4078 = vpop.f32.mrb[0].mxu0
      %4079 = vmatprep.mubr.bf16.mxu0 0
      %4080 = vmatmul.mubr.bf16.gmra.mrb[0].mxu0 %v3962
      %v4081 = vpop.f32.mrb[0].mxu0
      %v4082 = vadd.f32 0.0, %v4081
      %v4083 = vpop.f32.mrb[0].mxu0
      %v4084 = vpop.f32.mrb[0].mxu0
      %v4085 = vadd.f32 0.0, %v4084
      %v4086 = vpop.f32.mrb[0].mxu0
      %4087 = vmatprep.mubr.bf16.mxu0 0
      %4088 = vmatmul.mubr.bf16.gmra.mrb[0].mxu0 %v3965
      %v4089 = vpop.f32.mrb[0].mxu0
      %v4090 = vadd.f32 0.0, %v4089
      %v4091 = vpop.f32.mrb[0].mxu0
      %v4092 = vpop.f32.mrb[0].mxu0
      %v4093 = vadd.f32 0.0, %v4092
      %v4094 = vpop.f32.mrb[0].mxu0
      %4095 = vmatprep.mubr.bf16.mxu0 0
      %4096 = vmatmul.mubr.bf16.gmra.mrb[0].mxu0 %v3968
      %v4097 = vpop.f32.mrb[0].mxu0
      %v4098 = vadd.f32 0.0, %v4097
      %v4099 = vpop.f32.mrb[0].mxu0
      %v4100 = vpop.f32.mrb[0].mxu0
      %v4101 = vadd.f32 0.0, %v4100
      %v4102 = vpop.f32.mrb[0].mxu0
      %4103 = vmatprep.mubr.bf16.mxu0 0
      %4104 = vmatmul.mubr.bf16.gmra.mrb[0].mxu0 %v3971
      %v4105 = vpop.f32.mrb[0].mxu0
      %v4106 = vadd.f32 0.0, %v4105
      %v4107 = vpop.f32.mrb[0].mxu0
      %v4108 = vpop.f32.mrb[0].mxu0
      %v4109 = vadd.f32 0.0, %v4108
      %v4110 = vpop.f32.mrb[0].mxu0
      %4111 = vmatprep.mubr.bf16.mxu0 0
      %4112 = vmatmul.mubr.bf16.gmra.mrb[0].mxu0 %v3974
      %v4113 = vpop.f32.mrb[0].mxu0
      %v4114 = vadd.f32 0.0, %v4113
      %v4115 = vpop.f32.mrb[0].mxu0
      %v4116 = vpop.f32.mrb[0].mxu0
      %v4117 = vadd.f32 0.0, %v4116
      %v4118 = vpop.f32.mrb[0].mxu0
      %4119 = vmatprep.mubr.bf16.mxu0 0
      %4120 = vmatmul.mubr.bf16.gmra.mrb[0].mxu0 %v3977
      %v4121 = vpop.f32.mrb[0].mxu0
      %v4122 = vadd.f32 0.0, %v4121
      %v4123 = vpop.f32.mrb[0].mxu0
      %v4124 = vpop.f32.mrb[0].mxu0
      %v4125 = vadd.f32 0.0, %v4124
      %v4126 = vpop.f32.mrb[0].mxu0
      %4127 = vmatprep.mubr.bf16.mxu0 0
      %4128 = vmatmul.mubr.bf16.gmra.mrb[0].mxu0 %v3980
      %v4129 = vpop.f32.mrb[0].mxu0
      %v4130 = vadd.f32 0.0, %v4129
      %v4131 = vpop.f32.mrb[0].mxu0
      %v4132 = vpop.f32.mrb[0].mxu0
      %v4133 = vadd.f32 0.0, %v4132
      %v4134 = vpop.f32.mrb[0].mxu0
      %4135 = vmatprep.mubr.bf16.mxu0 0
      %4136 = vmatmul.mubr.bf16.gmra.mrb[0].mxu0 %v3983
      %v4137 = vpop.f32.mrb[0].mxu0
      %v4138 = vadd.f32 0.0, %v4137
      %v4139 = vpop.f32.mrb[0].mxu0
      %v4140 = vpop.f32.mrb[0].mxu0
      %v4141 = vadd.f32 0.0, %v4140
      %v4142 = vpop.f32.mrb[0].mxu0
      %4143 = vmatprep.mubr.bf16.mxu0 0
      %4144 = vmatmul.mubr.bf16.gmra.mrb[0].mxu0 %v3986
      %v4145 = vpop.f32.mrb[0].mxu0
      %v4146 = vadd.f32 0.0, %v4145
      %v4147 = vpop.f32.mrb[0].mxu0
      %v4148 = vpop.f32.mrb[0].mxu0
      %v4149 = vadd.f32 0.0, %v4148
      %v4150 = vpop.f32.mrb[0].mxu0
      %4151 = vdwg.mxu0
      %v4152 = vadd.f32 %v3466, %v4026
      %v4153 = vadd.f32 %v3467, %v4029
      %v4154 = vadd.f32 %v3468, %v4034
      %v4155 = vadd.f32 %v3469, %v4037
      %v4156 = vadd.f32 %v3470, %v4042
      %v4157 = vadd.f32 %v3471, %v4045
      %v4158 = vadd.f32 %v3472, %v4050
      %v4159 = vadd.f32 %v3473, %v4053
      %v4160 = vadd.f32 %v3474, %v4058
      %v4161 = vadd.f32 %v3475, %v4061
      %v4162 = vadd.f32 %v3476, %v4066
      %v4163 = vadd.f32 %v3477, %v4069
      %v4164 = vadd.f32 %v3478, %v4074
      %v4165 = vadd.f32 %v3479, %v4077
      %v4166 = vadd.f32 %v3480, %v4082
      %v4167 = vadd.f32 %v3481, %v4085
      %v4168 = vadd.f32 %v3482, %v4090
      %v4169 = vadd.f32 %v3483, %v4093
      %v4170 = vadd.f32 %v3484, %v4098
      %v4171 = vadd.f32 %v3485, %v4101
      %v4172 = vadd.f32 %v3486, %v4106
      %v4173 = vadd.f32 %v3487, %v4109
      %v4174 = vadd.f32 %v3488, %v4114
      %v4175 = vadd.f32 %v3489, %v4117
      %v4176 = vadd.f32 %v3490, %v4122
      %v4177 = vadd.f32 %v3491, %v4125
      %v4178 = vadd.f32 %v3492, %v4130
      %v4179 = vadd.f32 %v3493, %v4133
      %v4180 = vadd.f32 %v3494, %v4138
      %v4181 = vadd.f32 %v3495, %v4141
      %v4182 = vadd.f32 %v3496, %v4146
      %v4183 = vadd.f32 %v3497, %v4149
      %v4184 = vld [vmem:[%s3139] sm:$0xe]
      %v4185 = vld [vmem:[%s3139 + $0x14] sm:$0xe]
      %v4186 = vld [vmem:[%s3139 + $0x28] sm:$0xe]
      %v4187 = vld [vmem:[%s3139 + $0x3c] sm:$0xe]
      %v4188 = vld [vmem:[%s3139 + $0x50] sm:$0xe]
      %v4189 = vld [vmem:[%s3139 + $0x64] sm:$0xe]
      %v4190 = vld [vmem:[%s3139 + $0x78] sm:$0xe]
      %v4191 = vld [vmem:[%s3139 + $0x8c] sm:$0xe]
      %v4232 = vrot.slane %v4184, 5
      %v4233 = vrot.slane %v4232, 4
      %v4234 = vrot.slane %v3499, 5
      %v4235 = vsel %vm1243, %v4233, %v4234
      %v4236 = vrot.slane %v4234, 4
      %v4237 = vrot.slane %v3500, 5
      %v4238 = vsel %vm1243, %v4236, %v4237
      %v4239 = vrot.slane %v4237, 4
      %v4240 = vrot.slane %v3501, 5
      %v4241 = vsel %vm1243, %v4239, %v4240
      %v4242 = vrot.slane %v4240, 4
      %v4243 = vrot.slane %v3502, 5
      %v4244 = vsel %vm1243, %v4242, %v4243
      %v4245 = vrot.slane %v4185, 5
      %v4246 = vrot.slane %v4245, 4
      %v4247 = vrot.slane %v3504, 5
      %v4248 = vsel %vm1243, %v4246, %v4247
      %v4249 = vrot.slane %v4247, 4
      %v4250 = vrot.slane %v3505, 5
      %v4251 = vsel %vm1243, %v4249, %v4250
      %v4252 = vrot.slane %v4250, 4
      %v4253 = vrot.slane %v3506, 5
      %v4254 = vsel %vm1243, %v4252, %v4253
      %v4255 = vrot.slane %v4253, 4
      %v4256 = vrot.slane %v3507, 5
      %v4257 = vsel %vm1243, %v4255, %v4256
      %v4258 = vrot.slane %v4186, 5
      %v4259 = vrot.slane %v4258, 4
      %v4260 = vrot.slane %v3509, 5
      %v4261 = vsel %vm1243, %v4259, %v4260
      %v4262 = vrot.slane %v4260, 4
      %v4263 = vrot.slane %v3510, 5
      %v4264 = vsel %vm1243, %v4262, %v4263
      %v4265 = vrot.slane %v4263, 4
      %v4266 = vrot.slane %v3511, 5
      %v4267 = vsel %vm1243, %v4265, %v4266
      %v4268 = vrot.slane %v4266, 4
      %v4269 = vrot.slane %v3512, 5
      %v4270 = vsel %vm1243, %v4268, %v4269
      %v4271 = vrot.slane %v4187, 5
      %v4272 = vrot.slane %v4271, 4
      %v4273 = vrot.slane %v3514, 5
      %v4274 = vsel %vm1243, %v4272, %v4273
      %v4275 = vrot.slane %v4273, 4
      %v4276 = vrot.slane %v3515, 5
      %v4277 = vsel %vm1243, %v4275, %v4276
      %v4278 = vrot.slane %v4276, 4
      %v4279 = vrot.slane %v3516, 5
      %v4280 = vsel %vm1243, %v4278, %v4279
      %v4281 = vrot.slane %v4279, 4
      %v4282 = vrot.slane %v3517, 5
      %v4283 = vsel %vm1243, %v4281, %v4282
      %v4284 = vrot.slane %v4188, 5
      %v4285 = vrot.slane %v4284, 4
      %v4286 = vrot.slane %v3519, 5
      %v4287 = vsel %vm1243, %v4285, %v4286
      %v4288 = vrot.slane %v4286, 4
      %v4289 = vrot.slane %v3520, 5
      %v4290 = vsel %vm1243, %v4288, %v4289
      %v4291 = vrot.slane %v4289, 4
      %v4292 = vrot.slane %v3521, 5
      %v4293 = vsel %vm1243, %v4291, %v4292
      %v4294 = vrot.slane %v4292, 4
      %v4295 = vrot.slane %v3522, 5
      %v4296 = vsel %vm1243, %v4294, %v4295
      %v4297 = vrot.slane %v4189, 5
      %v4298 = vrot.slane %v4297, 4
      %v4299 = vrot.slane %v3524, 5
      %v4300 = vsel %vm1243, %v4298, %v4299
      %v4301 = vrot.slane %v4299, 4
      %v4302 = vrot.slane %v3525, 5
      %v4303 = vsel %vm1243, %v4301, %v4302
      %v4304 = vrot.slane %v4302, 4
      %v4305 = vrot.slane %v3526, 5
      %v4306 = vsel %vm1243, %v4304, %v4305
      %v4307 = vrot.slane %v4305, 4
      %v4308 = vrot.slane %v3527, 5
      %v4309 = vsel %vm1243, %v4307, %v4308
      %v4310 = vrot.slane %v4190, 5
      %v4311 = vrot.slane %v4310, 4
      %v4312 = vrot.slane %v3529, 5
      %v4313 = vsel %vm1243, %v4311, %v4312
      %v4314 = vrot.slane %v4312, 4
      %v4315 = vrot.slane %v3530, 5
      %v4316 = vsel %vm1243, %v4314, %v4315
      %v4317 = vrot.slane %v4315, 4
      %v4318 = vrot.slane %v3531, 5
      %v4319 = vsel %vm1243, %v4317, %v4318
      %v4320 = vrot.slane %v4318, 4
      %v4321 = vrot.slane %v3532, 5
      %v4322 = vsel %vm1243, %v4320, %v4321
      %v4323 = vrot.slane %v4191, 5
      %v4324 = vrot.slane %v4323, 4
      %v4325 = vrot.slane %v3534, 5
      %v4326 = vsel %vm1243, %v4324, %v4325
      %v4327 = vrot.slane %v4325, 4
      %v4328 = vrot.slane %v3535, 5
      %v4329 = vsel %vm1243, %v4327, %v4328
      %v4330 = vrot.slane %v4328, 4
      %v4331 = vrot.slane %v3536, 5
      %v4332 = vsel %vm1243, %v4330, %v4331
      %v4333 = vrot.slane %v4331, 4
      %v4334 = vrot.slane %v3537, 5
      %v4335 = vsel %vm1243, %v4333, %v4334
      %s4336 = scalar_lea.vmem %s1, 32
      %v4337 = vld [vmem:[%s4336] sm:$0xf]
      %v4338 = vunpack.c.l.b16 %v4235
      %v4339 = vunpack.c.l.b16 %v4238
      %v4340 = vunpack.c.l.b16 %v4241
      %v4341 = vunpack.c.l.b16 %v4244
      %v4342 = vunpack.c.l.b16 %v4248
      %v4343 = vunpack.c.l.b16 %v4251
      %v4344 = vunpack.c.l.b16 %v4254
      %v4345 = vunpack.c.l.b16 %v4257
      %v4346 = vunpack.c.l.b16 %v4261
      %v4347 = vunpack.c.l.b16 %v4264
      %v4348 = vunpack.c.l.b16 %v4267
      %v4349 = vunpack.c.l.b16 %v4270
      %v4350 = vunpack.c.l.b16 %v4274
      %v4351 = vunpack.c.l.b16 %v4277
      %v4352 = vunpack.c.l.b16 %v4280
      %v4353 = vunpack.c.l.b16 %v4283
      %v4354 = vunpack.c.l.b16 %v4287
      %v4355 = vunpack.c.l.b16 %v4290
      %v4356 = vunpack.c.l.b16 %v4293
      %v4357 = vunpack.c.l.b16 %v4296
      %v4358 = vunpack.c.l.b16 %v4300
      %v4359 = vunpack.c.l.b16 %v4303
      %v4360 = vunpack.c.l.b16 %v4306
      %v4361 = vunpack.c.l.b16 %v4309
      %v4362 = vunpack.c.l.b16 %v4313
      %v4363 = vunpack.c.l.b16 %v4316
      %v4364 = vunpack.c.l.b16 %v4319
      %v4365 = vunpack.c.l.b16 %v4322
      %v4366 = vunpack.c.l.b16 %v4326
      %v4367 = vunpack.c.l.b16 %v4329
      %v4368 = vunpack.c.l.b16 %v4332
      %v4369 = vunpack.c.l.b16 %v4335
      %v4370 = vpack.c.b16 %v4339, %v4338
      %v4371 = vpack.c.b16 %v4341, %v4340
      %v4372 = vpack.c.b16 %v4343, %v4342
      %v4373 = vpack.c.b16 %v4345, %v4344
      %v4374 = vpack.c.b16 %v4347, %v4346
      %v4375 = vpack.c.b16 %v4349, %v4348
      %v4376 = vpack.c.b16 %v4351, %v4350
      %v4377 = vpack.c.b16 %v4353, %v4352
      %v4378 = vpack.c.b16 %v4355, %v4354
      %v4379 = vpack.c.b16 %v4357, %v4356
      %v4380 = vpack.c.b16 %v4359, %v4358
      %v4381 = vpack.c.b16 %v4361, %v4360
      %v4382 = vpack.c.b16 %v4363, %v4362
      %v4383 = vpack.c.b16 %v4365, %v4364
      %v4384 = vpack.c.b16 %v4367, %v4366
      %v4385 = vpack.c.b16 %v4369, %v4368
      %v4387 = vsel %vm711, %v4370, 0
      %v4390 = vsel %vm711, %v4371, 0
      %v4393 = vsel %vm711, %v4372, 0
      %v4396 = vsel %vm711, %v4373, 0
      %v4399 = vsel %vm711, %v4374, 0
      %v4402 = vsel %vm711, %v4375, 0
      %v4405 = vsel %vm711, %v4376, 0
      %v4408 = vsel %vm711, %v4377, 0
      %v4411 = vsel %vm711, %v4378, 0
      %v4414 = vsel %vm711, %v4379, 0
      %v4417 = vsel %vm711, %v4380, 0
      %v4420 = vsel %vm711, %v4381, 0
      %v4423 = vsel %vm711, %v4382, 0
      %v4426 = vsel %vm711, %v4383, 0
      %v4429 = vsel %vm711, %v4384, 0
      %v4432 = vsel %vm711, %v4385, 0
      %v4435 = vsel %vm760, %v4337, 0
      %4437 = vmatprep.subr.bf16.mxu0 0
      %4438 = vmatpush1.bf16.msra.mxu0 %v4435
      %4439 = vmatprep.subr.bf16.mxu0 0
      %4440 = vmatpush1.bf16.msra.mxu0 0
      %4441 = vmatprep.subr.bf16.mxu0 0
      %4442 = vmatpush1.bf16.msra.mxu0 0
      %4443 = vmatprep.subr.bf16.mxu0 0
      %4444 = vmatpush1.bf16.msra.mxu0 0
      %4445 = vmatprep.subr.bf16.mxu0 0
      %4446 = vmatpush1.bf16.msra.mxu0 0
      %4447 = vmatprep.subr.bf16.mxu0 0
      %4448 = vmatpush1.bf16.msra.mxu0 0
      %4449 = vmatprep.subr.bf16.mxu0 0
      %4450 = vmatpush1.bf16.msra.mxu0 0
      %4451 = vmatprep.subr.bf16.mxu0 0
      %4452 = vmatpush1.bf16.msra.mxu0 0
      %4453 = vmatprep.subr.bf16.mxu0 0
      %4454 = vmatpush1.bf16.msra.mxu0 0
      %4455 = vmatprep.subr.bf16.mxu0 0
      %4456 = vmatpush1.bf16.msra.mxu0 0
      %4457 = vmatprep.subr.bf16.mxu0 0
      %4458 = vmatpush1.bf16.msra.mxu0 0
      %4459 = vmatprep.subr.bf16.mxu0 0
      %4460 = vmatpush1.bf16.msra.mxu0 0
      %4461 = vmatprep.subr.bf16.mxu0 0
      %4462 = vmatpush1.bf16.msra.mxu0 0
      %4463 = vmatprep.subr.bf16.mxu0 0
      %4464 = vmatpush1.bf16.msra.mxu0 0
      %4465 = vmatprep.subr.bf16.mxu0 0
      %4466 = vmatpush1.bf16.msra.mxu0 0
      %4467 = vmatprep.subr.bf16.mxu0 0
      %4468 = vmatpush1.bf16.msra.mxu0 0
      %4469 = vmatprep.mubr.bf16.mxu0 0
      %4470 = vmatmul.mubr.bf16.gmra.mrb[0].mxu0 %v4387
      %v4471 = vpop.f32.mrb[0].mxu0
      %v4472 = vadd.f32 0.0, %v4471
      %v4473 = vpop.f32.mrb[0].mxu0
      %v4474 = vpop.f32.mrb[0].mxu0
      %v4475 = vadd.f32 0.0, %v4474
      %v4476 = vpop.f32.mrb[0].mxu0
      %4477 = vmatprep.mubr.bf16.mxu0 0
      %4478 = vmatmul.mubr.bf16.gmra.mrb[0].mxu0 %v4390
      %v4479 = vpop.f32.mrb[0].mxu0
      %v4480 = vadd.f32 0.0, %v4479
      %v4481 = vpop.f32.mrb[0].mxu0
      %v4482 = vpop.f32.mrb[0].mxu0
      %v4483 = vadd.f32 0.0, %v4482
      %v4484 = vpop.f32.mrb[0].mxu0
      %4485 = vmatprep.mubr.bf16.mxu0 0
      %4486 = vmatmul.mubr.bf16.gmra.mrb[0].mxu0 %v4393
      %v4487 = vpop.f32.mrb[0].mxu0
      %v4488 = vadd.f32 0.0, %v4487
      %v4489 = vpop.f32.mrb[0].mxu0
      %v4490 = vpop.f32.mrb[0].mxu0
      %v4491 = vadd.f32 0.0, %v4490
      %v4492 = vpop.f32.mrb[0].mxu0
      %4493 = vmatprep.mubr.bf16.mxu0 0
      %4494 = vmatmul.mubr.bf16.gmra.mrb[0].mxu0 %v4396
      %v4495 = vpop.f32.mrb[0].mxu0
      %v4496 = vadd.f32 0.0, %v4495
      %v4497 = vpop.f32.mrb[0].mxu0
      %v4498 = vpop.f32.mrb[0].mxu0
      %v4499 = vadd.f32 0.0, %v4498
      %v4500 = vpop.f32.mrb[0].mxu0
      %4501 = vmatprep.mubr.bf16.mxu0 0
      %4502 = vmatmul.mubr.bf16.gmra.mrb[0].mxu0 %v4399
      %v4503 = vpop.f32.mrb[0].mxu0
      %v4504 = vadd.f32 0.0, %v4503
      %v4505 = vpop.f32.mrb[0].mxu0
      %v4506 = vpop.f32.mrb[0].mxu0
      %v4507 = vadd.f32 0.0, %v4506
      %v4508 = vpop.f32.mrb[0].mxu0
      %4509 = vmatprep.mubr.bf16.mxu0 0
      %4510 = vmatmul.mubr.bf16.gmra.mrb[0].mxu0 %v4402
      %v4511 = vpop.f32.mrb[0].mxu0
      %v4512 = vadd.f32 0.0, %v4511
      %v4513 = vpop.f32.mrb[0].mxu0
      %v4514 = vpop.f32.mrb[0].mxu0
      %v4515 = vadd.f32 0.0, %v4514
      %v4516 = vpop.f32.mrb[0].mxu0
      %4517 = vmatprep.mubr.bf16.mxu0 0
      %4518 = vmatmul.mubr.bf16.gmra.mrb[0].mxu0 %v4405
      %v4519 = vpop.f32.mrb[0].mxu0
      %v4520 = vadd.f32 0.0, %v4519
      %v4521 = vpop.f32.mrb[0].mxu0
      %v4522 = vpop.f32.mrb[0].mxu0
      %v4523 = vadd.f32 0.0, %v4522
      %v4524 = vpop.f32.mrb[0].mxu0
      %4525 = vmatprep.mubr.bf16.mxu0 0
      %4526 = vmatmul.mubr.bf16.gmra.mrb[0].mxu0 %v4408
      %v4527 = vpop.f32.mrb[0].mxu0
      %v4528 = vadd.f32 0.0, %v4527
      %v4529 = vpop.f32.mrb[0].mxu0
      %v4530 = vpop.f32.mrb[0].mxu0
      %v4531 = vadd.f32 0.0, %v4530
      %v4532 = vpop.f32.mrb[0].mxu0
      %4533 = vmatprep.mubr.bf16.mxu0 0
      %4534 = vmatmul.mubr.bf16.gmra.mrb[0].mxu0 %v4411
      %v4535 = vpop.f32.mrb[0].mxu0
      %v4536 = vadd.f32 0.0, %v4535
      %v4537 = vpop.f32.mrb[0].mxu0
      %v4538 = vpop.f32.mrb[0].mxu0
      %v4539 = vadd.f32 0.0, %v4538
      %v4540 = vpop.f32.mrb[0].mxu0
      %4541 = vmatprep.mubr.bf16.mxu0 0
      %4542 = vmatmul.mubr.bf16.gmra.mrb[0].mxu0 %v4414
      %v4543 = vpop.f32.mrb[0].mxu0
      %v4544 = vadd.f32 0.0, %v4543
      %v4545 = vpop.f32.mrb[0].mxu0
      %v4546 = vpop.f32.mrb[0].mxu0
      %v4547 = vadd.f32 0.0, %v4546
      %v4548 = vpop.f32.mrb[0].mxu0
      %4549 = vmatprep.mubr.bf16.mxu0 0
      %4550 = vmatmul.mubr.bf16.gmra.mrb[0].mxu0 %v4417
      %v4551 = vpop.f32.mrb[0].mxu0
      %v4552 = vadd.f32 0.0, %v4551
      %v4553 = vpop.f32.mrb[0].mxu0
      %v4554 = vpop.f32.mrb[0].mxu0
      %v4555 = vadd.f32 0.0, %v4554
      %v4556 = vpop.f32.mrb[0].mxu0
      %4557 = vmatprep.mubr.bf16.mxu0 0
      %4558 = vmatmul.mubr.bf16.gmra.mrb[0].mxu0 %v4420
      %v4559 = vpop.f32.mrb[0].mxu0
      %v4560 = vadd.f32 0.0, %v4559
      %v4561 = vpop.f32.mrb[0].mxu0
      %v4562 = vpop.f32.mrb[0].mxu0
      %v4563 = vadd.f32 0.0, %v4562
      %v4564 = vpop.f32.mrb[0].mxu0
      %4565 = vmatprep.mubr.bf16.mxu0 0
      %4566 = vmatmul.mubr.bf16.gmra.mrb[0].mxu0 %v4423
      %v4567 = vpop.f32.mrb[0].mxu0
      %v4568 = vadd.f32 0.0, %v4567
      %v4569 = vpop.f32.mrb[0].mxu0
      %v4570 = vpop.f32.mrb[0].mxu0
      %v4571 = vadd.f32 0.0, %v4570
      %v4572 = vpop.f32.mrb[0].mxu0
      %4573 = vmatprep.mubr.bf16.mxu0 0
      %4574 = vmatmul.mubr.bf16.gmra.mrb[0].mxu0 %v4426
      %v4575 = vpop.f32.mrb[0].mxu0
      %v4576 = vadd.f32 0.0, %v4575
      %v4577 = vpop.f32.mrb[0].mxu0
      %v4578 = vpop.f32.mrb[0].mxu0
      %v4579 = vadd.f32 0.0, %v4578
      %v4580 = vpop.f32.mrb[0].mxu0
      %4581 = vmatprep.mubr.bf16.mxu0 0
      %4582 = vmatmul.mubr.bf16.gmra.mrb[0].mxu0 %v4429
      %v4583 = vpop.f32.mrb[0].mxu0
      %v4584 = vadd.f32 0.0, %v4583
      %v4585 = vpop.f32.mrb[0].mxu0
      %v4586 = vpop.f32.mrb[0].mxu0
      %v4587 = vadd.f32 0.0, %v4586
      %v4588 = vpop.f32.mrb[0].mxu0
      %4589 = vmatprep.mubr.bf16.mxu0 0
      %4590 = vmatmul.mubr.bf16.gmra.mrb[0].mxu0 %v4432
      %v4591 = vpop.f32.mrb[0].mxu0
      %v4592 = vadd.f32 0.0, %v4591
      %v4593 = vpop.f32.mrb[0].mxu0
      %v4594 = vpop.f32.mrb[0].mxu0
      %v4595 = vadd.f32 0.0, %v4594
      %v4596 = vpop.f32.mrb[0].mxu0
      %4597 = vdwg.mxu0
      %v4598 = vadd.f32 %v4152, %v4472
      %v4599 = vadd.f32 %v4153, %v4475
      %v4600 = vadd.f32 %v4154, %v4480
      %v4601 = vadd.f32 %v4155, %v4483
      %v4602 = vadd.f32 %v4156, %v4488
      %v4603 = vadd.f32 %v4157, %v4491
      %v4604 = vadd.f32 %v4158, %v4496
      %v4605 = vadd.f32 %v4159, %v4499
      %v4606 = vadd.f32 %v4160, %v4504
      %v4607 = vadd.f32 %v4161, %v4507
      %v4608 = vadd.f32 %v4162, %v4512
      %v4609 = vadd.f32 %v4163, %v4515
      %v4610 = vadd.f32 %v4164, %v4520
      %v4611 = vadd.f32 %v4165, %v4523
      %v4612 = vadd.f32 %v4166, %v4528
      %v4613 = vadd.f32 %v4167, %v4531
      %v4614 = vadd.f32 %v4168, %v4536
      %v4615 = vadd.f32 %v4169, %v4539
      %v4616 = vadd.f32 %v4170, %v4544
      %v4617 = vadd.f32 %v4171, %v4547
      %v4618 = vadd.f32 %v4172, %v4552
      %v4619 = vadd.f32 %v4173, %v4555
      %v4620 = vadd.f32 %v4174, %v4560
      %v4621 = vadd.f32 %v4175, %v4563
      %v4622 = vadd.f32 %v4176, %v4568
      %v4623 = vadd.f32 %v4177, %v4571
      %v4624 = vadd.f32 %v4178, %v4576
      %v4625 = vadd.f32 %v4179, %v4579
      %v4626 = vadd.f32 %v4180, %v4584
      %v4627 = vadd.f32 %v4181, %v4587
      %v4628 = vadd.f32 %v4182, %v4592
      %v4629 = vadd.f32 %v4183, %v4595
      %v4630 = vpack.c.bf16 %v4599, %v4598
      %v4631 = vpack.c.bf16 %v4601, %v4600
      %v4632 = vpack.c.bf16 %v4603, %v4602
      %v4633 = vpack.c.bf16 %v4605, %v4604
      %v4634 = vpack.c.bf16 %v4607, %v4606
      %v4635 = vpack.c.bf16 %v4609, %v4608
      %v4636 = vpack.c.bf16 %v4611, %v4610
      %v4637 = vpack.c.bf16 %v4613, %v4612
      %v4638 = vpack.c.bf16 %v4615, %v4614
      %v4639 = vpack.c.bf16 %v4617, %v4616
      %v4640 = vpack.c.bf16 %v4619, %v4618
      %v4641 = vpack.c.bf16 %v4621, %v4620
      %v4642 = vpack.c.bf16 %v4623, %v4622
      %v4643 = vpack.c.bf16 %v4625, %v4624
      %v4644 = vpack.c.bf16 %v4627, %v4626
      %v4645 = vpack.c.bf16 %v4629, %v4628
      %v4662 = vunpack.c.l.b16 %v4630
      %v4663 = vunpack.c.h.b16 %v4630
      %v4664 = vunpack.c.l.b16 %v4631
      %v4665 = vunpack.c.h.b16 %v4631
      %v4666 = vunpack.c.l.b16 %v4632
      %v4667 = vunpack.c.h.b16 %v4632
      %v4668 = vunpack.c.l.b16 %v4633
      %v4669 = vunpack.c.h.b16 %v4633
      %v4670 = vunpack.c.l.b16 %v4634
      %v4671 = vunpack.c.h.b16 %v4634
      %v4672 = vunpack.c.l.b16 %v4635
      %v4673 = vunpack.c.h.b16 %v4635
      %v4674 = vunpack.c.l.b16 %v4636
      %v4675 = vunpack.c.h.b16 %v4636
      %v4676 = vunpack.c.l.b16 %v4637
      %v4677 = vunpack.c.h.b16 %v4637
      %v4678 = vunpack.c.l.b16 %v4638
      %v4679 = vunpack.c.h.b16 %v4638
      %v4680 = vunpack.c.l.b16 %v4639
      %v4681 = vunpack.c.h.b16 %v4639
      %v4682 = vunpack.c.l.b16 %v4640
      %v4683 = vunpack.c.h.b16 %v4640
      %v4684 = vunpack.c.l.b16 %v4641
      %v4685 = vunpack.c.h.b16 %v4641
      %v4686 = vunpack.c.l.b16 %v4642
      %v4687 = vunpack.c.h.b16 %v4642
      %v4688 = vunpack.c.l.b16 %v4643
      %v4689 = vunpack.c.h.b16 %v4643
      %v4690 = vunpack.c.l.b16 %v4644
      %v4691 = vunpack.c.h.b16 %v4644
      %v4692 = vunpack.c.l.b16 %v4645
      %v4693 = vunpack.c.h.b16 %v4645
      %v4694 = vpack.c.b16 %v4662, %v4662
      %v4695 = vpack.c.b16 %v4663, %v4663
      %v4696 = vpack.c.b16 %v4664, %v4664
      %v4697 = vpack.c.b16 %v4665, %v4665
      %v4698 = vpack.c.b16 %v4666, %v4666
      %v4699 = vpack.c.b16 %v4667, %v4667
      %v4700 = vpack.c.b16 %v4668, %v4668
      %v4701 = vpack.c.b16 %v4669, %v4669
      %v4702 = vpack.c.b16 %v4670, %v4670
      %v4703 = vpack.c.b16 %v4671, %v4671
      %v4704 = vpack.c.b16 %v4672, %v4672
      %v4705 = vpack.c.b16 %v4673, %v4673
      %v4706 = vpack.c.b16 %v4674, %v4674
      %v4707 = vpack.c.b16 %v4675, %v4675
      %v4708 = vpack.c.b16 %v4676, %v4676
      %v4709 = vpack.c.b16 %v4677, %v4677
      %v4710 = vpack.c.b16 %v4678, %v4678
      %v4711 = vpack.c.b16 %v4679, %v4679
      %v4712 = vpack.c.b16 %v4680, %v4680
      %v4713 = vpack.c.b16 %v4681, %v4681
      %v4714 = vpack.c.b16 %v4682, %v4682
      %v4715 = vpack.c.b16 %v4683, %v4683
      %v4716 = vpack.c.b16 %v4684, %v4684
      %v4717 = vpack.c.b16 %v4685, %v4685
      %v4718 = vpack.c.b16 %v4686, %v4686
      %v4719 = vpack.c.b16 %v4687, %v4687
      %v4720 = vpack.c.b16 %v4688, %v4688
      %v4721 = vpack.c.b16 %v4689, %v4689
      %v4722 = vpack.c.b16 %v4690, %v4690
      %v4723 = vpack.c.b16 %v4691, %v4691
      %v4724 = vpack.c.b16 %v4692, %v4692
      %v4725 = vpack.c.b16 %v4693, %v4693
      %4758 = vst [vmem:[%s244] sm:$0xf] %v4694
      %4759 = vst [vmem:[%s244 + $0x4] sm:$0xf] %v4695
      %4760 = vst [vmem:[%s244 + $0x8] sm:$0xf] %v4696
      %4761 = vst [vmem:[%s244 + $0xc] sm:$0xf] %v4697
      %4762 = vst [vmem:[%s244 + $0x10] sm:$0xf] %v4698
      %4763 = vst [vmem:[%s244 + $0x14] sm:$0xf] %v4699
      %4764 = vst [vmem:[%s244 + $0x18] sm:$0xf] %v4700
      %4765 = vst [vmem:[%s244 + $0x1c] sm:$0xf] %v4701
      %4766 = vst [vmem:[%s244 + $0x20] sm:$0xf] %v4702
      %4767 = vst [vmem:[%s244 + $0x24] sm:$0xf] %v4703
      %4768 = vst [vmem:[%s244 + $0x28] sm:$0xf] %v4704
      %4769 = vst [vmem:[%s244 + $0x2c] sm:$0xf] %v4705
      %4770 = vst [vmem:[%s244 + $0x30] sm:$0xf] %v4706
      %4771 = vst [vmem:[%s244 + $0x34] sm:$0xf] %v4707
      %4772 = vst [vmem:[%s244 + $0x38] sm:$0xf] %v4708
      %4773 = vst [vmem:[%s244 + $0x3c] sm:$0xf] %v4709
      %4774 = vst [vmem:[%s244 + $0x40] sm:$0xf] %v4710
      %4775 = vst [vmem:[%s244 + $0x44] sm:$0xf] %v4711
      %4776 = vst [vmem:[%s244 + $0x48] sm:$0xf] %v4712
      %4777 = vst [vmem:[%s244 + $0x4c] sm:$0xf] %v4713
      %4778 = vst [vmem:[%s244 + $0x50] sm:$0xf] %v4714
      %4779 = vst [vmem:[%s244 + $0x54] sm:$0xf] %v4715
      %4780 = vst [vmem:[%s244 + $0x58] sm:$0xf] %v4716
      %4781 = vst [vmem:[%s244 + $0x5c] sm:$0xf] %v4717
      %4782 = vst [vmem:[%s244 + $0x60] sm:$0xf] %v4718
      %4783 = vst [vmem:[%s244 + $0x64] sm:$0xf] %v4719
      %4784 = vst [vmem:[%s244 + $0x68] sm:$0xf] %v4720
      %4785 = vst [vmem:[%s244 + $0x6c] sm:$0xf] %v4721
      %4786 = vst [vmem:[%s244 + $0x70] sm:$0xf] %v4722
      %4787 = vst [vmem:[%s244 + $0x74] sm:$0xf] %v4723
      %4788 = vst [vmem:[%s244 + $0x78] sm:$0xf] %v4724
      %4789 = vst [vmem:[%s244 + $0x7c] sm:$0xf] %v4725
      %v4790 = vadd.f32 %v4598, %v4599
      %v4791 = vadd.f32 %v4790, %v4600
      %v4792 = vadd.f32 %v4791, %v4601
      %v4793 = vadd.f32 %v4792, %v4602
      %v4794 = vadd.f32 %v4793, %v4603
      %v4795 = vadd.f32 %v4794, %v4604
      %v4796 = vadd.f32 %v4795, %v4605
      %v4797 = vadd.f32 %v4796, %v4606
      %v4798 = vadd.f32 %v4797, %v4607
      %v4799 = vadd.f32 %v4798, %v4608
      %v4800 = vadd.f32 %v4799, %v4609
      %v4801 = vadd.f32 %v4800, %v4610
      %v4802 = vadd.f32 %v4801, %v4611
      %v4803 = vadd.f32 %v4802, %v4612
      %v4804 = vadd.f32 %v4803, %v4613
      %v4805 = vadd.f32 %v4804, %v4614
      %v4806 = vadd.f32 %v4805, %v4615
      %v4807 = vadd.f32 %v4806, %v4616
      %v4808 = vadd.f32 %v4807, %v4617
      %v4809 = vadd.f32 %v4808, %v4618
      %v4810 = vadd.f32 %v4809, %v4619
      %v4811 = vadd.f32 %v4810, %v4620
      %v4812 = vadd.f32 %v4811, %v4621
      %v4813 = vadd.f32 %v4812, %v4622
      %v4814 = vadd.f32 %v4813, %v4623
      %v4815 = vadd.f32 %v4814, %v4624
      %v4816 = vadd.f32 %v4815, %v4625
      %v4817 = vadd.f32 %v4816, %v4626
      %v4818 = vadd.f32 %v4817, %v4627
      %v4819 = vadd.f32 %v4818, %v4628
      %v4820 = vadd.f32 %v4819, %v4629
      %v4821 = vrot.slane %v4820, 4
      %v4822 = vadd.f32 %v4820, %v4821
      %v4823 = vrot.slane %v4822, 2
      %v4824 = vadd.f32 %v4822, %v4823
      %v4825 = vrot.slane %v4824, 1
      %v4826 = vadd.f32 %v4824, %v4825
      %4827 = vst [vmem:[%s252] sm:$0x1] %v4826
      %v4828 = vmul.f32 %v4598, %v4598
      %v4829 = vmul.f32 %v4599, %v4599
      %v4830 = vmul.f32 %v4600, %v4600
      %v4831 = vmul.f32 %v4601, %v4601
      %v4832 = vmul.f32 %v4602, %v4602
      %v4833 = vmul.f32 %v4603, %v4603
      %v4834 = vmul.f32 %v4604, %v4604
      %v4835 = vmul.f32 %v4605, %v4605
      %v4836 = vmul.f32 %v4606, %v4606
      %v4837 = vmul.f32 %v4607, %v4607
      %v4838 = vmul.f32 %v4608, %v4608
      %v4839 = vmul.f32 %v4609, %v4609
      %v4840 = vmul.f32 %v4610, %v4610
      %v4841 = vmul.f32 %v4611, %v4611
      %v4842 = vmul.f32 %v4612, %v4612
      %v4843 = vmul.f32 %v4613, %v4613
      %v4844 = vmul.f32 %v4614, %v4614
      %v4845 = vmul.f32 %v4615, %v4615
      %v4846 = vmul.f32 %v4616, %v4616
      %v4847 = vmul.f32 %v4617, %v4617
      %v4848 = vmul.f32 %v4618, %v4618
      %v4849 = vmul.f32 %v4619, %v4619
      %v4850 = vmul.f32 %v4620, %v4620
      %v4851 = vmul.f32 %v4621, %v4621
      %v4852 = vmul.f32 %v4622, %v4622
      %v4853 = vmul.f32 %v4623, %v4623
      %v4854 = vmul.f32 %v4624, %v4624
      %v4855 = vmul.f32 %v4625, %v4625
      %v4856 = vmul.f32 %v4626, %v4626
      %v4857 = vmul.f32 %v4627, %v4627
      %v4858 = vmul.f32 %v4628, %v4628
      %v4859 = vmul.f32 %v4629, %v4629
      %v4860 = vadd.f32 %v4828, %v4829
      %v4861 = vadd.f32 %v4860, %v4830
      %v4862 = vadd.f32 %v4861, %v4831
      %v4863 = vadd.f32 %v4862, %v4832
      %v4864 = vadd.f32 %v4863, %v4833
      %v4865 = vadd.f32 %v4864, %v4834
      %v4866 = vadd.f32 %v4865, %v4835
      %v4867 = vadd.f32 %v4866, %v4836
      %v4868 = vadd.f32 %v4867, %v4837
      %v4869 = vadd.f32 %v4868, %v4838
      %v4870 = vadd.f32 %v4869, %v4839
      %v4871 = vadd.f32 %v4870, %v4840
      %v4872 = vadd.f32 %v4871, %v4841
      %v4873 = vadd.f32 %v4872, %v4842
      %v4874 = vadd.f32 %v4873, %v4843
      %v4875 = vadd.f32 %v4874, %v4844
      %v4876 = vadd.f32 %v4875, %v4845
      %v4877 = vadd.f32 %v4876, %v4846
      %v4878 = vadd.f32 %v4877, %v4847
      %v4879 = vadd.f32 %v4878, %v4848
      %v4880 = vadd.f32 %v4879, %v4849
      %v4881 = vadd.f32 %v4880, %v4850
      %v4882 = vadd.f32 %v4881, %v4851
      %v4883 = vadd.f32 %v4882, %v4852
      %v4884 = vadd.f32 %v4883, %v4853
      %v4885 = vadd.f32 %v4884, %v4854
      %v4886 = vadd.f32 %v4885, %v4855
      %v4887 = vadd.f32 %v4886, %v4856
      %v4888 = vadd.f32 %v4887, %v4857
      %v4889 = vadd.f32 %v4888, %v4858
      %v4890 = vadd.f32 %v4889, %v4859
      %v4891 = vrot.slane %v4890, 4
      %v4892 = vadd.f32 %v4890, %v4891
      %v4893 = vrot.slane %v4892, 2
      %v4894 = vadd.f32 %v4892, %v4893
      %v4895 = vrot.slane %v4894, 1
      %v4896 = vadd.f32 %v4894, %v4895
      %4897 = vst [vmem:[%s259] sm:$0x1] %v4896
      %s4898 = smul.u32 8, %s21
      %p4899 = scmp.lt.s32.totalorder %s20, 1
      %s4900 = scalar_select %p4899, %s20, 1
      %p4901 = scmp.lt.s32.totalorder %s4898, 31
      %s4902 = scalar_select %p4901, %s4898, 31
      %s4903 = smul.addr %s4902, 4
      %s4904 = smul.addr %s4900, 128
      %s4905 = sadd.s32 %s4903, %s4904
      %s4906 = smul.addr %s4905, 4
      %s4907 = scalar_lea.vmem %s2, %s4906
      %p4908 = scmp.lt.s32.totalorder %s20, 1
      %s4909 = scalar_select %p4908, %s20, 1
      %p4910 = scmp.lt.s32.totalorder %s21, 3
      %s4911 = scalar_select %p4910, %s21, 3
      %s4912 = smul.addr %s4909, 4
      %s4913 = sadd.s32 %s4911, %s4912
      %s4914 = scalar_lea.vmem %s3, %s4913
      %p4915 = scmp.lt.s32.totalorder %s20, 1
      %s4916 = scalar_select %p4915, %s20, 1
      %p4917 = scmp.lt.s32.totalorder %s21, 3
      %s4918 = scalar_select %p4917, %s21, 3
      %s4919 = smul.addr %s4916, 4
      %s4920 = sadd.s32 %s4918, %s4919
      %s4921 = scalar_lea.vmem %s4, %s4920
      // Predicated region
      $region29: #{upsampling_forward.3} parent=27 // pred_check
        %p4922 = pneg %p95
      $region30: #{upsampling_forward.3} parent=27 // pred_check_branch
        %4924 = sbr.rel (%p4922) target = $region32
      $region31: #{upsampling_forward.3} parent=27 // pred_region
        %s4925 = smul.u32 8, %s21
      $region32: #{upsampling_forward.3} parent=27 // pred_fallthru
        _
      // Predicated region
      $region33: #{upsampling_forward.3} parent=27 // pred_check
        %p4926 = pneg %p123
      $region34: #{upsampling_forward.3} parent=27 // pred_check_branch
        %4928 = sbr.rel (%p4926) target = $region36
      $region35: #{upsampling_forward.3} parent=27 // pred_region
        _
      $region36: #{upsampling_forward.3} parent=27 // pred_fallthru
        _
      // Predicated region
      $region37: #{upsampling_forward.3} parent=27 // pred_check
        %p4929 = pneg %p151
      $region38: #{upsampling_forward.3} parent=27 // pred_check_branch
        %4931 = sbr.rel (%p4929) target = $region40
      $region39: #{upsampling_forward.3} parent=27 // pred_region
        _
      $region40: #{upsampling_forward.3} parent=27 // pred_fallthru
        _
    $region28: #{upsampling_forward.3} parent=5 // pred_fallthru
      _
    %p4932 = scmp.le.s32.totalorder 2, %s11
    // Predicated region
    $region41: #{upsampling_forward.3} parent=5 // pred_check
      %p4933 = pneg %p4932
    $region42: #{upsampling_forward.3} parent=5 // pred_check_branch
      %4935 = sbr.rel (%p4933) target = $region44
    $region43: #{upsampling_forward.3} parent=5 // pred_region
      %s4936 = ssub.s32 %s11, 2
      // Predicated region
      $region45: #{upsampling_forward.3} parent=43 // pred_check
        %p4937 = pneg %p101
      $region46: #{upsampling_forward.3} parent=43 // pred_check_branch
        %4939 = sbr.rel (%p4937) target = $region48
      $region47: #{upsampling_forward.3} parent=43 // pred_region
        %s4940 = smul.u32 8, %s23
        %p4941 = scmp.lt.s32.totalorder %s22, 1
        %s4942 = scalar_select %p4941, %s22, 1
        %p4943 = scmp.lt.s32.totalorder %s4940, 31
        %s4944 = scalar_select %p4943, %s4940, 31
        %s4945 = smul.addr %s4944, 4
        %s4946 = smul.addr %s4942, 128
        %s4947 = sadd.s32 %s4945, %s4946
        %s4948 = smul.addr %s4947, 4
        %s4949 = scalar_lea.vmem %s2, %s4948
      $region48: #{upsampling_forward.3} parent=43 // pred_fallthru
        _
      // Predicated region
      $region49: #{upsampling_forward.3} parent=43 // pred_check
        %p4950 = pneg %p129
      $region50: #{upsampling_forward.3} parent=43 // pred_check_branch
        %4952 = sbr.rel (%p4950) target = $region52
      $region51: #{upsampling_forward.3} parent=43 // pred_region
        %p4953 = scmp.lt.s32.totalorder %s22, 1
        %s4954 = scalar_select %p4953, %s22, 1
        %p4955 = scmp.lt.s32.totalorder %s23, 3
        %s4956 = scalar_select %p4955, %s23, 3
        %s4957 = smul.addr %s4954, 4
        %s4958 = sadd.s32 %s4956, %s4957
        %s4959 = scalar_lea.vmem %s3, %s4958
      $region52: #{upsampling_forward.3} parent=43 // pred_fallthru
        _
      // Predicated region
      $region53: #{upsampling_forward.3} parent=43 // pred_check
        %p4960 = pneg %p157
      $region54: #{upsampling_forward.3} parent=43 // pred_check_branch
        %4962 = sbr.rel (%p4960) target = $region56
      $region55: #{upsampling_forward.3} parent=43 // pred_region
        %p4963 = scmp.lt.s32.totalorder %s22, 1
        %s4964 = scalar_select %p4963, %s22, 1
        %p4965 = scmp.lt.s32.totalorder %s23, 3
        %s4966 = scalar_select %p4965, %s23, 3
        %s4967 = smul.addr %s4964, 4
        %s4968 = sadd.s32 %s4966, %s4967
        %s4969 = scalar_lea.vmem %s4, %s4968
      $region56: #{upsampling_forward.3} parent=43 // pred_fallthru
        _
    $region44: #{upsampling_forward.3} parent=5 // pred_fallthru
      _
  $region6: #{upsampling_forward.3} parent=0 // loop_footer
    %s15 = sadd.s32 1, %s11
  $region7: #{upsampling_forward.3} parent=0 // loop_footer_branch
    %10 = sbr.rel target = $region3
  $region8: #{upsampling_forward.3} parent=0 // loop_exit
    _

</llo_original>
